<compile_context>
chip_gen: v6e
topology: v6e:2x2x1
jax: 0.10.0
libtpu: 0.0.40
codegen_flags: <defaults>
</compile_context>

<pallas_src>
import functools

import jax
import jax.numpy as jnp
from jax.experimental import pallas as pl
from jax.experimental.pallas import tpu as pltpu

VSPEC = pl.BlockSpec(memory_space=pltpu.MemorySpace.VMEM)
LN_EPS = 1e-5        # PyTorch LayerNorm default
NEG_INF = -1e9       # additive key-padding mask value
# TODO(synk): PyTorch uses -inf for memory_key_padding_mask (NaN rows if every
# memory position is masked); -1e9 differs only in that degenerate case.


# --------------------------- packed parameter layout --------------------------

class _Layout:
    """Static column layout of a packed parameter slab (trace-time only)."""

    def __init__(self):
        self.off = {}
        self.order = []
        self.size = 0

    def add(self, name, width):
        self.off[name] = (self.size, width)
        self.order.append(name)
        self.size += width

    def slc(self, name):
        o, w = self.off[name]
        return slice(o, o + w)


def make_layouts(D, dff, E):
    wd = _Layout()                      # (D, .) weights, dff-wide blocks first (128-aligned)
    for n, w in [("enc_ff_w1", dff), ("dec_ff_w1", dff),
                 ("enc_w_qkv", 3 * D), ("enc_w_o", D),
                 ("mg_wv", D), ("mg_wu", D), ("mg_ww", 2),
                 ("dec_sa_w_qkv", 3 * D), ("dec_sa_w_o", D),
                 ("dec_ca_w_q", D), ("dec_ca_w_kv", 2 * D), ("dec_ca_w_o", D),
                 ("proj_w", E)]:
        wd.add(n, w)

    wf = _Layout()                      # (dff, .) weights
    for n, w in [("enc_ff_w2", D), ("dec_ff_w2", D)]:
        wf.add(n, w)

    vec = _Layout()                     # (1, .) biases / LayerNorm params
    for n, w in [("enc_ff_b1", dff), ("dec_ff_b1", dff),
                 ("enc_b_qkv", 3 * D), ("enc_b_o", D),
                 ("enc_ln1_g", D), ("enc_ln1_b", D),
                 ("enc_ff_b2", D), ("enc_ln2_g", D), ("enc_ln2_b", D),
                 ("mg_bv", D), ("mg_bu", D), ("mg_bw", 2),
                 ("dec_b_qkv", 3 * D), ("dec_b_o", D),
                 ("dec_ln1_g", D), ("dec_ln1_b", D),
                 ("dec_cb_q", D), ("dec_cb_kv", 2 * D), ("dec_cb_o", D),
                 ("dec_ln2_g", D), ("dec_ln2_b", D),
                 ("dec_ff_b2", D), ("dec_ln3_g", D), ("dec_ln3_b", D),
                 ("proj_b", E)]:
        vec.add(n, w)
    return wd, wf, vec


# ------------------------- in-kernel building blocks ------------------------

def _mha(q, k, v, nhead, bias=None):
    """Batched all-heads multi-head attention (f32).

    q: (Bq, Lq, D) with Bq in {1, Bk}; k, v: (Bk, Lk, D);
    bias: optional (1, Bk, 1, Lk) additive key-padding bias.
    Heads are moved to the leading batch dim with static lane slices + a
    leading-dim concat, then a single batched einsum per phase feeds the MXU.
    Returns (Bk, Lq, D).
    """
    Bq, Lq, D = q.shape
    Bk, Lk, _ = k.shape
    Dh = D // nhead
    scale = 1.0 / float(Dh) ** 0.5

    def split_heads(t):                 # (Bt, Lt, D) -> (nhead*Bt, Lt, Dh), head-major
        return jnp.concatenate(
            [t[:, :, h * Dh:(h + 1) * Dh] for h in range(nhead)], axis=0)

    qh, kh, vh = split_heads(q), split_heads(k), split_heads(v)
    if Bq != Bk:                        # shared queries -> replicate per key batch
        qh = jnp.broadcast_to(qh[:, None], (nhead, Bk, Lq, Dh)
                              ).reshape(nhead * Bk, Lq, Dh)

    s = jnp.einsum("bqd,bkd->bqk", qh, kh,
                   preferred_element_type=jnp.float32) * scale
    if bias is not None:                # broadcast over heads / queries, no relayout
        s = (s.reshape(nhead, Bk, Lq, Lk) + bias).reshape(nhead * Bk, Lq, Lk)
    s = s - jnp.max(s, axis=-1, keepdims=True)
    p = jnp.exp(s)
    p = p / jnp.sum(p, axis=-1, keepdims=True)               # exact division
    o = jnp.einsum("bqk,bkd->bqd", p, vh, preferred_element_type=jnp.float32)
    # merge heads back into lanes: (nhead*Bk, Lq, Dh) -> (Bk, Lq, D)
    return jnp.concatenate([o[h * Bk:(h + 1) * Bk] for h in range(nhead)], axis=-1)


# ------------------------------ fused kernel -------------------------------

def _fused_kernel(x_ref, pe_ref, tgt_ref, wd_ref, wf_ref, vec_ref, out_ref, *,
                  nhead, wd_l, wf_l, vec_l):
    B, L, D = x_ref.shape
    T = tgt_ref.shape[1]

    def W(n):                           # slice of the (D, .) weight slab
        return wd_ref[:, wd_l.slc(n)]

    def WF(n):                          # slice of the (dff, .) weight slab
        return wf_ref[:, wf_l.slc(n)]

    def V(n):                           # slice of the (1, .) bias / LN slab
        return vec_ref[:, vec_l.slc(n)]

    def dense(x, w, b, act=None):
        y = jnp.dot(x, w, preferred_element_type=jnp.float32) + b
        return jnp.maximum(y, 0.0) if act == "relu" else y

    def add_ln(x, y, g, b):             # LayerNorm(x + y), f32 statistics
        z = x + y
        mu = jnp.mean(z, axis=-1, keepdims=True)
        var = jnp.mean(jnp.square(z - mu), axis=-1, keepdims=True)
        return (z - mu) * jax.lax.rsqrt(var + LN_EPS) * g + b

    # ---- TransformerEncoderLayer (post-norm, eval / no dropout) ----
    x = (x_ref[...] + pe_ref[...]).reshape(B * L, D)          # flattened (B*L, D)
    qkv = dense(x, W("enc_w_qkv"), V("enc_b_qkv"))            # fused QKV (B*L, 3D)
    sa = _mha(qkv[:, 0:D].reshape(B, L, D),
              qkv[:, D:2 * D].reshape(B, L, D),
              qkv[:, 2 * D:3 * D].reshape(B, L, D), nhead).reshape(B * L, D)
    sa = dense(sa, W("enc_w_o"), V("enc_b_o"))
    x = add_ln(x, sa, V("enc_ln1_g"), V("enc_ln1_b"))
    h = dense(x, W("enc_ff_w1"), V("enc_ff_b1"), act="relu")
    h = dense(h, WF("enc_ff_w2"), V("enc_ff_b2"))
    x = add_ln(x, h, V("enc_ln2_g"), V("enc_ln2_b"))          # encoder out (B*L, D)

    # ---- global-balance mask generator (fused epilogue) ----
    # TODO(synk): MutuallyExclusiveGatedAttentionGlobalBalanceMask source was not
    # provided; reconstructed as gated attention (tanh * sigmoid) -> 2-way logits
    # -> mean over batch (global) -> softmax over {pos, neg} (mutually exclusive).
    hv = jnp.tanh(dense(x, W("mg_wv"), V("mg_bv")))
    hu = jax.nn.sigmoid(dense(x, W("mg_wu"), V("mg_bu")))
    logits = dense(hv * hu, W("mg_ww"), V("mg_bw"))           # (B*L, 2)

    lm = jnp.mean(logits.reshape(B, L, 2), axis=0)            # (L, 2), global over batch
    lm = lm - jnp.max(lm, axis=-1, keepdims=True)
    e = jnp.exp(lm)
    masks = e / jnp.sum(e, axis=-1, keepdims=True)            # (L, 2) soft masks

    # Hard mask as a lane-oriented row (key bias over L) with no in-kernel
    # transpose: r[l] = mean_b(logit_pos - logit_neg); pos wins iff r >= 0.
    diff = logits[:, 0:1] - logits[:, 1:2]                    # (B*L, 1)
    eye = (jax.lax.broadcasted_iota(jnp.int32, (L, L), 0) ==
           jax.lax.broadcasted_iota(jnp.int32, (L, L), 1)).astype(jnp.float32)
    r = jnp.sum(diff * jnp.concatenate([eye] * B, axis=0),
                axis=0, keepdims=True) * (1.0 / B)            # (1, L)
    pos_hard = r >= 0.0                                       # (1, L); ties -> pos
    bias_pos = jnp.where(pos_hard, 0.0, NEG_INF)[None, None]  # pos branch drops neg-hard keys
    bias_neg = jnp.where(pos_hard, NEG_INF, 0.0)[None, None]  # neg branch drops pos-hard keys
    bias_pn = jnp.concatenate(
        [jnp.broadcast_to(bias_pos, (1, B, 1, L)),
         jnp.broadcast_to(bias_neg, (1, B, 1, L))], axis=1)   # (1, 2B, 1, L)

    # soft-masked pos/neg memories, stacked along batch: (2B, L, D)
    xr = x.reshape(B, L, D)
    mem = jnp.concatenate([xr * masks[:, 0:1][None],
                           xr * masks[:, 1:2][None]], axis=0)

    # ---- TransformerDecoderLayer (pos/neg branches batched as 2B) ----
    # Self-attention on the shared prompt embeddings (identical for every batch
    # element and both branches) -> computed once on (T, D).
    t = tgt_ref[...].reshape(T, D)
    qkv = dense(t, W("dec_sa_w_qkv"), V("dec_b_qkv"))
    sa = _mha(qkv[:, 0:D][None], qkv[:, D:2 * D][None],
              qkv[:, 2 * D:3 * D][None], nhead).reshape(T, D)
    sa = dense(sa, W("dec_sa_w_o"), V("dec_b_o"))
    x1 = add_ln(t, sa, V("dec_ln1_g"), V("dec_ln1_b"))        # (T, D), shared

    # Cross-attention over batched pos/neg memories, fused KV projection.
    kv = dense(mem.reshape(2 * B * L, D), W("dec_ca_w_kv"), V("dec_cb_kv"))
    qc = dense(x1, W("dec_ca_w_q"), V("dec_cb_q"))[None]      # (1, T, D) shared queries
    ca = _mha(qc, kv[:, 0:D].reshape(2 * B, L, D),
              kv[:, D:2 * D].reshape(2 * B, L, D), nhead, bias=bias_pn)
    ca = dense(ca.reshape(2 * B * T, D), W("dec_ca_w_o"), V("dec_cb_o"))
    x1b = jnp.broadcast_to(x1[None], (2 * B, T, D)).reshape(2 * B * T, D)  # one broadcast
    x2 = add_ln(x1b, ca, V("dec_ln2_g"), V("dec_ln2_b"))

    # FFN + final LN + output projection (fused epilogue)
    h = dense(x2, W("dec_ff_w1"), V("dec_ff_b1"), act="relu")
    h = dense(h, WF("dec_ff_w2"), V("dec_ff_b2"))
    x3 = add_ln(x2, h, V("dec_ln3_g"), V("dec_ln3_b"))
    y = dense(x3, W("proj_w"), V("proj_b"))                   # (2B*T, E)
    out_ref[...] = y.reshape(out_ref.shape)                   # (2B, T, E)


# ------------------------------- full forward --------------------------------

def householder_orthogonalize(x, y, eps=1e-8):
    xy = jnp.sum(x * y, axis=-1, keepdims=True)
    xx = jnp.sum(x * x, axis=-1, keepdims=True)
    return x, y - (xy / (xx + eps)) * x


def forward(x, params, cfg):
    """x: (B, prompt_num_s + prompt_num_m, proj_hidd_dim)"""
    B, L, D = x.shape
    E = cfg["embed_dim"]
    T = cfg["pos_prompt_len"] * cfg["pos_prompt_layers"]
    wd_l, wf_l, vec_l = make_layouts(D, cfg["dim_feedforward"], E)

    prompts = pl.pallas_call(
        functools.partial(_fused_kernel, nhead=cfg["nhead"],
                          wd_l=wd_l, wf_l=wf_l, vec_l=vec_l),
        out_shape=jax.ShapeDtypeStruct((2 * B, T, E), jnp.float32),
        in_specs=[VSPEC] * 6,
        out_specs=VSPEC,
    )(x, params["props_pe"], params["prompt_embeddings"],
      params["wd"], params["wf"], params["vec"])

    pos_prompts, neg_prompts = prompts[:B], prompts[B:]
    if cfg["ortho_prompt_after"]:
        pos_prompts, neg_prompts = householder_orthogonalize(pos_prompts, neg_prompts)
    if cfg["pos_prompt_layers"] > 1:
        pos_prompts = pos_prompts.reshape(-1, cfg["pos_prompt_layers"],
                                          cfg["pos_prompt_len"], E)
    if cfg["neg_prompt_layers"] > 1:
        neg_prompts = neg_prompts.reshape(-1, cfg["neg_prompt_layers"],
                                          cfg["neg_prompt_len"], E)
    return pos_prompts, neg_prompts


# ------------------------------ parameter init -------------------------------

def _uniform(key, shape, fan_in):
    bound = 1.0 / (fan_in ** 0.5)
    return jax.random.uniform(key, shape, jnp.float32, -bound, bound)


def init_params(key, cfg):
    D = cfg["proj_hidd_dim"]
    dff = cfg["dim_feedforward"]
    E = cfg["embed_dim"]
    L = cfg["prompt_num_s"] + cfg["prompt_num_m"]
    T = cfg["pos_prompt_len"] * cfg["pos_prompt_layers"]
    wd_l, wf_l, vec_l = make_layouts(D, dff, E)

    n_wd, n_wf = len(wd_l.order), len(wf_l.order)
    keys = jax.random.split(key, n_wd + n_wf + 2)

    wd_parts = [_uniform(keys[i], (D, wd_l.off[n][1]), D)
                for i, n in enumerate(wd_l.order)]
    wf_parts = [_uniform(keys[n_wd + i], (dff, wf_l.off[n][1]), dff)
                for i, n in enumerate(wf_l.order)]
    vec_parts = [jnp.ones((1, vec_l.off[n][1]), jnp.float32) if n.endswith("_g")
                 else jnp.zeros((1, vec_l.off[n][1]), jnp.float32)
                 for n in vec_l.order]

    return {
        # cls_token exists in the PyTorch __init__ but is unused in forward -> omitted.
        "props_pe": 0.02 * jax.random.normal(keys[-2], (1, L, D), jnp.float32),
        "prompt_embeddings": 0.02 * jax.random.normal(keys[-1], (1, T, D), jnp.float32),
        "wd": jnp.concatenate(wd_parts, axis=1),
        "wf": jnp.concatenate(wf_parts, axis=1),
        "vec": jnp.concatenate(vec_parts, axis=1),
    }


# ---------------------------------- main -------------------------------------

if __name__ == "__main__":
    CFG = dict(
        embed_dim=16,
        prompt_num_s=4,
        prompt_num_m=4,
        proj_hidd_dim=32,
        pos_prompt_len=2,
        neg_prompt_len=2,
        pos_prompt_layers=4,
        neg_prompt_layers=4,
        nhead=4,
        dim_feedforward=2048,   # nn.TransformerEncoderLayer default
        ortho_prompt_after=0,
    )
    B = 2
    L = CFG["prompt_num_s"] + CFG["prompt_num_m"]
    D = CFG["proj_hidd_dim"]

    root = jax.random.PRNGKey(0)
    kx, kp = jax.random.split(root)
    x = jax.random.normal(kx, (B, L, D), jnp.float32)
    params = init_params(kp, CFG)

    fwd = jax.jit(lambda xx, pp: forward(xx, pp, CFG))
    pos, neg = fwd(x, params)
    pos, neg = jax.block_until_ready((pos, neg))

    assert pos.shape == (B, CFG["pos_prompt_layers"], CFG["pos_prompt_len"], CFG["embed_dim"])
    assert neg.shape == (B, CFG["neg_prompt_layers"], CFG["neg_prompt_len"], CFG["embed_dim"])
    assert bool(jnp.all(jnp.isfinite(pos))) and bool(jnp.all(jnp.isfinite(neg)))
    print("KERNEL_OK")
</pallas_src>

<mosaic_0001>
module attributes {stable_mosaic.version = 11 : i64} {
  func.func @_fused_kernel(%arg0: memref<2x8x32xf32, #tpu.memory_space<vmem>>, %arg1: memref<1x8x32xf32, #tpu.memory_space<vmem>>, %arg2: memref<1x8x32xf32, #tpu.memory_space<vmem>>, %arg3: memref<32x4562xf32, #tpu.memory_space<vmem>>, %arg4: memref<2048x64xf32, #tpu.memory_space<vmem>>, %arg5: memref<1x4946xf32, #tpu.memory_space<vmem>>, %arg6: memref<4x8x16xf32, #tpu.memory_space<vmem>>) attributes {dimension_semantics = [], scalar_prefetch = 0 : i64, scratch_operands = 0 : i64, tpu.core_type = #tpu.core_type<tc>} {
    %c0 = arith.constant 0 : index
    %c0_0 = arith.constant 0 : index
    %c0_1 = arith.constant 0 : index
    %0 = vector.load %arg0[%c0, %c0_0, %c0_1] : memref<2x8x32xf32, #tpu.memory_space<vmem>>, vector<2x8x32xf32>
    %c0_2 = arith.constant 0 : index
    %c0_3 = arith.constant 0 : index
    %c0_4 = arith.constant 0 : index
    %1 = vector.load %arg1[%c0_2, %c0_3, %c0_4] : memref<1x8x32xf32, #tpu.memory_space<vmem>>, vector<1x8x32xf32>
    %2 = vector.broadcast %1 : vector<1x8x32xf32> to vector<2x8x32xf32>
    %3 = arith.addf %0, %2 : vector<2x8x32xf32>
    %4 = vector.shape_cast %3 : vector<2x8x32xf32> to vector<16x32xf32>
    %c0_5 = arith.constant 0 : index
    %c4096 = arith.constant 4096 : index
    %5 = vector.load %arg3[%c0_5, %c4096] : memref<32x4562xf32, #tpu.memory_space<vmem>>, vector<32x96xf32>
    %c0_6 = arith.constant 0 : index
    %c4096_7 = arith.constant 4096 : index
    %6 = vector.load %arg5[%c0_6, %c4096_7] : memref<1x4946xf32, #tpu.memory_space<vmem>>, vector<1x96xf32>
    %cst = arith.constant dense<0.000000e+00> : vector<16x96xf32>
    %7 = tpu.matmul %4, %5, %cst {dimension_numbers = #tpu.dot_dimension_numbers<[1], [0], [0], [1], [0, 0, 1, 1], [], []>} : vector<16x32xf32>, vector<32x96xf32>, vector<16x96xf32> -> vector<16x96xf32>
    %8 = vector.broadcast %6 : vector<1x96xf32> to vector<16x96xf32>
    %9 = arith.addf %7, %8 : vector<16x96xf32>
    %10 = vector.extract_strided_slice %9 {offsets = [0, 0], sizes = [16, 32], strides = [1, 1]} : vector<16x96xf32> to vector<16x32xf32>
    %11 = vector.shape_cast %10 : vector<16x32xf32> to vector<2x8x32xf32>
    %12 = vector.extract_strided_slice %9 {offsets = [0, 32], sizes = [16, 32], strides = [1, 1]} : vector<16x96xf32> to vector<16x32xf32>
    %13 = vector.shape_cast %12 : vector<16x32xf32> to vector<2x8x32xf32>
    %14 = vector.extract_strided_slice %9 {offsets = [0, 64], sizes = [16, 32], strides = [1, 1]} : vector<16x96xf32> to vector<16x32xf32>
    %15 = vector.shape_cast %14 : vector<16x32xf32> to vector<2x8x32xf32>
    %16 = vector.extract_strided_slice %11 {offsets = [0, 0, 0], sizes = [2, 8, 8], strides = [1, 1, 1]} : vector<2x8x32xf32> to vector<2x8x8xf32>
    %17 = vector.extract_strided_slice %11 {offsets = [0, 0, 8], sizes = [2, 8, 8], strides = [1, 1, 1]} : vector<2x8x32xf32> to vector<2x8x8xf32>
    %18 = vector.extract_strided_slice %11 {offsets = [0, 0, 16], sizes = [2, 8, 8], strides = [1, 1, 1]} : vector<2x8x32xf32> to vector<2x8x8xf32>
    %19 = vector.extract_strided_slice %11 {offsets = [0, 0, 24], sizes = [2, 8, 8], strides = [1, 1, 1]} : vector<2x8x32xf32> to vector<2x8x8xf32>
    %20 = tpu.concatenate %16, %17, %18, %19 in 0 : vector<2x8x8xf32>, vector<2x8x8xf32>, vector<2x8x8xf32>, vector<2x8x8xf32> -> vector<8x8x8xf32>
    %21 = vector.extract_strided_slice %13 {offsets = [0, 0, 0], sizes = [2, 8, 8], strides = [1, 1, 1]} : vector<2x8x32xf32> to vector<2x8x8xf32>
    %22 = vector.extract_strided_slice %13 {offsets = [0, 0, 8], sizes = [2, 8, 8], strides = [1, 1, 1]} : vector<2x8x32xf32> to vector<2x8x8xf32>
    %23 = vector.extract_strided_slice %13 {offsets = [0, 0, 16], sizes = [2, 8, 8], strides = [1, 1, 1]} : vector<2x8x32xf32> to vector<2x8x8xf32>
    %24 = vector.extract_strided_slice %13 {offsets = [0, 0, 24], sizes = [2, 8, 8], strides = [1, 1, 1]} : vector<2x8x32xf32> to vector<2x8x8xf32>
    %25 = tpu.concatenate %21, %22, %23, %24 in 0 : vector<2x8x8xf32>, vector<2x8x8xf32>, vector<2x8x8xf32>, vector<2x8x8xf32> -> vector<8x8x8xf32>
    %26 = vector.extract_strided_slice %15 {offsets = [0, 0, 0], sizes = [2, 8, 8], strides = [1, 1, 1]} : vector<2x8x32xf32> to vector<2x8x8xf32>
    %27 = vector.extract_strided_slice %15 {offsets = [0, 0, 8], sizes = [2, 8, 8], strides = [1, 1, 1]} : vector<2x8x32xf32> to vector<2x8x8xf32>
    %28 = vector.extract_strided_slice %15 {offsets = [0, 0, 16], sizes = [2, 8, 8], strides = [1, 1, 1]} : vector<2x8x32xf32> to vector<2x8x8xf32>
    %29 = vector.extract_strided_slice %15 {offsets = [0, 0, 24], sizes = [2, 8, 8], strides = [1, 1, 1]} : vector<2x8x32xf32> to vector<2x8x8xf32>
    %30 = tpu.concatenate %26, %27, %28, %29 in 0 : vector<2x8x8xf32>, vector<2x8x8xf32>, vector<2x8x8xf32>, vector<2x8x8xf32> -> vector<8x8x8xf32>
    "tpu.trace_start"() <{level = 10 : i32, message = "bqd,bkd->bqk"}> : () -> ()
    %cst_8 = arith.constant dense<0.000000e+00> : vector<8x8x8xf32>
    %31 = tpu.matmul %20, %25, %cst_8 {dimension_numbers = #tpu.dot_dimension_numbers<[2], [2], [1], [1], [0, 0, 0, 1, 1, 1], [0], [0]>} : vector<8x8x8xf32>, vector<8x8x8xf32>, vector<8x8x8xf32> -> vector<8x8x8xf32>
    "tpu.trace_stop"() : () -> ()
    %cst_9 = arith.constant 0.353553385 : f32
    %32 = vector.broadcast %cst_9 : f32 to vector<8x8x8xf32>
    %33 = arith.mulf %31, %32 : vector<8x8x8xf32>
    %cst_10 = arith.constant dense<0xFF800000> : vector<8x8xf32>
    %34 = vector.multi_reduction <maximumf>, %33, %cst_10 [2] : vector<8x8x8xf32> to vector<8x8xf32>
    %35 = vector.shape_cast %34 : vector<8x8xf32> to vector<8x8x1xf32>
    %36 = vector.broadcast %35 : vector<8x8x1xf32> to vector<8x8x8xf32>
    %37 = arith.subf %33, %36 : vector<8x8x8xf32>
    %38 = math.exp %37 : vector<8x8x8xf32>
    %cst_11 = arith.constant dense<0.000000e+00> : vector<8x8xf32>
    %39 = vector.multi_reduction <add>, %38, %cst_11 [2] : vector<8x8x8xf32> to vector<8x8xf32>
    %40 = vector.shape_cast %39 : vector<8x8xf32> to vector<8x8x1xf32>
    %41 = vector.broadcast %40 : vector<8x8x1xf32> to vector<8x8x8xf32>
    %42 = arith.divf %38, %41 : vector<8x8x8xf32>
    "tpu.trace_start"() <{level = 10 : i32, message = "bqk,bkd->bqd"}> : () -> ()
    %cst_12 = arith.constant dense<0.000000e+00> : vector<8x8x8xf32>
    %43 = tpu.matmul %42, %30, %cst_12 {dimension_numbers = #tpu.dot_dimension_numbers<[2], [1], [1], [2], [0, 0, 0, 1, 1, 2], [0], [0]>} : vector<8x8x8xf32>, vector<8x8x8xf32>, vector<8x8x8xf32> -> vector<8x8x8xf32>
    "tpu.trace_stop"() : () -> ()
    %44 = vector.extract_strided_slice %43 {offsets = [0, 0, 0], sizes = [2, 8, 8], strides = [1, 1, 1]} : vector<8x8x8xf32> to vector<2x8x8xf32>
    %45 = vector.extract_strided_slice %43 {offsets = [2, 0, 0], sizes = [2, 8, 8], strides = [1, 1, 1]} : vector<8x8x8xf32> to vector<2x8x8xf32>
    %46 = vector.extract_strided_slice %43 {offsets = [4, 0, 0], sizes = [2, 8, 8], strides = [1, 1, 1]} : vector<8x8x8xf32> to vector<2x8x8xf32>
    %47 = vector.extract_strided_slice %43 {offsets = [6, 0, 0], sizes = [2, 8, 8], strides = [1, 1, 1]} : vector<8x8x8xf32> to vector<2x8x8xf32>
    %48 = tpu.concatenate %44, %45, %46, %47 in 2 : vector<2x8x8xf32>, vector<2x8x8xf32>, vector<2x8x8xf32>, vector<2x8x8xf32> -> vector<2x8x32xf32>
    %49 = vector.shape_cast %48 : vector<2x8x32xf32> to vector<16x32xf32>
    %c0_13 = arith.constant 0 : index
    %c4192 = arith.constant 4192 : index
    %50 = vector.load %arg3[%c0_13, %c4192] : memref<32x4562xf32, #tpu.memory_space<vmem>>, vector<32x32xf32>
    %c0_14 = arith.constant 0 : index
    %c4192_15 = arith.constant 4192 : index
    %51 = vector.load %arg5[%c0_14, %c4192_15] : memref<1x4946xf32, #tpu.memory_space<vmem>>, vector<1x32xf32>
    %cst_16 = arith.constant dense<0.000000e+00> : vector<16x32xf32>
    %52 = tpu.matmul %49, %50, %cst_16 {dimension_numbers = #tpu.dot_dimension_numbers<[1], [0], [0], [1], [0, 0, 1, 1], [], []>} : vector<16x32xf32>, vector<32x32xf32>, vector<16x32xf32> -> vector<16x32xf32>
    %53 = vector.broadcast %51 : vector<1x32xf32> to vector<16x32xf32>
    %54 = arith.addf %52, %53 : vector<16x32xf32>
    %c0_17 = arith.constant 0 : index
    %c4224 = arith.constant 4224 : index
    %55 = vector.load %arg5[%c0_17, %c4224] : memref<1x4946xf32, #tpu.memory_space<vmem>>, vector<1x32xf32>
    %c0_18 = arith.constant 0 : index
    %c4256 = arith.constant 4256 : index
    %56 = vector.load %arg5[%c0_18, %c4256] : memref<1x4946xf32, #tpu.memory_space<vmem>>, vector<1x32xf32>
    %57 = arith.addf %4, %54 : vector<16x32xf32>
    %cst_19 = arith.constant dense<0.000000e+00> : vector<16xf32>
    %58 = vector.multi_reduction <add>, %57, %cst_19 [1] : vector<16x32xf32> to vector<16xf32>
    %59 = vector.shape_cast %58 : vector<16xf32> to vector<16x1xf32>
    %cst_20 = arith.constant 3.200000e+01 : f32
    %60 = vector.broadcast %cst_20 : f32 to vector<16x1xf32>
    %61 = arith.divf %59, %60 : vector<16x1xf32>
    %62 = vector.broadcast %61 : vector<16x1xf32> to vector<16x32xf32>
    %63 = arith.subf %57, %62 : vector<16x32xf32>
    %64 = arith.mulf %63, %63 : vector<16x32xf32>
    %cst_21 = arith.constant dense<0.000000e+00> : vector<16xf32>
    %65 = vector.multi_reduction <add>, %64, %cst_21 [1] : vector<16x32xf32> to vector<16xf32>
    %66 = vector.shape_cast %65 : vector<16xf32> to vector<16x1xf32>
    %cst_22 = arith.constant 3.200000e+01 : f32
    %67 = vector.broadcast %cst_22 : f32 to vector<16x1xf32>
    %68 = arith.divf %66, %67 : vector<16x1xf32>
    %69 = vector.broadcast %61 : vector<16x1xf32> to vector<16x32xf32>
    %70 = arith.subf %57, %69 : vector<16x32xf32>
    %cst_23 = arith.constant 9.99999974E-6 : f32
    %71 = vector.broadcast %cst_23 : f32 to vector<16x1xf32>
    %72 = arith.addf %68, %71 : vector<16x1xf32>
    %73 = math.rsqrt %72 : vector<16x1xf32>
    %74 = vector.broadcast %73 : vector<16x1xf32> to vector<16x32xf32>
    %75 = arith.mulf %70, %74 : vector<16x32xf32>
    %76 = vector.broadcast %55 : vector<1x32xf32> to vector<16x32xf32>
    %77 = arith.mulf %75, %76 : vector<16x32xf32>
    %78 = vector.broadcast %56 : vector<1x32xf32> to vector<16x32xf32>
    %79 = arith.addf %77, %78 : vector<16x32xf32>
    %c0_24 = arith.constant 0 : index
    %c0_25 = arith.constant 0 : index
    %80 = vector.load %arg3[%c0_24, %c0_25] : memref<32x4562xf32, #tpu.memory_space<vmem>>, vector<32x2048xf32>
    %c0_26 = arith.constant 0 : index
    %c0_27 = arith.constant 0 : index
    %81 = vector.load %arg5[%c0_26, %c0_27] : memref<1x4946xf32, #tpu.memory_space<vmem>>, vector<1x2048xf32>
    %cst_28 = arith.constant dense<0.000000e+00> : vector<16x2048xf32>
    %82 = tpu.matmul %79, %80, %cst_28 {dimension_numbers = #tpu.dot_dimension_numbers<[1], [0], [0], [1], [0, 0, 1, 1], [], []>} : vector<16x32xf32>, vector<32x2048xf32>, vector<16x2048xf32> -> vector<16x2048xf32>
    %83 = vector.broadcast %81 : vector<1x2048xf32> to vector<16x2048xf32>
    %84 = arith.addf %82, %83 : vector<16x2048xf32>
    %cst_29 = arith.constant 0.000000e+00 : f32
    %85 = vector.broadcast %cst_29 : f32 to vector<16x2048xf32>
    %86 = arith.maximumf %84, %85 : vector<16x2048xf32>
    %c0_30 = arith.constant 0 : index
    %c0_31 = arith.constant 0 : index
    %87 = vector.load %arg4[%c0_30, %c0_31] : memref<2048x64xf32, #tpu.memory_space<vmem>>, vector<2048x32xf32>
    %c0_32 = arith.constant 0 : index
    %c4288 = arith.constant 4288 : index
    %88 = vector.load %arg5[%c0_32, %c4288] : memref<1x4946xf32, #tpu.memory_space<vmem>>, vector<1x32xf32>
    %cst_33 = arith.constant dense<0.000000e+00> : vector<16x32xf32>
    %89 = tpu.matmul %86, %87, %cst_33 {dimension_numbers = #tpu.dot_dimension_numbers<[1], [0], [0], [1], [0, 0, 1, 1], [], []>} : vector<16x2048xf32>, vector<2048x32xf32>, vector<16x32xf32> -> vector<16x32xf32>
    %90 = vector.broadcast %88 : vector<1x32xf32> to vector<16x32xf32>
    %91 = arith.addf %89, %90 : vector<16x32xf32>
    %c0_34 = arith.constant 0 : index
    %c4320 = arith.constant 4320 : index
    %92 = vector.load %arg5[%c0_34, %c4320] : memref<1x4946xf32, #tpu.memory_space<vmem>>, vector<1x32xf32>
    %c0_35 = arith.constant 0 : index
    %c4352 = arith.constant 4352 : index
    %93 = vector.load %arg5[%c0_35, %c4352] : memref<1x4946xf32, #tpu.memory_space<vmem>>, vector<1x32xf32>
    %94 = arith.addf %79, %91 : vector<16x32xf32>
    %cst_36 = arith.constant dense<0.000000e+00> : vector<16xf32>
    %95 = vector.multi_reduction <add>, %94, %cst_36 [1] : vector<16x32xf32> to vector<16xf32>
    %96 = vector.shape_cast %95 : vector<16xf32> to vector<16x1xf32>
    %cst_37 = arith.constant 3.200000e+01 : f32
    %97 = vector.broadcast %cst_37 : f32 to vector<16x1xf32>
    %98 = arith.divf %96, %97 : vector<16x1xf32>
    %99 = vector.broadcast %98 : vector<16x1xf32> to vector<16x32xf32>
    %100 = arith.subf %94, %99 : vector<16x32xf32>
    %101 = arith.mulf %100, %100 : vector<16x32xf32>
    %cst_38 = arith.constant dense<0.000000e+00> : vector<16xf32>
    %102 = vector.multi_reduction <add>, %101, %cst_38 [1] : vector<16x32xf32> to vector<16xf32>
    %103 = vector.shape_cast %102 : vector<16xf32> to vector<16x1xf32>
    %cst_39 = arith.constant 3.200000e+01 : f32
    %104 = vector.broadcast %cst_39 : f32 to vector<16x1xf32>
    %105 = arith.divf %103, %104 : vector<16x1xf32>
    %106 = vector.broadcast %98 : vector<16x1xf32> to vector<16x32xf32>
    %107 = arith.subf %94, %106 : vector<16x32xf32>
    %cst_40 = arith.constant 9.99999974E-6 : f32
    %108 = vector.broadcast %cst_40 : f32 to vector<16x1xf32>
    %109 = arith.addf %105, %108 : vector<16x1xf32>
    %110 = math.rsqrt %109 : vector<16x1xf32>
    %111 = vector.broadcast %110 : vector<16x1xf32> to vector<16x32xf32>
    %112 = arith.mulf %107, %111 : vector<16x32xf32>
    %113 = vector.broadcast %92 : vector<1x32xf32> to vector<16x32xf32>
    %114 = arith.mulf %112, %113 : vector<16x32xf32>
    %115 = vector.broadcast %93 : vector<1x32xf32> to vector<16x32xf32>
    %116 = arith.addf %114, %115 : vector<16x32xf32>
    %c0_41 = arith.constant 0 : index
    %c4224_42 = arith.constant 4224 : index
    %117 = vector.load %arg3[%c0_41, %c4224_42] : memref<32x4562xf32, #tpu.memory_space<vmem>>, vector<32x32xf32>
    %c0_43 = arith.constant 0 : index
    %c4384 = arith.constant 4384 : index
    %118 = vector.load %arg5[%c0_43, %c4384] : memref<1x4946xf32, #tpu.memory_space<vmem>>, vector<1x32xf32>
    %cst_44 = arith.constant dense<0.000000e+00> : vector<16x32xf32>
    %119 = tpu.matmul %116, %117, %cst_44 {dimension_numbers = #tpu.dot_dimension_numbers<[1], [0], [0], [1], [0, 0, 1, 1], [], []>} : vector<16x32xf32>, vector<32x32xf32>, vector<16x32xf32> -> vector<16x32xf32>
    %120 = vector.broadcast %118 : vector<1x32xf32> to vector<16x32xf32>
    %121 = arith.addf %119, %120 : vector<16x32xf32>
    %122 = math.tanh %121 : vector<16x32xf32>
    %c0_45 = arith.constant 0 : index
    %c4256_46 = arith.constant 4256 : index
    %123 = vector.load %arg3[%c0_45, %c4256_46] : memref<32x4562xf32, #tpu.memory_space<vmem>>, vector<32x32xf32>
    %c0_47 = arith.constant 0 : index
    %c4416 = arith.constant 4416 : index
    %124 = vector.load %arg5[%c0_47, %c4416] : memref<1x4946xf32, #tpu.memory_space<vmem>>, vector<1x32xf32>
    %cst_48 = arith.constant dense<0.000000e+00> : vector<16x32xf32>
    %125 = tpu.matmul %116, %123, %cst_48 {dimension_numbers = #tpu.dot_dimension_numbers<[1], [0], [0], [1], [0, 0, 1, 1], [], []>} : vector<16x32xf32>, vector<32x32xf32>, vector<16x32xf32> -> vector<16x32xf32>
    %126 = vector.broadcast %124 : vector<1x32xf32> to vector<16x32xf32>
    %127 = arith.addf %125, %126 : vector<16x32xf32>
    %128 = arith.negf %127 : vector<16x32xf32>
    %129 = math.exp %128 : vector<16x32xf32>
    %cst_49 = arith.constant 1.000000e+00 : f32
    %130 = vector.broadcast %cst_49 : f32 to vector<16x32xf32>
    %131 = arith.addf %130, %129 : vector<16x32xf32>
    %132 = arith.divf %130, %131 : vector<16x32xf32>
    %133 = arith.mulf %122, %132 : vector<16x32xf32>
    %c0_50 = arith.constant 0 : index
    %c4288_51 = arith.constant 4288 : index
    %134 = vector.load %arg3[%c0_50, %c4288_51] : memref<32x4562xf32, #tpu.memory_space<vmem>>, vector<32x2xf32>
    %c0_52 = arith.constant 0 : index
    %c4448 = arith.constant 4448 : index
    %135 = vector.load %arg5[%c0_52, %c4448] : memref<1x4946xf32, #tpu.memory_space<vmem>>, vector<1x2xf32>
    %cst_53 = arith.constant dense<0.000000e+00> : vector<16x2xf32>
    %136 = tpu.matmul %133, %134, %cst_53 {dimension_numbers = #tpu.dot_dimension_numbers<[1], [0], [0], [1], [0, 0, 1, 1], [], []>} : vector<16x32xf32>, vector<32x2xf32>, vector<16x2xf32> -> vector<16x2xf32>
    %137 = vector.broadcast %135 : vector<1x2xf32> to vector<16x2xf32>
    %138 = arith.addf %136, %137 : vector<16x2xf32>
    %139 = vector.shape_cast %138 : vector<16x2xf32> to vector<2x8x2xf32>
    %cst_54 = arith.constant dense<0.000000e+00> : vector<8x2xf32>
    %140 = vector.multi_reduction <add>, %139, %cst_54 [0] : vector<2x8x2xf32> to vector<8x2xf32>
    %cst_55 = arith.constant 2.000000e+00 : f32
    %141 = vector.broadcast %cst_55 : f32 to vector<8x2xf32>
    %142 = arith.divf %140, %141 : vector<8x2xf32>
    %cst_56 = arith.constant dense<0xFF800000> : vector<8xf32>
    %143 = vector.multi_reduction <maximumf>, %142, %cst_56 [1] : vector<8x2xf32> to vector<8xf32>
    %144 = vector.shape_cast %143 : vector<8xf32> to vector<8x1xf32>
    %145 = vector.broadcast %144 : vector<8x1xf32> to vector<8x2xf32>
    %146 = arith.subf %142, %145 : vector<8x2xf32>
    %147 = math.exp %146 : vector<8x2xf32>
    %cst_57 = arith.constant dense<0.000000e+00> : vector<8xf32>
    %148 = vector.multi_reduction <add>, %147, %cst_57 [1] : vector<8x2xf32> to vector<8xf32>
    %149 = vector.shape_cast %148 : vector<8xf32> to vector<8x1xf32>
    %150 = vector.broadcast %149 : vector<8x1xf32> to vector<8x2xf32>
    %151 = arith.divf %147, %150 : vector<8x2xf32>
    %152 = vector.extract_strided_slice %138 {offsets = [0, 0], sizes = [16, 1], strides = [1, 1]} : vector<16x2xf32> to vector<16x1xf32>
    %153 = vector.extract_strided_slice %138 {offsets = [0, 1], sizes = [16, 1], strides = [1, 1]} : vector<16x2xf32> to vector<16x1xf32>
    %154 = arith.subf %152, %153 : vector<16x1xf32>
    %155 = tpu.iota {dimensions = array<i32: 0>} : vector<8x8xi32>
    %156 = tpu.iota {dimensions = array<i32: 1>} : vector<8x8xi32>
    %157 = arith.cmpi eq, %155, %156 : vector<8x8xi32>
    %158 = arith.extui %157 : vector<8x8xi1> to vector<8x8xi32>
    %159 = arith.sitofp %158 : vector<8x8xi32> to vector<8x8xf32>
    %160 = tpu.concatenate %159, %159 in 0 : vector<8x8xf32>, vector<8x8xf32> -> vector<16x8xf32>
    %161 = vector.broadcast %154 : vector<16x1xf32> to vector<16x8xf32>
    %162 = arith.mulf %161, %160 : vector<16x8xf32>
    %cst_58 = arith.constant dense<0.000000e+00> : vector<8xf32>
    %163 = vector.multi_reduction <add>, %162, %cst_58 [0] : vector<16x8xf32> to vector<8xf32>
    %164 = vector.shape_cast %163 : vector<8xf32> to vector<1x8xf32>
    %cst_59 = arith.constant 5.000000e-01 : f32
    %165 = vector.broadcast %cst_59 : f32 to vector<1x8xf32>
    %166 = arith.mulf %164, %165 : vector<1x8xf32>
    %cst_60 = arith.constant 0.000000e+00 : f32
    %167 = vector.broadcast %cst_60 : f32 to vector<1x8xf32>
    %168 = arith.cmpf oge, %166, %167 : vector<1x8xf32>
    %cst_61 = arith.constant 0.000000e+00 : f32
    %cst_62 = arith.constant -1.000000e+09 : f32
    %169 = vector.broadcast %cst_61 : f32 to vector<1x8xf32>
    %170 = vector.broadcast %cst_62 : f32 to vector<1x8xf32>
    %171 = arith.select %168, %169, %170 : vector<1x8xi1>, vector<1x8xf32>
    %172 = vector.shape_cast %171 : vector<1x8xf32> to vector<1x1x1x8xf32>
    %cst_63 = arith.constant -1.000000e+09 : f32
    %cst_64 = arith.constant 0.000000e+00 : f32
    %173 = vector.broadcast %cst_63 : f32 to vector<1x8xf32>
    %174 = vector.broadcast %cst_64 : f32 to vector<1x8xf32>
    %175 = arith.select %168, %173, %174 : vector<1x8xi1>, vector<1x8xf32>
    %176 = vector.shape_cast %175 : vector<1x8xf32> to vector<1x1x1x8xf32>
    %177 = vector.shape_cast %172 : vector<1x1x1x8xf32> to vector<1x1x1x8xf32>
    %178 = vector.broadcast %177 : vector<1x1x1x8xf32> to vector<1x2x1x8xf32>
    %179 = vector.shape_cast %176 : vector<1x1x1x8xf32> to vector<1x1x1x8xf32>
    %180 = vector.broadcast %179 : vector<1x1x1x8xf32> to vector<1x2x1x8xf32>
    %181 = tpu.concatenate %178, %180 in 1 : vector<1x2x1x8xf32>, vector<1x2x1x8xf32> -> vector<1x4x1x8xf32>
    %182 = vector.shape_cast %116 : vector<16x32xf32> to vector<2x8x32xf32>
    %183 = vector.extract_strided_slice %151 {offsets = [0, 0], sizes = [8, 1], strides = [1, 1]} : vector<8x2xf32> to vector<8x1xf32>
    %184 = vector.shape_cast %183 : vector<8x1xf32> to vector<1x8x1xf32>
    %185 = vector.broadcast %184 : vector<1x8x1xf32> to vector<2x8x32xf32>
    %186 = arith.mulf %182, %185 : vector<2x8x32xf32>
    %187 = vector.extract_strided_slice %151 {offsets = [0, 1], sizes = [8, 1], strides = [1, 1]} : vector<8x2xf32> to vector<8x1xf32>
    %188 = vector.shape_cast %187 : vector<8x1xf32> to vector<1x8x1xf32>
    %189 = vector.broadcast %188 : vector<1x8x1xf32> to vector<2x8x32xf32>
    %190 = arith.mulf %182, %189 : vector<2x8x32xf32>
    %191 = tpu.concatenate %186, %190 in 0 : vector<2x8x32xf32>, vector<2x8x32xf32> -> vector<4x8x32xf32>
    %c0_65 = arith.constant 0 : index
    %c0_66 = arith.constant 0 : index
    %c0_67 = arith.constant 0 : index
    %192 = vector.load %arg2[%c0_65, %c0_66, %c0_67] : memref<1x8x32xf32, #tpu.memory_space<vmem>>, vector<1x8x32xf32>
    %193 = vector.shape_cast %192 : vector<1x8x32xf32> to vector<8x32xf32>
    %c0_68 = arith.constant 0 : index
    %c4290 = arith.constant 4290 : index
    %194 = vector.load %arg3[%c0_68, %c4290] : memref<32x4562xf32, #tpu.memory_space<vmem>>, vector<32x96xf32>
    %c0_69 = arith.constant 0 : index
    %c4450 = arith.constant 4450 : index
    %195 = vector.load %arg5[%c0_69, %c4450] : memref<1x4946xf32, #tpu.memory_space<vmem>>, vector<1x96xf32>
    %cst_70 = arith.constant dense<0.000000e+00> : vector<8x96xf32>
    %196 = tpu.matmul %193, %194, %cst_70 {dimension_numbers = #tpu.dot_dimension_numbers<[1], [0], [0], [1], [0, 0, 1, 1], [], []>} : vector<8x32xf32>, vector<32x96xf32>, vector<8x96xf32> -> vector<8x96xf32>
    %197 = vector.broadcast %195 : vector<1x96xf32> to vector<8x96xf32>
    %198 = arith.addf %196, %197 : vector<8x96xf32>
    %199 = vector.extract_strided_slice %198 {offsets = [0, 0], sizes = [8, 32], strides = [1, 1]} : vector<8x96xf32> to vector<8x32xf32>
    %200 = vector.shape_cast %199 : vector<8x32xf32> to vector<1x8x32xf32>
    %201 = vector.extract_strided_slice %198 {offsets = [0, 32], sizes = [8, 32], strides = [1, 1]} : vector<8x96xf32> to vector<8x32xf32>
    %202 = vector.shape_cast %201 : vector<8x32xf32> to vector<1x8x32xf32>
    %203 = vector.extract_strided_slice %198 {offsets = [0, 64], sizes = [8, 32], strides = [1, 1]} : vector<8x96xf32> to vector<8x32xf32>
    %204 = vector.shape_cast %203 : vector<8x32xf32> to vector<1x8x32xf32>
    %205 = vector.extract_strided_slice %200 {offsets = [0, 0, 0], sizes = [1, 8, 8], strides = [1, 1, 1]} : vector<1x8x32xf32> to vector<1x8x8xf32>
    %206 = vector.extract_strided_slice %200 {offsets = [0, 0, 8], sizes = [1, 8, 8], strides = [1, 1, 1]} : vector<1x8x32xf32> to vector<1x8x8xf32>
    %207 = vector.extract_strided_slice %200 {offsets = [0, 0, 16], sizes = [1, 8, 8], strides = [1, 1, 1]} : vector<1x8x32xf32> to vector<1x8x8xf32>
    %208 = vector.extract_strided_slice %200 {offsets = [0, 0, 24], sizes = [1, 8, 8], strides = [1, 1, 1]} : vector<1x8x32xf32> to vector<1x8x8xf32>
    %209 = tpu.concatenate %205, %206, %207, %208 in 0 : vector<1x8x8xf32>, vector<1x8x8xf32>, vector<1x8x8xf32>, vector<1x8x8xf32> -> vector<4x8x8xf32>
    %210 = vector.extract_strided_slice %202 {offsets = [0, 0, 0], sizes = [1, 8, 8], strides = [1, 1, 1]} : vector<1x8x32xf32> to vector<1x8x8xf32>
    %211 = vector.extract_strided_slice %202 {offsets = [0, 0, 8], sizes = [1, 8, 8], strides = [1, 1, 1]} : vector<1x8x32xf32> to vector<1x8x8xf32>
    %212 = vector.extract_strided_slice %202 {offsets = [0, 0, 16], sizes = [1, 8, 8], strides = [1, 1, 1]} : vector<1x8x32xf32> to vector<1x8x8xf32>
    %213 = vector.extract_strided_slice %202 {offsets = [0, 0, 24], sizes = [1, 8, 8], strides = [1, 1, 1]} : vector<1x8x32xf32> to vector<1x8x8xf32>
    %214 = tpu.concatenate %210, %211, %212, %213 in 0 : vector<1x8x8xf32>, vector<1x8x8xf32>, vector<1x8x8xf32>, vector<1x8x8xf32> -> vector<4x8x8xf32>
    %215 = vector.extract_strided_slice %204 {offsets = [0, 0, 0], sizes = [1, 8, 8], strides = [1, 1, 1]} : vector<1x8x32xf32> to vector<1x8x8xf32>
    %216 = vector.extract_strided_slice %204 {offsets = [0, 0, 8], sizes = [1, 8, 8], strides = [1, 1, 1]} : vector<1x8x32xf32> to vector<1x8x8xf32>
    %217 = vector.extract_strided_slice %204 {offsets = [0, 0, 16], sizes = [1, 8, 8], strides = [1, 1, 1]} : vector<1x8x32xf32> to vector<1x8x8xf32>
    %218 = vector.extract_strided_slice %204 {offsets = [0, 0, 24], sizes = [1, 8, 8], strides = [1, 1, 1]} : vector<1x8x32xf32> to vector<1x8x8xf32>
    %219 = tpu.concatenate %215, %216, %217, %218 in 0 : vector<1x8x8xf32>, vector<1x8x8xf32>, vector<1x8x8xf32>, vector<1x8x8xf32> -> vector<4x8x8xf32>
    "tpu.trace_start"() <{level = 10 : i32, message = "bqd,bkd->bqk"}> : () -> ()
    %cst_71 = arith.constant dense<0.000000e+00> : vector<4x8x8xf32>
    %220 = tpu.matmul %209, %214, %cst_71 {dimension_numbers = #tpu.dot_dimension_numbers<[2], [2], [1], [1], [0, 0, 0, 1, 1, 1], [0], [0]>} : vector<4x8x8xf32>, vector<4x8x8xf32>, vector<4x8x8xf32> -> vector<4x8x8xf32>
    "tpu.trace_stop"() : () -> ()
    %cst_72 = arith.constant 0.353553385 : f32
    %221 = vector.broadcast %cst_72 : f32 to vector<4x8x8xf32>
    %222 = arith.mulf %220, %221 : vector<4x8x8xf32>
    %cst_73 = arith.constant dense<0xFF800000> : vector<4x8xf32>
    %223 = vector.multi_reduction <maximumf>, %222, %cst_73 [2] : vector<4x8x8xf32> to vector<4x8xf32>
    %224 = vector.shape_cast %223 : vector<4x8xf32> to vector<4x8x1xf32>
    %225 = vector.broadcast %224 : vector<4x8x1xf32> to vector<4x8x8xf32>
    %226 = arith.subf %222, %225 : vector<4x8x8xf32>
    %227 = math.exp %226 : vector<4x8x8xf32>
    %cst_74 = arith.constant dense<0.000000e+00> : vector<4x8xf32>
    %228 = vector.multi_reduction <add>, %227, %cst_74 [2] : vector<4x8x8xf32> to vector<4x8xf32>
    %229 = vector.shape_cast %228 : vector<4x8xf32> to vector<4x8x1xf32>
    %230 = vector.broadcast %229 : vector<4x8x1xf32> to vector<4x8x8xf32>
    %231 = arith.divf %227, %230 : vector<4x8x8xf32>
    "tpu.trace_start"() <{level = 10 : i32, message = "bqk,bkd->bqd"}> : () -> ()
    %cst_75 = arith.constant dense<0.000000e+00> : vector<4x8x8xf32>
    %232 = tpu.matmul %231, %219, %cst_75 {dimension_numbers = #tpu.dot_dimension_numbers<[2], [1], [1], [2], [0, 0, 0, 1, 1, 2], [0], [0]>} : vector<4x8x8xf32>, vector<4x8x8xf32>, vector<4x8x8xf32> -> vector<4x8x8xf32>
    "tpu.trace_stop"() : () -> ()
    %233 = vector.extract_strided_slice %232 {offsets = [0, 0, 0], sizes = [1, 8, 8], strides = [1, 1, 1]} : vector<4x8x8xf32> to vector<1x8x8xf32>
    %234 = vector.extract_strided_slice %232 {offsets = [1, 0, 0], sizes = [1, 8, 8], strides = [1, 1, 1]} : vector<4x8x8xf32> to vector<1x8x8xf32>
    %235 = vector.extract_strided_slice %232 {offsets = [2, 0, 0], sizes = [1, 8, 8], strides = [1, 1, 1]} : vector<4x8x8xf32> to vector<1x8x8xf32>
    %236 = vector.extract_strided_slice %232 {offsets = [3, 0, 0], sizes = [1, 8, 8], strides = [1, 1, 1]} : vector<4x8x8xf32> to vector<1x8x8xf32>
    %237 = tpu.concatenate %233, %234, %235, %236 in 2 : vector<1x8x8xf32>, vector<1x8x8xf32>, vector<1x8x8xf32>, vector<1x8x8xf32> -> vector<1x8x32xf32>
    %238 = vector.shape_cast %237 : vector<1x8x32xf32> to vector<8x32xf32>
    %c0_76 = arith.constant 0 : index
    %c4386 = arith.constant 4386 : index
    %239 = vector.load %arg3[%c0_76, %c4386] : memref<32x4562xf32, #tpu.memory_space<vmem>>, vector<32x32xf32>
    %c0_77 = arith.constant 0 : index
    %c4546 = arith.constant 4546 : index
    %240 = vector.load %arg5[%c0_77, %c4546] : memref<1x4946xf32, #tpu.memory_space<vmem>>, vector<1x32xf32>
    %cst_78 = arith.constant dense<0.000000e+00> : vector<8x32xf32>
    %241 = tpu.matmul %238, %239, %cst_78 {dimension_numbers = #tpu.dot_dimension_numbers<[1], [0], [0], [1], [0, 0, 1, 1], [], []>} : vector<8x32xf32>, vector<32x32xf32>, vector<8x32xf32> -> vector<8x32xf32>
    %242 = vector.broadcast %240 : vector<1x32xf32> to vector<8x32xf32>
    %243 = arith.addf %241, %242 : vector<8x32xf32>
    %c0_79 = arith.constant 0 : index
    %c4578 = arith.constant 4578 : index
    %244 = vector.load %arg5[%c0_79, %c4578] : memref<1x4946xf32, #tpu.memory_space<vmem>>, vector<1x32xf32>
    %c0_80 = arith.constant 0 : index
    %c4610 = arith.constant 4610 : index
    %245 = vector.load %arg5[%c0_80, %c4610] : memref<1x4946xf32, #tpu.memory_space<vmem>>, vector<1x32xf32>
    %246 = arith.addf %193, %243 : vector<8x32xf32>
    %cst_81 = arith.constant dense<0.000000e+00> : vector<8xf32>
    %247 = vector.multi_reduction <add>, %246, %cst_81 [1] : vector<8x32xf32> to vector<8xf32>
    %248 = vector.shape_cast %247 : vector<8xf32> to vector<8x1xf32>
    %cst_82 = arith.constant 3.200000e+01 : f32
    %249 = vector.broadcast %cst_82 : f32 to vector<8x1xf32>
    %250 = arith.divf %248, %249 : vector<8x1xf32>
    %251 = vector.broadcast %250 : vector<8x1xf32> to vector<8x32xf32>
    %252 = arith.subf %246, %251 : vector<8x32xf32>
    %253 = arith.mulf %252, %252 : vector<8x32xf32>
    %cst_83 = arith.constant dense<0.000000e+00> : vector<8xf32>
    %254 = vector.multi_reduction <add>, %253, %cst_83 [1] : vector<8x32xf32> to vector<8xf32>
    %255 = vector.shape_cast %254 : vector<8xf32> to vector<8x1xf32>
    %cst_84 = arith.constant 3.200000e+01 : f32
    %256 = vector.broadcast %cst_84 : f32 to vector<8x1xf32>
    %257 = arith.divf %255, %256 : vector<8x1xf32>
    %258 = vector.broadcast %250 : vector<8x1xf32> to vector<8x32xf32>
    %259 = arith.subf %246, %258 : vector<8x32xf32>
    %cst_85 = arith.constant 9.99999974E-6 : f32
    %260 = vector.broadcast %cst_85 : f32 to vector<8x1xf32>
    %261 = arith.addf %257, %260 : vector<8x1xf32>
    %262 = math.rsqrt %261 : vector<8x1xf32>
    %263 = vector.broadcast %262 : vector<8x1xf32> to vector<8x32xf32>
    %264 = arith.mulf %259, %263 : vector<8x32xf32>
    %265 = vector.broadcast %244 : vector<1x32xf32> to vector<8x32xf32>
    %266 = arith.mulf %264, %265 : vector<8x32xf32>
    %267 = vector.broadcast %245 : vector<1x32xf32> to vector<8x32xf32>
    %268 = arith.addf %266, %267 : vector<8x32xf32>
    %269 = vector.shape_cast %191 : vector<4x8x32xf32> to vector<32x32xf32>
    %c0_86 = arith.constant 0 : index
    %c4450_87 = arith.constant 4450 : index
    %270 = vector.load %arg3[%c0_86, %c4450_87] : memref<32x4562xf32, #tpu.memory_space<vmem>>, vector<32x64xf32>
    %c0_88 = arith.constant 0 : index
    %c4674 = arith.constant 4674 : index
    %271 = vector.load %arg5[%c0_88, %c4674] : memref<1x4946xf32, #tpu.memory_space<vmem>>, vector<1x64xf32>
    %cst_89 = arith.constant dense<0.000000e+00> : vector<32x64xf32>
    %272 = tpu.matmul %269, %270, %cst_89 {dimension_numbers = #tpu.dot_dimension_numbers<[1], [0], [0], [1], [0, 0, 1, 1], [], []>} : vector<32x32xf32>, vector<32x64xf32>, vector<32x64xf32> -> vector<32x64xf32>
    %273 = vector.broadcast %271 : vector<1x64xf32> to vector<32x64xf32>
    %274 = arith.addf %272, %273 : vector<32x64xf32>
    %c0_90 = arith.constant 0 : index
    %c4418 = arith.constant 4418 : index
    %275 = vector.load %arg3[%c0_90, %c4418] : memref<32x4562xf32, #tpu.memory_space<vmem>>, vector<32x32xf32>
    %c0_91 = arith.constant 0 : index
    %c4642 = arith.constant 4642 : index
    %276 = vector.load %arg5[%c0_91, %c4642] : memref<1x4946xf32, #tpu.memory_space<vmem>>, vector<1x32xf32>
    %cst_92 = arith.constant dense<0.000000e+00> : vector<8x32xf32>
    %277 = tpu.matmul %268, %275, %cst_92 {dimension_numbers = #tpu.dot_dimension_numbers<[1], [0], [0], [1], [0, 0, 1, 1], [], []>} : vector<8x32xf32>, vector<32x32xf32>, vector<8x32xf32> -> vector<8x32xf32>
    %278 = vector.broadcast %276 : vector<1x32xf32> to vector<8x32xf32>
    %279 = arith.addf %277, %278 : vector<8x32xf32>
    %280 = vector.shape_cast %279 : vector<8x32xf32> to vector<1x8x32xf32>
    %281 = vector.extract_strided_slice %274 {offsets = [0, 0], sizes = [32, 32], strides = [1, 1]} : vector<32x64xf32> to vector<32x32xf32>
    %282 = vector.shape_cast %281 : vector<32x32xf32> to vector<4x8x32xf32>
    %283 = vector.extract_strided_slice %274 {offsets = [0, 32], sizes = [32, 32], strides = [1, 1]} : vector<32x64xf32> to vector<32x32xf32>
    %284 = vector.shape_cast %283 : vector<32x32xf32> to vector<4x8x32xf32>
    %285 = vector.extract_strided_slice %280 {offsets = [0, 0, 0], sizes = [1, 8, 8], strides = [1, 1, 1]} : vector<1x8x32xf32> to vector<1x8x8xf32>
    %286 = vector.extract_strided_slice %280 {offsets = [0, 0, 8], sizes = [1, 8, 8], strides = [1, 1, 1]} : vector<1x8x32xf32> to vector<1x8x8xf32>
    %287 = vector.extract_strided_slice %280 {offsets = [0, 0, 16], sizes = [1, 8, 8], strides = [1, 1, 1]} : vector<1x8x32xf32> to vector<1x8x8xf32>
    %288 = vector.extract_strided_slice %280 {offsets = [0, 0, 24], sizes = [1, 8, 8], strides = [1, 1, 1]} : vector<1x8x32xf32> to vector<1x8x8xf32>
    %289 = tpu.concatenate %285, %286, %287, %288 in 0 : vector<1x8x8xf32>, vector<1x8x8xf32>, vector<1x8x8xf32>, vector<1x8x8xf32> -> vector<4x8x8xf32>
    %290 = vector.extract_strided_slice %282 {offsets = [0, 0, 0], sizes = [4, 8, 8], strides = [1, 1, 1]} : vector<4x8x32xf32> to vector<4x8x8xf32>
    %291 = vector.extract_strided_slice %282 {offsets = [0, 0, 8], sizes = [4, 8, 8], strides = [1, 1, 1]} : vector<4x8x32xf32> to vector<4x8x8xf32>
    %292 = vector.extract_strided_slice %282 {offsets = [0, 0, 16], sizes = [4, 8, 8], strides = [1, 1, 1]} : vector<4x8x32xf32> to vector<4x8x8xf32>
    %293 = vector.extract_strided_slice %282 {offsets = [0, 0, 24], sizes = [4, 8, 8], strides = [1, 1, 1]} : vector<4x8x32xf32> to vector<4x8x8xf32>
    %294 = tpu.concatenate %290, %291, %292, %293 in 0 : vector<4x8x8xf32>, vector<4x8x8xf32>, vector<4x8x8xf32>, vector<4x8x8xf32> -> vector<16x8x8xf32>
    %295 = vector.extract_strided_slice %284 {offsets = [0, 0, 0], sizes = [4, 8, 8], strides = [1, 1, 1]} : vector<4x8x32xf32> to vector<4x8x8xf32>
    %296 = vector.extract_strided_slice %284 {offsets = [0, 0, 8], sizes = [4, 8, 8], strides = [1, 1, 1]} : vector<4x8x32xf32> to vector<4x8x8xf32>
    %297 = vector.extract_strided_slice %284 {offsets = [0, 0, 16], sizes = [4, 8, 8], strides = [1, 1, 1]} : vector<4x8x32xf32> to vector<4x8x8xf32>
    %298 = vector.extract_strided_slice %284 {offsets = [0, 0, 24], sizes = [4, 8, 8], strides = [1, 1, 1]} : vector<4x8x32xf32> to vector<4x8x8xf32>
    %299 = tpu.concatenate %295, %296, %297, %298 in 0 : vector<4x8x8xf32>, vector<4x8x8xf32>, vector<4x8x8xf32>, vector<4x8x8xf32> -> vector<16x8x8xf32>
    %300 = vector.shape_cast %289 : vector<4x8x8xf32> to vector<4x1x8x8xf32>
    %301 = vector.shape_cast %300 : vector<4x1x8x8xf32> to vector<4x1x8x8xf32>
    %302 = vector.broadcast %301 : vector<4x1x8x8xf32> to vector<4x4x8x8xf32>
    %303 = vector.shape_cast %302 : vector<4x4x8x8xf32> to vector<16x8x8xf32>
    "tpu.trace_start"() <{level = 10 : i32, message = "bqd,bkd->bqk"}> : () -> ()
    %cst_93 = arith.constant dense<0.000000e+00> : vector<16x8x8xf32>
    %304 = tpu.matmul %303, %294, %cst_93 {dimension_numbers = #tpu.dot_dimension_numbers<[2], [2], [1], [1], [0, 0, 0, 1, 1, 1], [0], [0]>} : vector<16x8x8xf32>, vector<16x8x8xf32>, vector<16x8x8xf32> -> vector<16x8x8xf32>
    "tpu.trace_stop"() : () -> ()
    %cst_94 = arith.constant 0.353553385 : f32
    %305 = vector.broadcast %cst_94 : f32 to vector<16x8x8xf32>
    %306 = arith.mulf %304, %305 : vector<16x8x8xf32>
    %307 = vector.shape_cast %306 : vector<16x8x8xf32> to vector<4x4x8x8xf32>
    %308 = vector.broadcast %181 : vector<1x4x1x8xf32> to vector<4x4x8x8xf32>
    %309 = arith.addf %307, %308 : vector<4x4x8x8xf32>
    %310 = vector.shape_cast %309 : vector<4x4x8x8xf32> to vector<16x8x8xf32>
    %cst_95 = arith.constant dense<0xFF800000> : vector<16x8xf32>
    %311 = vector.multi_reduction <maximumf>, %310, %cst_95 [2] : vector<16x8x8xf32> to vector<16x8xf32>
    %312 = vector.shape_cast %311 : vector<16x8xf32> to vector<16x8x1xf32>
    %313 = vector.broadcast %312 : vector<16x8x1xf32> to vector<16x8x8xf32>
    %314 = arith.subf %310, %313 : vector<16x8x8xf32>
    %315 = math.exp %314 : vector<16x8x8xf32>
    %cst_96 = arith.constant dense<0.000000e+00> : vector<16x8xf32>
    %316 = vector.multi_reduction <add>, %315, %cst_96 [2] : vector<16x8x8xf32> to vector<16x8xf32>
    %317 = vector.shape_cast %316 : vector<16x8xf32> to vector<16x8x1xf32>
    %318 = vector.broadcast %317 : vector<16x8x1xf32> to vector<16x8x8xf32>
    %319 = arith.divf %315, %318 : vector<16x8x8xf32>
    "tpu.trace_start"() <{level = 10 : i32, message = "bqk,bkd->bqd"}> : () -> ()
    %cst_97 = arith.constant dense<0.000000e+00> : vector<16x8x8xf32>
    %320 = tpu.matmul %319, %299, %cst_97 {dimension_numbers = #tpu.dot_dimension_numbers<[2], [1], [1], [2], [0, 0, 0, 1, 1, 2], [0], [0]>} : vector<16x8x8xf32>, vector<16x8x8xf32>, vector<16x8x8xf32> -> vector<16x8x8xf32>
    "tpu.trace_stop"() : () -> ()
    %321 = vector.extract_strided_slice %320 {offsets = [0, 0, 0], sizes = [4, 8, 8], strides = [1, 1, 1]} : vector<16x8x8xf32> to vector<4x8x8xf32>
    %322 = vector.extract_strided_slice %320 {offsets = [4, 0, 0], sizes = [4, 8, 8], strides = [1, 1, 1]} : vector<16x8x8xf32> to vector<4x8x8xf32>
    %323 = vector.extract_strided_slice %320 {offsets = [8, 0, 0], sizes = [4, 8, 8], strides = [1, 1, 1]} : vector<16x8x8xf32> to vector<4x8x8xf32>
    %324 = vector.extract_strided_slice %320 {offsets = [12, 0, 0], sizes = [4, 8, 8], strides = [1, 1, 1]} : vector<16x8x8xf32> to vector<4x8x8xf32>
    %325 = tpu.concatenate %321, %322, %323, %324 in 2 : vector<4x8x8xf32>, vector<4x8x8xf32>, vector<4x8x8xf32>, vector<4x8x8xf32> -> vector<4x8x32xf32>
    %326 = vector.shape_cast %325 : vector<4x8x32xf32> to vector<32x32xf32>
    %c0_98 = arith.constant 0 : index
    %c4514 = arith.constant 4514 : index
    %327 = vector.load %arg3[%c0_98, %c4514] : memref<32x4562xf32, #tpu.memory_space<vmem>>, vector<32x32xf32>
    %c0_99 = arith.constant 0 : index
    %c4738 = arith.constant 4738 : index
    %328 = vector.load %arg5[%c0_99, %c4738] : memref<1x4946xf32, #tpu.memory_space<vmem>>, vector<1x32xf32>
    %cst_100 = arith.constant dense<0.000000e+00> : vector<32x32xf32>
    %329 = tpu.matmul %326, %327, %cst_100 {dimension_numbers = #tpu.dot_dimension_numbers<[1], [0], [0], [1], [0, 0, 1, 1], [], []>} : vector<32x32xf32>, vector<32x32xf32>, vector<32x32xf32> -> vector<32x32xf32>
    %330 = vector.broadcast %328 : vector<1x32xf32> to vector<32x32xf32>
    %331 = arith.addf %329, %330 : vector<32x32xf32>
    %332 = vector.shape_cast %268 : vector<8x32xf32> to vector<1x8x32xf32>
    %333 = vector.shape_cast %332 : vector<1x8x32xf32> to vector<1x8x32xf32>
    %334 = vector.broadcast %333 : vector<1x8x32xf32> to vector<4x8x32xf32>
    %335 = vector.shape_cast %334 : vector<4x8x32xf32> to vector<32x32xf32>
    %c0_101 = arith.constant 0 : index
    %c4770 = arith.constant 4770 : index
    %336 = vector.load %arg5[%c0_101, %c4770] : memref<1x4946xf32, #tpu.memory_space<vmem>>, vector<1x32xf32>
    %c0_102 = arith.constant 0 : index
    %c4802 = arith.constant 4802 : index
    %337 = vector.load %arg5[%c0_102, %c4802] : memref<1x4946xf32, #tpu.memory_space<vmem>>, vector<1x32xf32>
    %338 = arith.addf %335, %331 : vector<32x32xf32>
    %cst_103 = arith.constant dense<0.000000e+00> : vector<32xf32>
    %339 = vector.multi_reduction <add>, %338, %cst_103 [1] : vector<32x32xf32> to vector<32xf32>
    %340 = vector.shape_cast %339 : vector<32xf32> to vector<32x1xf32>
    %cst_104 = arith.constant 3.200000e+01 : f32
    %341 = vector.broadcast %cst_104 : f32 to vector<32x1xf32>
    %342 = arith.divf %340, %341 : vector<32x1xf32>
    %343 = vector.broadcast %342 : vector<32x1xf32> to vector<32x32xf32>
    %344 = arith.subf %338, %343 : vector<32x32xf32>
    %345 = arith.mulf %344, %344 : vector<32x32xf32>
    %cst_105 = arith.constant dense<0.000000e+00> : vector<32xf32>
    %346 = vector.multi_reduction <add>, %345, %cst_105 [1] : vector<32x32xf32> to vector<32xf32>
    %347 = vector.shape_cast %346 : vector<32xf32> to vector<32x1xf32>
    %cst_106 = arith.constant 3.200000e+01 : f32
    %348 = vector.broadcast %cst_106 : f32 to vector<32x1xf32>
    %349 = arith.divf %347, %348 : vector<32x1xf32>
    %350 = vector.broadcast %342 : vector<32x1xf32> to vector<32x32xf32>
    %351 = arith.subf %338, %350 : vector<32x32xf32>
    %cst_107 = arith.constant 9.99999974E-6 : f32
    %352 = vector.broadcast %cst_107 : f32 to vector<32x1xf32>
    %353 = arith.addf %349, %352 : vector<32x1xf32>
    %354 = math.rsqrt %353 : vector<32x1xf32>
    %355 = vector.broadcast %354 : vector<32x1xf32> to vector<32x32xf32>
    %356 = arith.mulf %351, %355 : vector<32x32xf32>
    %357 = vector.broadcast %336 : vector<1x32xf32> to vector<32x32xf32>
    %358 = arith.mulf %356, %357 : vector<32x32xf32>
    %359 = vector.broadcast %337 : vector<1x32xf32> to vector<32x32xf32>
    %360 = arith.addf %358, %359 : vector<32x32xf32>
    %c0_108 = arith.constant 0 : index
    %c2048 = arith.constant 2048 : index
    %361 = vector.load %arg3[%c0_108, %c2048] : memref<32x4562xf32, #tpu.memory_space<vmem>>, vector<32x2048xf32>
    %c0_109 = arith.constant 0 : index
    %c2048_110 = arith.constant 2048 : index
    %362 = vector.load %arg5[%c0_109, %c2048_110] : memref<1x4946xf32, #tpu.memory_space<vmem>>, vector<1x2048xf32>
    %cst_111 = arith.constant dense<0.000000e+00> : vector<32x2048xf32>
    %363 = tpu.matmul %360, %361, %cst_111 {dimension_numbers = #tpu.dot_dimension_numbers<[1], [0], [0], [1], [0, 0, 1, 1], [], []>} : vector<32x32xf32>, vector<32x2048xf32>, vector<32x2048xf32> -> vector<32x2048xf32>
    %364 = vector.broadcast %362 : vector<1x2048xf32> to vector<32x2048xf32>
    %365 = arith.addf %363, %364 : vector<32x2048xf32>
    %cst_112 = arith.constant 0.000000e+00 : f32
    %366 = vector.broadcast %cst_112 : f32 to vector<32x2048xf32>
    %367 = arith.maximumf %365, %366 : vector<32x2048xf32>
    %c0_113 = arith.constant 0 : index
    %c32 = arith.constant 32 : index
    %368 = vector.load %arg4[%c0_113, %c32] : memref<2048x64xf32, #tpu.memory_space<vmem>>, vector<2048x32xf32>
    %c0_114 = arith.constant 0 : index
    %c4834 = arith.constant 4834 : index
    %369 = vector.load %arg5[%c0_114, %c4834] : memref<1x4946xf32, #tpu.memory_space<vmem>>, vector<1x32xf32>
    %cst_115 = arith.constant dense<0.000000e+00> : vector<32x32xf32>
    %370 = tpu.matmul %367, %368, %cst_115 {dimension_numbers = #tpu.dot_dimension_numbers<[1], [0], [0], [1], [0, 0, 1, 1], [], []>} : vector<32x2048xf32>, vector<2048x32xf32>, vector<32x32xf32> -> vector<32x32xf32>
    %371 = vector.broadcast %369 : vector<1x32xf32> to vector<32x32xf32>
    %372 = arith.addf %370, %371 : vector<32x32xf32>
    %c0_116 = arith.constant 0 : index
    %c4866 = arith.constant 4866 : index
    %373 = vector.load %arg5[%c0_116, %c4866] : memref<1x4946xf32, #tpu.memory_space<vmem>>, vector<1x32xf32>
    %c0_117 = arith.constant 0 : index
    %c4898 = arith.constant 4898 : index
    %374 = vector.load %arg5[%c0_117, %c4898] : memref<1x4946xf32, #tpu.memory_space<vmem>>, vector<1x32xf32>
    %375 = arith.addf %360, %372 : vector<32x32xf32>
    %cst_118 = arith.constant dense<0.000000e+00> : vector<32xf32>
    %376 = vector.multi_reduction <add>, %375, %cst_118 [1] : vector<32x32xf32> to vector<32xf32>
    %377 = vector.shape_cast %376 : vector<32xf32> to vector<32x1xf32>
    %cst_119 = arith.constant 3.200000e+01 : f32
    %378 = vector.broadcast %cst_119 : f32 to vector<32x1xf32>
    %379 = arith.divf %377, %378 : vector<32x1xf32>
    %380 = vector.broadcast %379 : vector<32x1xf32> to vector<32x32xf32>
    %381 = arith.subf %375, %380 : vector<32x32xf32>
    %382 = arith.mulf %381, %381 : vector<32x32xf32>
    %cst_120 = arith.constant dense<0.000000e+00> : vector<32xf32>
    %383 = vector.multi_reduction <add>, %382, %cst_120 [1] : vector<32x32xf32> to vector<32xf32>
    %384 = vector.shape_cast %383 : vector<32xf32> to vector<32x1xf32>
    %cst_121 = arith.constant 3.200000e+01 : f32
    %385 = vector.broadcast %cst_121 : f32 to vector<32x1xf32>
    %386 = arith.divf %384, %385 : vector<32x1xf32>
    %387 = vector.broadcast %379 : vector<32x1xf32> to vector<32x32xf32>
    %388 = arith.subf %375, %387 : vector<32x32xf32>
    %cst_122 = arith.constant 9.99999974E-6 : f32
    %389 = vector.broadcast %cst_122 : f32 to vector<32x1xf32>
    %390 = arith.addf %386, %389 : vector<32x1xf32>
    %391 = math.rsqrt %390 : vector<32x1xf32>
    %392 = vector.broadcast %391 : vector<32x1xf32> to vector<32x32xf32>
    %393 = arith.mulf %388, %392 : vector<32x32xf32>
    %394 = vector.broadcast %373 : vector<1x32xf32> to vector<32x32xf32>
    %395 = arith.mulf %393, %394 : vector<32x32xf32>
    %396 = vector.broadcast %374 : vector<1x32xf32> to vector<32x32xf32>
    %397 = arith.addf %395, %396 : vector<32x32xf32>
    %c0_123 = arith.constant 0 : index
    %c4546_124 = arith.constant 4546 : index
    %398 = vector.load %arg3[%c0_123, %c4546_124] : memref<32x4562xf32, #tpu.memory_space<vmem>>, vector<32x16xf32>
    %c0_125 = arith.constant 0 : index
    %c4930 = arith.constant 4930 : index
    %399 = vector.load %arg5[%c0_125, %c4930] : memref<1x4946xf32, #tpu.memory_space<vmem>>, vector<1x16xf32>
    %cst_126 = arith.constant dense<0.000000e+00> : vector<32x16xf32>
    %400 = tpu.matmul %397, %398, %cst_126 {dimension_numbers = #tpu.dot_dimension_numbers<[1], [0], [0], [1], [0, 0, 1, 1], [], []>} : vector<32x32xf32>, vector<32x16xf32>, vector<32x16xf32> -> vector<32x16xf32>
    %401 = vector.broadcast %399 : vector<1x16xf32> to vector<32x16xf32>
    %402 = arith.addf %400, %401 : vector<32x16xf32>
    %403 = vector.shape_cast %402 : vector<32x16xf32> to vector<4x8x16xf32>
    %c0_127 = arith.constant 0 : index
    %c0_128 = arith.constant 0 : index
    %c0_129 = arith.constant 0 : index
    %404 = vector.load %arg6[%c0_127, %c0_128, %c0_129] : memref<4x8x16xf32, #tpu.memory_space<vmem>>, vector<4x8x16xf32>
    tpu.vector_store %arg6[%c0_127, %c0_128, %c0_129], %403 {strides = array<i32>} : memref<4x8x16xf32, #tpu.memory_space<vmem>>, vector<4x8x16xf32>,
    return
  }
}

</mosaic_0001>

<llo_original>
// kernel: _lambda_.1
$region0: #{_lambda_.1}
  #allocation0 [shape = 'u32[]', space=smem, size = 0x4, offset = 0x4, fixed_abs, tag = 'smem constant byte address 0x4 - core index']
  #allocation1 [shape = 'u32[144,128]{1,0:T(1,128)}', space=vmem, size = 0x12000, scoped, tag = 'internal scratch']
  %s0 = inlined_call_operand.vmem [shape: f32[2,8,32], index: 0, kind: input, shape index: {}]
  %s1 = inlined_call_operand.vmem [shape: f32[1,8,32], index: 1, kind: input, shape index: {}]
  %s2 = inlined_call_operand.vmem [shape: f32[1,8,32], index: 2, kind: input, shape index: {}]
  %s3 = inlined_call_operand.vmem [shape: f32[32,4562], index: 3, kind: input, shape index: {}]
  %s4 = inlined_call_operand.vmem [shape: f32[2048,64], index: 4, kind: input, shape index: {}]
  %s5 = inlined_call_operand.vmem [shape: f32[1,4946], index: 5, kind: input, shape index: {}]
  %s6 = inlined_call_operand.vmem [shape: f32[4,8,16], index: 6, kind: output, shape index: {}]
  %s7 = sld [smem:[#allocation0]]
  $region34: #{_lambda_.1} parent=0
    _
  %s9 = ssub.s32 1, %s7
  %s10 = scalar_select 0, %s9, %s7
  // Predicated region
  $region2: #{_lambda_.1} parent=0 // pred_check
    _
  $region3: #{_lambda_.1} parent=0 // pred_check_branch
    %12 = sbr.rel (0) target = $region5
  $region4: #{_lambda_.1} parent=0 // pred_region
    _
  $region5: #{_lambda_.1} parent=0 // pred_fallthru
    _
  // Predicated region
  $region6: #{_lambda_.1} parent=0 // pred_check
    _
  $region7: #{_lambda_.1} parent=0 // pred_check_branch
    %14 = sbr.rel (0) target = $region9
  $region8: #{_lambda_.1} parent=0 // pred_region
    _
  $region9: #{_lambda_.1} parent=0 // pred_fallthru
    _
  // Predicated region
  $region10: #{_lambda_.1} parent=0 // pred_check
    _
  $region11: #{_lambda_.1} parent=0 // pred_check_branch
    %16 = sbr.rel (0) target = $region13
  $region12: #{_lambda_.1} parent=0 // pred_region
    _
  $region13: #{_lambda_.1} parent=0 // pred_fallthru
    _
  // Predicated region
  $region14: #{_lambda_.1} parent=0 // pred_check
    _
  $region15: #{_lambda_.1} parent=0 // pred_check_branch
    %18 = sbr.rel (0) target = $region17
  $region16: #{_lambda_.1} parent=0 // pred_region
    _
  $region17: #{_lambda_.1} parent=0 // pred_fallthru
    _
  // Predicated region
  $region18: #{_lambda_.1} parent=0 // pred_check
    _
  $region19: #{_lambda_.1} parent=0 // pred_check_branch
    %20 = sbr.rel (0) target = $region21
  $region20: #{_lambda_.1} parent=0 // pred_region
    _
  $region21: #{_lambda_.1} parent=0 // pred_fallthru
    _
  // Predicated region
  $region22: #{_lambda_.1} parent=0 // pred_check
    _
  $region23: #{_lambda_.1} parent=0 // pred_check_branch
    %22 = sbr.rel (0) target = $region25
  $region24: #{_lambda_.1} parent=0 // pred_region
    _
  $region25: #{_lambda_.1} parent=0 // pred_fallthru
    _
  %v23 = vld [vmem:[%s0] sm:$0xff]
  %v24 = vld [vmem:[%s0 + $0x8] sm:$0xff]
  %v25 = vld [vmem:[%s1] sm:$0xff]
  %v26 = vadd.f32 %v23, %v25
  %v27 = vadd.f32 %v24, %v25
  %v28 = vld [vmem:[%s3 + $0x100] sm:$0xff]
  %v29 = vld [vmem:[%s3 + $0x220] sm:$0xff]
  %v30 = vld [vmem:[%s3 + $0x340] sm:$0xff]
  %v31 = vld [vmem:[%s3 + $0x460] sm:$0xff]
  %v32 = vld [vmem:[%s5 + $0x20] sm:$0x1]
  %v34 = vlaneseq
  %v35 = vshrl.u32 %v34, 7
  %v36 = vsub.s32 0, %v35
  %v37 = vrot.slane %v32, %v36
  %vm39 = vcmask 261120
  %v41 = vsel %vm39, %v26, 0
  %v44 = vsel %vm39, %v27, 0
  %46 = vmatprep.subr.mxu0 0.0
  %47 = vmatpush1.msra.mxu0 0.0
  %48 = vmatprep.subr.mxu0 0.0
  %49 = vmatpush1.msra.mxu0 0.0
  %50 = vmatprep.subr.mxu0 0.0
  %51 = vmatpush1.msra.mxu0 0.0
  %52 = vmatprep.subr.mxu0 0.0
  %53 = vmatpush1.msra.mxu0 0.0
  %54 = vmatprep.subr.mxu0 0.0
  %55 = vmatpush1.msra.mxu0 0.0
  %56 = vmatprep.subr.mxu0 0.0
  %57 = vmatpush1.msra.mxu0 0.0
  %58 = vmatprep.subr.mxu0 0.0
  %59 = vmatpush1.msra.mxu0 0.0
  %60 = vmatprep.subr.mxu0 0.0
  %61 = vmatpush1.msra.mxu0 0.0
  %62 = vmatprep.subr.mxu0 0.0
  %63 = vmatpush1.msra.mxu0 0.0
  %64 = vmatprep.subr.mxu0 0.0
  %65 = vmatpush1.msra.mxu0 0.0
  %66 = vmatprep.subr.mxu0 0.0
  %67 = vmatpush1.msra.mxu0 0.0
  %68 = vmatprep.subr.mxu0 0.0
  %69 = vmatpush1.msra.mxu0 0.0
  %70 = vmatprep.subr.mxu0 0.0
  %71 = vmatpush1.msra.mxu0 %v31
  %72 = vmatprep.subr.mxu0 0.0
  %73 = vmatpush1.msra.mxu0 %v30
  %74 = vmatprep.subr.mxu0 0.0
  %75 = vmatpush1.msra.mxu0 %v29
  %76 = vmatprep.subr.mxu0 0.0
  %77 = vmatpush1.msra.mxu0 %v28
  %78 = vmatprep.subr.mxu0 0.0
  %79 = vmatpush2.msra.mxu0 0.0
  %80 = vmatprep.subr.mxu0 0.0
  %81 = vmatpush2.msra.mxu0 0.0
  %82 = vmatprep.subr.mxu0 0.0
  %83 = vmatpush2.msra.mxu0 0.0
  %84 = vmatprep.subr.mxu0 0.0
  %85 = vmatpush2.msra.mxu0 0.0
  %86 = vmatprep.subr.mxu0 0.0
  %87 = vmatpush2.msra.mxu0 0.0
  %88 = vmatprep.subr.mxu0 0.0
  %89 = vmatpush2.msra.mxu0 0.0
  %90 = vmatprep.subr.mxu0 0.0
  %91 = vmatpush2.msra.mxu0 0.0
  %92 = vmatprep.subr.mxu0 0.0
  %93 = vmatpush2.msra.mxu0 0.0
  %94 = vmatprep.subr.mxu0 0.0
  %95 = vmatpush2.msra.mxu0 0.0
  %96 = vmatprep.subr.mxu0 0.0
  %97 = vmatpush2.msra.mxu0 0.0
  %98 = vmatprep.subr.mxu0 0.0
  %99 = vmatpush2.msra.mxu0 0.0
  %100 = vmatprep.subr.mxu0 0.0
  %101 = vmatpush2.msra.mxu0 0.0
  %102 = vmatprep.subr.mxu0 0.0
  %103 = vmatpush2.msra.mxu0 0.0
  %104 = vmatprep.subr.mxu0 0.0
  %105 = vmatpush2.msra.mxu0 0.0
  %106 = vmatprep.subr.mxu0 0.0
  %107 = vmatpush2.msra.mxu0 0.0
  %108 = vmatprep.subr.mxu0 0.0
  %109 = vmatpush2.msra.mxu0 0.0
  %110 = vmatprep.mubr.f32.mxu0 0.0
  %111 = vmatmul.mubr.f32.gmra.mxu0 %v41
  %v112 = vpop.f32.mrf.mxu0
  %v113 = vadd.f32 %v37, %v112
  %v114 = vpop.f32.mrf.mxu0
  %115 = vmatprep.mubr.f32.mxu0 0.0
  %116 = vmatmul.mubr.f32.gmra.mxu0 %v44
  %v117 = vpop.f32.mrf.mxu0
  %v118 = vadd.f32 %v37, %v117
  %v119 = vpop.f32.mrf.mxu0
  %120 = vdwg.mxu0
  %123 = vrot.lane.b32.xlu0 %v113, 120
  %v124 = vpop.permute.xlu0 %123
  %125 = vrot.lane.b32.xlu0 %v118, 120
  %v126 = vpop.permute.xlu0 %125
  %127 = vrot.lane.b32.xlu0 %v113, 112
  %v128 = vpop.permute.xlu0 %127
  %129 = vrot.lane.b32.xlu0 %v118, 112
  %v130 = vpop.permute.xlu0 %129
  %131 = vrot.lane.b32.xlu0 %v113, 104
  %v132 = vpop.permute.xlu0 %131
  %133 = vrot.lane.b32.xlu0 %v118, 104
  %v134 = vpop.permute.xlu0 %133
  %135 = vrot.lane.b32.xlu0 %v113, 96
  %v136 = vpop.permute.xlu0 %135
  %vm137 = vcmask 64512
  %v138 = vsel %vm137, %v113, 0
  %v140 = vsel %vm137, %v136, 0
  %142 = vmatprep.subr.mxu0 0.0
  %143 = vmatpush1.xpose.msra.mxu0 0.0
  %144 = vmatprep.subr.mxu0 0.0
  %145 = vmatpush1.xpose.msra.mxu0 0.0
  %146 = vmatprep.subr.mxu0 0.0
  %147 = vmatpush1.xpose.msra.mxu0 0.0
  %148 = vmatprep.subr.mxu0 0.0
  %149 = vmatpush1.xpose.msra.mxu0 0.0
  %150 = vmatprep.subr.mxu0 0.0
  %151 = vmatpush1.xpose.msra.mxu0 0.0
  %152 = vmatprep.subr.mxu0 0.0
  %153 = vmatpush1.xpose.msra.mxu0 0.0
  %154 = vmatprep.subr.mxu0 0.0
  %155 = vmatpush1.xpose.msra.mxu0 0.0
  %156 = vmatprep.subr.mxu0 0.0
  %157 = vmatpush1.xpose.msra.mxu0 0.0
  %158 = vmatprep.subr.mxu0 0.0
  %159 = vmatpush1.xpose.msra.mxu0 0.0
  %160 = vmatprep.subr.mxu0 0.0
  %161 = vmatpush1.xpose.msra.mxu0 0.0
  %162 = vmatprep.subr.mxu0 0.0
  %163 = vmatpush1.xpose.msra.mxu0 0.0
  %164 = vmatprep.subr.mxu0 0.0
  %165 = vmatpush1.xpose.msra.mxu0 0.0
  %166 = vmatprep.subr.mxu0 0.0
  %167 = vmatpush1.xpose.msra.mxu0 0.0
  %168 = vmatprep.subr.mxu0 0.0
  %169 = vmatpush1.xpose.msra.mxu0 0.0
  %170 = vmatprep.subr.mxu0 0.0
  %171 = vmatpush1.xpose.msra.mxu0 0.0
  %172 = vmatprep.subr.mxu0 0.0
  %173 = vmatpush1.xpose.msra.mxu0 %v140
  %174 = vmatprep.subr.mxu0 0.0
  %175 = vmatpush2.xpose.msra.mxu0 0.0
  %176 = vmatprep.subr.mxu0 0.0
  %177 = vmatpush2.xpose.msra.mxu0 0.0
  %178 = vmatprep.subr.mxu0 0.0
  %179 = vmatpush2.xpose.msra.mxu0 0.0
  %180 = vmatprep.subr.mxu0 0.0
  %181 = vmatpush2.xpose.msra.mxu0 0.0
  %182 = vmatprep.subr.mxu0 0.0
  %183 = vmatpush2.xpose.msra.mxu0 0.0
  %184 = vmatprep.subr.mxu0 0.0
  %185 = vmatpush2.xpose.msra.mxu0 0.0
  %186 = vmatprep.subr.mxu0 0.0
  %187 = vmatpush2.xpose.msra.mxu0 0.0
  %188 = vmatprep.subr.mxu0 0.0
  %189 = vmatpush2.xpose.msra.mxu0 0.0
  %190 = vmatprep.subr.mxu0 0.0
  %191 = vmatpush2.xpose.msra.mxu0 0.0
  %192 = vmatprep.subr.mxu0 0.0
  %193 = vmatpush2.xpose.msra.mxu0 0.0
  %194 = vmatprep.subr.mxu0 0.0
  %195 = vmatpush2.xpose.msra.mxu0 0.0
  %196 = vmatprep.subr.mxu0 0.0
  %197 = vmatpush2.xpose.msra.mxu0 0.0
  %198 = vmatprep.subr.mxu0 0.0
  %199 = vmatpush2.xpose.msra.mxu0 0.0
  %200 = vmatprep.subr.mxu0 0.0
  %201 = vmatpush2.xpose.msra.mxu0 0.0
  %202 = vmatprep.subr.mxu0 0.0
  %203 = vmatpush2.xpose.msra.mxu0 0.0
  %204 = vmatprep.subr.mxu0 0.0
  %205 = vmatpush2.xpose.msra.mxu0 0.0
  %206 = vmatprep.mubr.f32.mxu0 0.0
  %207 = vmatmul.mubr.f32.gmra.mxu0 %v138
  %v208 = vpop.f32.mrf.mxu0
  %v209 = vadd.f32 0.0, %v208
  %v210 = vpop.f32.mrf.mxu0
  %211 = vdwg.mxu0
  %212 = vrot.lane.b32.xlu0 %v118, 96
  %v213 = vpop.permute.xlu0 %212
  %v214 = vsel %vm137, %v118, 0
  %v216 = vsel %vm137, %v213, 0
  %218 = vmatprep.subr.mxu0 0.0
  %219 = vmatpush1.xpose.msra.mxu0 0.0
  %220 = vmatprep.subr.mxu0 0.0
  %221 = vmatpush1.xpose.msra.mxu0 0.0
  %222 = vmatprep.subr.mxu0 0.0
  %223 = vmatpush1.xpose.msra.mxu0 0.0
  %224 = vmatprep.subr.mxu0 0.0
  %225 = vmatpush1.xpose.msra.mxu0 0.0
  %226 = vmatprep.subr.mxu0 0.0
  %227 = vmatpush1.xpose.msra.mxu0 0.0
  %228 = vmatprep.subr.mxu0 0.0
  %229 = vmatpush1.xpose.msra.mxu0 0.0
  %230 = vmatprep.subr.mxu0 0.0
  %231 = vmatpush1.xpose.msra.mxu0 0.0
  %232 = vmatprep.subr.mxu0 0.0
  %233 = vmatpush1.xpose.msra.mxu0 0.0
  %234 = vmatprep.subr.mxu0 0.0
  %235 = vmatpush1.xpose.msra.mxu0 0.0
  %236 = vmatprep.subr.mxu0 0.0
  %237 = vmatpush1.xpose.msra.mxu0 0.0
  %238 = vmatprep.subr.mxu0 0.0
  %239 = vmatpush1.xpose.msra.mxu0 0.0
  %240 = vmatprep.subr.mxu0 0.0
  %241 = vmatpush1.xpose.msra.mxu0 0.0
  %242 = vmatprep.subr.mxu0 0.0
  %243 = vmatpush1.xpose.msra.mxu0 0.0
  %244 = vmatprep.subr.mxu0 0.0
  %245 = vmatpush1.xpose.msra.mxu0 0.0
  %246 = vmatprep.subr.mxu0 0.0
  %247 = vmatpush1.xpose.msra.mxu0 0.0
  %248 = vmatprep.subr.mxu0 0.0
  %249 = vmatpush1.xpose.msra.mxu0 %v216
  %250 = vmatprep.subr.mxu0 0.0
  %251 = vmatpush2.xpose.msra.mxu0 0.0
  %252 = vmatprep.subr.mxu0 0.0
  %253 = vmatpush2.xpose.msra.mxu0 0.0
  %254 = vmatprep.subr.mxu0 0.0
  %255 = vmatpush2.xpose.msra.mxu0 0.0
  %256 = vmatprep.subr.mxu0 0.0
  %257 = vmatpush2.xpose.msra.mxu0 0.0
  %258 = vmatprep.subr.mxu0 0.0
  %259 = vmatpush2.xpose.msra.mxu0 0.0
  %260 = vmatprep.subr.mxu0 0.0
  %261 = vmatpush2.xpose.msra.mxu0 0.0
  %262 = vmatprep.subr.mxu0 0.0
  %263 = vmatpush2.xpose.msra.mxu0 0.0
  %264 = vmatprep.subr.mxu0 0.0
  %265 = vmatpush2.xpose.msra.mxu0 0.0
  %266 = vmatprep.subr.mxu0 0.0
  %267 = vmatpush2.xpose.msra.mxu0 0.0
  %268 = vmatprep.subr.mxu0 0.0
  %269 = vmatpush2.xpose.msra.mxu0 0.0
  %270 = vmatprep.subr.mxu0 0.0
  %271 = vmatpush2.xpose.msra.mxu0 0.0
  %272 = vmatprep.subr.mxu0 0.0
  %273 = vmatpush2.xpose.msra.mxu0 0.0
  %274 = vmatprep.subr.mxu0 0.0
  %275 = vmatpush2.xpose.msra.mxu0 0.0
  %276 = vmatprep.subr.mxu0 0.0
  %277 = vmatpush2.xpose.msra.mxu0 0.0
  %278 = vmatprep.subr.mxu0 0.0
  %279 = vmatpush2.xpose.msra.mxu0 0.0
  %280 = vmatprep.subr.mxu0 0.0
  %281 = vmatpush2.xpose.msra.mxu0 0.0
  %282 = vmatprep.mubr.f32.mxu0 0.0
  %283 = vmatmul.mubr.f32.gmra.mxu0 %v214
  %v284 = vpop.f32.mrf.mxu0
  %v285 = vadd.f32 0.0, %v284
  %v286 = vpop.f32.mrf.mxu0
  %287 = vdwg.mxu0
  %288 = vrot.lane.b32.xlu0 %v124, 96
  %v289 = vpop.permute.xlu0 %288
  %v290 = vsel %vm137, %v124, 0
  %v292 = vsel %vm137, %v289, 0
  %294 = vmatprep.subr.mxu0 0.0
  %295 = vmatpush1.xpose.msra.mxu0 0.0
  %296 = vmatprep.subr.mxu0 0.0
  %297 = vmatpush1.xpose.msra.mxu0 0.0
  %298 = vmatprep.subr.mxu0 0.0
  %299 = vmatpush1.xpose.msra.mxu0 0.0
  %300 = vmatprep.subr.mxu0 0.0
  %301 = vmatpush1.xpose.msra.mxu0 0.0
  %302 = vmatprep.subr.mxu0 0.0
  %303 = vmatpush1.xpose.msra.mxu0 0.0
  %304 = vmatprep.subr.mxu0 0.0
  %305 = vmatpush1.xpose.msra.mxu0 0.0
  %306 = vmatprep.subr.mxu0 0.0
  %307 = vmatpush1.xpose.msra.mxu0 0.0
  %308 = vmatprep.subr.mxu0 0.0
  %309 = vmatpush1.xpose.msra.mxu0 0.0
  %310 = vmatprep.subr.mxu0 0.0
  %311 = vmatpush1.xpose.msra.mxu0 0.0
  %312 = vmatprep.subr.mxu0 0.0
  %313 = vmatpush1.xpose.msra.mxu0 0.0
  %314 = vmatprep.subr.mxu0 0.0
  %315 = vmatpush1.xpose.msra.mxu0 0.0
  %316 = vmatprep.subr.mxu0 0.0
  %317 = vmatpush1.xpose.msra.mxu0 0.0
  %318 = vmatprep.subr.mxu0 0.0
  %319 = vmatpush1.xpose.msra.mxu0 0.0
  %320 = vmatprep.subr.mxu0 0.0
  %321 = vmatpush1.xpose.msra.mxu0 0.0
  %322 = vmatprep.subr.mxu0 0.0
  %323 = vmatpush1.xpose.msra.mxu0 0.0
  %324 = vmatprep.subr.mxu0 0.0
  %325 = vmatpush1.xpose.msra.mxu0 %v292
  %326 = vmatprep.subr.mxu0 0.0
  %327 = vmatpush2.xpose.msra.mxu0 0.0
  %328 = vmatprep.subr.mxu0 0.0
  %329 = vmatpush2.xpose.msra.mxu0 0.0
  %330 = vmatprep.subr.mxu0 0.0
  %331 = vmatpush2.xpose.msra.mxu0 0.0
  %332 = vmatprep.subr.mxu0 0.0
  %333 = vmatpush2.xpose.msra.mxu0 0.0
  %334 = vmatprep.subr.mxu0 0.0
  %335 = vmatpush2.xpose.msra.mxu0 0.0
  %336 = vmatprep.subr.mxu0 0.0
  %337 = vmatpush2.xpose.msra.mxu0 0.0
  %338 = vmatprep.subr.mxu0 0.0
  %339 = vmatpush2.xpose.msra.mxu0 0.0
  %340 = vmatprep.subr.mxu0 0.0
  %341 = vmatpush2.xpose.msra.mxu0 0.0
  %342 = vmatprep.subr.mxu0 0.0
  %343 = vmatpush2.xpose.msra.mxu0 0.0
  %344 = vmatprep.subr.mxu0 0.0
  %345 = vmatpush2.xpose.msra.mxu0 0.0
  %346 = vmatprep.subr.mxu0 0.0
  %347 = vmatpush2.xpose.msra.mxu0 0.0
  %348 = vmatprep.subr.mxu0 0.0
  %349 = vmatpush2.xpose.msra.mxu0 0.0
  %350 = vmatprep.subr.mxu0 0.0
  %351 = vmatpush2.xpose.msra.mxu0 0.0
  %352 = vmatprep.subr.mxu0 0.0
  %353 = vmatpush2.xpose.msra.mxu0 0.0
  %354 = vmatprep.subr.mxu0 0.0
  %355 = vmatpush2.xpose.msra.mxu0 0.0
  %356 = vmatprep.subr.mxu0 0.0
  %357 = vmatpush2.xpose.msra.mxu0 0.0
  %358 = vmatprep.mubr.f32.mxu0 0.0
  %359 = vmatmul.mubr.f32.gmra.mxu0 %v290
  %v360 = vpop.f32.mrf.mxu0
  %v361 = vadd.f32 0.0, %v360
  %v362 = vpop.f32.mrf.mxu0
  %363 = vdwg.mxu0
  %364 = vrot.lane.b32.xlu0 %v126, 96
  %v365 = vpop.permute.xlu0 %364
  %v366 = vsel %vm137, %v126, 0
  %v368 = vsel %vm137, %v365, 0
  %370 = vmatprep.subr.mxu0 0.0
  %371 = vmatpush1.xpose.msra.mxu0 0.0
  %372 = vmatprep.subr.mxu0 0.0
  %373 = vmatpush1.xpose.msra.mxu0 0.0
  %374 = vmatprep.subr.mxu0 0.0
  %375 = vmatpush1.xpose.msra.mxu0 0.0
  %376 = vmatprep.subr.mxu0 0.0
  %377 = vmatpush1.xpose.msra.mxu0 0.0
  %378 = vmatprep.subr.mxu0 0.0
  %379 = vmatpush1.xpose.msra.mxu0 0.0
  %380 = vmatprep.subr.mxu0 0.0
  %381 = vmatpush1.xpose.msra.mxu0 0.0
  %382 = vmatprep.subr.mxu0 0.0
  %383 = vmatpush1.xpose.msra.mxu0 0.0
  %384 = vmatprep.subr.mxu0 0.0
  %385 = vmatpush1.xpose.msra.mxu0 0.0
  %386 = vmatprep.subr.mxu0 0.0
  %387 = vmatpush1.xpose.msra.mxu0 0.0
  %388 = vmatprep.subr.mxu0 0.0
  %389 = vmatpush1.xpose.msra.mxu0 0.0
  %390 = vmatprep.subr.mxu0 0.0
  %391 = vmatpush1.xpose.msra.mxu0 0.0
  %392 = vmatprep.subr.mxu0 0.0
  %393 = vmatpush1.xpose.msra.mxu0 0.0
  %394 = vmatprep.subr.mxu0 0.0
  %395 = vmatpush1.xpose.msra.mxu0 0.0
  %396 = vmatprep.subr.mxu0 0.0
  %397 = vmatpush1.xpose.msra.mxu0 0.0
  %398 = vmatprep.subr.mxu0 0.0
  %399 = vmatpush1.xpose.msra.mxu0 0.0
  %400 = vmatprep.subr.mxu0 0.0
  %401 = vmatpush1.xpose.msra.mxu0 %v368
  %402 = vmatprep.subr.mxu0 0.0
  %403 = vmatpush2.xpose.msra.mxu0 0.0
  %404 = vmatprep.subr.mxu0 0.0
  %405 = vmatpush2.xpose.msra.mxu0 0.0
  %406 = vmatprep.subr.mxu0 0.0
  %407 = vmatpush2.xpose.msra.mxu0 0.0
  %408 = vmatprep.subr.mxu0 0.0
  %409 = vmatpush2.xpose.msra.mxu0 0.0
  %410 = vmatprep.subr.mxu0 0.0
  %411 = vmatpush2.xpose.msra.mxu0 0.0
  %412 = vmatprep.subr.mxu0 0.0
  %413 = vmatpush2.xpose.msra.mxu0 0.0
  %414 = vmatprep.subr.mxu0 0.0
  %415 = vmatpush2.xpose.msra.mxu0 0.0
  %416 = vmatprep.subr.mxu0 0.0
  %417 = vmatpush2.xpose.msra.mxu0 0.0
  %418 = vmatprep.subr.mxu0 0.0
  %419 = vmatpush2.xpose.msra.mxu0 0.0
  %420 = vmatprep.subr.mxu0 0.0
  %421 = vmatpush2.xpose.msra.mxu0 0.0
  %422 = vmatprep.subr.mxu0 0.0
  %423 = vmatpush2.xpose.msra.mxu0 0.0
  %424 = vmatprep.subr.mxu0 0.0
  %425 = vmatpush2.xpose.msra.mxu0 0.0
  %426 = vmatprep.subr.mxu0 0.0
  %427 = vmatpush2.xpose.msra.mxu0 0.0
  %428 = vmatprep.subr.mxu0 0.0
  %429 = vmatpush2.xpose.msra.mxu0 0.0
  %430 = vmatprep.subr.mxu0 0.0
  %431 = vmatpush2.xpose.msra.mxu0 0.0
  %432 = vmatprep.subr.mxu0 0.0
  %433 = vmatpush2.xpose.msra.mxu0 0.0
  %434 = vmatprep.mubr.f32.mxu0 0.0
  %435 = vmatmul.mubr.f32.gmra.mxu0 %v366
  %v436 = vpop.f32.mrf.mxu0
  %v437 = vadd.f32 0.0, %v436
  %v438 = vpop.f32.mrf.mxu0
  %439 = vdwg.mxu0
  %440 = vrot.lane.b32.xlu0 %v128, 96
  %v441 = vpop.permute.xlu0 %440
  %v442 = vsel %vm137, %v128, 0
  %v444 = vsel %vm137, %v441, 0
  %446 = vmatprep.subr.mxu0 0.0
  %447 = vmatpush1.xpose.msra.mxu0 0.0
  %448 = vmatprep.subr.mxu0 0.0
  %449 = vmatpush1.xpose.msra.mxu0 0.0
  %450 = vmatprep.subr.mxu0 0.0
  %451 = vmatpush1.xpose.msra.mxu0 0.0
  %452 = vmatprep.subr.mxu0 0.0
  %453 = vmatpush1.xpose.msra.mxu0 0.0
  %454 = vmatprep.subr.mxu0 0.0
  %455 = vmatpush1.xpose.msra.mxu0 0.0
  %456 = vmatprep.subr.mxu0 0.0
  %457 = vmatpush1.xpose.msra.mxu0 0.0
  %458 = vmatprep.subr.mxu0 0.0
  %459 = vmatpush1.xpose.msra.mxu0 0.0
  %460 = vmatprep.subr.mxu0 0.0
  %461 = vmatpush1.xpose.msra.mxu0 0.0
  %462 = vmatprep.subr.mxu0 0.0
  %463 = vmatpush1.xpose.msra.mxu0 0.0
  %464 = vmatprep.subr.mxu0 0.0
  %465 = vmatpush1.xpose.msra.mxu0 0.0
  %466 = vmatprep.subr.mxu0 0.0
  %467 = vmatpush1.xpose.msra.mxu0 0.0
  %468 = vmatprep.subr.mxu0 0.0
  %469 = vmatpush1.xpose.msra.mxu0 0.0
  %470 = vmatprep.subr.mxu0 0.0
  %471 = vmatpush1.xpose.msra.mxu0 0.0
  %472 = vmatprep.subr.mxu0 0.0
  %473 = vmatpush1.xpose.msra.mxu0 0.0
  %474 = vmatprep.subr.mxu0 0.0
  %475 = vmatpush1.xpose.msra.mxu0 0.0
  %476 = vmatprep.subr.mxu0 0.0
  %477 = vmatpush1.xpose.msra.mxu0 %v444
  %478 = vmatprep.subr.mxu0 0.0
  %479 = vmatpush2.xpose.msra.mxu0 0.0
  %480 = vmatprep.subr.mxu0 0.0
  %481 = vmatpush2.xpose.msra.mxu0 0.0
  %482 = vmatprep.subr.mxu0 0.0
  %483 = vmatpush2.xpose.msra.mxu0 0.0
  %484 = vmatprep.subr.mxu0 0.0
  %485 = vmatpush2.xpose.msra.mxu0 0.0
  %486 = vmatprep.subr.mxu0 0.0
  %487 = vmatpush2.xpose.msra.mxu0 0.0
  %488 = vmatprep.subr.mxu0 0.0
  %489 = vmatpush2.xpose.msra.mxu0 0.0
  %490 = vmatprep.subr.mxu0 0.0
  %491 = vmatpush2.xpose.msra.mxu0 0.0
  %492 = vmatprep.subr.mxu0 0.0
  %493 = vmatpush2.xpose.msra.mxu0 0.0
  %494 = vmatprep.subr.mxu0 0.0
  %495 = vmatpush2.xpose.msra.mxu0 0.0
  %496 = vmatprep.subr.mxu0 0.0
  %497 = vmatpush2.xpose.msra.mxu0 0.0
  %498 = vmatprep.subr.mxu0 0.0
  %499 = vmatpush2.xpose.msra.mxu0 0.0
  %500 = vmatprep.subr.mxu0 0.0
  %501 = vmatpush2.xpose.msra.mxu0 0.0
  %502 = vmatprep.subr.mxu0 0.0
  %503 = vmatpush2.xpose.msra.mxu0 0.0
  %504 = vmatprep.subr.mxu0 0.0
  %505 = vmatpush2.xpose.msra.mxu0 0.0
  %506 = vmatprep.subr.mxu0 0.0
  %507 = vmatpush2.xpose.msra.mxu0 0.0
  %508 = vmatprep.subr.mxu0 0.0
  %509 = vmatpush2.xpose.msra.mxu0 0.0
  %510 = vmatprep.mubr.f32.mxu0 0.0
  %511 = vmatmul.mubr.f32.gmra.mxu0 %v442
  %v512 = vpop.f32.mrf.mxu0
  %v513 = vadd.f32 0.0, %v512
  %v514 = vpop.f32.mrf.mxu0
  %515 = vdwg.mxu0
  %516 = vrot.lane.b32.xlu0 %v130, 96
  %v517 = vpop.permute.xlu0 %516
  %v518 = vsel %vm137, %v130, 0
  %v520 = vsel %vm137, %v517, 0
  %522 = vmatprep.subr.mxu0 0.0
  %523 = vmatpush1.xpose.msra.mxu0 0.0
  %524 = vmatprep.subr.mxu0 0.0
  %525 = vmatpush1.xpose.msra.mxu0 0.0
  %526 = vmatprep.subr.mxu0 0.0
  %527 = vmatpush1.xpose.msra.mxu0 0.0
  %528 = vmatprep.subr.mxu0 0.0
  %529 = vmatpush1.xpose.msra.mxu0 0.0
  %530 = vmatprep.subr.mxu0 0.0
  %531 = vmatpush1.xpose.msra.mxu0 0.0
  %532 = vmatprep.subr.mxu0 0.0
  %533 = vmatpush1.xpose.msra.mxu0 0.0
  %534 = vmatprep.subr.mxu0 0.0
  %535 = vmatpush1.xpose.msra.mxu0 0.0
  %536 = vmatprep.subr.mxu0 0.0
  %537 = vmatpush1.xpose.msra.mxu0 0.0
  %538 = vmatprep.subr.mxu0 0.0
  %539 = vmatpush1.xpose.msra.mxu0 0.0
  %540 = vmatprep.subr.mxu0 0.0
  %541 = vmatpush1.xpose.msra.mxu0 0.0
  %542 = vmatprep.subr.mxu0 0.0
  %543 = vmatpush1.xpose.msra.mxu0 0.0
  %544 = vmatprep.subr.mxu0 0.0
  %545 = vmatpush1.xpose.msra.mxu0 0.0
  %546 = vmatprep.subr.mxu0 0.0
  %547 = vmatpush1.xpose.msra.mxu0 0.0
  %548 = vmatprep.subr.mxu0 0.0
  %549 = vmatpush1.xpose.msra.mxu0 0.0
  %550 = vmatprep.subr.mxu0 0.0
  %551 = vmatpush1.xpose.msra.mxu0 0.0
  %552 = vmatprep.subr.mxu0 0.0
  %553 = vmatpush1.xpose.msra.mxu0 %v520
  %554 = vmatprep.subr.mxu0 0.0
  %555 = vmatpush2.xpose.msra.mxu0 0.0
  %556 = vmatprep.subr.mxu0 0.0
  %557 = vmatpush2.xpose.msra.mxu0 0.0
  %558 = vmatprep.subr.mxu0 0.0
  %559 = vmatpush2.xpose.msra.mxu0 0.0
  %560 = vmatprep.subr.mxu0 0.0
  %561 = vmatpush2.xpose.msra.mxu0 0.0
  %562 = vmatprep.subr.mxu0 0.0
  %563 = vmatpush2.xpose.msra.mxu0 0.0
  %564 = vmatprep.subr.mxu0 0.0
  %565 = vmatpush2.xpose.msra.mxu0 0.0
  %566 = vmatprep.subr.mxu0 0.0
  %567 = vmatpush2.xpose.msra.mxu0 0.0
  %568 = vmatprep.subr.mxu0 0.0
  %569 = vmatpush2.xpose.msra.mxu0 0.0
  %570 = vmatprep.subr.mxu0 0.0
  %571 = vmatpush2.xpose.msra.mxu0 0.0
  %572 = vmatprep.subr.mxu0 0.0
  %573 = vmatpush2.xpose.msra.mxu0 0.0
  %574 = vmatprep.subr.mxu0 0.0
  %575 = vmatpush2.xpose.msra.mxu0 0.0
  %576 = vmatprep.subr.mxu0 0.0
  %577 = vmatpush2.xpose.msra.mxu0 0.0
  %578 = vmatprep.subr.mxu0 0.0
  %579 = vmatpush2.xpose.msra.mxu0 0.0
  %580 = vmatprep.subr.mxu0 0.0
  %581 = vmatpush2.xpose.msra.mxu0 0.0
  %582 = vmatprep.subr.mxu0 0.0
  %583 = vmatpush2.xpose.msra.mxu0 0.0
  %584 = vmatprep.subr.mxu0 0.0
  %585 = vmatpush2.xpose.msra.mxu0 0.0
  %586 = vmatprep.mubr.f32.mxu0 0.0
  %587 = vmatmul.mubr.f32.gmra.mxu0 %v518
  %v588 = vpop.f32.mrf.mxu0
  %v589 = vadd.f32 0.0, %v588
  %v590 = vpop.f32.mrf.mxu0
  %591 = vdwg.mxu0
  %592 = vrot.lane.b32.xlu0 %v132, 96
  %v593 = vpop.permute.xlu0 %592
  %v594 = vsel %vm137, %v132, 0
  %v596 = vsel %vm137, %v593, 0
  %598 = vmatprep.subr.mxu0 0.0
  %599 = vmatpush1.xpose.msra.mxu0 0.0
  %600 = vmatprep.subr.mxu0 0.0
  %601 = vmatpush1.xpose.msra.mxu0 0.0
  %602 = vmatprep.subr.mxu0 0.0
  %603 = vmatpush1.xpose.msra.mxu0 0.0
  %604 = vmatprep.subr.mxu0 0.0
  %605 = vmatpush1.xpose.msra.mxu0 0.0
  %606 = vmatprep.subr.mxu0 0.0
  %607 = vmatpush1.xpose.msra.mxu0 0.0
  %608 = vmatprep.subr.mxu0 0.0
  %609 = vmatpush1.xpose.msra.mxu0 0.0
  %610 = vmatprep.subr.mxu0 0.0
  %611 = vmatpush1.xpose.msra.mxu0 0.0
  %612 = vmatprep.subr.mxu0 0.0
  %613 = vmatpush1.xpose.msra.mxu0 0.0
  %614 = vmatprep.subr.mxu0 0.0
  %615 = vmatpush1.xpose.msra.mxu0 0.0
  %616 = vmatprep.subr.mxu0 0.0
  %617 = vmatpush1.xpose.msra.mxu0 0.0
  %618 = vmatprep.subr.mxu0 0.0
  %619 = vmatpush1.xpose.msra.mxu0 0.0
  %620 = vmatprep.subr.mxu0 0.0
  %621 = vmatpush1.xpose.msra.mxu0 0.0
  %622 = vmatprep.subr.mxu0 0.0
  %623 = vmatpush1.xpose.msra.mxu0 0.0
  %624 = vmatprep.subr.mxu0 0.0
  %625 = vmatpush1.xpose.msra.mxu0 0.0
  %626 = vmatprep.subr.mxu0 0.0
  %627 = vmatpush1.xpose.msra.mxu0 0.0
  %628 = vmatprep.subr.mxu0 0.0
  %629 = vmatpush1.xpose.msra.mxu0 %v596
  %630 = vmatprep.subr.mxu0 0.0
  %631 = vmatpush2.xpose.msra.mxu0 0.0
  %632 = vmatprep.subr.mxu0 0.0
  %633 = vmatpush2.xpose.msra.mxu0 0.0
  %634 = vmatprep.subr.mxu0 0.0
  %635 = vmatpush2.xpose.msra.mxu0 0.0
  %636 = vmatprep.subr.mxu0 0.0
  %637 = vmatpush2.xpose.msra.mxu0 0.0
  %638 = vmatprep.subr.mxu0 0.0
  %639 = vmatpush2.xpose.msra.mxu0 0.0
  %640 = vmatprep.subr.mxu0 0.0
  %641 = vmatpush2.xpose.msra.mxu0 0.0
  %642 = vmatprep.subr.mxu0 0.0
  %643 = vmatpush2.xpose.msra.mxu0 0.0
  %644 = vmatprep.subr.mxu0 0.0
  %645 = vmatpush2.xpose.msra.mxu0 0.0
  %646 = vmatprep.subr.mxu0 0.0
  %647 = vmatpush2.xpose.msra.mxu0 0.0
  %648 = vmatprep.subr.mxu0 0.0
  %649 = vmatpush2.xpose.msra.mxu0 0.0
  %650 = vmatprep.subr.mxu0 0.0
  %651 = vmatpush2.xpose.msra.mxu0 0.0
  %652 = vmatprep.subr.mxu0 0.0
  %653 = vmatpush2.xpose.msra.mxu0 0.0
  %654 = vmatprep.subr.mxu0 0.0
  %655 = vmatpush2.xpose.msra.mxu0 0.0
  %656 = vmatprep.subr.mxu0 0.0
  %657 = vmatpush2.xpose.msra.mxu0 0.0
  %658 = vmatprep.subr.mxu0 0.0
  %659 = vmatpush2.xpose.msra.mxu0 0.0
  %660 = vmatprep.subr.mxu0 0.0
  %661 = vmatpush2.xpose.msra.mxu0 0.0
  %662 = vmatprep.mubr.f32.mxu0 0.0
  %663 = vmatmul.mubr.f32.gmra.mxu0 %v594
  %v664 = vpop.f32.mrf.mxu0
  %v665 = vadd.f32 0.0, %v664
  %v666 = vpop.f32.mrf.mxu0
  %667 = vdwg.mxu0
  %668 = vrot.lane.b32.xlu0 %v134, 96
  %v669 = vpop.permute.xlu0 %668
  %v670 = vsel %vm137, %v134, 0
  %v672 = vsel %vm137, %v669, 0
  %674 = vmatprep.subr.mxu0 0.0
  %675 = vmatpush1.xpose.msra.mxu0 0.0
  %676 = vmatprep.subr.mxu0 0.0
  %677 = vmatpush1.xpose.msra.mxu0 0.0
  %678 = vmatprep.subr.mxu0 0.0
  %679 = vmatpush1.xpose.msra.mxu0 0.0
  %680 = vmatprep.subr.mxu0 0.0
  %681 = vmatpush1.xpose.msra.mxu0 0.0
  %682 = vmatprep.subr.mxu0 0.0
  %683 = vmatpush1.xpose.msra.mxu0 0.0
  %684 = vmatprep.subr.mxu0 0.0
  %685 = vmatpush1.xpose.msra.mxu0 0.0
  %686 = vmatprep.subr.mxu0 0.0
  %687 = vmatpush1.xpose.msra.mxu0 0.0
  %688 = vmatprep.subr.mxu0 0.0
  %689 = vmatpush1.xpose.msra.mxu0 0.0
  %690 = vmatprep.subr.mxu0 0.0
  %691 = vmatpush1.xpose.msra.mxu0 0.0
  %692 = vmatprep.subr.mxu0 0.0
  %693 = vmatpush1.xpose.msra.mxu0 0.0
  %694 = vmatprep.subr.mxu0 0.0
  %695 = vmatpush1.xpose.msra.mxu0 0.0
  %696 = vmatprep.subr.mxu0 0.0
  %697 = vmatpush1.xpose.msra.mxu0 0.0
  %698 = vmatprep.subr.mxu0 0.0
  %699 = vmatpush1.xpose.msra.mxu0 0.0
  %700 = vmatprep.subr.mxu0 0.0
  %701 = vmatpush1.xpose.msra.mxu0 0.0
  %702 = vmatprep.subr.mxu0 0.0
  %703 = vmatpush1.xpose.msra.mxu0 0.0
  %704 = vmatprep.subr.mxu0 0.0
  %705 = vmatpush1.xpose.msra.mxu0 %v672
  %706 = vmatprep.subr.mxu0 0.0
  %707 = vmatpush2.xpose.msra.mxu0 0.0
  %708 = vmatprep.subr.mxu0 0.0
  %709 = vmatpush2.xpose.msra.mxu0 0.0
  %710 = vmatprep.subr.mxu0 0.0
  %711 = vmatpush2.xpose.msra.mxu0 0.0
  %712 = vmatprep.subr.mxu0 0.0
  %713 = vmatpush2.xpose.msra.mxu0 0.0
  %714 = vmatprep.subr.mxu0 0.0
  %715 = vmatpush2.xpose.msra.mxu0 0.0
  %716 = vmatprep.subr.mxu0 0.0
  %717 = vmatpush2.xpose.msra.mxu0 0.0
  %718 = vmatprep.subr.mxu0 0.0
  %719 = vmatpush2.xpose.msra.mxu0 0.0
  %720 = vmatprep.subr.mxu0 0.0
  %721 = vmatpush2.xpose.msra.mxu0 0.0
  %722 = vmatprep.subr.mxu0 0.0
  %723 = vmatpush2.xpose.msra.mxu0 0.0
  %724 = vmatprep.subr.mxu0 0.0
  %725 = vmatpush2.xpose.msra.mxu0 0.0
  %726 = vmatprep.subr.mxu0 0.0
  %727 = vmatpush2.xpose.msra.mxu0 0.0
  %728 = vmatprep.subr.mxu0 0.0
  %729 = vmatpush2.xpose.msra.mxu0 0.0
  %730 = vmatprep.subr.mxu0 0.0
  %731 = vmatpush2.xpose.msra.mxu0 0.0
  %732 = vmatprep.subr.mxu0 0.0
  %733 = vmatpush2.xpose.msra.mxu0 0.0
  %734 = vmatprep.subr.mxu0 0.0
  %735 = vmatpush2.xpose.msra.mxu0 0.0
  %736 = vmatprep.subr.mxu0 0.0
  %737 = vmatpush2.xpose.msra.mxu0 0.0
  %738 = vmatprep.mubr.f32.mxu0 0.0
  %739 = vmatmul.mubr.f32.gmra.mxu0 %v670
  %v740 = vpop.f32.mrf.mxu0
  %v741 = vadd.f32 0.0, %v740
  %v742 = vpop.f32.mrf.mxu0
  %743 = vdwg.mxu0
  %v744 = vmul.f32 %v209, 0.35355338
  %v745 = vmul.f32 %v285, 0.35355338
  %v746 = vmul.f32 %v361, 0.35355338
  %v747 = vmul.f32 %v437, 0.35355338
  %v748 = vmul.f32 %v513, 0.35355338
  %v749 = vmul.f32 %v589, 0.35355338
  %v750 = vmul.f32 %v665, 0.35355338
  %v751 = vmul.f32 %v741, 0.35355338
  %v752 = vsel %vm137, %v744, -inf
  %753 = vmax.xlane.f32.xlu0 %v752
  %v754 = vpop.xlane.xlu0 %753
  %v755 = vsel %vm137, %v745, -inf
  %756 = vmax.xlane.f32.xlu0 %v755
  %v757 = vpop.xlane.xlu0 %756
  %v758 = vsel %vm137, %v746, -inf
  %759 = vmax.xlane.f32.xlu0 %v758
  %v760 = vpop.xlane.xlu0 %759
  %v761 = vsel %vm137, %v747, -inf
  %762 = vmax.xlane.f32.xlu0 %v761
  %v763 = vpop.xlane.xlu0 %762
  %v764 = vsel %vm137, %v748, -inf
  %765 = vmax.xlane.f32.xlu0 %v764
  %v766 = vpop.xlane.xlu0 %765
  %v767 = vsel %vm137, %v749, -inf
  %768 = vmax.xlane.f32.xlu0 %v767
  %v769 = vpop.xlane.xlu0 %768
  %v770 = vsel %vm137, %v750, -inf
  %771 = vmax.xlane.f32.xlu0 %v770
  %v772 = vpop.xlane.xlu0 %771
  %v773 = vsel %vm137, %v751, -inf
  %774 = vmax.xlane.f32.xlu0 %v773
  %v775 = vpop.xlane.xlu0 %774
  %v776 = vsub.f32 %v744, %v754
  %v777 = vsub.f32 %v745, %v757
  %v778 = vsub.f32 %v746, %v760
  %v779 = vsub.f32 %v747, %v763
  %v780 = vsub.f32 %v748, %v766
  %v781 = vsub.f32 %v749, %v769
  %v782 = vsub.f32 %v750, %v772
  %v783 = vsub.f32 %v751, %v775
  %v784 = vmul.f32 %v776, 1.442695
  %v785 = vpow.pop %v784
  %v786 = vmul.f32 %v777, 1.442695
  %v787 = vpow.pop %v786
  %v788 = vmul.f32 %v778, 1.442695
  %v789 = vpow.pop %v788
  %v790 = vmul.f32 %v779, 1.442695
  %v791 = vpow.pop %v790
  %v792 = vmul.f32 %v780, 1.442695
  %v793 = vpow.pop %v792
  %v794 = vmul.f32 %v781, 1.442695
  %v795 = vpow.pop %v794
  %v796 = vmul.f32 %v782, 1.442695
  %v797 = vpow.pop %v796
  %v798 = vmul.f32 %v783, 1.442695
  %v799 = vpow.pop %v798
  %v800 = vsel %vm137, %v785, 0.0
  %801 = vadd.xlane.f32.xlu0 %v800
  %v802 = vpop.xlane.xlu0 %801
  %v803 = vsel %vm137, %v787, 0.0
  %804 = vadd.xlane.f32.xlu0 %v803
  %v805 = vpop.xlane.xlu0 %804
  %v806 = vsel %vm137, %v789, 0.0
  %807 = vadd.xlane.f32.xlu0 %v806
  %v808 = vpop.xlane.xlu0 %807
  %v809 = vsel %vm137, %v791, 0.0
  %810 = vadd.xlane.f32.xlu0 %v809
  %v811 = vpop.xlane.xlu0 %810
  %v812 = vsel %vm137, %v793, 0.0
  %813 = vadd.xlane.f32.xlu0 %v812
  %v814 = vpop.xlane.xlu0 %813
  %v815 = vsel %vm137, %v795, 0.0
  %816 = vadd.xlane.f32.xlu0 %v815
  %v817 = vpop.xlane.xlu0 %816
  %v818 = vsel %vm137, %v797, 0.0
  %819 = vadd.xlane.f32.xlu0 %v818
  %v820 = vpop.xlane.xlu0 %819
  %v821 = vsel %vm137, %v799, 0.0
  %822 = vadd.xlane.f32.xlu0 %v821
  %v823 = vpop.xlane.xlu0 %822
  %v824 = vrcp.pop %v802
  %v825 = vmul.f32 %v785, %v824
  %v826 = vrcp.pop %v805
  %v827 = vmul.f32 %v787, %v826
  %v828 = vrcp.pop %v808
  %v829 = vmul.f32 %v789, %v828
  %v830 = vrcp.pop %v811
  %v831 = vmul.f32 %v791, %v830
  %v832 = vrcp.pop %v814
  %v833 = vmul.f32 %v793, %v832
  %v834 = vrcp.pop %v817
  %v835 = vmul.f32 %v795, %v834
  %v836 = vrcp.pop %v820
  %v837 = vmul.f32 %v797, %v836
  %v838 = vrcp.pop %v823
  %v839 = vmul.f32 %v799, %v838
  %840 = vrot.lane.b32.xlu0 %v113, 64
  %v841 = vpop.permute.xlu0 %840
  %v844 = vsel %vm137, %v825, 0
  %846 = vmatprep.subr.mxu0 0.0
  %847 = vmatpush1.msra.mxu0 0.0
  %848 = vmatprep.subr.mxu0 0.0
  %849 = vmatpush1.msra.mxu0 0.0
  %850 = vmatprep.subr.mxu0 0.0
  %851 = vmatpush1.msra.mxu0 0.0
  %852 = vmatprep.subr.mxu0 0.0
  %853 = vmatpush1.msra.mxu0 0.0
  %854 = vmatprep.subr.mxu0 0.0
  %855 = vmatpush1.msra.mxu0 0.0
  %856 = vmatprep.subr.mxu0 0.0
  %857 = vmatpush1.msra.mxu0 0.0
  %858 = vmatprep.subr.mxu0 0.0
  %859 = vmatpush1.msra.mxu0 0.0
  %860 = vmatprep.subr.mxu0 0.0
  %861 = vmatpush1.msra.mxu0 0.0
  %862 = vmatprep.subr.mxu0 0.0
  %863 = vmatpush1.msra.mxu0 0.0
  %864 = vmatprep.subr.mxu0 0.0
  %865 = vmatpush1.msra.mxu0 0.0
  %866 = vmatprep.subr.mxu0 0.0
  %867 = vmatpush1.msra.mxu0 0.0
  %868 = vmatprep.subr.mxu0 0.0
  %869 = vmatpush1.msra.mxu0 0.0
  %870 = vmatprep.subr.mxu0 0.0
  %871 = vmatpush1.msra.mxu0 0.0
  %872 = vmatprep.subr.mxu0 0.0
  %873 = vmatpush1.msra.mxu0 0.0
  %874 = vmatprep.subr.mxu0 0.0
  %875 = vmatpush1.msra.mxu0 0.0
  %876 = vmatprep.subr.mxu0 0.0
  %877 = vmatpush1.msra.mxu0 %v841
  %878 = vmatprep.subr.mxu0 0.0
  %879 = vmatpush2.msra.mxu0 0.0
  %880 = vmatprep.subr.mxu0 0.0
  %881 = vmatpush2.msra.mxu0 0.0
  %882 = vmatprep.subr.mxu0 0.0
  %883 = vmatpush2.msra.mxu0 0.0
  %884 = vmatprep.subr.mxu0 0.0
  %885 = vmatpush2.msra.mxu0 0.0
  %886 = vmatprep.subr.mxu0 0.0
  %887 = vmatpush2.msra.mxu0 0.0
  %888 = vmatprep.subr.mxu0 0.0
  %889 = vmatpush2.msra.mxu0 0.0
  %890 = vmatprep.subr.mxu0 0.0
  %891 = vmatpush2.msra.mxu0 0.0
  %892 = vmatprep.subr.mxu0 0.0
  %893 = vmatpush2.msra.mxu0 0.0
  %894 = vmatprep.subr.mxu0 0.0
  %895 = vmatpush2.msra.mxu0 0.0
  %896 = vmatprep.subr.mxu0 0.0
  %897 = vmatpush2.msra.mxu0 0.0
  %898 = vmatprep.subr.mxu0 0.0
  %899 = vmatpush2.msra.mxu0 0.0
  %900 = vmatprep.subr.mxu0 0.0
  %901 = vmatpush2.msra.mxu0 0.0
  %902 = vmatprep.subr.mxu0 0.0
  %903 = vmatpush2.msra.mxu0 0.0
  %904 = vmatprep.subr.mxu0 0.0
  %905 = vmatpush2.msra.mxu0 0.0
  %906 = vmatprep.subr.mxu0 0.0
  %907 = vmatpush2.msra.mxu0 0.0
  %908 = vmatprep.subr.mxu0 0.0
  %909 = vmatpush2.msra.mxu0 0.0
  %910 = vmatprep.mubr.f32.mxu0 0.0
  %911 = vmatmul.mubr.f32.gmra.mxu0 %v844
  %v912 = vpop.f32.mrf.mxu0
  %v913 = vadd.f32 0.0, %v912
  %v914 = vpop.f32.mrf.mxu0
  %915 = vdwg.mxu0
  %916 = vrot.lane.b32.xlu0 %v118, 64
  %v917 = vpop.permute.xlu0 %916
  %v920 = vsel %vm137, %v827, 0
  %922 = vmatprep.subr.mxu0 0.0
  %923 = vmatpush1.msra.mxu0 0.0
  %924 = vmatprep.subr.mxu0 0.0
  %925 = vmatpush1.msra.mxu0 0.0
  %926 = vmatprep.subr.mxu0 0.0
  %927 = vmatpush1.msra.mxu0 0.0
  %928 = vmatprep.subr.mxu0 0.0
  %929 = vmatpush1.msra.mxu0 0.0
  %930 = vmatprep.subr.mxu0 0.0
  %931 = vmatpush1.msra.mxu0 0.0
  %932 = vmatprep.subr.mxu0 0.0
  %933 = vmatpush1.msra.mxu0 0.0
  %934 = vmatprep.subr.mxu0 0.0
  %935 = vmatpush1.msra.mxu0 0.0
  %936 = vmatprep.subr.mxu0 0.0
  %937 = vmatpush1.msra.mxu0 0.0
  %938 = vmatprep.subr.mxu0 0.0
  %939 = vmatpush1.msra.mxu0 0.0
  %940 = vmatprep.subr.mxu0 0.0
  %941 = vmatpush1.msra.mxu0 0.0
  %942 = vmatprep.subr.mxu0 0.0
  %943 = vmatpush1.msra.mxu0 0.0
  %944 = vmatprep.subr.mxu0 0.0
  %945 = vmatpush1.msra.mxu0 0.0
  %946 = vmatprep.subr.mxu0 0.0
  %947 = vmatpush1.msra.mxu0 0.0
  %948 = vmatprep.subr.mxu0 0.0
  %949 = vmatpush1.msra.mxu0 0.0
  %950 = vmatprep.subr.mxu0 0.0
  %951 = vmatpush1.msra.mxu0 0.0
  %952 = vmatprep.subr.mxu0 0.0
  %953 = vmatpush1.msra.mxu0 %v917
  %954 = vmatprep.subr.mxu0 0.0
  %955 = vmatpush2.msra.mxu0 0.0
  %956 = vmatprep.subr.mxu0 0.0
  %957 = vmatpush2.msra.mxu0 0.0
  %958 = vmatprep.subr.mxu0 0.0
  %959 = vmatpush2.msra.mxu0 0.0
  %960 = vmatprep.subr.mxu0 0.0
  %961 = vmatpush2.msra.mxu0 0.0
  %962 = vmatprep.subr.mxu0 0.0
  %963 = vmatpush2.msra.mxu0 0.0
  %964 = vmatprep.subr.mxu0 0.0
  %965 = vmatpush2.msra.mxu0 0.0
  %966 = vmatprep.subr.mxu0 0.0
  %967 = vmatpush2.msra.mxu0 0.0
  %968 = vmatprep.subr.mxu0 0.0
  %969 = vmatpush2.msra.mxu0 0.0
  %970 = vmatprep.subr.mxu0 0.0
  %971 = vmatpush2.msra.mxu0 0.0
  %972 = vmatprep.subr.mxu0 0.0
  %973 = vmatpush2.msra.mxu0 0.0
  %974 = vmatprep.subr.mxu0 0.0
  %975 = vmatpush2.msra.mxu0 0.0
  %976 = vmatprep.subr.mxu0 0.0
  %977 = vmatpush2.msra.mxu0 0.0
  %978 = vmatprep.subr.mxu0 0.0
  %979 = vmatpush2.msra.mxu0 0.0
  %980 = vmatprep.subr.mxu0 0.0
  %981 = vmatpush2.msra.mxu0 0.0
  %982 = vmatprep.subr.mxu0 0.0
  %983 = vmatpush2.msra.mxu0 0.0
  %984 = vmatprep.subr.mxu0 0.0
  %985 = vmatpush2.msra.mxu0 0.0
  %986 = vmatprep.mubr.f32.mxu0 0.0
  %987 = vmatmul.mubr.f32.gmra.mxu0 %v920
  %v988 = vpop.f32.mrf.mxu0
  %v989 = vadd.f32 0.0, %v988
  %v990 = vpop.f32.mrf.mxu0
  %991 = vdwg.mxu0
  %992 = vrot.lane.b32.xlu0 %v124, 64
  %v993 = vpop.permute.xlu0 %992
  %v996 = vsel %vm137, %v829, 0
  %998 = vmatprep.subr.mxu0 0.0
  %999 = vmatpush1.msra.mxu0 0.0
  %1000 = vmatprep.subr.mxu0 0.0
  %1001 = vmatpush1.msra.mxu0 0.0
  %1002 = vmatprep.subr.mxu0 0.0
  %1003 = vmatpush1.msra.mxu0 0.0
  %1004 = vmatprep.subr.mxu0 0.0
  %1005 = vmatpush1.msra.mxu0 0.0
  %1006 = vmatprep.subr.mxu0 0.0
  %1007 = vmatpush1.msra.mxu0 0.0
  %1008 = vmatprep.subr.mxu0 0.0
  %1009 = vmatpush1.msra.mxu0 0.0
  %1010 = vmatprep.subr.mxu0 0.0
  %1011 = vmatpush1.msra.mxu0 0.0
  %1012 = vmatprep.subr.mxu0 0.0
  %1013 = vmatpush1.msra.mxu0 0.0
  %1014 = vmatprep.subr.mxu0 0.0
  %1015 = vmatpush1.msra.mxu0 0.0
  %1016 = vmatprep.subr.mxu0 0.0
  %1017 = vmatpush1.msra.mxu0 0.0
  %1018 = vmatprep.subr.mxu0 0.0
  %1019 = vmatpush1.msra.mxu0 0.0
  %1020 = vmatprep.subr.mxu0 0.0
  %1021 = vmatpush1.msra.mxu0 0.0
  %1022 = vmatprep.subr.mxu0 0.0
  %1023 = vmatpush1.msra.mxu0 0.0
  %1024 = vmatprep.subr.mxu0 0.0
  %1025 = vmatpush1.msra.mxu0 0.0
  %1026 = vmatprep.subr.mxu0 0.0
  %1027 = vmatpush1.msra.mxu0 0.0
  %1028 = vmatprep.subr.mxu0 0.0
  %1029 = vmatpush1.msra.mxu0 %v993
  %1030 = vmatprep.subr.mxu0 0.0
  %1031 = vmatpush2.msra.mxu0 0.0
  %1032 = vmatprep.subr.mxu0 0.0
  %1033 = vmatpush2.msra.mxu0 0.0
  %1034 = vmatprep.subr.mxu0 0.0
  %1035 = vmatpush2.msra.mxu0 0.0
  %1036 = vmatprep.subr.mxu0 0.0
  %1037 = vmatpush2.msra.mxu0 0.0
  %1038 = vmatprep.subr.mxu0 0.0
  %1039 = vmatpush2.msra.mxu0 0.0
  %1040 = vmatprep.subr.mxu0 0.0
  %1041 = vmatpush2.msra.mxu0 0.0
  %1042 = vmatprep.subr.mxu0 0.0
  %1043 = vmatpush2.msra.mxu0 0.0
  %1044 = vmatprep.subr.mxu0 0.0
  %1045 = vmatpush2.msra.mxu0 0.0
  %1046 = vmatprep.subr.mxu0 0.0
  %1047 = vmatpush2.msra.mxu0 0.0
  %1048 = vmatprep.subr.mxu0 0.0
  %1049 = vmatpush2.msra.mxu0 0.0
  %1050 = vmatprep.subr.mxu0 0.0
  %1051 = vmatpush2.msra.mxu0 0.0
  %1052 = vmatprep.subr.mxu0 0.0
  %1053 = vmatpush2.msra.mxu0 0.0
  %1054 = vmatprep.subr.mxu0 0.0
  %1055 = vmatpush2.msra.mxu0 0.0
  %1056 = vmatprep.subr.mxu0 0.0
  %1057 = vmatpush2.msra.mxu0 0.0
  %1058 = vmatprep.subr.mxu0 0.0
  %1059 = vmatpush2.msra.mxu0 0.0
  %1060 = vmatprep.subr.mxu0 0.0
  %1061 = vmatpush2.msra.mxu0 0.0
  %1062 = vmatprep.mubr.f32.mxu0 0.0
  %1063 = vmatmul.mubr.f32.gmra.mxu0 %v996
  %v1064 = vpop.f32.mrf.mxu0
  %v1065 = vadd.f32 0.0, %v1064
  %v1066 = vpop.f32.mrf.mxu0
  %1067 = vdwg.mxu0
  %1068 = vrot.lane.b32.xlu0 %v126, 64
  %v1069 = vpop.permute.xlu0 %1068
  %v1072 = vsel %vm137, %v831, 0
  %1074 = vmatprep.subr.mxu0 0.0
  %1075 = vmatpush1.msra.mxu0 0.0
  %1076 = vmatprep.subr.mxu0 0.0
  %1077 = vmatpush1.msra.mxu0 0.0
  %1078 = vmatprep.subr.mxu0 0.0
  %1079 = vmatpush1.msra.mxu0 0.0
  %1080 = vmatprep.subr.mxu0 0.0
  %1081 = vmatpush1.msra.mxu0 0.0
  %1082 = vmatprep.subr.mxu0 0.0
  %1083 = vmatpush1.msra.mxu0 0.0
  %1084 = vmatprep.subr.mxu0 0.0
  %1085 = vmatpush1.msra.mxu0 0.0
  %1086 = vmatprep.subr.mxu0 0.0
  %1087 = vmatpush1.msra.mxu0 0.0
  %1088 = vmatprep.subr.mxu0 0.0
  %1089 = vmatpush1.msra.mxu0 0.0
  %1090 = vmatprep.subr.mxu0 0.0
  %1091 = vmatpush1.msra.mxu0 0.0
  %1092 = vmatprep.subr.mxu0 0.0
  %1093 = vmatpush1.msra.mxu0 0.0
  %1094 = vmatprep.subr.mxu0 0.0
  %1095 = vmatpush1.msra.mxu0 0.0
  %1096 = vmatprep.subr.mxu0 0.0
  %1097 = vmatpush1.msra.mxu0 0.0
  %1098 = vmatprep.subr.mxu0 0.0
  %1099 = vmatpush1.msra.mxu0 0.0
  %1100 = vmatprep.subr.mxu0 0.0
  %1101 = vmatpush1.msra.mxu0 0.0
  %1102 = vmatprep.subr.mxu0 0.0
  %1103 = vmatpush1.msra.mxu0 0.0
  %1104 = vmatprep.subr.mxu0 0.0
  %1105 = vmatpush1.msra.mxu0 %v1069
  %1106 = vmatprep.subr.mxu0 0.0
  %1107 = vmatpush2.msra.mxu0 0.0
  %1108 = vmatprep.subr.mxu0 0.0
  %1109 = vmatpush2.msra.mxu0 0.0
  %1110 = vmatprep.subr.mxu0 0.0
  %1111 = vmatpush2.msra.mxu0 0.0
  %1112 = vmatprep.subr.mxu0 0.0
  %1113 = vmatpush2.msra.mxu0 0.0
  %1114 = vmatprep.subr.mxu0 0.0
  %1115 = vmatpush2.msra.mxu0 0.0
  %1116 = vmatprep.subr.mxu0 0.0
  %1117 = vmatpush2.msra.mxu0 0.0
  %1118 = vmatprep.subr.mxu0 0.0
  %1119 = vmatpush2.msra.mxu0 0.0
  %1120 = vmatprep.subr.mxu0 0.0
  %1121 = vmatpush2.msra.mxu0 0.0
  %1122 = vmatprep.subr.mxu0 0.0
  %1123 = vmatpush2.msra.mxu0 0.0
  %1124 = vmatprep.subr.mxu0 0.0
  %1125 = vmatpush2.msra.mxu0 0.0
  %1126 = vmatprep.subr.mxu0 0.0
  %1127 = vmatpush2.msra.mxu0 0.0
  %1128 = vmatprep.subr.mxu0 0.0
  %1129 = vmatpush2.msra.mxu0 0.0
  %1130 = vmatprep.subr.mxu0 0.0
  %1131 = vmatpush2.msra.mxu0 0.0
  %1132 = vmatprep.subr.mxu0 0.0
  %1133 = vmatpush2.msra.mxu0 0.0
  %1134 = vmatprep.subr.mxu0 0.0
  %1135 = vmatpush2.msra.mxu0 0.0
  %1136 = vmatprep.subr.mxu0 0.0
  %1137 = vmatpush2.msra.mxu0 0.0
  %1138 = vmatprep.mubr.f32.mxu0 0.0
  %1139 = vmatmul.mubr.f32.gmra.mxu0 %v1072
  %v1140 = vpop.f32.mrf.mxu0
  %v1141 = vadd.f32 0.0, %v1140
  %v1142 = vpop.f32.mrf.mxu0
  %1143 = vdwg.mxu0
  %1144 = vrot.lane.b32.xlu0 %v128, 64
  %v1145 = vpop.permute.xlu0 %1144
  %v1148 = vsel %vm137, %v833, 0
  %1150 = vmatprep.subr.mxu0 0.0
  %1151 = vmatpush1.msra.mxu0 0.0
  %1152 = vmatprep.subr.mxu0 0.0
  %1153 = vmatpush1.msra.mxu0 0.0
  %1154 = vmatprep.subr.mxu0 0.0
  %1155 = vmatpush1.msra.mxu0 0.0
  %1156 = vmatprep.subr.mxu0 0.0
  %1157 = vmatpush1.msra.mxu0 0.0
  %1158 = vmatprep.subr.mxu0 0.0
  %1159 = vmatpush1.msra.mxu0 0.0
  %1160 = vmatprep.subr.mxu0 0.0
  %1161 = vmatpush1.msra.mxu0 0.0
  %1162 = vmatprep.subr.mxu0 0.0
  %1163 = vmatpush1.msra.mxu0 0.0
  %1164 = vmatprep.subr.mxu0 0.0
  %1165 = vmatpush1.msra.mxu0 0.0
  %1166 = vmatprep.subr.mxu0 0.0
  %1167 = vmatpush1.msra.mxu0 0.0
  %1168 = vmatprep.subr.mxu0 0.0
  %1169 = vmatpush1.msra.mxu0 0.0
  %1170 = vmatprep.subr.mxu0 0.0
  %1171 = vmatpush1.msra.mxu0 0.0
  %1172 = vmatprep.subr.mxu0 0.0
  %1173 = vmatpush1.msra.mxu0 0.0
  %1174 = vmatprep.subr.mxu0 0.0
  %1175 = vmatpush1.msra.mxu0 0.0
  %1176 = vmatprep.subr.mxu0 0.0
  %1177 = vmatpush1.msra.mxu0 0.0
  %1178 = vmatprep.subr.mxu0 0.0
  %1179 = vmatpush1.msra.mxu0 0.0
  %1180 = vmatprep.subr.mxu0 0.0
  %1181 = vmatpush1.msra.mxu0 %v1145
  %1182 = vmatprep.subr.mxu0 0.0
  %1183 = vmatpush2.msra.mxu0 0.0
  %1184 = vmatprep.subr.mxu0 0.0
  %1185 = vmatpush2.msra.mxu0 0.0
  %1186 = vmatprep.subr.mxu0 0.0
  %1187 = vmatpush2.msra.mxu0 0.0
  %1188 = vmatprep.subr.mxu0 0.0
  %1189 = vmatpush2.msra.mxu0 0.0
  %1190 = vmatprep.subr.mxu0 0.0
  %1191 = vmatpush2.msra.mxu0 0.0
  %1192 = vmatprep.subr.mxu0 0.0
  %1193 = vmatpush2.msra.mxu0 0.0
  %1194 = vmatprep.subr.mxu0 0.0
  %1195 = vmatpush2.msra.mxu0 0.0
  %1196 = vmatprep.subr.mxu0 0.0
  %1197 = vmatpush2.msra.mxu0 0.0
  %1198 = vmatprep.subr.mxu0 0.0
  %1199 = vmatpush2.msra.mxu0 0.0
  %1200 = vmatprep.subr.mxu0 0.0
  %1201 = vmatpush2.msra.mxu0 0.0
  %1202 = vmatprep.subr.mxu0 0.0
  %1203 = vmatpush2.msra.mxu0 0.0
  %1204 = vmatprep.subr.mxu0 0.0
  %1205 = vmatpush2.msra.mxu0 0.0
  %1206 = vmatprep.subr.mxu0 0.0
  %1207 = vmatpush2.msra.mxu0 0.0
  %1208 = vmatprep.subr.mxu0 0.0
  %1209 = vmatpush2.msra.mxu0 0.0
  %1210 = vmatprep.subr.mxu0 0.0
  %1211 = vmatpush2.msra.mxu0 0.0
  %1212 = vmatprep.subr.mxu0 0.0
  %1213 = vmatpush2.msra.mxu0 0.0
  %1214 = vmatprep.mubr.f32.mxu0 0.0
  %1215 = vmatmul.mubr.f32.gmra.mxu0 %v1148
  %v1216 = vpop.f32.mrf.mxu0
  %v1217 = vadd.f32 0.0, %v1216
  %v1218 = vpop.f32.mrf.mxu0
  %1219 = vdwg.mxu0
  %1220 = vrot.lane.b32.xlu0 %v130, 64
  %v1221 = vpop.permute.xlu0 %1220
  %v1224 = vsel %vm137, %v835, 0
  %1226 = vmatprep.subr.mxu0 0.0
  %1227 = vmatpush1.msra.mxu0 0.0
  %1228 = vmatprep.subr.mxu0 0.0
  %1229 = vmatpush1.msra.mxu0 0.0
  %1230 = vmatprep.subr.mxu0 0.0
  %1231 = vmatpush1.msra.mxu0 0.0
  %1232 = vmatprep.subr.mxu0 0.0
  %1233 = vmatpush1.msra.mxu0 0.0
  %1234 = vmatprep.subr.mxu0 0.0
  %1235 = vmatpush1.msra.mxu0 0.0
  %1236 = vmatprep.subr.mxu0 0.0
  %1237 = vmatpush1.msra.mxu0 0.0
  %1238 = vmatprep.subr.mxu0 0.0
  %1239 = vmatpush1.msra.mxu0 0.0
  %1240 = vmatprep.subr.mxu0 0.0
  %1241 = vmatpush1.msra.mxu0 0.0
  %1242 = vmatprep.subr.mxu0 0.0
  %1243 = vmatpush1.msra.mxu0 0.0
  %1244 = vmatprep.subr.mxu0 0.0
  %1245 = vmatpush1.msra.mxu0 0.0
  %1246 = vmatprep.subr.mxu0 0.0
  %1247 = vmatpush1.msra.mxu0 0.0
  %1248 = vmatprep.subr.mxu0 0.0
  %1249 = vmatpush1.msra.mxu0 0.0
  %1250 = vmatprep.subr.mxu0 0.0
  %1251 = vmatpush1.msra.mxu0 0.0
  %1252 = vmatprep.subr.mxu0 0.0
  %1253 = vmatpush1.msra.mxu0 0.0
  %1254 = vmatprep.subr.mxu0 0.0
  %1255 = vmatpush1.msra.mxu0 0.0
  %1256 = vmatprep.subr.mxu0 0.0
  %1257 = vmatpush1.msra.mxu0 %v1221
  %1258 = vmatprep.subr.mxu0 0.0
  %1259 = vmatpush2.msra.mxu0 0.0
  %1260 = vmatprep.subr.mxu0 0.0
  %1261 = vmatpush2.msra.mxu0 0.0
  %1262 = vmatprep.subr.mxu0 0.0
  %1263 = vmatpush2.msra.mxu0 0.0
  %1264 = vmatprep.subr.mxu0 0.0
  %1265 = vmatpush2.msra.mxu0 0.0
  %1266 = vmatprep.subr.mxu0 0.0
  %1267 = vmatpush2.msra.mxu0 0.0
  %1268 = vmatprep.subr.mxu0 0.0
  %1269 = vmatpush2.msra.mxu0 0.0
  %1270 = vmatprep.subr.mxu0 0.0
  %1271 = vmatpush2.msra.mxu0 0.0
  %1272 = vmatprep.subr.mxu0 0.0
  %1273 = vmatpush2.msra.mxu0 0.0
  %1274 = vmatprep.subr.mxu0 0.0
  %1275 = vmatpush2.msra.mxu0 0.0
  %1276 = vmatprep.subr.mxu0 0.0
  %1277 = vmatpush2.msra.mxu0 0.0
  %1278 = vmatprep.subr.mxu0 0.0
  %1279 = vmatpush2.msra.mxu0 0.0
  %1280 = vmatprep.subr.mxu0 0.0
  %1281 = vmatpush2.msra.mxu0 0.0
  %1282 = vmatprep.subr.mxu0 0.0
  %1283 = vmatpush2.msra.mxu0 0.0
  %1284 = vmatprep.subr.mxu0 0.0
  %1285 = vmatpush2.msra.mxu0 0.0
  %1286 = vmatprep.subr.mxu0 0.0
  %1287 = vmatpush2.msra.mxu0 0.0
  %1288 = vmatprep.subr.mxu0 0.0
  %1289 = vmatpush2.msra.mxu0 0.0
  %1290 = vmatprep.mubr.f32.mxu0 0.0
  %1291 = vmatmul.mubr.f32.gmra.mxu0 %v1224
  %v1292 = vpop.f32.mrf.mxu0
  %v1293 = vadd.f32 0.0, %v1292
  %v1294 = vpop.f32.mrf.mxu0
  %1295 = vdwg.mxu0
  %1296 = vrot.lane.b32.xlu0 %v132, 64
  %v1297 = vpop.permute.xlu0 %1296
  %v1300 = vsel %vm137, %v837, 0
  %1302 = vmatprep.subr.mxu0 0.0
  %1303 = vmatpush1.msra.mxu0 0.0
  %1304 = vmatprep.subr.mxu0 0.0
  %1305 = vmatpush1.msra.mxu0 0.0
  %1306 = vmatprep.subr.mxu0 0.0
  %1307 = vmatpush1.msra.mxu0 0.0
  %1308 = vmatprep.subr.mxu0 0.0
  %1309 = vmatpush1.msra.mxu0 0.0
  %1310 = vmatprep.subr.mxu0 0.0
  %1311 = vmatpush1.msra.mxu0 0.0
  %1312 = vmatprep.subr.mxu0 0.0
  %1313 = vmatpush1.msra.mxu0 0.0
  %1314 = vmatprep.subr.mxu0 0.0
  %1315 = vmatpush1.msra.mxu0 0.0
  %1316 = vmatprep.subr.mxu0 0.0
  %1317 = vmatpush1.msra.mxu0 0.0
  %1318 = vmatprep.subr.mxu0 0.0
  %1319 = vmatpush1.msra.mxu0 0.0
  %1320 = vmatprep.subr.mxu0 0.0
  %1321 = vmatpush1.msra.mxu0 0.0
  %1322 = vmatprep.subr.mxu0 0.0
  %1323 = vmatpush1.msra.mxu0 0.0
  %1324 = vmatprep.subr.mxu0 0.0
  %1325 = vmatpush1.msra.mxu0 0.0
  %1326 = vmatprep.subr.mxu0 0.0
  %1327 = vmatpush1.msra.mxu0 0.0
  %1328 = vmatprep.subr.mxu0 0.0
  %1329 = vmatpush1.msra.mxu0 0.0
  %1330 = vmatprep.subr.mxu0 0.0
  %1331 = vmatpush1.msra.mxu0 0.0
  %1332 = vmatprep.subr.mxu0 0.0
  %1333 = vmatpush1.msra.mxu0 %v1297
  %1334 = vmatprep.subr.mxu0 0.0
  %1335 = vmatpush2.msra.mxu0 0.0
  %1336 = vmatprep.subr.mxu0 0.0
  %1337 = vmatpush2.msra.mxu0 0.0
  %1338 = vmatprep.subr.mxu0 0.0
  %1339 = vmatpush2.msra.mxu0 0.0
  %1340 = vmatprep.subr.mxu0 0.0
  %1341 = vmatpush2.msra.mxu0 0.0
  %1342 = vmatprep.subr.mxu0 0.0
  %1343 = vmatpush2.msra.mxu0 0.0
  %1344 = vmatprep.subr.mxu0 0.0
  %1345 = vmatpush2.msra.mxu0 0.0
  %1346 = vmatprep.subr.mxu0 0.0
  %1347 = vmatpush2.msra.mxu0 0.0
  %1348 = vmatprep.subr.mxu0 0.0
  %1349 = vmatpush2.msra.mxu0 0.0
  %1350 = vmatprep.subr.mxu0 0.0
  %1351 = vmatpush2.msra.mxu0 0.0
  %1352 = vmatprep.subr.mxu0 0.0
  %1353 = vmatpush2.msra.mxu0 0.0
  %1354 = vmatprep.subr.mxu0 0.0
  %1355 = vmatpush2.msra.mxu0 0.0
  %1356 = vmatprep.subr.mxu0 0.0
  %1357 = vmatpush2.msra.mxu0 0.0
  %1358 = vmatprep.subr.mxu0 0.0
  %1359 = vmatpush2.msra.mxu0 0.0
  %1360 = vmatprep.subr.mxu0 0.0
  %1361 = vmatpush2.msra.mxu0 0.0
  %1362 = vmatprep.subr.mxu0 0.0
  %1363 = vmatpush2.msra.mxu0 0.0
  %1364 = vmatprep.subr.mxu0 0.0
  %1365 = vmatpush2.msra.mxu0 0.0
  %1366 = vmatprep.mubr.f32.mxu0 0.0
  %1367 = vmatmul.mubr.f32.gmra.mxu0 %v1300
  %v1368 = vpop.f32.mrf.mxu0
  %v1369 = vadd.f32 0.0, %v1368
  %v1370 = vpop.f32.mrf.mxu0
  %1371 = vdwg.mxu0
  %1372 = vrot.lane.b32.xlu0 %v134, 64
  %v1373 = vpop.permute.xlu0 %1372
  %v1376 = vsel %vm137, %v839, 0
  %1378 = vmatprep.subr.mxu0 0.0
  %1379 = vmatpush1.msra.mxu0 0.0
  %1380 = vmatprep.subr.mxu0 0.0
  %1381 = vmatpush1.msra.mxu0 0.0
  %1382 = vmatprep.subr.mxu0 0.0
  %1383 = vmatpush1.msra.mxu0 0.0
  %1384 = vmatprep.subr.mxu0 0.0
  %1385 = vmatpush1.msra.mxu0 0.0
  %1386 = vmatprep.subr.mxu0 0.0
  %1387 = vmatpush1.msra.mxu0 0.0
  %1388 = vmatprep.subr.mxu0 0.0
  %1389 = vmatpush1.msra.mxu0 0.0
  %1390 = vmatprep.subr.mxu0 0.0
  %1391 = vmatpush1.msra.mxu0 0.0
  %1392 = vmatprep.subr.mxu0 0.0
  %1393 = vmatpush1.msra.mxu0 0.0
  %1394 = vmatprep.subr.mxu0 0.0
  %1395 = vmatpush1.msra.mxu0 0.0
  %1396 = vmatprep.subr.mxu0 0.0
  %1397 = vmatpush1.msra.mxu0 0.0
  %1398 = vmatprep.subr.mxu0 0.0
  %1399 = vmatpush1.msra.mxu0 0.0
  %1400 = vmatprep.subr.mxu0 0.0
  %1401 = vmatpush1.msra.mxu0 0.0
  %1402 = vmatprep.subr.mxu0 0.0
  %1403 = vmatpush1.msra.mxu0 0.0
  %1404 = vmatprep.subr.mxu0 0.0
  %1405 = vmatpush1.msra.mxu0 0.0
  %1406 = vmatprep.subr.mxu0 0.0
  %1407 = vmatpush1.msra.mxu0 0.0
  %1408 = vmatprep.subr.mxu0 0.0
  %1409 = vmatpush1.msra.mxu0 %v1373
  %1410 = vmatprep.subr.mxu0 0.0
  %1411 = vmatpush2.msra.mxu0 0.0
  %1412 = vmatprep.subr.mxu0 0.0
  %1413 = vmatpush2.msra.mxu0 0.0
  %1414 = vmatprep.subr.mxu0 0.0
  %1415 = vmatpush2.msra.mxu0 0.0
  %1416 = vmatprep.subr.mxu0 0.0
  %1417 = vmatpush2.msra.mxu0 0.0
  %1418 = vmatprep.subr.mxu0 0.0
  %1419 = vmatpush2.msra.mxu0 0.0
  %1420 = vmatprep.subr.mxu0 0.0
  %1421 = vmatpush2.msra.mxu0 0.0
  %1422 = vmatprep.subr.mxu0 0.0
  %1423 = vmatpush2.msra.mxu0 0.0
  %1424 = vmatprep.subr.mxu0 0.0
  %1425 = vmatpush2.msra.mxu0 0.0
  %1426 = vmatprep.subr.mxu0 0.0
  %1427 = vmatpush2.msra.mxu0 0.0
  %1428 = vmatprep.subr.mxu0 0.0
  %1429 = vmatpush2.msra.mxu0 0.0
  %1430 = vmatprep.subr.mxu0 0.0
  %1431 = vmatpush2.msra.mxu0 0.0
  %1432 = vmatprep.subr.mxu0 0.0
  %1433 = vmatpush2.msra.mxu0 0.0
  %1434 = vmatprep.subr.mxu0 0.0
  %1435 = vmatpush2.msra.mxu0 0.0
  %1436 = vmatprep.subr.mxu0 0.0
  %1437 = vmatpush2.msra.mxu0 0.0
  %1438 = vmatprep.subr.mxu0 0.0
  %1439 = vmatpush2.msra.mxu0 0.0
  %1440 = vmatprep.subr.mxu0 0.0
  %1441 = vmatpush2.msra.mxu0 0.0
  %1442 = vmatprep.mubr.f32.mxu0 0.0
  %1443 = vmatmul.mubr.f32.gmra.mxu0 %v1376
  %v1444 = vpop.f32.mrf.mxu0
  %v1445 = vadd.f32 0.0, %v1444
  %v1446 = vpop.f32.mrf.mxu0
  %1447 = vdwg.mxu0
  %1450 = vrot.lane.b32.xlu0 %v1065, 8
  %v1451 = vpop.permute.xlu0 %1450
  %1452 = vrot.lane.b32.xlu0 %v1141, 8
  %v1453 = vpop.permute.xlu0 %1452
  %1458 = vrot.lane.b32.xlu0 %v1217, 16
  %v1459 = vpop.permute.xlu0 %1458
  %1460 = vrot.lane.b32.xlu0 %v1293, 16
  %v1461 = vpop.permute.xlu0 %1460
  %1466 = vrot.lane.b32.xlu0 %v1369, 24
  %v1467 = vpop.permute.xlu0 %1466
  %1468 = vrot.lane.b32.xlu0 %v1445, 24
  %v1469 = vpop.permute.xlu0 %1468
  %v1472 = vsel %vm137, %v913, %v1451
  %v1473 = vsel %vm137, %v989, %v1453
  %vm1474 = vcmask 130048
  %v1475 = vsel %vm1474, %v1472, %v1459
  %v1476 = vsel %vm1474, %v1473, %v1461
  %vm1477 = vcmask 195584
  %v1478 = vsel %vm1477, %v1475, %v1467
  %v1479 = vsel %vm1477, %v1476, %v1469
  %v1480 = vld [vmem:[%s3 + $0x100] sm:$0xff]
  %v1481 = vld [vmem:[%s3 + $0x220] sm:$0xff]
  %v1482 = vld [vmem:[%s3 + $0x340] sm:$0xff]
  %v1483 = vld [vmem:[%s3 + $0x460] sm:$0xff]
  %v1484 = vld [vmem:[%s5 + $0x20] sm:$0x1]
  %v1486 = vlaneseq
  %v1487 = vshrl.u32 %v1486, 7
  %v1488 = vsub.s32 0, %v1487
  %v1489 = vrot.slane %v1484, %v1488
  %1494 = vrot.lane.b32.xlu0 %v1480, 32
  %v1495 = vpop.permute.xlu0 %1494
  %1496 = vrot.lane.b32.xlu0 %v1481, 32
  %v1497 = vpop.permute.xlu0 %1496
  %1498 = vrot.lane.b32.xlu0 %v1482, 32
  %v1499 = vpop.permute.xlu0 %1498
  %1500 = vrot.lane.b32.xlu0 %v1483, 32
  %v1501 = vpop.permute.xlu0 %1500
  %1506 = vrot.lane.b32.xlu0 %v1489, 32
  %v1507 = vpop.permute.xlu0 %1506
  %v1510 = vsel %vm39, %v1478, 0
  %v1513 = vsel %vm39, %v1479, 0
  %1515 = vmatprep.subr.mxu0 0.0
  %1516 = vmatpush1.msra.mxu0 0.0
  %1517 = vmatprep.subr.mxu0 0.0
  %1518 = vmatpush1.msra.mxu0 0.0
  %1519 = vmatprep.subr.mxu0 0.0
  %1520 = vmatpush1.msra.mxu0 0.0
  %1521 = vmatprep.subr.mxu0 0.0
  %1522 = vmatpush1.msra.mxu0 0.0
  %1523 = vmatprep.subr.mxu0 0.0
  %1524 = vmatpush1.msra.mxu0 0.0
  %1525 = vmatprep.subr.mxu0 0.0
  %1526 = vmatpush1.msra.mxu0 0.0
  %1527 = vmatprep.subr.mxu0 0.0
  %1528 = vmatpush1.msra.mxu0 0.0
  %1529 = vmatprep.subr.mxu0 0.0
  %1530 = vmatpush1.msra.mxu0 0.0
  %1531 = vmatprep.subr.mxu0 0.0
  %1532 = vmatpush1.msra.mxu0 0.0
  %1533 = vmatprep.subr.mxu0 0.0
  %1534 = vmatpush1.msra.mxu0 0.0
  %1535 = vmatprep.subr.mxu0 0.0
  %1536 = vmatpush1.msra.mxu0 0.0
  %1537 = vmatprep.subr.mxu0 0.0
  %1538 = vmatpush1.msra.mxu0 0.0
  %1539 = vmatprep.subr.mxu0 0.0
  %1540 = vmatpush1.msra.mxu0 %v1501
  %1541 = vmatprep.subr.mxu0 0.0
  %1542 = vmatpush1.msra.mxu0 %v1499
  %1543 = vmatprep.subr.mxu0 0.0
  %1544 = vmatpush1.msra.mxu0 %v1497
  %1545 = vmatprep.subr.mxu0 0.0
  %1546 = vmatpush1.msra.mxu0 %v1495
  %1547 = vmatprep.subr.mxu0 0.0
  %1548 = vmatpush2.msra.mxu0 0.0
  %1549 = vmatprep.subr.mxu0 0.0
  %1550 = vmatpush2.msra.mxu0 0.0
  %1551 = vmatprep.subr.mxu0 0.0
  %1552 = vmatpush2.msra.mxu0 0.0
  %1553 = vmatprep.subr.mxu0 0.0
  %1554 = vmatpush2.msra.mxu0 0.0
  %1555 = vmatprep.subr.mxu0 0.0
  %1556 = vmatpush2.msra.mxu0 0.0
  %1557 = vmatprep.subr.mxu0 0.0
  %1558 = vmatpush2.msra.mxu0 0.0
  %1559 = vmatprep.subr.mxu0 0.0
  %1560 = vmatpush2.msra.mxu0 0.0
  %1561 = vmatprep.subr.mxu0 0.0
  %1562 = vmatpush2.msra.mxu0 0.0
  %1563 = vmatprep.subr.mxu0 0.0
  %1564 = vmatpush2.msra.mxu0 0.0
  %1565 = vmatprep.subr.mxu0 0.0
  %1566 = vmatpush2.msra.mxu0 0.0
  %1567 = vmatprep.subr.mxu0 0.0
  %1568 = vmatpush2.msra.mxu0 0.0
  %1569 = vmatprep.subr.mxu0 0.0
  %1570 = vmatpush2.msra.mxu0 0.0
  %1571 = vmatprep.subr.mxu0 0.0
  %1572 = vmatpush2.msra.mxu0 0.0
  %1573 = vmatprep.subr.mxu0 0.0
  %1574 = vmatpush2.msra.mxu0 0.0
  %1575 = vmatprep.subr.mxu0 0.0
  %1576 = vmatpush2.msra.mxu0 0.0
  %1577 = vmatprep.subr.mxu0 0.0
  %1578 = vmatpush2.msra.mxu0 0.0
  %1579 = vmatprep.mubr.f32.mxu0 0.0
  %1580 = vmatmul.mubr.f32.gmra.mxu0 %v1510
  %v1581 = vpop.f32.mrf.mxu0
  %v1582 = vadd.f32 %v1507, %v1581
  %v1583 = vpop.f32.mrf.mxu0
  %1584 = vmatprep.mubr.f32.mxu0 0.0
  %1585 = vmatmul.mubr.f32.gmra.mxu0 %v1513
  %v1586 = vpop.f32.mrf.mxu0
  %v1587 = vadd.f32 %v1507, %v1586
  %v1588 = vpop.f32.mrf.mxu0
  %1589 = vdwg.mxu0
  %v1590 = vld [vmem:[%s5 + $0x21] sm:$0x1]
  %v1591 = vadd.f32 %v26, %v1582
  %v1592 = vadd.f32 %v27, %v1587
  %v1593 = vsel %vm39, %v1591, 0.0
  %1594 = vadd.xlane.f32.xlu0 %v1593
  %v1595 = vpop.xlane.xlu0 %1594
  %v1596 = vsel %vm39, %v1592, 0.0
  %1597 = vadd.xlane.f32.xlu0 %v1596
  %v1598 = vpop.xlane.xlu0 %1597
  %v1599 = vrcp.pop 32.0
  %v1600 = vmul.f32 %v1595, %v1599
  %v1601 = vmul.f32 %v1598, %v1599
  %v1602 = vsub.f32 %v1591, %v1600
  %v1603 = vsub.f32 %v1592, %v1601
  %v1604 = vmul.f32 %v1602, %v1602
  %v1605 = vmul.f32 %v1603, %v1603
  %v1606 = vsel %vm39, %v1604, 0.0
  %1607 = vadd.xlane.f32.xlu0 %v1606
  %v1608 = vpop.xlane.xlu0 %1607
  %v1609 = vsel %vm39, %v1605, 0.0
  %1610 = vadd.xlane.f32.xlu0 %v1609
  %v1611 = vpop.xlane.xlu0 %1610
  %v1612 = vmul.f32 %v1608, %v1599
  %v1613 = vmul.f32 %v1611, %v1599
  %v1614 = vadd.f32 %v1612, 1e-05
  %v1615 = vadd.f32 %v1613, 1e-05
  %v1616 = vrsqrt.pop %v1614
  %v1617 = vrsqrt.pop %v1615
  %v1618 = vmul.f32 %v1602, %v1616
  %v1619 = vmul.f32 %v1603, %v1617
  %v1621 = vlaneseq
  %v1622 = vshrl.u32 %v1621, 7
  %v1623 = vsub.s32 0, %v1622
  %v1624 = vrot.slane %v1590, %v1623
  %v1626 = vmul.f32 %v1618, %v1624
  %v1627 = vmul.f32 %v1619, %v1624
  %1628 = vrot.lane.b32.xlu0 %v1624, 96
  %v1629 = vpop.permute.xlu0 %1628
  %v1631 = vadd.f32 %v1626, %v1629
  %v1632 = vadd.f32 %v1627, %v1629
  %v1633 = vld [vmem:[%s3] sm:$0xff]
  %v1634 = vld [vmem:[%s3 + $0x8] sm:$0xff]
  %v1635 = vld [vmem:[%s3 + $0x10] sm:$0xff]
  %v1636 = vld [vmem:[%s3 + $0x18] sm:$0xff]
  %v1637 = vld [vmem:[%s3 + $0x20] sm:$0xff]
  %v1638 = vld [vmem:[%s3 + $0x28] sm:$0xff]
  %v1639 = vld [vmem:[%s3 + $0x30] sm:$0xff]
  %v1640 = vld [vmem:[%s3 + $0x38] sm:$0xff]
  %v1641 = vld [vmem:[%s3 + $0x40] sm:$0xff]
  %v1642 = vld [vmem:[%s3 + $0x48] sm:$0xff]
  %v1643 = vld [vmem:[%s3 + $0x50] sm:$0xff]
  %v1644 = vld [vmem:[%s3 + $0x58] sm:$0xff]
  %v1645 = vld [vmem:[%s3 + $0x60] sm:$0xff]
  %v1646 = vld [vmem:[%s3 + $0x68] sm:$0xff]
  %v1647 = vld [vmem:[%s3 + $0x70] sm:$0xff]
  %v1648 = vld [vmem:[%s3 + $0x78] sm:$0xff]
  %v1649 = vld [vmem:[%s3 + $0x120] sm:$0xff]
  %v1650 = vld [vmem:[%s3 + $0x128] sm:$0xff]
  %v1651 = vld [vmem:[%s3 + $0x130] sm:$0xff]
  %v1652 = vld [vmem:[%s3 + $0x138] sm:$0xff]
  %v1653 = vld [vmem:[%s3 + $0x140] sm:$0xff]
  %v1654 = vld [vmem:[%s3 + $0x148] sm:$0xff]
  %v1655 = vld [vmem:[%s3 + $0x150] sm:$0xff]
  %v1656 = vld [vmem:[%s3 + $0x158] sm:$0xff]
  %v1657 = vld [vmem:[%s3 + $0x160] sm:$0xff]
  %v1658 = vld [vmem:[%s3 + $0x168] sm:$0xff]
  %v1659 = vld [vmem:[%s3 + $0x170] sm:$0xff]
  %v1660 = vld [vmem:[%s3 + $0x178] sm:$0xff]
  %v1661 = vld [vmem:[%s3 + $0x180] sm:$0xff]
  %v1662 = vld [vmem:[%s3 + $0x188] sm:$0xff]
  %v1663 = vld [vmem:[%s3 + $0x190] sm:$0xff]
  %v1664 = vld [vmem:[%s3 + $0x198] sm:$0xff]
  %v1665 = vld [vmem:[%s3 + $0x240] sm:$0xff]
  %v1666 = vld [vmem:[%s3 + $0x248] sm:$0xff]
  %v1667 = vld [vmem:[%s3 + $0x250] sm:$0xff]
  %v1668 = vld [vmem:[%s3 + $0x258] sm:$0xff]
  %v1669 = vld [vmem:[%s3 + $0x260] sm:$0xff]
  %v1670 = vld [vmem:[%s3 + $0x268] sm:$0xff]
  %v1671 = vld [vmem:[%s3 + $0x270] sm:$0xff]
  %v1672 = vld [vmem:[%s3 + $0x278] sm:$0xff]
  %v1673 = vld [vmem:[%s3 + $0x280] sm:$0xff]
  %v1674 = vld [vmem:[%s3 + $0x288] sm:$0xff]
  %v1675 = vld [vmem:[%s3 + $0x290] sm:$0xff]
  %v1676 = vld [vmem:[%s3 + $0x298] sm:$0xff]
  %v1677 = vld [vmem:[%s3 + $0x2a0] sm:$0xff]
  %v1678 = vld [vmem:[%s3 + $0x2a8] sm:$0xff]
  %v1679 = vld [vmem:[%s3 + $0x2b0] sm:$0xff]
  %v1680 = vld [vmem:[%s3 + $0x2b8] sm:$0xff]
  %v1681 = vld [vmem:[%s3 + $0x360] sm:$0xff]
  %v1682 = vld [vmem:[%s3 + $0x368] sm:$0xff]
  %v1683 = vld [vmem:[%s3 + $0x370] sm:$0xff]
  %v1684 = vld [vmem:[%s3 + $0x378] sm:$0xff]
  %v1685 = vld [vmem:[%s3 + $0x380] sm:$0xff]
  %v1686 = vld [vmem:[%s3 + $0x388] sm:$0xff]
  %v1687 = vld [vmem:[%s3 + $0x390] sm:$0xff]
  %v1688 = vld [vmem:[%s3 + $0x398] sm:$0xff]
  %v1689 = vld [vmem:[%s3 + $0x3a0] sm:$0xff]
  %v1690 = vld [vmem:[%s3 + $0x3a8] sm:$0xff]
  %v1691 = vld [vmem:[%s3 + $0x3b0] sm:$0xff]
  %v1692 = vld [vmem:[%s3 + $0x3b8] sm:$0xff]
  %v1693 = vld [vmem:[%s3 + $0x3c0] sm:$0xff]
  %v1694 = vld [vmem:[%s3 + $0x3c8] sm:$0xff]
  %v1695 = vld [vmem:[%s3 + $0x3d0] sm:$0xff]
  %v1696 = vld [vmem:[%s3 + $0x3d8] sm:$0xff]
  %v1697 = vld [vmem:[%s5] sm:$0xff]
  %v1698 = vld [vmem:[%s5 + $0x8] sm:$0xff]
  %v1701 = vlaneseq
  %v1702 = vshrl.u32 %v1701, 7
  %v1703 = vsub.s32 0, %v1702
  %v1704 = vrot.slane %v1697, %v1703
  %v1705 = vlaneseq
  %v1706 = vshrl.u32 %v1705, 7
  %v1707 = vsub.s32 1, %v1706
  %v1708 = vrot.slane %v1697, %v1707
  %v1709 = vlaneseq
  %v1710 = vshrl.u32 %v1709, 7
  %v1711 = vsub.s32 2, %v1710
  %v1712 = vrot.slane %v1697, %v1711
  %v1713 = vlaneseq
  %v1714 = vshrl.u32 %v1713, 7
  %v1715 = vsub.s32 3, %v1714
  %v1716 = vrot.slane %v1697, %v1715
  %v1717 = vlaneseq
  %v1718 = vshrl.u32 %v1717, 7
  %v1719 = vsub.s32 4, %v1718
  %v1720 = vrot.slane %v1697, %v1719
  %v1721 = vlaneseq
  %v1722 = vshrl.u32 %v1721, 7
  %v1723 = vsub.s32 5, %v1722
  %v1724 = vrot.slane %v1697, %v1723
  %v1725 = vlaneseq
  %v1726 = vshrl.u32 %v1725, 7
  %v1727 = vsub.s32 6, %v1726
  %v1728 = vrot.slane %v1697, %v1727
  %v1729 = vlaneseq
  %v1730 = vshrl.u32 %v1729, 7
  %v1731 = vsub.s32 7, %v1730
  %v1732 = vrot.slane %v1697, %v1731
  %v1733 = vlaneseq
  %v1734 = vshrl.u32 %v1733, 7
  %v1735 = vsub.s32 0, %v1734
  %v1736 = vrot.slane %v1698, %v1735
  %v1737 = vlaneseq
  %v1738 = vshrl.u32 %v1737, 7
  %v1739 = vsub.s32 1, %v1738
  %v1740 = vrot.slane %v1698, %v1739
  %v1741 = vlaneseq
  %v1742 = vshrl.u32 %v1741, 7
  %v1743 = vsub.s32 2, %v1742
  %v1744 = vrot.slane %v1698, %v1743
  %v1745 = vlaneseq
  %v1746 = vshrl.u32 %v1745, 7
  %v1747 = vsub.s32 3, %v1746
  %v1748 = vrot.slane %v1698, %v1747
  %v1749 = vlaneseq
  %v1750 = vshrl.u32 %v1749, 7
  %v1751 = vsub.s32 4, %v1750
  %v1752 = vrot.slane %v1698, %v1751
  %v1753 = vlaneseq
  %v1754 = vshrl.u32 %v1753, 7
  %v1755 = vsub.s32 5, %v1754
  %v1756 = vrot.slane %v1698, %v1755
  %v1757 = vlaneseq
  %v1758 = vshrl.u32 %v1757, 7
  %v1759 = vsub.s32 6, %v1758
  %v1760 = vrot.slane %v1698, %v1759
  %v1761 = vlaneseq
  %v1762 = vshrl.u32 %v1761, 7
  %v1763 = vsub.s32 7, %v1762
  %v1764 = vrot.slane %v1698, %v1763
  %v1782 = vsel %vm39, %v1631, 0
  %v1785 = vsel %vm39, %v1632, 0
  %1787 = vmatprep.subr.mxu0 0.0
  %1788 = vmatpush1.msra.mxu0 0.0
  %1789 = vmatprep.subr.mxu0 0.0
  %1790 = vmatpush1.msra.mxu0 0.0
  %1791 = vmatprep.subr.mxu0 0.0
  %1792 = vmatpush1.msra.mxu0 0.0
  %1793 = vmatprep.subr.mxu0 0.0
  %1794 = vmatpush1.msra.mxu0 0.0
  %1795 = vmatprep.subr.mxu0 0.0
  %1796 = vmatpush1.msra.mxu0 0.0
  %1797 = vmatprep.subr.mxu0 0.0
  %1798 = vmatpush1.msra.mxu0 0.0
  %1799 = vmatprep.subr.mxu0 0.0
  %1800 = vmatpush1.msra.mxu0 0.0
  %1801 = vmatprep.subr.mxu0 0.0
  %1802 = vmatpush1.msra.mxu0 0.0
  %1803 = vmatprep.subr.mxu0 0.0
  %1804 = vmatpush1.msra.mxu0 0.0
  %1805 = vmatprep.subr.mxu0 0.0
  %1806 = vmatpush1.msra.mxu0 0.0
  %1807 = vmatprep.subr.mxu0 0.0
  %1808 = vmatpush1.msra.mxu0 0.0
  %1809 = vmatprep.subr.mxu0 0.0
  %1810 = vmatpush1.msra.mxu0 0.0
  %1811 = vmatprep.subr.mxu0 %v1682
  %1812 = vmatpush1.msra.mxu0 %v1681
  %1813 = vmatprep.subr.mxu0 %v1666
  %1814 = vmatpush1.msra.mxu0 %v1665
  %1815 = vmatprep.subr.mxu0 %v1650
  %1816 = vmatpush1.msra.mxu0 %v1649
  %1817 = vmatprep.subr.mxu0 %v1634
  %1818 = vmatpush1.msra.mxu0 %v1633
  %1819 = vmatprep.subr.mxu0 0.0
  %1820 = vmatpush2.msra.mxu0 0.0
  %1821 = vmatprep.subr.mxu0 0.0
  %1822 = vmatpush2.msra.mxu0 0.0
  %1823 = vmatprep.subr.mxu0 0.0
  %1824 = vmatpush2.msra.mxu0 0.0
  %1825 = vmatprep.subr.mxu0 0.0
  %1826 = vmatpush2.msra.mxu0 0.0
  %1827 = vmatprep.subr.mxu0 0.0
  %1828 = vmatpush2.msra.mxu0 0.0
  %1829 = vmatprep.subr.mxu0 0.0
  %1830 = vmatpush2.msra.mxu0 0.0
  %1831 = vmatprep.subr.mxu0 0.0
  %1832 = vmatpush2.msra.mxu0 0.0
  %1833 = vmatprep.subr.mxu0 0.0
  %1834 = vmatpush2.msra.mxu0 0.0
  %1835 = vmatprep.subr.mxu0 0.0
  %1836 = vmatpush2.msra.mxu0 0.0
  %1837 = vmatprep.subr.mxu0 0.0
  %1838 = vmatpush2.msra.mxu0 0.0
  %1839 = vmatprep.subr.mxu0 0.0
  %1840 = vmatpush2.msra.mxu0 0.0
  %1841 = vmatprep.subr.mxu0 0.0
  %1842 = vmatpush2.msra.mxu0 0.0
  %1843 = vmatprep.subr.mxu0 0.0
  %1844 = vmatpush2.msra.mxu0 0.0
  %1845 = vmatprep.subr.mxu0 0.0
  %1846 = vmatpush2.msra.mxu0 0.0
  %1847 = vmatprep.subr.mxu0 0.0
  %1848 = vmatpush2.msra.mxu0 0.0
  %1849 = vmatprep.subr.mxu0 0.0
  %1850 = vmatpush2.msra.mxu0 0.0
  %1851 = vmatprep.mubr.f32.mxu0 0.0
  %1852 = vmatmul.mubr.f32.gmra.mxu0 %v1782
  %v1853 = vpop.f32.mrf.mxu0
  %v1854 = vadd.f32 %v1704, %v1853
  %v1855 = vpop.f32.mrf.mxu0
  %v1856 = vadd.f32 %v1708, %v1855
  %1857 = vmatprep.mubr.f32.mxu0 0.0
  %1858 = vmatmul.mubr.f32.gmra.mxu0 %v1785
  %v1859 = vpop.f32.mrf.mxu0
  %v1860 = vadd.f32 %v1704, %v1859
  %v1861 = vpop.f32.mrf.mxu0
  %v1862 = vadd.f32 %v1708, %v1861
  %1863 = vdwg.mxu0
  %1864 = vmatprep.subr.mxu0 0.0
  %1865 = vmatpush1.msra.mxu0 0.0
  %1866 = vmatprep.subr.mxu0 0.0
  %1867 = vmatpush1.msra.mxu0 0.0
  %1868 = vmatprep.subr.mxu0 0.0
  %1869 = vmatpush1.msra.mxu0 0.0
  %1870 = vmatprep.subr.mxu0 0.0
  %1871 = vmatpush1.msra.mxu0 0.0
  %1872 = vmatprep.subr.mxu0 0.0
  %1873 = vmatpush1.msra.mxu0 0.0
  %1874 = vmatprep.subr.mxu0 0.0
  %1875 = vmatpush1.msra.mxu0 0.0
  %1876 = vmatprep.subr.mxu0 0.0
  %1877 = vmatpush1.msra.mxu0 0.0
  %1878 = vmatprep.subr.mxu0 0.0
  %1879 = vmatpush1.msra.mxu0 0.0
  %1880 = vmatprep.subr.mxu0 0.0
  %1881 = vmatpush1.msra.mxu0 0.0
  %1882 = vmatprep.subr.mxu0 0.0
  %1883 = vmatpush1.msra.mxu0 0.0
  %1884 = vmatprep.subr.mxu0 0.0
  %1885 = vmatpush1.msra.mxu0 0.0
  %1886 = vmatprep.subr.mxu0 0.0
  %1887 = vmatpush1.msra.mxu0 0.0
  %1888 = vmatprep.subr.mxu0 %v1684
  %1889 = vmatpush1.msra.mxu0 %v1683
  %1890 = vmatprep.subr.mxu0 %v1668
  %1891 = vmatpush1.msra.mxu0 %v1667
  %1892 = vmatprep.subr.mxu0 %v1652
  %1893 = vmatpush1.msra.mxu0 %v1651
  %1894 = vmatprep.subr.mxu0 %v1636
  %1895 = vmatpush1.msra.mxu0 %v1635
  %1896 = vmatprep.subr.mxu0 0.0
  %1897 = vmatpush2.msra.mxu0 0.0
  %1898 = vmatprep.subr.mxu0 0.0
  %1899 = vmatpush2.msra.mxu0 0.0
  %1900 = vmatprep.subr.mxu0 0.0
  %1901 = vmatpush2.msra.mxu0 0.0
  %1902 = vmatprep.subr.mxu0 0.0
  %1903 = vmatpush2.msra.mxu0 0.0
  %1904 = vmatprep.subr.mxu0 0.0
  %1905 = vmatpush2.msra.mxu0 0.0
  %1906 = vmatprep.subr.mxu0 0.0
  %1907 = vmatpush2.msra.mxu0 0.0
  %1908 = vmatprep.subr.mxu0 0.0
  %1909 = vmatpush2.msra.mxu0 0.0
  %1910 = vmatprep.subr.mxu0 0.0
  %1911 = vmatpush2.msra.mxu0 0.0
  %1912 = vmatprep.subr.mxu0 0.0
  %1913 = vmatpush2.msra.mxu0 0.0
  %1914 = vmatprep.subr.mxu0 0.0
  %1915 = vmatpush2.msra.mxu0 0.0
  %1916 = vmatprep.subr.mxu0 0.0
  %1917 = vmatpush2.msra.mxu0 0.0
  %1918 = vmatprep.subr.mxu0 0.0
  %1919 = vmatpush2.msra.mxu0 0.0
  %1920 = vmatprep.subr.mxu0 0.0
  %1921 = vmatpush2.msra.mxu0 0.0
  %1922 = vmatprep.subr.mxu0 0.0
  %1923 = vmatpush2.msra.mxu0 0.0
  %1924 = vmatprep.subr.mxu0 0.0
  %1925 = vmatpush2.msra.mxu0 0.0
  %1926 = vmatprep.subr.mxu0 0.0
  %1927 = vmatpush2.msra.mxu0 0.0
  %1928 = vmatprep.mubr.f32.mxu0 0.0
  %1929 = vmatmul.mubr.f32.gmra.mxu0 %v1782
  %v1930 = vpop.f32.mrf.mxu0
  %v1931 = vadd.f32 %v1712, %v1930
  %v1932 = vpop.f32.mrf.mxu0
  %v1933 = vadd.f32 %v1716, %v1932
  %1934 = vmatprep.mubr.f32.mxu0 0.0
  %1935 = vmatmul.mubr.f32.gmra.mxu0 %v1785
  %v1936 = vpop.f32.mrf.mxu0
  %v1937 = vadd.f32 %v1712, %v1936
  %v1938 = vpop.f32.mrf.mxu0
  %v1939 = vadd.f32 %v1716, %v1938
  %1940 = vdwg.mxu0
  %1941 = vmatprep.subr.mxu0 0.0
  %1942 = vmatpush1.msra.mxu0 0.0
  %1943 = vmatprep.subr.mxu0 0.0
  %1944 = vmatpush1.msra.mxu0 0.0
  %1945 = vmatprep.subr.mxu0 0.0
  %1946 = vmatpush1.msra.mxu0 0.0
  %1947 = vmatprep.subr.mxu0 0.0
  %1948 = vmatpush1.msra.mxu0 0.0
  %1949 = vmatprep.subr.mxu0 0.0
  %1950 = vmatpush1.msra.mxu0 0.0
  %1951 = vmatprep.subr.mxu0 0.0
  %1952 = vmatpush1.msra.mxu0 0.0
  %1953 = vmatprep.subr.mxu0 0.0
  %1954 = vmatpush1.msra.mxu0 0.0
  %1955 = vmatprep.subr.mxu0 0.0
  %1956 = vmatpush1.msra.mxu0 0.0
  %1957 = vmatprep.subr.mxu0 0.0
  %1958 = vmatpush1.msra.mxu0 0.0
  %1959 = vmatprep.subr.mxu0 0.0
  %1960 = vmatpush1.msra.mxu0 0.0
  %1961 = vmatprep.subr.mxu0 0.0
  %1962 = vmatpush1.msra.mxu0 0.0
  %1963 = vmatprep.subr.mxu0 0.0
  %1964 = vmatpush1.msra.mxu0 0.0
  %1965 = vmatprep.subr.mxu0 %v1686
  %1966 = vmatpush1.msra.mxu0 %v1685
  %1967 = vmatprep.subr.mxu0 %v1670
  %1968 = vmatpush1.msra.mxu0 %v1669
  %1969 = vmatprep.subr.mxu0 %v1654
  %1970 = vmatpush1.msra.mxu0 %v1653
  %1971 = vmatprep.subr.mxu0 %v1638
  %1972 = vmatpush1.msra.mxu0 %v1637
  %1973 = vmatprep.subr.mxu0 0.0
  %1974 = vmatpush2.msra.mxu0 0.0
  %1975 = vmatprep.subr.mxu0 0.0
  %1976 = vmatpush2.msra.mxu0 0.0
  %1977 = vmatprep.subr.mxu0 0.0
  %1978 = vmatpush2.msra.mxu0 0.0
  %1979 = vmatprep.subr.mxu0 0.0
  %1980 = vmatpush2.msra.mxu0 0.0
  %1981 = vmatprep.subr.mxu0 0.0
  %1982 = vmatpush2.msra.mxu0 0.0
  %1983 = vmatprep.subr.mxu0 0.0
  %1984 = vmatpush2.msra.mxu0 0.0
  %1985 = vmatprep.subr.mxu0 0.0
  %1986 = vmatpush2.msra.mxu0 0.0
  %1987 = vmatprep.subr.mxu0 0.0
  %1988 = vmatpush2.msra.mxu0 0.0
  %1989 = vmatprep.subr.mxu0 0.0
  %1990 = vmatpush2.msra.mxu0 0.0
  %1991 = vmatprep.subr.mxu0 0.0
  %1992 = vmatpush2.msra.mxu0 0.0
  %1993 = vmatprep.subr.mxu0 0.0
  %1994 = vmatpush2.msra.mxu0 0.0
  %1995 = vmatprep.subr.mxu0 0.0
  %1996 = vmatpush2.msra.mxu0 0.0
  %1997 = vmatprep.subr.mxu0 0.0
  %1998 = vmatpush2.msra.mxu0 0.0
  %1999 = vmatprep.subr.mxu0 0.0
  %2000 = vmatpush2.msra.mxu0 0.0
  %2001 = vmatprep.subr.mxu0 0.0
  %2002 = vmatpush2.msra.mxu0 0.0
  %2003 = vmatprep.subr.mxu0 0.0
  %2004 = vmatpush2.msra.mxu0 0.0
  %2005 = vmatprep.mubr.f32.mxu0 0.0
  %2006 = vmatmul.mubr.f32.gmra.mxu0 %v1782
  %v2007 = vpop.f32.mrf.mxu0
  %v2008 = vadd.f32 %v1720, %v2007
  %v2009 = vpop.f32.mrf.mxu0
  %v2010 = vadd.f32 %v1724, %v2009
  %2011 = vmatprep.mubr.f32.mxu0 0.0
  %2012 = vmatmul.mubr.f32.gmra.mxu0 %v1785
  %v2013 = vpop.f32.mrf.mxu0
  %v2014 = vadd.f32 %v1720, %v2013
  %v2015 = vpop.f32.mrf.mxu0
  %v2016 = vadd.f32 %v1724, %v2015
  %2017 = vdwg.mxu0
  %2018 = vmatprep.subr.mxu0 0.0
  %2019 = vmatpush1.msra.mxu0 0.0
  %2020 = vmatprep.subr.mxu0 0.0
  %2021 = vmatpush1.msra.mxu0 0.0
  %2022 = vmatprep.subr.mxu0 0.0
  %2023 = vmatpush1.msra.mxu0 0.0
  %2024 = vmatprep.subr.mxu0 0.0
  %2025 = vmatpush1.msra.mxu0 0.0
  %2026 = vmatprep.subr.mxu0 0.0
  %2027 = vmatpush1.msra.mxu0 0.0
  %2028 = vmatprep.subr.mxu0 0.0
  %2029 = vmatpush1.msra.mxu0 0.0
  %2030 = vmatprep.subr.mxu0 0.0
  %2031 = vmatpush1.msra.mxu0 0.0
  %2032 = vmatprep.subr.mxu0 0.0
  %2033 = vmatpush1.msra.mxu0 0.0
  %2034 = vmatprep.subr.mxu0 0.0
  %2035 = vmatpush1.msra.mxu0 0.0
  %2036 = vmatprep.subr.mxu0 0.0
  %2037 = vmatpush1.msra.mxu0 0.0
  %2038 = vmatprep.subr.mxu0 0.0
  %2039 = vmatpush1.msra.mxu0 0.0
  %2040 = vmatprep.subr.mxu0 0.0
  %2041 = vmatpush1.msra.mxu0 0.0
  %2042 = vmatprep.subr.mxu0 %v1688
  %2043 = vmatpush1.msra.mxu0 %v1687
  %2044 = vmatprep.subr.mxu0 %v1672
  %2045 = vmatpush1.msra.mxu0 %v1671
  %2046 = vmatprep.subr.mxu0 %v1656
  %2047 = vmatpush1.msra.mxu0 %v1655
  %2048 = vmatprep.subr.mxu0 %v1640
  %2049 = vmatpush1.msra.mxu0 %v1639
  %2050 = vmatprep.subr.mxu0 0.0
  %2051 = vmatpush2.msra.mxu0 0.0
  %2052 = vmatprep.subr.mxu0 0.0
  %2053 = vmatpush2.msra.mxu0 0.0
  %2054 = vmatprep.subr.mxu0 0.0
  %2055 = vmatpush2.msra.mxu0 0.0
  %2056 = vmatprep.subr.mxu0 0.0
  %2057 = vmatpush2.msra.mxu0 0.0
  %2058 = vmatprep.subr.mxu0 0.0
  %2059 = vmatpush2.msra.mxu0 0.0
  %2060 = vmatprep.subr.mxu0 0.0
  %2061 = vmatpush2.msra.mxu0 0.0
  %2062 = vmatprep.subr.mxu0 0.0
  %2063 = vmatpush2.msra.mxu0 0.0
  %2064 = vmatprep.subr.mxu0 0.0
  %2065 = vmatpush2.msra.mxu0 0.0
  %2066 = vmatprep.subr.mxu0 0.0
  %2067 = vmatpush2.msra.mxu0 0.0
  %2068 = vmatprep.subr.mxu0 0.0
  %2069 = vmatpush2.msra.mxu0 0.0
  %2070 = vmatprep.subr.mxu0 0.0
  %2071 = vmatpush2.msra.mxu0 0.0
  %2072 = vmatprep.subr.mxu0 0.0
  %2073 = vmatpush2.msra.mxu0 0.0
  %2074 = vmatprep.subr.mxu0 0.0
  %2075 = vmatpush2.msra.mxu0 0.0
  %2076 = vmatprep.subr.mxu0 0.0
  %2077 = vmatpush2.msra.mxu0 0.0
  %2078 = vmatprep.subr.mxu0 0.0
  %2079 = vmatpush2.msra.mxu0 0.0
  %2080 = vmatprep.subr.mxu0 0.0
  %2081 = vmatpush2.msra.mxu0 0.0
  %2082 = vmatprep.mubr.f32.mxu0 0.0
  %2083 = vmatmul.mubr.f32.gmra.mxu0 %v1782
  %v2084 = vpop.f32.mrf.mxu0
  %v2085 = vadd.f32 %v1728, %v2084
  %v2086 = vpop.f32.mrf.mxu0
  %v2087 = vadd.f32 %v1732, %v2086
  %2088 = vmatprep.mubr.f32.mxu0 0.0
  %2089 = vmatmul.mubr.f32.gmra.mxu0 %v1785
  %v2090 = vpop.f32.mrf.mxu0
  %v2091 = vadd.f32 %v1728, %v2090
  %v2092 = vpop.f32.mrf.mxu0
  %v2093 = vadd.f32 %v1732, %v2092
  %2094 = vdwg.mxu0
  %2095 = vmatprep.subr.mxu0 0.0
  %2096 = vmatpush1.msra.mxu0 0.0
  %2097 = vmatprep.subr.mxu0 0.0
  %2098 = vmatpush1.msra.mxu0 0.0
  %2099 = vmatprep.subr.mxu0 0.0
  %2100 = vmatpush1.msra.mxu0 0.0
  %2101 = vmatprep.subr.mxu0 0.0
  %2102 = vmatpush1.msra.mxu0 0.0
  %2103 = vmatprep.subr.mxu0 0.0
  %2104 = vmatpush1.msra.mxu0 0.0
  %2105 = vmatprep.subr.mxu0 0.0
  %2106 = vmatpush1.msra.mxu0 0.0
  %2107 = vmatprep.subr.mxu0 0.0
  %2108 = vmatpush1.msra.mxu0 0.0
  %2109 = vmatprep.subr.mxu0 0.0
  %2110 = vmatpush1.msra.mxu0 0.0
  %2111 = vmatprep.subr.mxu0 0.0
  %2112 = vmatpush1.msra.mxu0 0.0
  %2113 = vmatprep.subr.mxu0 0.0
  %2114 = vmatpush1.msra.mxu0 0.0
  %2115 = vmatprep.subr.mxu0 0.0
  %2116 = vmatpush1.msra.mxu0 0.0
  %2117 = vmatprep.subr.mxu0 0.0
  %2118 = vmatpush1.msra.mxu0 0.0
  %2119 = vmatprep.subr.mxu0 %v1690
  %2120 = vmatpush1.msra.mxu0 %v1689
  %2121 = vmatprep.subr.mxu0 %v1674
  %2122 = vmatpush1.msra.mxu0 %v1673
  %2123 = vmatprep.subr.mxu0 %v1658
  %2124 = vmatpush1.msra.mxu0 %v1657
  %2125 = vmatprep.subr.mxu0 %v1642
  %2126 = vmatpush1.msra.mxu0 %v1641
  %2127 = vmatprep.subr.mxu0 0.0
  %2128 = vmatpush2.msra.mxu0 0.0
  %2129 = vmatprep.subr.mxu0 0.0
  %2130 = vmatpush2.msra.mxu0 0.0
  %2131 = vmatprep.subr.mxu0 0.0
  %2132 = vmatpush2.msra.mxu0 0.0
  %2133 = vmatprep.subr.mxu0 0.0
  %2134 = vmatpush2.msra.mxu0 0.0
  %2135 = vmatprep.subr.mxu0 0.0
  %2136 = vmatpush2.msra.mxu0 0.0
  %2137 = vmatprep.subr.mxu0 0.0
  %2138 = vmatpush2.msra.mxu0 0.0
  %2139 = vmatprep.subr.mxu0 0.0
  %2140 = vmatpush2.msra.mxu0 0.0
  %2141 = vmatprep.subr.mxu0 0.0
  %2142 = vmatpush2.msra.mxu0 0.0
  %2143 = vmatprep.subr.mxu0 0.0
  %2144 = vmatpush2.msra.mxu0 0.0
  %2145 = vmatprep.subr.mxu0 0.0
  %2146 = vmatpush2.msra.mxu0 0.0
  %2147 = vmatprep.subr.mxu0 0.0
  %2148 = vmatpush2.msra.mxu0 0.0
  %2149 = vmatprep.subr.mxu0 0.0
  %2150 = vmatpush2.msra.mxu0 0.0
  %2151 = vmatprep.subr.mxu0 0.0
  %2152 = vmatpush2.msra.mxu0 0.0
  %2153 = vmatprep.subr.mxu0 0.0
  %2154 = vmatpush2.msra.mxu0 0.0
  %2155 = vmatprep.subr.mxu0 0.0
  %2156 = vmatpush2.msra.mxu0 0.0
  %2157 = vmatprep.subr.mxu0 0.0
  %2158 = vmatpush2.msra.mxu0 0.0
  %2159 = vmatprep.mubr.f32.mxu0 0.0
  %2160 = vmatmul.mubr.f32.gmra.mxu0 %v1782
  %v2161 = vpop.f32.mrf.mxu0
  %v2162 = vadd.f32 %v1736, %v2161
  %v2163 = vpop.f32.mrf.mxu0
  %v2164 = vadd.f32 %v1740, %v2163
  %2165 = vmatprep.mubr.f32.mxu0 0.0
  %2166 = vmatmul.mubr.f32.gmra.mxu0 %v1785
  %v2167 = vpop.f32.mrf.mxu0
  %v2168 = vadd.f32 %v1736, %v2167
  %v2169 = vpop.f32.mrf.mxu0
  %v2170 = vadd.f32 %v1740, %v2169
  %2171 = vdwg.mxu0
  %2172 = vmatprep.subr.mxu0 0.0
  %2173 = vmatpush1.msra.mxu0 0.0
  %2174 = vmatprep.subr.mxu0 0.0
  %2175 = vmatpush1.msra.mxu0 0.0
  %2176 = vmatprep.subr.mxu0 0.0
  %2177 = vmatpush1.msra.mxu0 0.0
  %2178 = vmatprep.subr.mxu0 0.0
  %2179 = vmatpush1.msra.mxu0 0.0
  %2180 = vmatprep.subr.mxu0 0.0
  %2181 = vmatpush1.msra.mxu0 0.0
  %2182 = vmatprep.subr.mxu0 0.0
  %2183 = vmatpush1.msra.mxu0 0.0
  %2184 = vmatprep.subr.mxu0 0.0
  %2185 = vmatpush1.msra.mxu0 0.0
  %2186 = vmatprep.subr.mxu0 0.0
  %2187 = vmatpush1.msra.mxu0 0.0
  %2188 = vmatprep.subr.mxu0 0.0
  %2189 = vmatpush1.msra.mxu0 0.0
  %2190 = vmatprep.subr.mxu0 0.0
  %2191 = vmatpush1.msra.mxu0 0.0
  %2192 = vmatprep.subr.mxu0 0.0
  %2193 = vmatpush1.msra.mxu0 0.0
  %2194 = vmatprep.subr.mxu0 0.0
  %2195 = vmatpush1.msra.mxu0 0.0
  %2196 = vmatprep.subr.mxu0 %v1692
  %2197 = vmatpush1.msra.mxu0 %v1691
  %2198 = vmatprep.subr.mxu0 %v1676
  %2199 = vmatpush1.msra.mxu0 %v1675
  %2200 = vmatprep.subr.mxu0 %v1660
  %2201 = vmatpush1.msra.mxu0 %v1659
  %2202 = vmatprep.subr.mxu0 %v1644
  %2203 = vmatpush1.msra.mxu0 %v1643
  %2204 = vmatprep.subr.mxu0 0.0
  %2205 = vmatpush2.msra.mxu0 0.0
  %2206 = vmatprep.subr.mxu0 0.0
  %2207 = vmatpush2.msra.mxu0 0.0
  %2208 = vmatprep.subr.mxu0 0.0
  %2209 = vmatpush2.msra.mxu0 0.0
  %2210 = vmatprep.subr.mxu0 0.0
  %2211 = vmatpush2.msra.mxu0 0.0
  %2212 = vmatprep.subr.mxu0 0.0
  %2213 = vmatpush2.msra.mxu0 0.0
  %2214 = vmatprep.subr.mxu0 0.0
  %2215 = vmatpush2.msra.mxu0 0.0
  %2216 = vmatprep.subr.mxu0 0.0
  %2217 = vmatpush2.msra.mxu0 0.0
  %2218 = vmatprep.subr.mxu0 0.0
  %2219 = vmatpush2.msra.mxu0 0.0
  %2220 = vmatprep.subr.mxu0 0.0
  %2221 = vmatpush2.msra.mxu0 0.0
  %2222 = vmatprep.subr.mxu0 0.0
  %2223 = vmatpush2.msra.mxu0 0.0
  %2224 = vmatprep.subr.mxu0 0.0
  %2225 = vmatpush2.msra.mxu0 0.0
  %2226 = vmatprep.subr.mxu0 0.0
  %2227 = vmatpush2.msra.mxu0 0.0
  %2228 = vmatprep.subr.mxu0 0.0
  %2229 = vmatpush2.msra.mxu0 0.0
  %2230 = vmatprep.subr.mxu0 0.0
  %2231 = vmatpush2.msra.mxu0 0.0
  %2232 = vmatprep.subr.mxu0 0.0
  %2233 = vmatpush2.msra.mxu0 0.0
  %2234 = vmatprep.subr.mxu0 0.0
  %2235 = vmatpush2.msra.mxu0 0.0
  %2236 = vmatprep.mubr.f32.mxu0 0.0
  %2237 = vmatmul.mubr.f32.gmra.mxu0 %v1782
  %v2238 = vpop.f32.mrf.mxu0
  %v2239 = vadd.f32 %v1744, %v2238
  %v2240 = vpop.f32.mrf.mxu0
  %v2241 = vadd.f32 %v1748, %v2240
  %2242 = vmatprep.mubr.f32.mxu0 0.0
  %2243 = vmatmul.mubr.f32.gmra.mxu0 %v1785
  %v2244 = vpop.f32.mrf.mxu0
  %v2245 = vadd.f32 %v1744, %v2244
  %v2246 = vpop.f32.mrf.mxu0
  %v2247 = vadd.f32 %v1748, %v2246
  %2248 = vdwg.mxu0
  %2249 = vmatprep.subr.mxu0 0.0
  %2250 = vmatpush1.msra.mxu0 0.0
  %2251 = vmatprep.subr.mxu0 0.0
  %2252 = vmatpush1.msra.mxu0 0.0
  %2253 = vmatprep.subr.mxu0 0.0
  %2254 = vmatpush1.msra.mxu0 0.0
  %2255 = vmatprep.subr.mxu0 0.0
  %2256 = vmatpush1.msra.mxu0 0.0
  %2257 = vmatprep.subr.mxu0 0.0
  %2258 = vmatpush1.msra.mxu0 0.0
  %2259 = vmatprep.subr.mxu0 0.0
  %2260 = vmatpush1.msra.mxu0 0.0
  %2261 = vmatprep.subr.mxu0 0.0
  %2262 = vmatpush1.msra.mxu0 0.0
  %2263 = vmatprep.subr.mxu0 0.0
  %2264 = vmatpush1.msra.mxu0 0.0
  %2265 = vmatprep.subr.mxu0 0.0
  %2266 = vmatpush1.msra.mxu0 0.0
  %2267 = vmatprep.subr.mxu0 0.0
  %2268 = vmatpush1.msra.mxu0 0.0
  %2269 = vmatprep.subr.mxu0 0.0
  %2270 = vmatpush1.msra.mxu0 0.0
  %2271 = vmatprep.subr.mxu0 0.0
  %2272 = vmatpush1.msra.mxu0 0.0
  %2273 = vmatprep.subr.mxu0 %v1694
  %2274 = vmatpush1.msra.mxu0 %v1693
  %2275 = vmatprep.subr.mxu0 %v1678
  %2276 = vmatpush1.msra.mxu0 %v1677
  %2277 = vmatprep.subr.mxu0 %v1662
  %2278 = vmatpush1.msra.mxu0 %v1661
  %2279 = vmatprep.subr.mxu0 %v1646
  %2280 = vmatpush1.msra.mxu0 %v1645
  %2281 = vmatprep.subr.mxu0 0.0
  %2282 = vmatpush2.msra.mxu0 0.0
  %2283 = vmatprep.subr.mxu0 0.0
  %2284 = vmatpush2.msra.mxu0 0.0
  %2285 = vmatprep.subr.mxu0 0.0
  %2286 = vmatpush2.msra.mxu0 0.0
  %2287 = vmatprep.subr.mxu0 0.0
  %2288 = vmatpush2.msra.mxu0 0.0
  %2289 = vmatprep.subr.mxu0 0.0
  %2290 = vmatpush2.msra.mxu0 0.0
  %2291 = vmatprep.subr.mxu0 0.0
  %2292 = vmatpush2.msra.mxu0 0.0
  %2293 = vmatprep.subr.mxu0 0.0
  %2294 = vmatpush2.msra.mxu0 0.0
  %2295 = vmatprep.subr.mxu0 0.0
  %2296 = vmatpush2.msra.mxu0 0.0
  %2297 = vmatprep.subr.mxu0 0.0
  %2298 = vmatpush2.msra.mxu0 0.0
  %2299 = vmatprep.subr.mxu0 0.0
  %2300 = vmatpush2.msra.mxu0 0.0
  %2301 = vmatprep.subr.mxu0 0.0
  %2302 = vmatpush2.msra.mxu0 0.0
  %2303 = vmatprep.subr.mxu0 0.0
  %2304 = vmatpush2.msra.mxu0 0.0
  %2305 = vmatprep.subr.mxu0 0.0
  %2306 = vmatpush2.msra.mxu0 0.0
  %2307 = vmatprep.subr.mxu0 0.0
  %2308 = vmatpush2.msra.mxu0 0.0
  %2309 = vmatprep.subr.mxu0 0.0
  %2310 = vmatpush2.msra.mxu0 0.0
  %2311 = vmatprep.subr.mxu0 0.0
  %2312 = vmatpush2.msra.mxu0 0.0
  %2313 = vmatprep.mubr.f32.mxu0 0.0
  %2314 = vmatmul.mubr.f32.gmra.mxu0 %v1782
  %v2315 = vpop.f32.mrf.mxu0
  %v2316 = vadd.f32 %v1752, %v2315
  %v2317 = vpop.f32.mrf.mxu0
  %v2318 = vadd.f32 %v1756, %v2317
  %2319 = vmatprep.mubr.f32.mxu0 0.0
  %2320 = vmatmul.mubr.f32.gmra.mxu0 %v1785
  %v2321 = vpop.f32.mrf.mxu0
  %v2322 = vadd.f32 %v1752, %v2321
  %v2323 = vpop.f32.mrf.mxu0
  %v2324 = vadd.f32 %v1756, %v2323
  %2325 = vdwg.mxu0
  %2326 = vmatprep.subr.mxu0 0.0
  %2327 = vmatpush1.msra.mxu0 0.0
  %2328 = vmatprep.subr.mxu0 0.0
  %2329 = vmatpush1.msra.mxu0 0.0
  %2330 = vmatprep.subr.mxu0 0.0
  %2331 = vmatpush1.msra.mxu0 0.0
  %2332 = vmatprep.subr.mxu0 0.0
  %2333 = vmatpush1.msra.mxu0 0.0
  %2334 = vmatprep.subr.mxu0 0.0
  %2335 = vmatpush1.msra.mxu0 0.0
  %2336 = vmatprep.subr.mxu0 0.0
  %2337 = vmatpush1.msra.mxu0 0.0
  %2338 = vmatprep.subr.mxu0 0.0
  %2339 = vmatpush1.msra.mxu0 0.0
  %2340 = vmatprep.subr.mxu0 0.0
  %2341 = vmatpush1.msra.mxu0 0.0
  %2342 = vmatprep.subr.mxu0 0.0
  %2343 = vmatpush1.msra.mxu0 0.0
  %2344 = vmatprep.subr.mxu0 0.0
  %2345 = vmatpush1.msra.mxu0 0.0
  %2346 = vmatprep.subr.mxu0 0.0
  %2347 = vmatpush1.msra.mxu0 0.0
  %2348 = vmatprep.subr.mxu0 0.0
  %2349 = vmatpush1.msra.mxu0 0.0
  %2350 = vmatprep.subr.mxu0 %v1696
  %2351 = vmatpush1.msra.mxu0 %v1695
  %2352 = vmatprep.subr.mxu0 %v1680
  %2353 = vmatpush1.msra.mxu0 %v1679
  %2354 = vmatprep.subr.mxu0 %v1664
  %2355 = vmatpush1.msra.mxu0 %v1663
  %2356 = vmatprep.subr.mxu0 %v1648
  %2357 = vmatpush1.msra.mxu0 %v1647
  %2358 = vmatprep.subr.mxu0 0.0
  %2359 = vmatpush2.msra.mxu0 0.0
  %2360 = vmatprep.subr.mxu0 0.0
  %2361 = vmatpush2.msra.mxu0 0.0
  %2362 = vmatprep.subr.mxu0 0.0
  %2363 = vmatpush2.msra.mxu0 0.0
  %2364 = vmatprep.subr.mxu0 0.0
  %2365 = vmatpush2.msra.mxu0 0.0
  %2366 = vmatprep.subr.mxu0 0.0
  %2367 = vmatpush2.msra.mxu0 0.0
  %2368 = vmatprep.subr.mxu0 0.0
  %2369 = vmatpush2.msra.mxu0 0.0
  %2370 = vmatprep.subr.mxu0 0.0
  %2371 = vmatpush2.msra.mxu0 0.0
  %2372 = vmatprep.subr.mxu0 0.0
  %2373 = vmatpush2.msra.mxu0 0.0
  %2374 = vmatprep.subr.mxu0 0.0
  %2375 = vmatpush2.msra.mxu0 0.0
  %2376 = vmatprep.subr.mxu0 0.0
  %2377 = vmatpush2.msra.mxu0 0.0
  %2378 = vmatprep.subr.mxu0 0.0
  %2379 = vmatpush2.msra.mxu0 0.0
  %2380 = vmatprep.subr.mxu0 0.0
  %2381 = vmatpush2.msra.mxu0 0.0
  %2382 = vmatprep.subr.mxu0 0.0
  %2383 = vmatpush2.msra.mxu0 0.0
  %2384 = vmatprep.subr.mxu0 0.0
  %2385 = vmatpush2.msra.mxu0 0.0
  %2386 = vmatprep.subr.mxu0 0.0
  %2387 = vmatpush2.msra.mxu0 0.0
  %2388 = vmatprep.subr.mxu0 0.0
  %2389 = vmatpush2.msra.mxu0 0.0
  %2390 = vmatprep.mubr.f32.mxu0 0.0
  %2391 = vmatmul.mubr.f32.gmra.mxu0 %v1782
  %v2392 = vpop.f32.mrf.mxu0
  %v2393 = vadd.f32 %v1760, %v2392
  %v2394 = vpop.f32.mrf.mxu0
  %v2395 = vadd.f32 %v1764, %v2394
  %2396 = vmatprep.mubr.f32.mxu0 0.0
  %2397 = vmatmul.mubr.f32.gmra.mxu0 %v1785
  %v2398 = vpop.f32.mrf.mxu0
  %v2399 = vadd.f32 %v1760, %v2398
  %v2400 = vpop.f32.mrf.mxu0
  %v2401 = vadd.f32 %v1764, %v2400
  %2402 = vdwg.mxu0
  %v2403 = vmax.f32 %v1854, 0.0
  %v2404 = vmax.f32 %v1856, 0.0
  %v2405 = vmax.f32 %v1931, 0.0
  %v2406 = vmax.f32 %v1933, 0.0
  %v2407 = vmax.f32 %v2008, 0.0
  %v2408 = vmax.f32 %v2010, 0.0
  %v2409 = vmax.f32 %v2085, 0.0
  %v2410 = vmax.f32 %v2087, 0.0
  %v2411 = vmax.f32 %v2162, 0.0
  %v2412 = vmax.f32 %v2164, 0.0
  %v2413 = vmax.f32 %v2239, 0.0
  %v2414 = vmax.f32 %v2241, 0.0
  %v2415 = vmax.f32 %v2316, 0.0
  %v2416 = vmax.f32 %v2318, 0.0
  %v2417 = vmax.f32 %v2393, 0.0
  %v2418 = vmax.f32 %v2395, 0.0
  %v2419 = vmax.f32 %v1860, 0.0
  %v2420 = vmax.f32 %v1862, 0.0
  %v2421 = vmax.f32 %v1937, 0.0
  %v2422 = vmax.f32 %v1939, 0.0
  %v2423 = vmax.f32 %v2014, 0.0
  %v2424 = vmax.f32 %v2016, 0.0
  %v2425 = vmax.f32 %v2091, 0.0
  %v2426 = vmax.f32 %v2093, 0.0
  %v2427 = vmax.f32 %v2168, 0.0
  %v2428 = vmax.f32 %v2170, 0.0
  %v2429 = vmax.f32 %v2245, 0.0
  %v2430 = vmax.f32 %v2247, 0.0
  %v2431 = vmax.f32 %v2322, 0.0
  %v2432 = vmax.f32 %v2324, 0.0
  %v2433 = vmax.f32 %v2399, 0.0
  %v2434 = vmax.f32 %v2401, 0.0
  %v2435 = vld [vmem:[%s4] sm:$0xff]
  %v2436 = vld [vmem:[%s4 + $0x8] sm:$0xff]
  %v2437 = vld [vmem:[%s4 + $0x10] sm:$0xff]
  %v2438 = vld [vmem:[%s4 + $0x18] sm:$0xff]
  %v2439 = vld [vmem:[%s4 + $0x20] sm:$0xff]
  %v2440 = vld [vmem:[%s4 + $0x28] sm:$0xff]
  %v2441 = vld [vmem:[%s4 + $0x30] sm:$0xff]
  %v2442 = vld [vmem:[%s4 + $0x38] sm:$0xff]
  %v2443 = vld [vmem:[%s4 + $0x40] sm:$0xff]
  %v2444 = vld [vmem:[%s4 + $0x48] sm:$0xff]
  %v2445 = vld [vmem:[%s4 + $0x50] sm:$0xff]
  %v2446 = vld [vmem:[%s4 + $0x58] sm:$0xff]
  %v2447 = vld [vmem:[%s4 + $0x60] sm:$0xff]
  %v2448 = vld [vmem:[%s4 + $0x68] sm:$0xff]
  %v2449 = vld [vmem:[%s4 + $0x70] sm:$0xff]
  %v2450 = vld [vmem:[%s4 + $0x78] sm:$0xff]
  %v2451 = vld [vmem:[%s4 + $0x80] sm:$0xff]
  %v2452 = vld [vmem:[%s4 + $0x88] sm:$0xff]
  %v2453 = vld [vmem:[%s4 + $0x90] sm:$0xff]
  %v2454 = vld [vmem:[%s4 + $0x98] sm:$0xff]
  %v2455 = vld [vmem:[%s4 + $0xa0] sm:$0xff]
  %v2456 = vld [vmem:[%s4 + $0xa8] sm:$0xff]
  %v2457 = vld [vmem:[%s4 + $0xb0] sm:$0xff]
  %v2458 = vld [vmem:[%s4 + $0xb8] sm:$0xff]
  %v2459 = vld [vmem:[%s4 + $0xc0] sm:$0xff]
  %v2460 = vld [vmem:[%s4 + $0xc8] sm:$0xff]
  %v2461 = vld [vmem:[%s4 + $0xd0] sm:$0xff]
  %v2462 = vld [vmem:[%s4 + $0xd8] sm:$0xff]
  %v2463 = vld [vmem:[%s4 + $0xe0] sm:$0xff]
  %v2464 = vld [vmem:[%s4 + $0xe8] sm:$0xff]
  %v2465 = vld [vmem:[%s4 + $0xf0] sm:$0xff]
  %v2466 = vld [vmem:[%s4 + $0xf8] sm:$0xff]
  %v2467 = vld [vmem:[%s4 + $0x100] sm:$0xff]
  %v2468 = vld [vmem:[%s4 + $0x108] sm:$0xff]
  %v2469 = vld [vmem:[%s4 + $0x110] sm:$0xff]
  %v2470 = vld [vmem:[%s4 + $0x118] sm:$0xff]
  %v2471 = vld [vmem:[%s4 + $0x120] sm:$0xff]
  %v2472 = vld [vmem:[%s4 + $0x128] sm:$0xff]
  %v2473 = vld [vmem:[%s4 + $0x130] sm:$0xff]
  %v2474 = vld [vmem:[%s4 + $0x138] sm:$0xff]
  %v2475 = vld [vmem:[%s4 + $0x140] sm:$0xff]
  %v2476 = vld [vmem:[%s4 + $0x148] sm:$0xff]
  %v2477 = vld [vmem:[%s4 + $0x150] sm:$0xff]
  %v2478 = vld [vmem:[%s4 + $0x158] sm:$0xff]
  %v2479 = vld [vmem:[%s4 + $0x160] sm:$0xff]
  %v2480 = vld [vmem:[%s4 + $0x168] sm:$0xff]
  %v2481 = vld [vmem:[%s4 + $0x170] sm:$0xff]
  %v2482 = vld [vmem:[%s4 + $0x178] sm:$0xff]
  %v2483 = vld [vmem:[%s4 + $0x180] sm:$0xff]
  %v2484 = vld [vmem:[%s4 + $0x188] sm:$0xff]
  %v2485 = vld [vmem:[%s4 + $0x190] sm:$0xff]
  %v2486 = vld [vmem:[%s4 + $0x198] sm:$0xff]
  %v2487 = vld [vmem:[%s4 + $0x1a0] sm:$0xff]
  %v2488 = vld [vmem:[%s4 + $0x1a8] sm:$0xff]
  %v2489 = vld [vmem:[%s4 + $0x1b0] sm:$0xff]
  %v2490 = vld [vmem:[%s4 + $0x1b8] sm:$0xff]
  %v2491 = vld [vmem:[%s4 + $0x1c0] sm:$0xff]
  %v2492 = vld [vmem:[%s4 + $0x1c8] sm:$0xff]
  %v2493 = vld [vmem:[%s4 + $0x1d0] sm:$0xff]
  %v2494 = vld [vmem:[%s4 + $0x1d8] sm:$0xff]
  %v2495 = vld [vmem:[%s4 + $0x1e0] sm:$0xff]
  %v2496 = vld [vmem:[%s4 + $0x1e8] sm:$0xff]
  %v2497 = vld [vmem:[%s4 + $0x1f0] sm:$0xff]
  %v2498 = vld [vmem:[%s4 + $0x1f8] sm:$0xff]
  %v2499 = vld [vmem:[%s4 + $0x200] sm:$0xff]
  %v2500 = vld [vmem:[%s4 + $0x208] sm:$0xff]
  %v2501 = vld [vmem:[%s4 + $0x210] sm:$0xff]
  %v2502 = vld [vmem:[%s4 + $0x218] sm:$0xff]
  %v2503 = vld [vmem:[%s4 + $0x220] sm:$0xff]
  %v2504 = vld [vmem:[%s4 + $0x228] sm:$0xff]
  %v2505 = vld [vmem:[%s4 + $0x230] sm:$0xff]
  %v2506 = vld [vmem:[%s4 + $0x238] sm:$0xff]
  %v2507 = vld [vmem:[%s4 + $0x240] sm:$0xff]
  %v2508 = vld [vmem:[%s4 + $0x248] sm:$0xff]
  %v2509 = vld [vmem:[%s4 + $0x250] sm:$0xff]
  %v2510 = vld [vmem:[%s4 + $0x258] sm:$0xff]
  %v2511 = vld [vmem:[%s4 + $0x260] sm:$0xff]
  %v2512 = vld [vmem:[%s4 + $0x268] sm:$0xff]
  %v2513 = vld [vmem:[%s4 + $0x270] sm:$0xff]
  %v2514 = vld [vmem:[%s4 + $0x278] sm:$0xff]
  %v2515 = vld [vmem:[%s4 + $0x280] sm:$0xff]
  %v2516 = vld [vmem:[%s4 + $0x288] sm:$0xff]
  %v2517 = vld [vmem:[%s4 + $0x290] sm:$0xff]
  %v2518 = vld [vmem:[%s4 + $0x298] sm:$0xff]
  %v2519 = vld [vmem:[%s4 + $0x2a0] sm:$0xff]
  %v2520 = vld [vmem:[%s4 + $0x2a8] sm:$0xff]
  %v2521 = vld [vmem:[%s4 + $0x2b0] sm:$0xff]
  %v2522 = vld [vmem:[%s4 + $0x2b8] sm:$0xff]
  %v2523 = vld [vmem:[%s4 + $0x2c0] sm:$0xff]
  %v2524 = vld [vmem:[%s4 + $0x2c8] sm:$0xff]
  %v2525 = vld [vmem:[%s4 + $0x2d0] sm:$0xff]
  %v2526 = vld [vmem:[%s4 + $0x2d8] sm:$0xff]
  %v2527 = vld [vmem:[%s4 + $0x2e0] sm:$0xff]
  %v2528 = vld [vmem:[%s4 + $0x2e8] sm:$0xff]
  %v2529 = vld [vmem:[%s4 + $0x2f0] sm:$0xff]
  %v2530 = vld [vmem:[%s4 + $0x2f8] sm:$0xff]
  %v2531 = vld [vmem:[%s4 + $0x300] sm:$0xff]
  %v2532 = vld [vmem:[%s4 + $0x308] sm:$0xff]
  %v2533 = vld [vmem:[%s4 + $0x310] sm:$0xff]
  %v2534 = vld [vmem:[%s4 + $0x318] sm:$0xff]
  %v2535 = vld [vmem:[%s4 + $0x320] sm:$0xff]
  %v2536 = vld [vmem:[%s4 + $0x328] sm:$0xff]
  %v2537 = vld [vmem:[%s4 + $0x330] sm:$0xff]
  %v2538 = vld [vmem:[%s4 + $0x338] sm:$0xff]
  %v2539 = vld [vmem:[%s4 + $0x340] sm:$0xff]
  %v2540 = vld [vmem:[%s4 + $0x348] sm:$0xff]
  %v2541 = vld [vmem:[%s4 + $0x350] sm:$0xff]
  %v2542 = vld [vmem:[%s4 + $0x358] sm:$0xff]
  %v2543 = vld [vmem:[%s4 + $0x360] sm:$0xff]
  %v2544 = vld [vmem:[%s4 + $0x368] sm:$0xff]
  %v2545 = vld [vmem:[%s4 + $0x370] sm:$0xff]
  %v2546 = vld [vmem:[%s4 + $0x378] sm:$0xff]
  %v2547 = vld [vmem:[%s4 + $0x380] sm:$0xff]
  %v2548 = vld [vmem:[%s4 + $0x388] sm:$0xff]
  %v2549 = vld [vmem:[%s4 + $0x390] sm:$0xff]
  %v2550 = vld [vmem:[%s4 + $0x398] sm:$0xff]
  %v2551 = vld [vmem:[%s4 + $0x3a0] sm:$0xff]
  %v2552 = vld [vmem:[%s4 + $0x3a8] sm:$0xff]
  %v2553 = vld [vmem:[%s4 + $0x3b0] sm:$0xff]
  %v2554 = vld [vmem:[%s4 + $0x3b8] sm:$0xff]
  %v2555 = vld [vmem:[%s4 + $0x3c0] sm:$0xff]
  %v2556 = vld [vmem:[%s4 + $0x3c8] sm:$0xff]
  %v2557 = vld [vmem:[%s4 + $0x3d0] sm:$0xff]
  %v2558 = vld [vmem:[%s4 + $0x3d8] sm:$0xff]
  %v2559 = vld [vmem:[%s4 + $0x3e0] sm:$0xff]
  %v2560 = vld [vmem:[%s4 + $0x3e8] sm:$0xff]
  %v2561 = vld [vmem:[%s4 + $0x3f0] sm:$0xff]
  %v2562 = vld [vmem:[%s4 + $0x3f8] sm:$0xff]
  %v2563 = vld [vmem:[%s4 + $0x400] sm:$0xff]
  %v2564 = vld [vmem:[%s4 + $0x408] sm:$0xff]
  %v2565 = vld [vmem:[%s4 + $0x410] sm:$0xff]
  %v2566 = vld [vmem:[%s4 + $0x418] sm:$0xff]
  %v2567 = vld [vmem:[%s4 + $0x420] sm:$0xff]
  %v2568 = vld [vmem:[%s4 + $0x428] sm:$0xff]
  %v2569 = vld [vmem:[%s4 + $0x430] sm:$0xff]
  %v2570 = vld [vmem:[%s4 + $0x438] sm:$0xff]
  %v2571 = vld [vmem:[%s4 + $0x440] sm:$0xff]
  %v2572 = vld [vmem:[%s4 + $0x448] sm:$0xff]
  %v2573 = vld [vmem:[%s4 + $0x450] sm:$0xff]
  %v2574 = vld [vmem:[%s4 + $0x458] sm:$0xff]
  %v2575 = vld [vmem:[%s4 + $0x460] sm:$0xff]
  %v2576 = vld [vmem:[%s4 + $0x468] sm:$0xff]
  %v2577 = vld [vmem:[%s4 + $0x470] sm:$0xff]
  %v2578 = vld [vmem:[%s4 + $0x478] sm:$0xff]
  %v2579 = vld [vmem:[%s4 + $0x480] sm:$0xff]
  %v2580 = vld [vmem:[%s4 + $0x488] sm:$0xff]
  %v2581 = vld [vmem:[%s4 + $0x490] sm:$0xff]
  %v2582 = vld [vmem:[%s4 + $0x498] sm:$0xff]
  %v2583 = vld [vmem:[%s4 + $0x4a0] sm:$0xff]
  %v2584 = vld [vmem:[%s4 + $0x4a8] sm:$0xff]
  %v2585 = vld [vmem:[%s4 + $0x4b0] sm:$0xff]
  %v2586 = vld [vmem:[%s4 + $0x4b8] sm:$0xff]
  %v2587 = vld [vmem:[%s4 + $0x4c0] sm:$0xff]
  %v2588 = vld [vmem:[%s4 + $0x4c8] sm:$0xff]
  %v2589 = vld [vmem:[%s4 + $0x4d0] sm:$0xff]
  %v2590 = vld [vmem:[%s4 + $0x4d8] sm:$0xff]
  %v2591 = vld [vmem:[%s4 + $0x4e0] sm:$0xff]
  %v2592 = vld [vmem:[%s4 + $0x4e8] sm:$0xff]
  %v2593 = vld [vmem:[%s4 + $0x4f0] sm:$0xff]
  %v2594 = vld [vmem:[%s4 + $0x4f8] sm:$0xff]
  %v2595 = vld [vmem:[%s4 + $0x500] sm:$0xff]
  %v2596 = vld [vmem:[%s4 + $0x508] sm:$0xff]
  %v2597 = vld [vmem:[%s4 + $0x510] sm:$0xff]
  %v2598 = vld [vmem:[%s4 + $0x518] sm:$0xff]
  %v2599 = vld [vmem:[%s4 + $0x520] sm:$0xff]
  %v2600 = vld [vmem:[%s4 + $0x528] sm:$0xff]
  %v2601 = vld [vmem:[%s4 + $0x530] sm:$0xff]
  %v2602 = vld [vmem:[%s4 + $0x538] sm:$0xff]
  %v2603 = vld [vmem:[%s4 + $0x540] sm:$0xff]
  %v2604 = vld [vmem:[%s4 + $0x548] sm:$0xff]
  %v2605 = vld [vmem:[%s4 + $0x550] sm:$0xff]
  %v2606 = vld [vmem:[%s4 + $0x558] sm:$0xff]
  %v2607 = vld [vmem:[%s4 + $0x560] sm:$0xff]
  %v2608 = vld [vmem:[%s4 + $0x568] sm:$0xff]
  %v2609 = vld [vmem:[%s4 + $0x570] sm:$0xff]
  %v2610 = vld [vmem:[%s4 + $0x578] sm:$0xff]
  %v2611 = vld [vmem:[%s4 + $0x580] sm:$0xff]
  %v2612 = vld [vmem:[%s4 + $0x588] sm:$0xff]
  %v2613 = vld [vmem:[%s4 + $0x590] sm:$0xff]
  %v2614 = vld [vmem:[%s4 + $0x598] sm:$0xff]
  %v2615 = vld [vmem:[%s4 + $0x5a0] sm:$0xff]
  %v2616 = vld [vmem:[%s4 + $0x5a8] sm:$0xff]
  %v2617 = vld [vmem:[%s4 + $0x5b0] sm:$0xff]
  %v2618 = vld [vmem:[%s4 + $0x5b8] sm:$0xff]
  %v2619 = vld [vmem:[%s4 + $0x5c0] sm:$0xff]
  %v2620 = vld [vmem:[%s4 + $0x5c8] sm:$0xff]
  %v2621 = vld [vmem:[%s4 + $0x5d0] sm:$0xff]
  %v2622 = vld [vmem:[%s4 + $0x5d8] sm:$0xff]
  %v2623 = vld [vmem:[%s4 + $0x5e0] sm:$0xff]
  %v2624 = vld [vmem:[%s4 + $0x5e8] sm:$0xff]
  %v2625 = vld [vmem:[%s4 + $0x5f0] sm:$0xff]
  %v2626 = vld [vmem:[%s4 + $0x5f8] sm:$0xff]
  %v2627 = vld [vmem:[%s4 + $0x600] sm:$0xff]
  %v2628 = vld [vmem:[%s4 + $0x608] sm:$0xff]
  %v2629 = vld [vmem:[%s4 + $0x610] sm:$0xff]
  %v2630 = vld [vmem:[%s4 + $0x618] sm:$0xff]
  %v2631 = vld [vmem:[%s4 + $0x620] sm:$0xff]
  %v2632 = vld [vmem:[%s4 + $0x628] sm:$0xff]
  %v2633 = vld [vmem:[%s4 + $0x630] sm:$0xff]
  %v2634 = vld [vmem:[%s4 + $0x638] sm:$0xff]
  %v2635 = vld [vmem:[%s4 + $0x640] sm:$0xff]
  %v2636 = vld [vmem:[%s4 + $0x648] sm:$0xff]
  %v2637 = vld [vmem:[%s4 + $0x650] sm:$0xff]
  %v2638 = vld [vmem:[%s4 + $0x658] sm:$0xff]
  %v2639 = vld [vmem:[%s4 + $0x660] sm:$0xff]
  %v2640 = vld [vmem:[%s4 + $0x668] sm:$0xff]
  %v2641 = vld [vmem:[%s4 + $0x670] sm:$0xff]
  %v2642 = vld [vmem:[%s4 + $0x678] sm:$0xff]
  %v2643 = vld [vmem:[%s4 + $0x680] sm:$0xff]
  %v2644 = vld [vmem:[%s4 + $0x688] sm:$0xff]
  %v2645 = vld [vmem:[%s4 + $0x690] sm:$0xff]
  %v2646 = vld [vmem:[%s4 + $0x698] sm:$0xff]
  %v2647 = vld [vmem:[%s4 + $0x6a0] sm:$0xff]
  %v2648 = vld [vmem:[%s4 + $0x6a8] sm:$0xff]
  %v2649 = vld [vmem:[%s4 + $0x6b0] sm:$0xff]
  %v2650 = vld [vmem:[%s4 + $0x6b8] sm:$0xff]
  %v2651 = vld [vmem:[%s4 + $0x6c0] sm:$0xff]
  %v2652 = vld [vmem:[%s4 + $0x6c8] sm:$0xff]
  %v2653 = vld [vmem:[%s4 + $0x6d0] sm:$0xff]
  %v2654 = vld [vmem:[%s4 + $0x6d8] sm:$0xff]
  %v2655 = vld [vmem:[%s4 + $0x6e0] sm:$0xff]
  %v2656 = vld [vmem:[%s4 + $0x6e8] sm:$0xff]
  %v2657 = vld [vmem:[%s4 + $0x6f0] sm:$0xff]
  %v2658 = vld [vmem:[%s4 + $0x6f8] sm:$0xff]
  %v2659 = vld [vmem:[%s4 + $0x700] sm:$0xff]
  %v2660 = vld [vmem:[%s4 + $0x708] sm:$0xff]
  %v2661 = vld [vmem:[%s4 + $0x710] sm:$0xff]
  %v2662 = vld [vmem:[%s4 + $0x718] sm:$0xff]
  %v2663 = vld [vmem:[%s4 + $0x720] sm:$0xff]
  %v2664 = vld [vmem:[%s4 + $0x728] sm:$0xff]
  %v2665 = vld [vmem:[%s4 + $0x730] sm:$0xff]
  %v2666 = vld [vmem:[%s4 + $0x738] sm:$0xff]
  %v2667 = vld [vmem:[%s4 + $0x740] sm:$0xff]
  %v2668 = vld [vmem:[%s4 + $0x748] sm:$0xff]
  %v2669 = vld [vmem:[%s4 + $0x750] sm:$0xff]
  %v2670 = vld [vmem:[%s4 + $0x758] sm:$0xff]
  %v2671 = vld [vmem:[%s4 + $0x760] sm:$0xff]
  %v2672 = vld [vmem:[%s4 + $0x768] sm:$0xff]
  %v2673 = vld [vmem:[%s4 + $0x770] sm:$0xff]
  %v2674 = vld [vmem:[%s4 + $0x778] sm:$0xff]
  %v2675 = vld [vmem:[%s4 + $0x780] sm:$0xff]
  %v2676 = vld [vmem:[%s4 + $0x788] sm:$0xff]
  %v2677 = vld [vmem:[%s4 + $0x790] sm:$0xff]
  %v2678 = vld [vmem:[%s4 + $0x798] sm:$0xff]
  %v2679 = vld [vmem:[%s4 + $0x7a0] sm:$0xff]
  %v2680 = vld [vmem:[%s4 + $0x7a8] sm:$0xff]
  %v2681 = vld [vmem:[%s4 + $0x7b0] sm:$0xff]
  %v2682 = vld [vmem:[%s4 + $0x7b8] sm:$0xff]
  %v2683 = vld [vmem:[%s4 + $0x7c0] sm:$0xff]
  %v2684 = vld [vmem:[%s4 + $0x7c8] sm:$0xff]
  %v2685 = vld [vmem:[%s4 + $0x7d0] sm:$0xff]
  %v2686 = vld [vmem:[%s4 + $0x7d8] sm:$0xff]
  %v2687 = vld [vmem:[%s4 + $0x7e0] sm:$0xff]
  %v2688 = vld [vmem:[%s4 + $0x7e8] sm:$0xff]
  %v2689 = vld [vmem:[%s4 + $0x7f0] sm:$0xff]
  %v2690 = vld [vmem:[%s4 + $0x7f8] sm:$0xff]
  %2691 = vrot.lane.b32.xlu0 %v1624, 64
  %v2692 = vpop.permute.xlu0 %2691
  %2694 = vmatprep.subr.mxu0 0.0
  %2695 = vmatpush1.msra.mxu0 %v2450
  %2696 = vmatprep.subr.mxu0 0.0
  %2697 = vmatpush1.msra.mxu0 %v2449
  %2698 = vmatprep.subr.mxu0 0.0
  %2699 = vmatpush1.msra.mxu0 %v2448
  %2700 = vmatprep.subr.mxu0 0.0
  %2701 = vmatpush1.msra.mxu0 %v2447
  %2702 = vmatprep.subr.mxu0 0.0
  %2703 = vmatpush1.msra.mxu0 %v2446
  %2704 = vmatprep.subr.mxu0 0.0
  %2705 = vmatpush1.msra.mxu0 %v2445
  %2706 = vmatprep.subr.mxu0 0.0
  %2707 = vmatpush1.msra.mxu0 %v2444
  %2708 = vmatprep.subr.mxu0 0.0
  %2709 = vmatpush1.msra.mxu0 %v2443
  %2710 = vmatprep.subr.mxu0 0.0
  %2711 = vmatpush1.msra.mxu0 %v2442
  %2712 = vmatprep.subr.mxu0 0.0
  %2713 = vmatpush1.msra.mxu0 %v2441
  %2714 = vmatprep.subr.mxu0 0.0
  %2715 = vmatpush1.msra.mxu0 %v2440
  %2716 = vmatprep.subr.mxu0 0.0
  %2717 = vmatpush1.msra.mxu0 %v2439
  %2718 = vmatprep.subr.mxu0 0.0
  %2719 = vmatpush1.msra.mxu0 %v2438
  %2720 = vmatprep.subr.mxu0 0.0
  %2721 = vmatpush1.msra.mxu0 %v2437
  %2722 = vmatprep.subr.mxu0 0.0
  %2723 = vmatpush1.msra.mxu0 %v2436
  %2724 = vmatprep.subr.mxu0 0.0
  %2725 = vmatpush1.msra.mxu0 %v2435
  %2726 = vmatprep.subr.mxu0 0.0
  %2727 = vmatpush2.msra.mxu0 %v2466
  %2728 = vmatprep.subr.mxu0 0.0
  %2729 = vmatpush2.msra.mxu0 %v2465
  %2730 = vmatprep.subr.mxu0 0.0
  %2731 = vmatpush2.msra.mxu0 %v2464
  %2732 = vmatprep.subr.mxu0 0.0
  %2733 = vmatpush2.msra.mxu0 %v2463
  %2734 = vmatprep.subr.mxu0 0.0
  %2735 = vmatpush2.msra.mxu0 %v2462
  %2736 = vmatprep.subr.mxu0 0.0
  %2737 = vmatpush2.msra.mxu0 %v2461
  %2738 = vmatprep.subr.mxu0 0.0
  %2739 = vmatpush2.msra.mxu0 %v2460
  %2740 = vmatprep.subr.mxu0 0.0
  %2741 = vmatpush2.msra.mxu0 %v2459
  %2742 = vmatprep.subr.mxu0 0.0
  %2743 = vmatpush2.msra.mxu0 %v2458
  %2744 = vmatprep.subr.mxu0 0.0
  %2745 = vmatpush2.msra.mxu0 %v2457
  %2746 = vmatprep.subr.mxu0 0.0
  %2747 = vmatpush2.msra.mxu0 %v2456
  %2748 = vmatprep.subr.mxu0 0.0
  %2749 = vmatpush2.msra.mxu0 %v2455
  %2750 = vmatprep.subr.mxu0 0.0
  %2751 = vmatpush2.msra.mxu0 %v2454
  %2752 = vmatprep.subr.mxu0 0.0
  %2753 = vmatpush2.msra.mxu0 %v2453
  %2754 = vmatprep.subr.mxu0 0.0
  %2755 = vmatpush2.msra.mxu0 %v2452
  %2756 = vmatprep.subr.mxu0 0.0
  %2757 = vmatpush2.msra.mxu0 %v2451
  %2758 = vmatprep.mubr.f32.mxu0 %v2404
  %2759 = vmatmul.mubr.f32.gmra.mxu0 %v2403
  %v2760 = vpop.f32.mrf.mxu0
  %v2761 = vadd.f32 %v2692, %v2760
  %v2762 = vpop.f32.mrf.mxu0
  %2763 = vmatprep.mubr.f32.mxu0 %v2420
  %2764 = vmatmul.mubr.f32.gmra.mxu0 %v2419
  %v2765 = vpop.f32.mrf.mxu0
  %v2766 = vadd.f32 %v2692, %v2765
  %v2767 = vpop.f32.mrf.mxu0
  %2768 = vdwg.mxu0
  %2769 = vmatprep.subr.mxu0 0.0
  %2770 = vmatpush1.msra.mxu0 %v2482
  %2771 = vmatprep.subr.mxu0 0.0
  %2772 = vmatpush1.msra.mxu0 %v2481
  %2773 = vmatprep.subr.mxu0 0.0
  %2774 = vmatpush1.msra.mxu0 %v2480
  %2775 = vmatprep.subr.mxu0 0.0
  %2776 = vmatpush1.msra.mxu0 %v2479
  %2777 = vmatprep.subr.mxu0 0.0
  %2778 = vmatpush1.msra.mxu0 %v2478
  %2779 = vmatprep.subr.mxu0 0.0
  %2780 = vmatpush1.msra.mxu0 %v2477
  %2781 = vmatprep.subr.mxu0 0.0
  %2782 = vmatpush1.msra.mxu0 %v2476
  %2783 = vmatprep.subr.mxu0 0.0
  %2784 = vmatpush1.msra.mxu0 %v2475
  %2785 = vmatprep.subr.mxu0 0.0
  %2786 = vmatpush1.msra.mxu0 %v2474
  %2787 = vmatprep.subr.mxu0 0.0
  %2788 = vmatpush1.msra.mxu0 %v2473
  %2789 = vmatprep.subr.mxu0 0.0
  %2790 = vmatpush1.msra.mxu0 %v2472
  %2791 = vmatprep.subr.mxu0 0.0
  %2792 = vmatpush1.msra.mxu0 %v2471
  %2793 = vmatprep.subr.mxu0 0.0
  %2794 = vmatpush1.msra.mxu0 %v2470
  %2795 = vmatprep.subr.mxu0 0.0
  %2796 = vmatpush1.msra.mxu0 %v2469
  %2797 = vmatprep.subr.mxu0 0.0
  %2798 = vmatpush1.msra.mxu0 %v2468
  %2799 = vmatprep.subr.mxu0 0.0
  %2800 = vmatpush1.msra.mxu0 %v2467
  %2801 = vmatprep.subr.mxu0 0.0
  %2802 = vmatpush2.msra.mxu0 %v2498
  %2803 = vmatprep.subr.mxu0 0.0
  %2804 = vmatpush2.msra.mxu0 %v2497
  %2805 = vmatprep.subr.mxu0 0.0
  %2806 = vmatpush2.msra.mxu0 %v2496
  %2807 = vmatprep.subr.mxu0 0.0
  %2808 = vmatpush2.msra.mxu0 %v2495
  %2809 = vmatprep.subr.mxu0 0.0
  %2810 = vmatpush2.msra.mxu0 %v2494
  %2811 = vmatprep.subr.mxu0 0.0
  %2812 = vmatpush2.msra.mxu0 %v2493
  %2813 = vmatprep.subr.mxu0 0.0
  %2814 = vmatpush2.msra.mxu0 %v2492
  %2815 = vmatprep.subr.mxu0 0.0
  %2816 = vmatpush2.msra.mxu0 %v2491
  %2817 = vmatprep.subr.mxu0 0.0
  %2818 = vmatpush2.msra.mxu0 %v2490
  %2819 = vmatprep.subr.mxu0 0.0
  %2820 = vmatpush2.msra.mxu0 %v2489
  %2821 = vmatprep.subr.mxu0 0.0
  %2822 = vmatpush2.msra.mxu0 %v2488
  %2823 = vmatprep.subr.mxu0 0.0
  %2824 = vmatpush2.msra.mxu0 %v2487
  %2825 = vmatprep.subr.mxu0 0.0
  %2826 = vmatpush2.msra.mxu0 %v2486
  %2827 = vmatprep.subr.mxu0 0.0
  %2828 = vmatpush2.msra.mxu0 %v2485
  %2829 = vmatprep.subr.mxu0 0.0
  %2830 = vmatpush2.msra.mxu0 %v2484
  %2831 = vmatprep.subr.mxu0 0.0
  %2832 = vmatpush2.msra.mxu0 %v2483
  %2833 = vmatprep.mubr.f32.mxu0 %v2406
  %2834 = vmatmul.mubr.f32.gmra.mxu0 %v2405
  %v2835 = vpop.f32.mrf.mxu0
  %v2836 = vadd.f32 %v2761, %v2835
  %v2837 = vpop.f32.mrf.mxu0
  %2838 = vmatprep.mubr.f32.mxu0 %v2422
  %2839 = vmatmul.mubr.f32.gmra.mxu0 %v2421
  %v2840 = vpop.f32.mrf.mxu0
  %v2841 = vadd.f32 %v2766, %v2840
  %v2842 = vpop.f32.mrf.mxu0
  %2843 = vdwg.mxu0
  %2844 = vmatprep.subr.mxu0 0.0
  %2845 = vmatpush1.msra.mxu0 %v2514
  %2846 = vmatprep.subr.mxu0 0.0
  %2847 = vmatpush1.msra.mxu0 %v2513
  %2848 = vmatprep.subr.mxu0 0.0
  %2849 = vmatpush1.msra.mxu0 %v2512
  %2850 = vmatprep.subr.mxu0 0.0
  %2851 = vmatpush1.msra.mxu0 %v2511
  %2852 = vmatprep.subr.mxu0 0.0
  %2853 = vmatpush1.msra.mxu0 %v2510
  %2854 = vmatprep.subr.mxu0 0.0
  %2855 = vmatpush1.msra.mxu0 %v2509
  %2856 = vmatprep.subr.mxu0 0.0
  %2857 = vmatpush1.msra.mxu0 %v2508
  %2858 = vmatprep.subr.mxu0 0.0
  %2859 = vmatpush1.msra.mxu0 %v2507
  %2860 = vmatprep.subr.mxu0 0.0
  %2861 = vmatpush1.msra.mxu0 %v2506
  %2862 = vmatprep.subr.mxu0 0.0
  %2863 = vmatpush1.msra.mxu0 %v2505
  %2864 = vmatprep.subr.mxu0 0.0
  %2865 = vmatpush1.msra.mxu0 %v2504
  %2866 = vmatprep.subr.mxu0 0.0
  %2867 = vmatpush1.msra.mxu0 %v2503
  %2868 = vmatprep.subr.mxu0 0.0
  %2869 = vmatpush1.msra.mxu0 %v2502
  %2870 = vmatprep.subr.mxu0 0.0
  %2871 = vmatpush1.msra.mxu0 %v2501
  %2872 = vmatprep.subr.mxu0 0.0
  %2873 = vmatpush1.msra.mxu0 %v2500
  %2874 = vmatprep.subr.mxu0 0.0
  %2875 = vmatpush1.msra.mxu0 %v2499
  %2876 = vmatprep.subr.mxu0 0.0
  %2877 = vmatpush2.msra.mxu0 %v2530
  %2878 = vmatprep.subr.mxu0 0.0
  %2879 = vmatpush2.msra.mxu0 %v2529
  %2880 = vmatprep.subr.mxu0 0.0
  %2881 = vmatpush2.msra.mxu0 %v2528
  %2882 = vmatprep.subr.mxu0 0.0
  %2883 = vmatpush2.msra.mxu0 %v2527
  %2884 = vmatprep.subr.mxu0 0.0
  %2885 = vmatpush2.msra.mxu0 %v2526
  %2886 = vmatprep.subr.mxu0 0.0
  %2887 = vmatpush2.msra.mxu0 %v2525
  %2888 = vmatprep.subr.mxu0 0.0
  %2889 = vmatpush2.msra.mxu0 %v2524
  %2890 = vmatprep.subr.mxu0 0.0
  %2891 = vmatpush2.msra.mxu0 %v2523
  %2892 = vmatprep.subr.mxu0 0.0
  %2893 = vmatpush2.msra.mxu0 %v2522
  %2894 = vmatprep.subr.mxu0 0.0
  %2895 = vmatpush2.msra.mxu0 %v2521
  %2896 = vmatprep.subr.mxu0 0.0
  %2897 = vmatpush2.msra.mxu0 %v2520
  %2898 = vmatprep.subr.mxu0 0.0
  %2899 = vmatpush2.msra.mxu0 %v2519
  %2900 = vmatprep.subr.mxu0 0.0
  %2901 = vmatpush2.msra.mxu0 %v2518
  %2902 = vmatprep.subr.mxu0 0.0
  %2903 = vmatpush2.msra.mxu0 %v2517
  %2904 = vmatprep.subr.mxu0 0.0
  %2905 = vmatpush2.msra.mxu0 %v2516
  %2906 = vmatprep.subr.mxu0 0.0
  %2907 = vmatpush2.msra.mxu0 %v2515
  %2908 = vmatprep.mubr.f32.mxu0 %v2408
  %2909 = vmatmul.mubr.f32.gmra.mxu0 %v2407
  %v2910 = vpop.f32.mrf.mxu0
  %v2911 = vadd.f32 %v2836, %v2910
  %v2912 = vpop.f32.mrf.mxu0
  %2913 = vmatprep.mubr.f32.mxu0 %v2424
  %2914 = vmatmul.mubr.f32.gmra.mxu0 %v2423
  %v2915 = vpop.f32.mrf.mxu0
  %v2916 = vadd.f32 %v2841, %v2915
  %v2917 = vpop.f32.mrf.mxu0
  %2918 = vdwg.mxu0
  %2919 = vmatprep.subr.mxu0 0.0
  %2920 = vmatpush1.msra.mxu0 %v2546
  %2921 = vmatprep.subr.mxu0 0.0
  %2922 = vmatpush1.msra.mxu0 %v2545
  %2923 = vmatprep.subr.mxu0 0.0
  %2924 = vmatpush1.msra.mxu0 %v2544
  %2925 = vmatprep.subr.mxu0 0.0
  %2926 = vmatpush1.msra.mxu0 %v2543
  %2927 = vmatprep.subr.mxu0 0.0
  %2928 = vmatpush1.msra.mxu0 %v2542
  %2929 = vmatprep.subr.mxu0 0.0
  %2930 = vmatpush1.msra.mxu0 %v2541
  %2931 = vmatprep.subr.mxu0 0.0
  %2932 = vmatpush1.msra.mxu0 %v2540
  %2933 = vmatprep.subr.mxu0 0.0
  %2934 = vmatpush1.msra.mxu0 %v2539
  %2935 = vmatprep.subr.mxu0 0.0
  %2936 = vmatpush1.msra.mxu0 %v2538
  %2937 = vmatprep.subr.mxu0 0.0
  %2938 = vmatpush1.msra.mxu0 %v2537
  %2939 = vmatprep.subr.mxu0 0.0
  %2940 = vmatpush1.msra.mxu0 %v2536
  %2941 = vmatprep.subr.mxu0 0.0
  %2942 = vmatpush1.msra.mxu0 %v2535
  %2943 = vmatprep.subr.mxu0 0.0
  %2944 = vmatpush1.msra.mxu0 %v2534
  %2945 = vmatprep.subr.mxu0 0.0
  %2946 = vmatpush1.msra.mxu0 %v2533
  %2947 = vmatprep.subr.mxu0 0.0
  %2948 = vmatpush1.msra.mxu0 %v2532
  %2949 = vmatprep.subr.mxu0 0.0
  %2950 = vmatpush1.msra.mxu0 %v2531
  %2951 = vmatprep.subr.mxu0 0.0
  %2952 = vmatpush2.msra.mxu0 %v2562
  %2953 = vmatprep.subr.mxu0 0.0
  %2954 = vmatpush2.msra.mxu0 %v2561
  %2955 = vmatprep.subr.mxu0 0.0
  %2956 = vmatpush2.msra.mxu0 %v2560
  %2957 = vmatprep.subr.mxu0 0.0
  %2958 = vmatpush2.msra.mxu0 %v2559
  %2959 = vmatprep.subr.mxu0 0.0
  %2960 = vmatpush2.msra.mxu0 %v2558
  %2961 = vmatprep.subr.mxu0 0.0
  %2962 = vmatpush2.msra.mxu0 %v2557
  %2963 = vmatprep.subr.mxu0 0.0
  %2964 = vmatpush2.msra.mxu0 %v2556
  %2965 = vmatprep.subr.mxu0 0.0
  %2966 = vmatpush2.msra.mxu0 %v2555
  %2967 = vmatprep.subr.mxu0 0.0
  %2968 = vmatpush2.msra.mxu0 %v2554
  %2969 = vmatprep.subr.mxu0 0.0
  %2970 = vmatpush2.msra.mxu0 %v2553
  %2971 = vmatprep.subr.mxu0 0.0
  %2972 = vmatpush2.msra.mxu0 %v2552
  %2973 = vmatprep.subr.mxu0 0.0
  %2974 = vmatpush2.msra.mxu0 %v2551
  %2975 = vmatprep.subr.mxu0 0.0
  %2976 = vmatpush2.msra.mxu0 %v2550
  %2977 = vmatprep.subr.mxu0 0.0
  %2978 = vmatpush2.msra.mxu0 %v2549
  %2979 = vmatprep.subr.mxu0 0.0
  %2980 = vmatpush2.msra.mxu0 %v2548
  %2981 = vmatprep.subr.mxu0 0.0
  %2982 = vmatpush2.msra.mxu0 %v2547
  %2983 = vmatprep.mubr.f32.mxu0 %v2410
  %2984 = vmatmul.mubr.f32.gmra.mxu0 %v2409
  %v2985 = vpop.f32.mrf.mxu0
  %v2986 = vadd.f32 %v2911, %v2985
  %v2987 = vpop.f32.mrf.mxu0
  %2988 = vmatprep.mubr.f32.mxu0 %v2426
  %2989 = vmatmul.mubr.f32.gmra.mxu0 %v2425
  %v2990 = vpop.f32.mrf.mxu0
  %v2991 = vadd.f32 %v2916, %v2990
  %v2992 = vpop.f32.mrf.mxu0
  %2993 = vdwg.mxu0
  %2994 = vmatprep.subr.mxu0 0.0
  %2995 = vmatpush1.msra.mxu0 %v2578
  %2996 = vmatprep.subr.mxu0 0.0
  %2997 = vmatpush1.msra.mxu0 %v2577
  %2998 = vmatprep.subr.mxu0 0.0
  %2999 = vmatpush1.msra.mxu0 %v2576
  %3000 = vmatprep.subr.mxu0 0.0
  %3001 = vmatpush1.msra.mxu0 %v2575
  %3002 = vmatprep.subr.mxu0 0.0
  %3003 = vmatpush1.msra.mxu0 %v2574
  %3004 = vmatprep.subr.mxu0 0.0
  %3005 = vmatpush1.msra.mxu0 %v2573
  %3006 = vmatprep.subr.mxu0 0.0
  %3007 = vmatpush1.msra.mxu0 %v2572
  %3008 = vmatprep.subr.mxu0 0.0
  %3009 = vmatpush1.msra.mxu0 %v2571
  %3010 = vmatprep.subr.mxu0 0.0
  %3011 = vmatpush1.msra.mxu0 %v2570
  %3012 = vmatprep.subr.mxu0 0.0
  %3013 = vmatpush1.msra.mxu0 %v2569
  %3014 = vmatprep.subr.mxu0 0.0
  %3015 = vmatpush1.msra.mxu0 %v2568
  %3016 = vmatprep.subr.mxu0 0.0
  %3017 = vmatpush1.msra.mxu0 %v2567
  %3018 = vmatprep.subr.mxu0 0.0
  %3019 = vmatpush1.msra.mxu0 %v2566
  %3020 = vmatprep.subr.mxu0 0.0
  %3021 = vmatpush1.msra.mxu0 %v2565
  %3022 = vmatprep.subr.mxu0 0.0
  %3023 = vmatpush1.msra.mxu0 %v2564
  %3024 = vmatprep.subr.mxu0 0.0
  %3025 = vmatpush1.msra.mxu0 %v2563
  %3026 = vmatprep.subr.mxu0 0.0
  %3027 = vmatpush2.msra.mxu0 %v2594
  %3028 = vmatprep.subr.mxu0 0.0
  %3029 = vmatpush2.msra.mxu0 %v2593
  %3030 = vmatprep.subr.mxu0 0.0
  %3031 = vmatpush2.msra.mxu0 %v2592
  %3032 = vmatprep.subr.mxu0 0.0
  %3033 = vmatpush2.msra.mxu0 %v2591
  %3034 = vmatprep.subr.mxu0 0.0
  %3035 = vmatpush2.msra.mxu0 %v2590
  %3036 = vmatprep.subr.mxu0 0.0
  %3037 = vmatpush2.msra.mxu0 %v2589
  %3038 = vmatprep.subr.mxu0 0.0
  %3039 = vmatpush2.msra.mxu0 %v2588
  %3040 = vmatprep.subr.mxu0 0.0
  %3041 = vmatpush2.msra.mxu0 %v2587
  %3042 = vmatprep.subr.mxu0 0.0
  %3043 = vmatpush2.msra.mxu0 %v2586
  %3044 = vmatprep.subr.mxu0 0.0
  %3045 = vmatpush2.msra.mxu0 %v2585
  %3046 = vmatprep.subr.mxu0 0.0
  %3047 = vmatpush2.msra.mxu0 %v2584
  %3048 = vmatprep.subr.mxu0 0.0
  %3049 = vmatpush2.msra.mxu0 %v2583
  %3050 = vmatprep.subr.mxu0 0.0
  %3051 = vmatpush2.msra.mxu0 %v2582
  %3052 = vmatprep.subr.mxu0 0.0
  %3053 = vmatpush2.msra.mxu0 %v2581
  %3054 = vmatprep.subr.mxu0 0.0
  %3055 = vmatpush2.msra.mxu0 %v2580
  %3056 = vmatprep.subr.mxu0 0.0
  %3057 = vmatpush2.msra.mxu0 %v2579
  %3058 = vmatprep.mubr.f32.mxu0 %v2412
  %3059 = vmatmul.mubr.f32.gmra.mxu0 %v2411
  %v3060 = vpop.f32.mrf.mxu0
  %v3061 = vadd.f32 %v2986, %v3060
  %v3062 = vpop.f32.mrf.mxu0
  %3063 = vmatprep.mubr.f32.mxu0 %v2428
  %3064 = vmatmul.mubr.f32.gmra.mxu0 %v2427
  %v3065 = vpop.f32.mrf.mxu0
  %v3066 = vadd.f32 %v2991, %v3065
  %v3067 = vpop.f32.mrf.mxu0
  %3068 = vdwg.mxu0
  %3069 = vmatprep.subr.mxu0 0.0
  %3070 = vmatpush1.msra.mxu0 %v2610
  %3071 = vmatprep.subr.mxu0 0.0
  %3072 = vmatpush1.msra.mxu0 %v2609
  %3073 = vmatprep.subr.mxu0 0.0
  %3074 = vmatpush1.msra.mxu0 %v2608
  %3075 = vmatprep.subr.mxu0 0.0
  %3076 = vmatpush1.msra.mxu0 %v2607
  %3077 = vmatprep.subr.mxu0 0.0
  %3078 = vmatpush1.msra.mxu0 %v2606
  %3079 = vmatprep.subr.mxu0 0.0
  %3080 = vmatpush1.msra.mxu0 %v2605
  %3081 = vmatprep.subr.mxu0 0.0
  %3082 = vmatpush1.msra.mxu0 %v2604
  %3083 = vmatprep.subr.mxu0 0.0
  %3084 = vmatpush1.msra.mxu0 %v2603
  %3085 = vmatprep.subr.mxu0 0.0
  %3086 = vmatpush1.msra.mxu0 %v2602
  %3087 = vmatprep.subr.mxu0 0.0
  %3088 = vmatpush1.msra.mxu0 %v2601
  %3089 = vmatprep.subr.mxu0 0.0
  %3090 = vmatpush1.msra.mxu0 %v2600
  %3091 = vmatprep.subr.mxu0 0.0
  %3092 = vmatpush1.msra.mxu0 %v2599
  %3093 = vmatprep.subr.mxu0 0.0
  %3094 = vmatpush1.msra.mxu0 %v2598
  %3095 = vmatprep.subr.mxu0 0.0
  %3096 = vmatpush1.msra.mxu0 %v2597
  %3097 = vmatprep.subr.mxu0 0.0
  %3098 = vmatpush1.msra.mxu0 %v2596
  %3099 = vmatprep.subr.mxu0 0.0
  %3100 = vmatpush1.msra.mxu0 %v2595
  %3101 = vmatprep.subr.mxu0 0.0
  %3102 = vmatpush2.msra.mxu0 %v2626
  %3103 = vmatprep.subr.mxu0 0.0
  %3104 = vmatpush2.msra.mxu0 %v2625
  %3105 = vmatprep.subr.mxu0 0.0
  %3106 = vmatpush2.msra.mxu0 %v2624
  %3107 = vmatprep.subr.mxu0 0.0
  %3108 = vmatpush2.msra.mxu0 %v2623
  %3109 = vmatprep.subr.mxu0 0.0
  %3110 = vmatpush2.msra.mxu0 %v2622
  %3111 = vmatprep.subr.mxu0 0.0
  %3112 = vmatpush2.msra.mxu0 %v2621
  %3113 = vmatprep.subr.mxu0 0.0
  %3114 = vmatpush2.msra.mxu0 %v2620
  %3115 = vmatprep.subr.mxu0 0.0
  %3116 = vmatpush2.msra.mxu0 %v2619
  %3117 = vmatprep.subr.mxu0 0.0
  %3118 = vmatpush2.msra.mxu0 %v2618
  %3119 = vmatprep.subr.mxu0 0.0
  %3120 = vmatpush2.msra.mxu0 %v2617
  %3121 = vmatprep.subr.mxu0 0.0
  %3122 = vmatpush2.msra.mxu0 %v2616
  %3123 = vmatprep.subr.mxu0 0.0
  %3124 = vmatpush2.msra.mxu0 %v2615
  %3125 = vmatprep.subr.mxu0 0.0
  %3126 = vmatpush2.msra.mxu0 %v2614
  %3127 = vmatprep.subr.mxu0 0.0
  %3128 = vmatpush2.msra.mxu0 %v2613
  %3129 = vmatprep.subr.mxu0 0.0
  %3130 = vmatpush2.msra.mxu0 %v2612
  %3131 = vmatprep.subr.mxu0 0.0
  %3132 = vmatpush2.msra.mxu0 %v2611
  %3133 = vmatprep.mubr.f32.mxu0 %v2414
  %3134 = vmatmul.mubr.f32.gmra.mxu0 %v2413
  %v3135 = vpop.f32.mrf.mxu0
  %v3136 = vadd.f32 %v3061, %v3135
  %v3137 = vpop.f32.mrf.mxu0
  %3138 = vmatprep.mubr.f32.mxu0 %v2430
  %3139 = vmatmul.mubr.f32.gmra.mxu0 %v2429
  %v3140 = vpop.f32.mrf.mxu0
  %v3141 = vadd.f32 %v3066, %v3140
  %v3142 = vpop.f32.mrf.mxu0
  %3143 = vdwg.mxu0
  %3144 = vmatprep.subr.mxu0 0.0
  %3145 = vmatpush1.msra.mxu0 %v2642
  %3146 = vmatprep.subr.mxu0 0.0
  %3147 = vmatpush1.msra.mxu0 %v2641
  %3148 = vmatprep.subr.mxu0 0.0
  %3149 = vmatpush1.msra.mxu0 %v2640
  %3150 = vmatprep.subr.mxu0 0.0
  %3151 = vmatpush1.msra.mxu0 %v2639
  %3152 = vmatprep.subr.mxu0 0.0
  %3153 = vmatpush1.msra.mxu0 %v2638
  %3154 = vmatprep.subr.mxu0 0.0
  %3155 = vmatpush1.msra.mxu0 %v2637
  %3156 = vmatprep.subr.mxu0 0.0
  %3157 = vmatpush1.msra.mxu0 %v2636
  %3158 = vmatprep.subr.mxu0 0.0
  %3159 = vmatpush1.msra.mxu0 %v2635
  %3160 = vmatprep.subr.mxu0 0.0
  %3161 = vmatpush1.msra.mxu0 %v2634
  %3162 = vmatprep.subr.mxu0 0.0
  %3163 = vmatpush1.msra.mxu0 %v2633
  %3164 = vmatprep.subr.mxu0 0.0
  %3165 = vmatpush1.msra.mxu0 %v2632
  %3166 = vmatprep.subr.mxu0 0.0
  %3167 = vmatpush1.msra.mxu0 %v2631
  %3168 = vmatprep.subr.mxu0 0.0
  %3169 = vmatpush1.msra.mxu0 %v2630
  %3170 = vmatprep.subr.mxu0 0.0
  %3171 = vmatpush1.msra.mxu0 %v2629
  %3172 = vmatprep.subr.mxu0 0.0
  %3173 = vmatpush1.msra.mxu0 %v2628
  %3174 = vmatprep.subr.mxu0 0.0
  %3175 = vmatpush1.msra.mxu0 %v2627
  %3176 = vmatprep.subr.mxu0 0.0
  %3177 = vmatpush2.msra.mxu0 %v2658
  %3178 = vmatprep.subr.mxu0 0.0
  %3179 = vmatpush2.msra.mxu0 %v2657
  %3180 = vmatprep.subr.mxu0 0.0
  %3181 = vmatpush2.msra.mxu0 %v2656
  %3182 = vmatprep.subr.mxu0 0.0
  %3183 = vmatpush2.msra.mxu0 %v2655
  %3184 = vmatprep.subr.mxu0 0.0
  %3185 = vmatpush2.msra.mxu0 %v2654
  %3186 = vmatprep.subr.mxu0 0.0
  %3187 = vmatpush2.msra.mxu0 %v2653
  %3188 = vmatprep.subr.mxu0 0.0
  %3189 = vmatpush2.msra.mxu0 %v2652
  %3190 = vmatprep.subr.mxu0 0.0
  %3191 = vmatpush2.msra.mxu0 %v2651
  %3192 = vmatprep.subr.mxu0 0.0
  %3193 = vmatpush2.msra.mxu0 %v2650
  %3194 = vmatprep.subr.mxu0 0.0
  %3195 = vmatpush2.msra.mxu0 %v2649
  %3196 = vmatprep.subr.mxu0 0.0
  %3197 = vmatpush2.msra.mxu0 %v2648
  %3198 = vmatprep.subr.mxu0 0.0
  %3199 = vmatpush2.msra.mxu0 %v2647
  %3200 = vmatprep.subr.mxu0 0.0
  %3201 = vmatpush2.msra.mxu0 %v2646
  %3202 = vmatprep.subr.mxu0 0.0
  %3203 = vmatpush2.msra.mxu0 %v2645
  %3204 = vmatprep.subr.mxu0 0.0
  %3205 = vmatpush2.msra.mxu0 %v2644
  %3206 = vmatprep.subr.mxu0 0.0
  %3207 = vmatpush2.msra.mxu0 %v2643
  %3208 = vmatprep.mubr.f32.mxu0 %v2416
  %3209 = vmatmul.mubr.f32.gmra.mxu0 %v2415
  %v3210 = vpop.f32.mrf.mxu0
  %v3211 = vadd.f32 %v3136, %v3210
  %v3212 = vpop.f32.mrf.mxu0
  %3213 = vmatprep.mubr.f32.mxu0 %v2432
  %3214 = vmatmul.mubr.f32.gmra.mxu0 %v2431
  %v3215 = vpop.f32.mrf.mxu0
  %v3216 = vadd.f32 %v3141, %v3215
  %v3217 = vpop.f32.mrf.mxu0
  %3218 = vdwg.mxu0
  %3219 = vmatprep.subr.mxu0 0.0
  %3220 = vmatpush1.msra.mxu0 %v2674
  %3221 = vmatprep.subr.mxu0 0.0
  %3222 = vmatpush1.msra.mxu0 %v2673
  %3223 = vmatprep.subr.mxu0 0.0
  %3224 = vmatpush1.msra.mxu0 %v2672
  %3225 = vmatprep.subr.mxu0 0.0
  %3226 = vmatpush1.msra.mxu0 %v2671
  %3227 = vmatprep.subr.mxu0 0.0
  %3228 = vmatpush1.msra.mxu0 %v2670
  %3229 = vmatprep.subr.mxu0 0.0
  %3230 = vmatpush1.msra.mxu0 %v2669
  %3231 = vmatprep.subr.mxu0 0.0
  %3232 = vmatpush1.msra.mxu0 %v2668
  %3233 = vmatprep.subr.mxu0 0.0
  %3234 = vmatpush1.msra.mxu0 %v2667
  %3235 = vmatprep.subr.mxu0 0.0
  %3236 = vmatpush1.msra.mxu0 %v2666
  %3237 = vmatprep.subr.mxu0 0.0
  %3238 = vmatpush1.msra.mxu0 %v2665
  %3239 = vmatprep.subr.mxu0 0.0
  %3240 = vmatpush1.msra.mxu0 %v2664
  %3241 = vmatprep.subr.mxu0 0.0
  %3242 = vmatpush1.msra.mxu0 %v2663
  %3243 = vmatprep.subr.mxu0 0.0
  %3244 = vmatpush1.msra.mxu0 %v2662
  %3245 = vmatprep.subr.mxu0 0.0
  %3246 = vmatpush1.msra.mxu0 %v2661
  %3247 = vmatprep.subr.mxu0 0.0
  %3248 = vmatpush1.msra.mxu0 %v2660
  %3249 = vmatprep.subr.mxu0 0.0
  %3250 = vmatpush1.msra.mxu0 %v2659
  %3251 = vmatprep.subr.mxu0 0.0
  %3252 = vmatpush2.msra.mxu0 %v2690
  %3253 = vmatprep.subr.mxu0 0.0
  %3254 = vmatpush2.msra.mxu0 %v2689
  %3255 = vmatprep.subr.mxu0 0.0
  %3256 = vmatpush2.msra.mxu0 %v2688
  %3257 = vmatprep.subr.mxu0 0.0
  %3258 = vmatpush2.msra.mxu0 %v2687
  %3259 = vmatprep.subr.mxu0 0.0
  %3260 = vmatpush2.msra.mxu0 %v2686
  %3261 = vmatprep.subr.mxu0 0.0
  %3262 = vmatpush2.msra.mxu0 %v2685
  %3263 = vmatprep.subr.mxu0 0.0
  %3264 = vmatpush2.msra.mxu0 %v2684
  %3265 = vmatprep.subr.mxu0 0.0
  %3266 = vmatpush2.msra.mxu0 %v2683
  %3267 = vmatprep.subr.mxu0 0.0
  %3268 = vmatpush2.msra.mxu0 %v2682
  %3269 = vmatprep.subr.mxu0 0.0
  %3270 = vmatpush2.msra.mxu0 %v2681
  %3271 = vmatprep.subr.mxu0 0.0
  %3272 = vmatpush2.msra.mxu0 %v2680
  %3273 = vmatprep.subr.mxu0 0.0
  %3274 = vmatpush2.msra.mxu0 %v2679
  %3275 = vmatprep.subr.mxu0 0.0
  %3276 = vmatpush2.msra.mxu0 %v2678
  %3277 = vmatprep.subr.mxu0 0.0
  %3278 = vmatpush2.msra.mxu0 %v2677
  %3279 = vmatprep.subr.mxu0 0.0
  %3280 = vmatpush2.msra.mxu0 %v2676
  %3281 = vmatprep.subr.mxu0 0.0
  %3282 = vmatpush2.msra.mxu0 %v2675
  %3283 = vmatprep.mubr.f32.mxu0 %v2418
  %3284 = vmatmul.mubr.f32.gmra.mxu0 %v2417
  %v3285 = vpop.f32.mrf.mxu0
  %v3286 = vadd.f32 %v3211, %v3285
  %v3287 = vpop.f32.mrf.mxu0
  %3288 = vmatprep.mubr.f32.mxu0 %v2434
  %3289 = vmatmul.mubr.f32.gmra.mxu0 %v2433
  %v3290 = vpop.f32.mrf.mxu0
  %v3291 = vadd.f32 %v3216, %v3290
  %v3292 = vpop.f32.mrf.mxu0
  %3293 = vdwg.mxu0
  %v3294 = vld [vmem:[%s5 + $0x22] sm:$0x1]
  %v3295 = vadd.f32 %v1631, %v3286
  %v3296 = vadd.f32 %v1632, %v3291
  %v3297 = vsel %vm39, %v3295, 0.0
  %3298 = vadd.xlane.f32.xlu0 %v3297
  %v3299 = vpop.xlane.xlu0 %3298
  %v3300 = vsel %vm39, %v3296, 0.0
  %3301 = vadd.xlane.f32.xlu0 %v3300
  %v3302 = vpop.xlane.xlu0 %3301
  %v3303 = vmul.f32 %v3299, %v1599
  %v3304 = vmul.f32 %v3302, %v1599
  %v3305 = vsub.f32 %v3295, %v3303
  %v3306 = vsub.f32 %v3296, %v3304
  %v3307 = vmul.f32 %v3305, %v3305
  %v3308 = vmul.f32 %v3306, %v3306
  %v3309 = vsel %vm39, %v3307, 0.0
  %3310 = vadd.xlane.f32.xlu0 %v3309
  %v3311 = vpop.xlane.xlu0 %3310
  %v3312 = vsel %vm39, %v3308, 0.0
  %3313 = vadd.xlane.f32.xlu0 %v3312
  %v3314 = vpop.xlane.xlu0 %3313
  %v3315 = vmul.f32 %v3311, %v1599
  %v3316 = vmul.f32 %v3314, %v1599
  %v3317 = vadd.f32 %v3315, 1e-05
  %v3318 = vadd.f32 %v3316, 1e-05
  %v3319 = vrsqrt.pop %v3317
  %v3320 = vrsqrt.pop %v3318
  %v3321 = vmul.f32 %v3305, %v3319
  %v3322 = vmul.f32 %v3306, %v3320
  %3323 = vrot.lane.b32.xlu0 %v1624, 32
  %v3324 = vpop.permute.xlu0 %3323
  %v3326 = vmul.f32 %v3321, %v3324
  %v3327 = vmul.f32 %v3322, %v3324
  %v3329 = vlaneseq
  %v3330 = vshrl.u32 %v3329, 7
  %v3331 = vsub.s32 0, %v3330
  %v3332 = vrot.slane %v3294, %v3331
  %v3334 = vadd.f32 %v3326, %v3332
  %v3335 = vadd.f32 %v3327, %v3332
  %v3336 = vld [vmem:[%s3 + $0x108] sm:$0xff]
  %v3337 = vld [vmem:[%s3 + $0x228] sm:$0xff]
  %v3338 = vld [vmem:[%s3 + $0x348] sm:$0xff]
  %v3339 = vld [vmem:[%s3 + $0x468] sm:$0xff]
  %3340 = vrot.lane.b32.xlu0 %v3332, 96
  %v3341 = vpop.permute.xlu0 %3340
  %v3344 = vsel %vm39, %v3334, 0
  %v3347 = vsel %vm39, %v3335, 0
  %3349 = vmatprep.subr.mxu0 0.0
  %3350 = vmatpush1.msra.mxu0 0.0
  %3351 = vmatprep.subr.mxu0 0.0
  %3352 = vmatpush1.msra.mxu0 0.0
  %3353 = vmatprep.subr.mxu0 0.0
  %3354 = vmatpush1.msra.mxu0 0.0
  %3355 = vmatprep.subr.mxu0 0.0
  %3356 = vmatpush1.msra.mxu0 0.0
  %3357 = vmatprep.subr.mxu0 0.0
  %3358 = vmatpush1.msra.mxu0 0.0
  %3359 = vmatprep.subr.mxu0 0.0
  %3360 = vmatpush1.msra.mxu0 0.0
  %3361 = vmatprep.subr.mxu0 0.0
  %3362 = vmatpush1.msra.mxu0 0.0
  %3363 = vmatprep.subr.mxu0 0.0
  %3364 = vmatpush1.msra.mxu0 0.0
  %3365 = vmatprep.subr.mxu0 0.0
  %3366 = vmatpush1.msra.mxu0 0.0
  %3367 = vmatprep.subr.mxu0 0.0
  %3368 = vmatpush1.msra.mxu0 0.0
  %3369 = vmatprep.subr.mxu0 0.0
  %3370 = vmatpush1.msra.mxu0 0.0
  %3371 = vmatprep.subr.mxu0 0.0
  %3372 = vmatpush1.msra.mxu0 0.0
  %3373 = vmatprep.subr.mxu0 0.0
  %3374 = vmatpush1.msra.mxu0 %v3339
  %3375 = vmatprep.subr.mxu0 0.0
  %3376 = vmatpush1.msra.mxu0 %v3338
  %3377 = vmatprep.subr.mxu0 0.0
  %3378 = vmatpush1.msra.mxu0 %v3337
  %3379 = vmatprep.subr.mxu0 0.0
  %3380 = vmatpush1.msra.mxu0 %v3336
  %3381 = vmatprep.subr.mxu0 0.0
  %3382 = vmatpush2.msra.mxu0 0.0
  %3383 = vmatprep.subr.mxu0 0.0
  %3384 = vmatpush2.msra.mxu0 0.0
  %3385 = vmatprep.subr.mxu0 0.0
  %3386 = vmatpush2.msra.mxu0 0.0
  %3387 = vmatprep.subr.mxu0 0.0
  %3388 = vmatpush2.msra.mxu0 0.0
  %3389 = vmatprep.subr.mxu0 0.0
  %3390 = vmatpush2.msra.mxu0 0.0
  %3391 = vmatprep.subr.mxu0 0.0
  %3392 = vmatpush2.msra.mxu0 0.0
  %3393 = vmatprep.subr.mxu0 0.0
  %3394 = vmatpush2.msra.mxu0 0.0
  %3395 = vmatprep.subr.mxu0 0.0
  %3396 = vmatpush2.msra.mxu0 0.0
  %3397 = vmatprep.subr.mxu0 0.0
  %3398 = vmatpush2.msra.mxu0 0.0
  %3399 = vmatprep.subr.mxu0 0.0
  %3400 = vmatpush2.msra.mxu0 0.0
  %3401 = vmatprep.subr.mxu0 0.0
  %3402 = vmatpush2.msra.mxu0 0.0
  %3403 = vmatprep.subr.mxu0 0.0
  %3404 = vmatpush2.msra.mxu0 0.0
  %3405 = vmatprep.subr.mxu0 0.0
  %3406 = vmatpush2.msra.mxu0 0.0
  %3407 = vmatprep.subr.mxu0 0.0
  %3408 = vmatpush2.msra.mxu0 0.0
  %3409 = vmatprep.subr.mxu0 0.0
  %3410 = vmatpush2.msra.mxu0 0.0
  %3411 = vmatprep.subr.mxu0 0.0
  %3412 = vmatpush2.msra.mxu0 0.0
  %3413 = vmatprep.mubr.f32.mxu0 0.0
  %3414 = vmatmul.mubr.f32.gmra.mxu0 %v3344
  %v3415 = vpop.f32.mrf.mxu0
  %v3416 = vadd.f32 %v3341, %v3415
  %v3417 = vpop.f32.mrf.mxu0
  %3418 = vmatprep.mubr.f32.mxu0 0.0
  %3419 = vmatmul.mubr.f32.gmra.mxu0 %v3347
  %v3420 = vpop.f32.mrf.mxu0
  %v3421 = vadd.f32 %v3341, %v3420
  %v3422 = vpop.f32.mrf.mxu0
  %3423 = vdwg.mxu0
  %v3424 = vtanh.pop %v3416
  %v3425 = vtanh.pop %v3421
  %3430 = vrot.lane.b32.xlu0 %v3336, 96
  %v3431 = vpop.permute.xlu0 %3430
  %3432 = vrot.lane.b32.xlu0 %v3337, 96
  %v3433 = vpop.permute.xlu0 %3432
  %3434 = vrot.lane.b32.xlu0 %v3338, 96
  %v3435 = vpop.permute.xlu0 %3434
  %3436 = vrot.lane.b32.xlu0 %v3339, 96
  %v3437 = vpop.permute.xlu0 %3436
  %3442 = vrot.lane.b32.xlu0 %v3332, 64
  %v3443 = vpop.permute.xlu0 %3442
  %3445 = vmatprep.subr.mxu0 0.0
  %3446 = vmatpush1.msra.mxu0 0.0
  %3447 = vmatprep.subr.mxu0 0.0
  %3448 = vmatpush1.msra.mxu0 0.0
  %3449 = vmatprep.subr.mxu0 0.0
  %3450 = vmatpush1.msra.mxu0 0.0
  %3451 = vmatprep.subr.mxu0 0.0
  %3452 = vmatpush1.msra.mxu0 0.0
  %3453 = vmatprep.subr.mxu0 0.0
  %3454 = vmatpush1.msra.mxu0 0.0
  %3455 = vmatprep.subr.mxu0 0.0
  %3456 = vmatpush1.msra.mxu0 0.0
  %3457 = vmatprep.subr.mxu0 0.0
  %3458 = vmatpush1.msra.mxu0 0.0
  %3459 = vmatprep.subr.mxu0 0.0
  %3460 = vmatpush1.msra.mxu0 0.0
  %3461 = vmatprep.subr.mxu0 0.0
  %3462 = vmatpush1.msra.mxu0 0.0
  %3463 = vmatprep.subr.mxu0 0.0
  %3464 = vmatpush1.msra.mxu0 0.0
  %3465 = vmatprep.subr.mxu0 0.0
  %3466 = vmatpush1.msra.mxu0 0.0
  %3467 = vmatprep.subr.mxu0 0.0
  %3468 = vmatpush1.msra.mxu0 0.0
  %3469 = vmatprep.subr.mxu0 0.0
  %3470 = vmatpush1.msra.mxu0 %v3437
  %3471 = vmatprep.subr.mxu0 0.0
  %3472 = vmatpush1.msra.mxu0 %v3435
  %3473 = vmatprep.subr.mxu0 0.0
  %3474 = vmatpush1.msra.mxu0 %v3433
  %3475 = vmatprep.subr.mxu0 0.0
  %3476 = vmatpush1.msra.mxu0 %v3431
  %3477 = vmatprep.subr.mxu0 0.0
  %3478 = vmatpush2.msra.mxu0 0.0
  %3479 = vmatprep.subr.mxu0 0.0
  %3480 = vmatpush2.msra.mxu0 0.0
  %3481 = vmatprep.subr.mxu0 0.0
  %3482 = vmatpush2.msra.mxu0 0.0
  %3483 = vmatprep.subr.mxu0 0.0
  %3484 = vmatpush2.msra.mxu0 0.0
  %3485 = vmatprep.subr.mxu0 0.0
  %3486 = vmatpush2.msra.mxu0 0.0
  %3487 = vmatprep.subr.mxu0 0.0
  %3488 = vmatpush2.msra.mxu0 0.0
  %3489 = vmatprep.subr.mxu0 0.0
  %3490 = vmatpush2.msra.mxu0 0.0
  %3491 = vmatprep.subr.mxu0 0.0
  %3492 = vmatpush2.msra.mxu0 0.0
  %3493 = vmatprep.subr.mxu0 0.0
  %3494 = vmatpush2.msra.mxu0 0.0
  %3495 = vmatprep.subr.mxu0 0.0
  %3496 = vmatpush2.msra.mxu0 0.0
  %3497 = vmatprep.subr.mxu0 0.0
  %3498 = vmatpush2.msra.mxu0 0.0
  %3499 = vmatprep.subr.mxu0 0.0
  %3500 = vmatpush2.msra.mxu0 0.0
  %3501 = vmatprep.subr.mxu0 0.0
  %3502 = vmatpush2.msra.mxu0 0.0
  %3503 = vmatprep.subr.mxu0 0.0
  %3504 = vmatpush2.msra.mxu0 0.0
  %3505 = vmatprep.subr.mxu0 0.0
  %3506 = vmatpush2.msra.mxu0 0.0
  %3507 = vmatprep.subr.mxu0 0.0
  %3508 = vmatpush2.msra.mxu0 0.0
  %3509 = vmatprep.mubr.f32.mxu0 0.0
  %3510 = vmatmul.mubr.f32.gmra.mxu0 %v3344
  %v3511 = vpop.f32.mrf.mxu0
  %v3512 = vadd.f32 %v3443, %v3511
  %v3513 = vpop.f32.mrf.mxu0
  %3514 = vmatprep.mubr.f32.mxu0 0.0
  %3515 = vmatmul.mubr.f32.gmra.mxu0 %v3347
  %v3516 = vpop.f32.mrf.mxu0
  %v3517 = vadd.f32 %v3443, %v3516
  %v3518 = vpop.f32.mrf.mxu0
  %3519 = vdwg.mxu0
  %v3520 = vxor.u32 %v3512, 2147483648
  %v3521 = vxor.u32 %v3517, 2147483648
  %v3522 = vmul.f32 %v3520, 1.442695
  %v3523 = vpow.pop %v3522
  %v3524 = vmul.f32 %v3521, 1.442695
  %v3525 = vpow.pop %v3524
  %v3526 = vadd.f32 %v3523, 1.0
  %v3527 = vadd.f32 %v3525, 1.0
  %v3528 = vrcp.pop %v3526
  %v3529 = vmul.f32 1.0, %v3528
  %v3530 = vrcp.pop %v3527
  %v3531 = vmul.f32 1.0, %v3530
  %v3532 = vmul.f32 %v3424, %v3529
  %v3533 = vmul.f32 %v3425, %v3531
  %3534 = vrot.lane.b32.xlu0 %v3336, 64
  %v3535 = vpop.permute.xlu0 %3534
  %3536 = vrot.lane.b32.xlu0 %v3337, 64
  %v3537 = vpop.permute.xlu0 %3536
  %3538 = vrot.lane.b32.xlu0 %v3338, 64
  %v3539 = vpop.permute.xlu0 %3538
  %3540 = vrot.lane.b32.xlu0 %v3339, 64
  %v3541 = vpop.permute.xlu0 %3540
  %3546 = vrot.lane.b32.xlu0 %v3332, 32
  %v3547 = vpop.permute.xlu0 %3546
  %v3550 = vsel %vm39, %v3532, 0
  %v3553 = vsel %vm39, %v3533, 0
  %3555 = vmatprep.subr.mxu0 0.0
  %3556 = vmatpush1.msra.mxu0 0.0
  %3557 = vmatprep.subr.mxu0 0.0
  %3558 = vmatpush1.msra.mxu0 0.0
  %3559 = vmatprep.subr.mxu0 0.0
  %3560 = vmatpush1.msra.mxu0 0.0
  %3561 = vmatprep.subr.mxu0 0.0
  %3562 = vmatpush1.msra.mxu0 0.0
  %3563 = vmatprep.subr.mxu0 0.0
  %3564 = vmatpush1.msra.mxu0 0.0
  %3565 = vmatprep.subr.mxu0 0.0
  %3566 = vmatpush1.msra.mxu0 0.0
  %3567 = vmatprep.subr.mxu0 0.0
  %3568 = vmatpush1.msra.mxu0 0.0
  %3569 = vmatprep.subr.mxu0 0.0
  %3570 = vmatpush1.msra.mxu0 0.0
  %3571 = vmatprep.subr.mxu0 0.0
  %3572 = vmatpush1.msra.mxu0 0.0
  %3573 = vmatprep.subr.mxu0 0.0
  %3574 = vmatpush1.msra.mxu0 0.0
  %3575 = vmatprep.subr.mxu0 0.0
  %3576 = vmatpush1.msra.mxu0 0.0
  %3577 = vmatprep.subr.mxu0 0.0
  %3578 = vmatpush1.msra.mxu0 0.0
  %3579 = vmatprep.subr.mxu0 0.0
  %3580 = vmatpush1.msra.mxu0 %v3541
  %3581 = vmatprep.subr.mxu0 0.0
  %3582 = vmatpush1.msra.mxu0 %v3539
  %3583 = vmatprep.subr.mxu0 0.0
  %3584 = vmatpush1.msra.mxu0 %v3537
  %3585 = vmatprep.subr.mxu0 0.0
  %3586 = vmatpush1.msra.mxu0 %v3535
  %3587 = vmatprep.subr.mxu0 0.0
  %3588 = vmatpush2.msra.mxu0 0.0
  %3589 = vmatprep.subr.mxu0 0.0
  %3590 = vmatpush2.msra.mxu0 0.0
  %3591 = vmatprep.subr.mxu0 0.0
  %3592 = vmatpush2.msra.mxu0 0.0
  %3593 = vmatprep.subr.mxu0 0.0
  %3594 = vmatpush2.msra.mxu0 0.0
  %3595 = vmatprep.subr.mxu0 0.0
  %3596 = vmatpush2.msra.mxu0 0.0
  %3597 = vmatprep.subr.mxu0 0.0
  %3598 = vmatpush2.msra.mxu0 0.0
  %3599 = vmatprep.subr.mxu0 0.0
  %3600 = vmatpush2.msra.mxu0 0.0
  %3601 = vmatprep.subr.mxu0 0.0
  %3602 = vmatpush2.msra.mxu0 0.0
  %3603 = vmatprep.subr.mxu0 0.0
  %3604 = vmatpush2.msra.mxu0 0.0
  %3605 = vmatprep.subr.mxu0 0.0
  %3606 = vmatpush2.msra.mxu0 0.0
  %3607 = vmatprep.subr.mxu0 0.0
  %3608 = vmatpush2.msra.mxu0 0.0
  %3609 = vmatprep.subr.mxu0 0.0
  %3610 = vmatpush2.msra.mxu0 0.0
  %3611 = vmatprep.subr.mxu0 0.0
  %3612 = vmatpush2.msra.mxu0 0.0
  %3613 = vmatprep.subr.mxu0 0.0
  %3614 = vmatpush2.msra.mxu0 0.0
  %3615 = vmatprep.subr.mxu0 0.0
  %3616 = vmatpush2.msra.mxu0 0.0
  %3617 = vmatprep.subr.mxu0 0.0
  %3618 = vmatpush2.msra.mxu0 0.0
  %3619 = vmatprep.mubr.f32.mxu0 0.0
  %3620 = vmatmul.mubr.f32.gmra.mxu0 %v3550
  %v3621 = vpop.f32.mrf.mxu0
  %v3622 = vadd.f32 %v3547, %v3621
  %v3623 = vpop.f32.mrf.mxu0
  %3624 = vmatprep.mubr.f32.mxu0 0.0
  %3625 = vmatmul.mubr.f32.gmra.mxu0 %v3553
  %v3626 = vpop.f32.mrf.mxu0
  %v3627 = vadd.f32 %v3547, %v3626
  %v3628 = vpop.f32.mrf.mxu0
  %3629 = vdwg.mxu0
  %vm3630 = vcmask 15360
  %v3631 = vsel %vm3630, %v3622, 0.0
  %v3632 = vsel %vm3630, %v3627, 0.0
  %v3633 = vadd.f32 %v3631, %v3632
  %v3634 = vrcp.pop 2.0
  %v3635 = vmul.f32 %v3633, %v3634
  %v3636 = vsel %vm3630, %v3635, -inf
  %3637 = vmax.xlane.f32.xlu0 %v3636
  %v3638 = vpop.xlane.xlu0 %3637
  %v3639 = vsub.f32 %v3635, %v3638
  %v3640 = vmul.f32 %v3639, 1.442695
  %v3641 = vpow.pop %v3640
  %v3642 = vsel %vm3630, %v3641, 0.0
  %3643 = vadd.xlane.f32.xlu0 %v3642
  %v3644 = vpop.xlane.xlu0 %3643
  %v3645 = vrcp.pop %v3644
  %v3646 = vmul.f32 %v3641, %v3645
  %3649 = vrot.lane.b32.xlu0 %v3622, 127
  %v3650 = vpop.permute.xlu0 %3649
  %3651 = vrot.lane.b32.xlu0 %v3627, 127
  %v3652 = vpop.permute.xlu0 %3651
  %v3655 = vsub.f32 %v3622, %v3650
  %v3656 = vsub.f32 %v3627, %v3652
  %v3657 = vlaneseq
  %v3658 = vshrl.u32 %v3657, 7
  %v3659 = vlaneseq
  %v3660 = vand.u32 %v3659, 127
  %vm3661 = vcmp.eq.s32.totalorder %v3658, %v3660
  %v3662 = vsel %vm3661, 1, 0
  %v3663 = vcvt.s32.f32 %v3662
  %3665 = vset.pattern.permute.xlu0 0
  %3666 = vperm.xlu0 %3665, %v3655
  %v3667 = vpop.permute.xlu0 %3666
  %3670 = vset.pattern.permute.xlu0 0
  %3671 = vperm.xlu0 %3670, %v3656
  %v3672 = vpop.permute.xlu0 %3671
  %v3674 = vmul.f32 %v3667, %v3663
  %v3675 = vmul.f32 %v3672, %v3663
  %v3676 = vsel %vm137, %v3674, 0.0
  %v3677 = vsel %vm137, %v3675, 0.0
  %v3678 = vadd.f32 %v3676, %v3677
  %v3679 = vrot.slane %v3678, 4
  %v3680 = vadd.f32 %v3678, %v3679
  %v3681 = vrot.slane %v3680, 2
  %v3682 = vadd.f32 %v3680, %v3681
  %v3683 = vrot.slane %v3682, 1
  %v3684 = vadd.f32 %v3682, %v3683
  %v3685 = vmul.f32 %v3684, 0.5
  %vm3686 = vcmp.ge.f32.partialorder %v3685, 0.0
  %v3687 = vsel %vm3686, 0.0, -1e+09
  %v3688 = vsel %vm3686, -1e+09, 0.0
  %3690 = vset.pattern.permute.xlu0 0
  %3691 = vperm.xlu0 %3690, %v3646
  %v3692 = vpop.permute.xlu0 %3691
  %v3694 = vmul.f32 %v3334, %v3692
  %v3695 = vmul.f32 %v3335, %v3692
  %3696 = vset.pattern.permute.xlu0 1
  %3697 = vperm.xlu0 %3696, %v3646
  %v3698 = vpop.permute.xlu0 %3697
  %v3700 = vmul.f32 %v3334, %v3698
  %v3701 = vmul.f32 %v3335, %v3698
  %v3702 = vld [vmem:[%s2] sm:$0xff]
  %v3703 = vld [vmem:[%s3 + $0x108] sm:$0xff]
  %v3704 = vld [vmem:[%s3 + $0x110] sm:$0xff]
  %v3705 = vld [vmem:[%s3 + $0x228] sm:$0xff]
  %v3706 = vld [vmem:[%s3 + $0x230] sm:$0xff]
  %v3707 = vld [vmem:[%s3 + $0x348] sm:$0xff]
  %v3708 = vld [vmem:[%s3 + $0x350] sm:$0xff]
  %v3709 = vld [vmem:[%s3 + $0x468] sm:$0xff]
  %v3710 = vld [vmem:[%s3 + $0x470] sm:$0xff]
  %v3711 = vld [vmem:[%s5 + $0x22] sm:$0x3]
  %v3713 = vlaneseq
  %v3714 = vshrl.u32 %v3713, 7
  %v3715 = vsub.s32 0, %v3714
  %v3716 = vrot.slane %v3711, %v3715
  %v3717 = vlaneseq
  %v3718 = vshrl.u32 %v3717, 7
  %v3719 = vsub.s32 1, %v3718
  %v3720 = vrot.slane %v3711, %v3719
  %3729 = vrot.lane.b32.xlu0 %v3703, 62
  %v3730 = vpop.permute.xlu0 %3729
  %3731 = vrot.lane.b32.xlu0 %v3704, 62
  %v3732 = vpop.permute.xlu0 %3731
  %3733 = vrot.lane.b32.xlu0 %v3705, 62
  %v3734 = vpop.permute.xlu0 %3733
  %3735 = vrot.lane.b32.xlu0 %v3706, 62
  %v3736 = vpop.permute.xlu0 %3735
  %3737 = vrot.lane.b32.xlu0 %v3707, 62
  %v3738 = vpop.permute.xlu0 %3737
  %3739 = vrot.lane.b32.xlu0 %v3708, 62
  %v3740 = vpop.permute.xlu0 %3739
  %3741 = vrot.lane.b32.xlu0 %v3709, 62
  %v3742 = vpop.permute.xlu0 %3741
  %3743 = vrot.lane.b32.xlu0 %v3710, 62
  %v3744 = vpop.permute.xlu0 %3743
  %vm3745 = vcmask 506880
  %v3746 = vsel %vm3745, %v3730, %v3732
  %v3747 = vsel %vm3745, %v3734, %v3736
  %v3748 = vsel %vm3745, %v3738, %v3740
  %v3749 = vsel %vm3745, %v3742, %v3744
  %3754 = vrot.lane.b32.xlu0 %v3716, 30
  %v3755 = vpop.permute.xlu0 %3754
  %3756 = vrot.lane.b32.xlu0 %v3720, 30
  %v3757 = vpop.permute.xlu0 %3756
  %vm3758 = vcmask 244736
  %v3759 = vsel %vm3758, %v3755, %v3757
  %v3762 = vsel %vm39, %v3702, 0
  %3764 = vmatprep.subr.mxu0 0.0
  %3765 = vmatpush1.msra.mxu0 0.0
  %3766 = vmatprep.subr.mxu0 0.0
  %3767 = vmatpush1.msra.mxu0 0.0
  %3768 = vmatprep.subr.mxu0 0.0
  %3769 = vmatpush1.msra.mxu0 0.0
  %3770 = vmatprep.subr.mxu0 0.0
  %3771 = vmatpush1.msra.mxu0 0.0
  %3772 = vmatprep.subr.mxu0 0.0
  %3773 = vmatpush1.msra.mxu0 0.0
  %3774 = vmatprep.subr.mxu0 0.0
  %3775 = vmatpush1.msra.mxu0 0.0
  %3776 = vmatprep.subr.mxu0 0.0
  %3777 = vmatpush1.msra.mxu0 0.0
  %3778 = vmatprep.subr.mxu0 0.0
  %3779 = vmatpush1.msra.mxu0 0.0
  %3780 = vmatprep.subr.mxu0 0.0
  %3781 = vmatpush1.msra.mxu0 0.0
  %3782 = vmatprep.subr.mxu0 0.0
  %3783 = vmatpush1.msra.mxu0 0.0
  %3784 = vmatprep.subr.mxu0 0.0
  %3785 = vmatpush1.msra.mxu0 0.0
  %3786 = vmatprep.subr.mxu0 0.0
  %3787 = vmatpush1.msra.mxu0 0.0
  %3788 = vmatprep.subr.mxu0 0.0
  %3789 = vmatpush1.msra.mxu0 %v3749
  %3790 = vmatprep.subr.mxu0 0.0
  %3791 = vmatpush1.msra.mxu0 %v3748
  %3792 = vmatprep.subr.mxu0 0.0
  %3793 = vmatpush1.msra.mxu0 %v3747
  %3794 = vmatprep.subr.mxu0 0.0
  %3795 = vmatpush1.msra.mxu0 %v3746
  %3796 = vmatprep.subr.mxu0 0.0
  %3797 = vmatpush2.msra.mxu0 0.0
  %3798 = vmatprep.subr.mxu0 0.0
  %3799 = vmatpush2.msra.mxu0 0.0
  %3800 = vmatprep.subr.mxu0 0.0
  %3801 = vmatpush2.msra.mxu0 0.0
  %3802 = vmatprep.subr.mxu0 0.0
  %3803 = vmatpush2.msra.mxu0 0.0
  %3804 = vmatprep.subr.mxu0 0.0
  %3805 = vmatpush2.msra.mxu0 0.0
  %3806 = vmatprep.subr.mxu0 0.0
  %3807 = vmatpush2.msra.mxu0 0.0
  %3808 = vmatprep.subr.mxu0 0.0
  %3809 = vmatpush2.msra.mxu0 0.0
  %3810 = vmatprep.subr.mxu0 0.0
  %3811 = vmatpush2.msra.mxu0 0.0
  %3812 = vmatprep.subr.mxu0 0.0
  %3813 = vmatpush2.msra.mxu0 0.0
  %3814 = vmatprep.subr.mxu0 0.0
  %3815 = vmatpush2.msra.mxu0 0.0
  %3816 = vmatprep.subr.mxu0 0.0
  %3817 = vmatpush2.msra.mxu0 0.0
  %3818 = vmatprep.subr.mxu0 0.0
  %3819 = vmatpush2.msra.mxu0 0.0
  %3820 = vmatprep.subr.mxu0 0.0
  %3821 = vmatpush2.msra.mxu0 0.0
  %3822 = vmatprep.subr.mxu0 0.0
  %3823 = vmatpush2.msra.mxu0 0.0
  %3824 = vmatprep.subr.mxu0 0.0
  %3825 = vmatpush2.msra.mxu0 0.0
  %3826 = vmatprep.subr.mxu0 0.0
  %3827 = vmatpush2.msra.mxu0 0.0
  %3828 = vmatprep.mubr.f32.mxu0 0.0
  %3829 = vmatmul.mubr.f32.gmra.mxu0 %v3762
  %v3830 = vpop.f32.mrf.mxu0
  %v3831 = vadd.f32 %v3759, %v3830
  %v3832 = vpop.f32.mrf.mxu0
  %3833 = vdwg.mxu0
  %3835 = vrot.lane.b32.xlu0 %v3831, 120
  %v3836 = vpop.permute.xlu0 %3835
  %3837 = vrot.lane.b32.xlu0 %v3831, 112
  %v3838 = vpop.permute.xlu0 %3837
  %3839 = vrot.lane.b32.xlu0 %v3831, 104
  %v3840 = vpop.permute.xlu0 %3839
  %3841 = vrot.lane.b32.xlu0 %v3831, 96
  %v3842 = vpop.permute.xlu0 %3841
  %v3843 = vsel %vm137, %v3831, 0
  %v3845 = vsel %vm137, %v3842, 0
  %3847 = vmatprep.subr.mxu0 0.0
  %3848 = vmatpush1.xpose.msra.mxu0 0.0
  %3849 = vmatprep.subr.mxu0 0.0
  %3850 = vmatpush1.xpose.msra.mxu0 0.0
  %3851 = vmatprep.subr.mxu0 0.0
  %3852 = vmatpush1.xpose.msra.mxu0 0.0
  %3853 = vmatprep.subr.mxu0 0.0
  %3854 = vmatpush1.xpose.msra.mxu0 0.0
  %3855 = vmatprep.subr.mxu0 0.0
  %3856 = vmatpush1.xpose.msra.mxu0 0.0
  %3857 = vmatprep.subr.mxu0 0.0
  %3858 = vmatpush1.xpose.msra.mxu0 0.0
  %3859 = vmatprep.subr.mxu0 0.0
  %3860 = vmatpush1.xpose.msra.mxu0 0.0
  %3861 = vmatprep.subr.mxu0 0.0
  %3862 = vmatpush1.xpose.msra.mxu0 0.0
  %3863 = vmatprep.subr.mxu0 0.0
  %3864 = vmatpush1.xpose.msra.mxu0 0.0
  %3865 = vmatprep.subr.mxu0 0.0
  %3866 = vmatpush1.xpose.msra.mxu0 0.0
  %3867 = vmatprep.subr.mxu0 0.0
  %3868 = vmatpush1.xpose.msra.mxu0 0.0
  %3869 = vmatprep.subr.mxu0 0.0
  %3870 = vmatpush1.xpose.msra.mxu0 0.0
  %3871 = vmatprep.subr.mxu0 0.0
  %3872 = vmatpush1.xpose.msra.mxu0 0.0
  %3873 = vmatprep.subr.mxu0 0.0
  %3874 = vmatpush1.xpose.msra.mxu0 0.0
  %3875 = vmatprep.subr.mxu0 0.0
  %3876 = vmatpush1.xpose.msra.mxu0 0.0
  %3877 = vmatprep.subr.mxu0 0.0
  %3878 = vmatpush1.xpose.msra.mxu0 %v3845
  %3879 = vmatprep.subr.mxu0 0.0
  %3880 = vmatpush2.xpose.msra.mxu0 0.0
  %3881 = vmatprep.subr.mxu0 0.0
  %3882 = vmatpush2.xpose.msra.mxu0 0.0
  %3883 = vmatprep.subr.mxu0 0.0
  %3884 = vmatpush2.xpose.msra.mxu0 0.0
  %3885 = vmatprep.subr.mxu0 0.0
  %3886 = vmatpush2.xpose.msra.mxu0 0.0
  %3887 = vmatprep.subr.mxu0 0.0
  %3888 = vmatpush2.xpose.msra.mxu0 0.0
  %3889 = vmatprep.subr.mxu0 0.0
  %3890 = vmatpush2.xpose.msra.mxu0 0.0
  %3891 = vmatprep.subr.mxu0 0.0
  %3892 = vmatpush2.xpose.msra.mxu0 0.0
  %3893 = vmatprep.subr.mxu0 0.0
  %3894 = vmatpush2.xpose.msra.mxu0 0.0
  %3895 = vmatprep.subr.mxu0 0.0
  %3896 = vmatpush2.xpose.msra.mxu0 0.0
  %3897 = vmatprep.subr.mxu0 0.0
  %3898 = vmatpush2.xpose.msra.mxu0 0.0
  %3899 = vmatprep.subr.mxu0 0.0
  %3900 = vmatpush2.xpose.msra.mxu0 0.0
  %3901 = vmatprep.subr.mxu0 0.0
  %3902 = vmatpush2.xpose.msra.mxu0 0.0
  %3903 = vmatprep.subr.mxu0 0.0
  %3904 = vmatpush2.xpose.msra.mxu0 0.0
  %3905 = vmatprep.subr.mxu0 0.0
  %3906 = vmatpush2.xpose.msra.mxu0 0.0
  %3907 = vmatprep.subr.mxu0 0.0
  %3908 = vmatpush2.xpose.msra.mxu0 0.0
  %3909 = vmatprep.subr.mxu0 0.0
  %3910 = vmatpush2.xpose.msra.mxu0 0.0
  %3911 = vmatprep.mubr.f32.mxu0 0.0
  %3912 = vmatmul.mubr.f32.gmra.mxu0 %v3843
  %v3913 = vpop.f32.mrf.mxu0
  %v3914 = vadd.f32 0.0, %v3913
  %v3915 = vpop.f32.mrf.mxu0
  %3916 = vdwg.mxu0
  %3917 = vrot.lane.b32.xlu0 %v3836, 96
  %v3918 = vpop.permute.xlu0 %3917
  %v3919 = vsel %vm137, %v3836, 0
  %v3921 = vsel %vm137, %v3918, 0
  %3923 = vmatprep.subr.mxu0 0.0
  %3924 = vmatpush1.xpose.msra.mxu0 0.0
  %3925 = vmatprep.subr.mxu0 0.0
  %3926 = vmatpush1.xpose.msra.mxu0 0.0
  %3927 = vmatprep.subr.mxu0 0.0
  %3928 = vmatpush1.xpose.msra.mxu0 0.0
  %3929 = vmatprep.subr.mxu0 0.0
  %3930 = vmatpush1.xpose.msra.mxu0 0.0
  %3931 = vmatprep.subr.mxu0 0.0
  %3932 = vmatpush1.xpose.msra.mxu0 0.0
  %3933 = vmatprep.subr.mxu0 0.0
  %3934 = vmatpush1.xpose.msra.mxu0 0.0
  %3935 = vmatprep.subr.mxu0 0.0
  %3936 = vmatpush1.xpose.msra.mxu0 0.0
  %3937 = vmatprep.subr.mxu0 0.0
  %3938 = vmatpush1.xpose.msra.mxu0 0.0
  %3939 = vmatprep.subr.mxu0 0.0
  %3940 = vmatpush1.xpose.msra.mxu0 0.0
  %3941 = vmatprep.subr.mxu0 0.0
  %3942 = vmatpush1.xpose.msra.mxu0 0.0
  %3943 = vmatprep.subr.mxu0 0.0
  %3944 = vmatpush1.xpose.msra.mxu0 0.0
  %3945 = vmatprep.subr.mxu0 0.0
  %3946 = vmatpush1.xpose.msra.mxu0 0.0
  %3947 = vmatprep.subr.mxu0 0.0
  %3948 = vmatpush1.xpose.msra.mxu0 0.0
  %3949 = vmatprep.subr.mxu0 0.0
  %3950 = vmatpush1.xpose.msra.mxu0 0.0
  %3951 = vmatprep.subr.mxu0 0.0
  %3952 = vmatpush1.xpose.msra.mxu0 0.0
  %3953 = vmatprep.subr.mxu0 0.0
  %3954 = vmatpush1.xpose.msra.mxu0 %v3921
  %3955 = vmatprep.subr.mxu0 0.0
  %3956 = vmatpush2.xpose.msra.mxu0 0.0
  %3957 = vmatprep.subr.mxu0 0.0
  %3958 = vmatpush2.xpose.msra.mxu0 0.0
  %3959 = vmatprep.subr.mxu0 0.0
  %3960 = vmatpush2.xpose.msra.mxu0 0.0
  %3961 = vmatprep.subr.mxu0 0.0
  %3962 = vmatpush2.xpose.msra.mxu0 0.0
  %3963 = vmatprep.subr.mxu0 0.0
  %3964 = vmatpush2.xpose.msra.mxu0 0.0
  %3965 = vmatprep.subr.mxu0 0.0
  %3966 = vmatpush2.xpose.msra.mxu0 0.0
  %3967 = vmatprep.subr.mxu0 0.0
  %3968 = vmatpush2.xpose.msra.mxu0 0.0
  %3969 = vmatprep.subr.mxu0 0.0
  %3970 = vmatpush2.xpose.msra.mxu0 0.0
  %3971 = vmatprep.subr.mxu0 0.0
  %3972 = vmatpush2.xpose.msra.mxu0 0.0
  %3973 = vmatprep.subr.mxu0 0.0
  %3974 = vmatpush2.xpose.msra.mxu0 0.0
  %3975 = vmatprep.subr.mxu0 0.0
  %3976 = vmatpush2.xpose.msra.mxu0 0.0
  %3977 = vmatprep.subr.mxu0 0.0
  %3978 = vmatpush2.xpose.msra.mxu0 0.0
  %3979 = vmatprep.subr.mxu0 0.0
  %3980 = vmatpush2.xpose.msra.mxu0 0.0
  %3981 = vmatprep.subr.mxu0 0.0
  %3982 = vmatpush2.xpose.msra.mxu0 0.0
  %3983 = vmatprep.subr.mxu0 0.0
  %3984 = vmatpush2.xpose.msra.mxu0 0.0
  %3985 = vmatprep.subr.mxu0 0.0
  %3986 = vmatpush2.xpose.msra.mxu0 0.0
  %3987 = vmatprep.mubr.f32.mxu0 0.0
  %3988 = vmatmul.mubr.f32.gmra.mxu0 %v3919
  %v3989 = vpop.f32.mrf.mxu0
  %v3990 = vadd.f32 0.0, %v3989
  %v3991 = vpop.f32.mrf.mxu0
  %3992 = vdwg.mxu0
  %3993 = vrot.lane.b32.xlu0 %v3838, 96
  %v3994 = vpop.permute.xlu0 %3993
  %v3995 = vsel %vm137, %v3838, 0
  %v3997 = vsel %vm137, %v3994, 0
  %3999 = vmatprep.subr.mxu0 0.0
  %4000 = vmatpush1.xpose.msra.mxu0 0.0
  %4001 = vmatprep.subr.mxu0 0.0
  %4002 = vmatpush1.xpose.msra.mxu0 0.0
  %4003 = vmatprep.subr.mxu0 0.0
  %4004 = vmatpush1.xpose.msra.mxu0 0.0
  %4005 = vmatprep.subr.mxu0 0.0
  %4006 = vmatpush1.xpose.msra.mxu0 0.0
  %4007 = vmatprep.subr.mxu0 0.0
  %4008 = vmatpush1.xpose.msra.mxu0 0.0
  %4009 = vmatprep.subr.mxu0 0.0
  %4010 = vmatpush1.xpose.msra.mxu0 0.0
  %4011 = vmatprep.subr.mxu0 0.0
  %4012 = vmatpush1.xpose.msra.mxu0 0.0
  %4013 = vmatprep.subr.mxu0 0.0
  %4014 = vmatpush1.xpose.msra.mxu0 0.0
  %4015 = vmatprep.subr.mxu0 0.0
  %4016 = vmatpush1.xpose.msra.mxu0 0.0
  %4017 = vmatprep.subr.mxu0 0.0
  %4018 = vmatpush1.xpose.msra.mxu0 0.0
  %4019 = vmatprep.subr.mxu0 0.0
  %4020 = vmatpush1.xpose.msra.mxu0 0.0
  %4021 = vmatprep.subr.mxu0 0.0
  %4022 = vmatpush1.xpose.msra.mxu0 0.0
  %4023 = vmatprep.subr.mxu0 0.0
  %4024 = vmatpush1.xpose.msra.mxu0 0.0
  %4025 = vmatprep.subr.mxu0 0.0
  %4026 = vmatpush1.xpose.msra.mxu0 0.0
  %4027 = vmatprep.subr.mxu0 0.0
  %4028 = vmatpush1.xpose.msra.mxu0 0.0
  %4029 = vmatprep.subr.mxu0 0.0
  %4030 = vmatpush1.xpose.msra.mxu0 %v3997
  %4031 = vmatprep.subr.mxu0 0.0
  %4032 = vmatpush2.xpose.msra.mxu0 0.0
  %4033 = vmatprep.subr.mxu0 0.0
  %4034 = vmatpush2.xpose.msra.mxu0 0.0
  %4035 = vmatprep.subr.mxu0 0.0
  %4036 = vmatpush2.xpose.msra.mxu0 0.0
  %4037 = vmatprep.subr.mxu0 0.0
  %4038 = vmatpush2.xpose.msra.mxu0 0.0
  %4039 = vmatprep.subr.mxu0 0.0
  %4040 = vmatpush2.xpose.msra.mxu0 0.0
  %4041 = vmatprep.subr.mxu0 0.0
  %4042 = vmatpush2.xpose.msra.mxu0 0.0
  %4043 = vmatprep.subr.mxu0 0.0
  %4044 = vmatpush2.xpose.msra.mxu0 0.0
  %4045 = vmatprep.subr.mxu0 0.0
  %4046 = vmatpush2.xpose.msra.mxu0 0.0
  %4047 = vmatprep.subr.mxu0 0.0
  %4048 = vmatpush2.xpose.msra.mxu0 0.0
  %4049 = vmatprep.subr.mxu0 0.0
  %4050 = vmatpush2.xpose.msra.mxu0 0.0
  %4051 = vmatprep.subr.mxu0 0.0
  %4052 = vmatpush2.xpose.msra.mxu0 0.0
  %4053 = vmatprep.subr.mxu0 0.0
  %4054 = vmatpush2.xpose.msra.mxu0 0.0
  %4055 = vmatprep.subr.mxu0 0.0
  %4056 = vmatpush2.xpose.msra.mxu0 0.0
  %4057 = vmatprep.subr.mxu0 0.0
  %4058 = vmatpush2.xpose.msra.mxu0 0.0
  %4059 = vmatprep.subr.mxu0 0.0
  %4060 = vmatpush2.xpose.msra.mxu0 0.0
  %4061 = vmatprep.subr.mxu0 0.0
  %4062 = vmatpush2.xpose.msra.mxu0 0.0
  %4063 = vmatprep.mubr.f32.mxu0 0.0
  %4064 = vmatmul.mubr.f32.gmra.mxu0 %v3995
  %v4065 = vpop.f32.mrf.mxu0
  %v4066 = vadd.f32 0.0, %v4065
  %v4067 = vpop.f32.mrf.mxu0
  %4068 = vdwg.mxu0
  %4069 = vrot.lane.b32.xlu0 %v3840, 96
  %v4070 = vpop.permute.xlu0 %4069
  %v4071 = vsel %vm137, %v3840, 0
  %v4073 = vsel %vm137, %v4070, 0
  %4075 = vmatprep.subr.mxu0 0.0
  %4076 = vmatpush1.xpose.msra.mxu0 0.0
  %4077 = vmatprep.subr.mxu0 0.0
  %4078 = vmatpush1.xpose.msra.mxu0 0.0
  %4079 = vmatprep.subr.mxu0 0.0
  %4080 = vmatpush1.xpose.msra.mxu0 0.0
  %4081 = vmatprep.subr.mxu0 0.0
  %4082 = vmatpush1.xpose.msra.mxu0 0.0
  %4083 = vmatprep.subr.mxu0 0.0
  %4084 = vmatpush1.xpose.msra.mxu0 0.0
  %4085 = vmatprep.subr.mxu0 0.0
  %4086 = vmatpush1.xpose.msra.mxu0 0.0
  %4087 = vmatprep.subr.mxu0 0.0
  %4088 = vmatpush1.xpose.msra.mxu0 0.0
  %4089 = vmatprep.subr.mxu0 0.0
  %4090 = vmatpush1.xpose.msra.mxu0 0.0
  %4091 = vmatprep.subr.mxu0 0.0
  %4092 = vmatpush1.xpose.msra.mxu0 0.0
  %4093 = vmatprep.subr.mxu0 0.0
  %4094 = vmatpush1.xpose.msra.mxu0 0.0
  %4095 = vmatprep.subr.mxu0 0.0
  %4096 = vmatpush1.xpose.msra.mxu0 0.0
  %4097 = vmatprep.subr.mxu0 0.0
  %4098 = vmatpush1.xpose.msra.mxu0 0.0
  %4099 = vmatprep.subr.mxu0 0.0
  %4100 = vmatpush1.xpose.msra.mxu0 0.0
  %4101 = vmatprep.subr.mxu0 0.0
  %4102 = vmatpush1.xpose.msra.mxu0 0.0
  %4103 = vmatprep.subr.mxu0 0.0
  %4104 = vmatpush1.xpose.msra.mxu0 0.0
  %4105 = vmatprep.subr.mxu0 0.0
  %4106 = vmatpush1.xpose.msra.mxu0 %v4073
  %4107 = vmatprep.subr.mxu0 0.0
  %4108 = vmatpush2.xpose.msra.mxu0 0.0
  %4109 = vmatprep.subr.mxu0 0.0
  %4110 = vmatpush2.xpose.msra.mxu0 0.0
  %4111 = vmatprep.subr.mxu0 0.0
  %4112 = vmatpush2.xpose.msra.mxu0 0.0
  %4113 = vmatprep.subr.mxu0 0.0
  %4114 = vmatpush2.xpose.msra.mxu0 0.0
  %4115 = vmatprep.subr.mxu0 0.0
  %4116 = vmatpush2.xpose.msra.mxu0 0.0
  %4117 = vmatprep.subr.mxu0 0.0
  %4118 = vmatpush2.xpose.msra.mxu0 0.0
  %4119 = vmatprep.subr.mxu0 0.0
  %4120 = vmatpush2.xpose.msra.mxu0 0.0
  %4121 = vmatprep.subr.mxu0 0.0
  %4122 = vmatpush2.xpose.msra.mxu0 0.0
  %4123 = vmatprep.subr.mxu0 0.0
  %4124 = vmatpush2.xpose.msra.mxu0 0.0
  %4125 = vmatprep.subr.mxu0 0.0
  %4126 = vmatpush2.xpose.msra.mxu0 0.0
  %4127 = vmatprep.subr.mxu0 0.0
  %4128 = vmatpush2.xpose.msra.mxu0 0.0
  %4129 = vmatprep.subr.mxu0 0.0
  %4130 = vmatpush2.xpose.msra.mxu0 0.0
  %4131 = vmatprep.subr.mxu0 0.0
  %4132 = vmatpush2.xpose.msra.mxu0 0.0
  %4133 = vmatprep.subr.mxu0 0.0
  %4134 = vmatpush2.xpose.msra.mxu0 0.0
  %4135 = vmatprep.subr.mxu0 0.0
  %4136 = vmatpush2.xpose.msra.mxu0 0.0
  %4137 = vmatprep.subr.mxu0 0.0
  %4138 = vmatpush2.xpose.msra.mxu0 0.0
  %4139 = vmatprep.mubr.f32.mxu0 0.0
  %4140 = vmatmul.mubr.f32.gmra.mxu0 %v4071
  %v4141 = vpop.f32.mrf.mxu0
  %v4142 = vadd.f32 0.0, %v4141
  %v4143 = vpop.f32.mrf.mxu0
  %4144 = vdwg.mxu0
  %v4145 = vmul.f32 %v3914, 0.35355338
  %v4146 = vmul.f32 %v3990, 0.35355338
  %v4147 = vmul.f32 %v4066, 0.35355338
  %v4148 = vmul.f32 %v4142, 0.35355338
  %v4149 = vsel %vm137, %v4145, -inf
  %4150 = vmax.xlane.f32.xlu0 %v4149
  %v4151 = vpop.xlane.xlu0 %4150
  %v4152 = vsel %vm137, %v4146, -inf
  %4153 = vmax.xlane.f32.xlu0 %v4152
  %v4154 = vpop.xlane.xlu0 %4153
  %v4155 = vsel %vm137, %v4147, -inf
  %4156 = vmax.xlane.f32.xlu0 %v4155
  %v4157 = vpop.xlane.xlu0 %4156
  %v4158 = vsel %vm137, %v4148, -inf
  %4159 = vmax.xlane.f32.xlu0 %v4158
  %v4160 = vpop.xlane.xlu0 %4159
  %v4161 = vsub.f32 %v4145, %v4151
  %v4162 = vsub.f32 %v4146, %v4154
  %v4163 = vsub.f32 %v4147, %v4157
  %v4164 = vsub.f32 %v4148, %v4160
  %v4165 = vmul.f32 %v4161, 1.442695
  %v4166 = vpow.pop %v4165
  %v4167 = vmul.f32 %v4162, 1.442695
  %v4168 = vpow.pop %v4167
  %v4169 = vmul.f32 %v4163, 1.442695
  %v4170 = vpow.pop %v4169
  %v4171 = vmul.f32 %v4164, 1.442695
  %v4172 = vpow.pop %v4171
  %v4173 = vsel %vm137, %v4166, 0.0
  %4174 = vadd.xlane.f32.xlu0 %v4173
  %v4175 = vpop.xlane.xlu0 %4174
  %v4176 = vsel %vm137, %v4168, 0.0
  %4177 = vadd.xlane.f32.xlu0 %v4176
  %v4178 = vpop.xlane.xlu0 %4177
  %v4179 = vsel %vm137, %v4170, 0.0
  %4180 = vadd.xlane.f32.xlu0 %v4179
  %v4181 = vpop.xlane.xlu0 %4180
  %v4182 = vsel %vm137, %v4172, 0.0
  %4183 = vadd.xlane.f32.xlu0 %v4182
  %v4184 = vpop.xlane.xlu0 %4183
  %v4185 = vrcp.pop %v4175
  %v4186 = vmul.f32 %v4166, %v4185
  %v4187 = vrcp.pop %v4178
  %v4188 = vmul.f32 %v4168, %v4187
  %v4189 = vrcp.pop %v4181
  %v4190 = vmul.f32 %v4170, %v4189
  %v4191 = vrcp.pop %v4184
  %v4192 = vmul.f32 %v4172, %v4191
  %4193 = vrot.lane.b32.xlu0 %v3831, 64
  %v4194 = vpop.permute.xlu0 %4193
  %v4197 = vsel %vm137, %v4186, 0
  %4199 = vmatprep.subr.mxu0 0.0
  %4200 = vmatpush1.msra.mxu0 0.0
  %4201 = vmatprep.subr.mxu0 0.0
  %4202 = vmatpush1.msra.mxu0 0.0
  %4203 = vmatprep.subr.mxu0 0.0
  %4204 = vmatpush1.msra.mxu0 0.0
  %4205 = vmatprep.subr.mxu0 0.0
  %4206 = vmatpush1.msra.mxu0 0.0
  %4207 = vmatprep.subr.mxu0 0.0
  %4208 = vmatpush1.msra.mxu0 0.0
  %4209 = vmatprep.subr.mxu0 0.0
  %4210 = vmatpush1.msra.mxu0 0.0
  %4211 = vmatprep.subr.mxu0 0.0
  %4212 = vmatpush1.msra.mxu0 0.0
  %4213 = vmatprep.subr.mxu0 0.0
  %4214 = vmatpush1.msra.mxu0 0.0
  %4215 = vmatprep.subr.mxu0 0.0
  %4216 = vmatpush1.msra.mxu0 0.0
  %4217 = vmatprep.subr.mxu0 0.0
  %4218 = vmatpush1.msra.mxu0 0.0
  %4219 = vmatprep.subr.mxu0 0.0
  %4220 = vmatpush1.msra.mxu0 0.0
  %4221 = vmatprep.subr.mxu0 0.0
  %4222 = vmatpush1.msra.mxu0 0.0
  %4223 = vmatprep.subr.mxu0 0.0
  %4224 = vmatpush1.msra.mxu0 0.0
  %4225 = vmatprep.subr.mxu0 0.0
  %4226 = vmatpush1.msra.mxu0 0.0
  %4227 = vmatprep.subr.mxu0 0.0
  %4228 = vmatpush1.msra.mxu0 0.0
  %4229 = vmatprep.subr.mxu0 0.0
  %4230 = vmatpush1.msra.mxu0 %v4194
  %4231 = vmatprep.subr.mxu0 0.0
  %4232 = vmatpush2.msra.mxu0 0.0
  %4233 = vmatprep.subr.mxu0 0.0
  %4234 = vmatpush2.msra.mxu0 0.0
  %4235 = vmatprep.subr.mxu0 0.0
  %4236 = vmatpush2.msra.mxu0 0.0
  %4237 = vmatprep.subr.mxu0 0.0
  %4238 = vmatpush2.msra.mxu0 0.0
  %4239 = vmatprep.subr.mxu0 0.0
  %4240 = vmatpush2.msra.mxu0 0.0
  %4241 = vmatprep.subr.mxu0 0.0
  %4242 = vmatpush2.msra.mxu0 0.0
  %4243 = vmatprep.subr.mxu0 0.0
  %4244 = vmatpush2.msra.mxu0 0.0
  %4245 = vmatprep.subr.mxu0 0.0
  %4246 = vmatpush2.msra.mxu0 0.0
  %4247 = vmatprep.subr.mxu0 0.0
  %4248 = vmatpush2.msra.mxu0 0.0
  %4249 = vmatprep.subr.mxu0 0.0
  %4250 = vmatpush2.msra.mxu0 0.0
  %4251 = vmatprep.subr.mxu0 0.0
  %4252 = vmatpush2.msra.mxu0 0.0
  %4253 = vmatprep.subr.mxu0 0.0
  %4254 = vmatpush2.msra.mxu0 0.0
  %4255 = vmatprep.subr.mxu0 0.0
  %4256 = vmatpush2.msra.mxu0 0.0
  %4257 = vmatprep.subr.mxu0 0.0
  %4258 = vmatpush2.msra.mxu0 0.0
  %4259 = vmatprep.subr.mxu0 0.0
  %4260 = vmatpush2.msra.mxu0 0.0
  %4261 = vmatprep.subr.mxu0 0.0
  %4262 = vmatpush2.msra.mxu0 0.0
  %4263 = vmatprep.mubr.f32.mxu0 0.0
  %4264 = vmatmul.mubr.f32.gmra.mxu0 %v4197
  %v4265 = vpop.f32.mrf.mxu0
  %v4266 = vadd.f32 0.0, %v4265
  %v4267 = vpop.f32.mrf.mxu0
  %4268 = vdwg.mxu0
  %4269 = vrot.lane.b32.xlu0 %v3836, 64
  %v4270 = vpop.permute.xlu0 %4269
  %v4273 = vsel %vm137, %v4188, 0
  %4275 = vmatprep.subr.mxu0 0.0
  %4276 = vmatpush1.msra.mxu0 0.0
  %4277 = vmatprep.subr.mxu0 0.0
  %4278 = vmatpush1.msra.mxu0 0.0
  %4279 = vmatprep.subr.mxu0 0.0
  %4280 = vmatpush1.msra.mxu0 0.0
  %4281 = vmatprep.subr.mxu0 0.0
  %4282 = vmatpush1.msra.mxu0 0.0
  %4283 = vmatprep.subr.mxu0 0.0
  %4284 = vmatpush1.msra.mxu0 0.0
  %4285 = vmatprep.subr.mxu0 0.0
  %4286 = vmatpush1.msra.mxu0 0.0
  %4287 = vmatprep.subr.mxu0 0.0
  %4288 = vmatpush1.msra.mxu0 0.0
  %4289 = vmatprep.subr.mxu0 0.0
  %4290 = vmatpush1.msra.mxu0 0.0
  %4291 = vmatprep.subr.mxu0 0.0
  %4292 = vmatpush1.msra.mxu0 0.0
  %4293 = vmatprep.subr.mxu0 0.0
  %4294 = vmatpush1.msra.mxu0 0.0
  %4295 = vmatprep.subr.mxu0 0.0
  %4296 = vmatpush1.msra.mxu0 0.0
  %4297 = vmatprep.subr.mxu0 0.0
  %4298 = vmatpush1.msra.mxu0 0.0
  %4299 = vmatprep.subr.mxu0 0.0
  %4300 = vmatpush1.msra.mxu0 0.0
  %4301 = vmatprep.subr.mxu0 0.0
  %4302 = vmatpush1.msra.mxu0 0.0
  %4303 = vmatprep.subr.mxu0 0.0
  %4304 = vmatpush1.msra.mxu0 0.0
  %4305 = vmatprep.subr.mxu0 0.0
  %4306 = vmatpush1.msra.mxu0 %v4270
  %4307 = vmatprep.subr.mxu0 0.0
  %4308 = vmatpush2.msra.mxu0 0.0
  %4309 = vmatprep.subr.mxu0 0.0
  %4310 = vmatpush2.msra.mxu0 0.0
  %4311 = vmatprep.subr.mxu0 0.0
  %4312 = vmatpush2.msra.mxu0 0.0
  %4313 = vmatprep.subr.mxu0 0.0
  %4314 = vmatpush2.msra.mxu0 0.0
  %4315 = vmatprep.subr.mxu0 0.0
  %4316 = vmatpush2.msra.mxu0 0.0
  %4317 = vmatprep.subr.mxu0 0.0
  %4318 = vmatpush2.msra.mxu0 0.0
  %4319 = vmatprep.subr.mxu0 0.0
  %4320 = vmatpush2.msra.mxu0 0.0
  %4321 = vmatprep.subr.mxu0 0.0
  %4322 = vmatpush2.msra.mxu0 0.0
  %4323 = vmatprep.subr.mxu0 0.0
  %4324 = vmatpush2.msra.mxu0 0.0
  %4325 = vmatprep.subr.mxu0 0.0
  %4326 = vmatpush2.msra.mxu0 0.0
  %4327 = vmatprep.subr.mxu0 0.0
  %4328 = vmatpush2.msra.mxu0 0.0
  %4329 = vmatprep.subr.mxu0 0.0
  %4330 = vmatpush2.msra.mxu0 0.0
  %4331 = vmatprep.subr.mxu0 0.0
  %4332 = vmatpush2.msra.mxu0 0.0
  %4333 = vmatprep.subr.mxu0 0.0
  %4334 = vmatpush2.msra.mxu0 0.0
  %4335 = vmatprep.subr.mxu0 0.0
  %4336 = vmatpush2.msra.mxu0 0.0
  %4337 = vmatprep.subr.mxu0 0.0
  %4338 = vmatpush2.msra.mxu0 0.0
  %4339 = vmatprep.mubr.f32.mxu0 0.0
  %4340 = vmatmul.mubr.f32.gmra.mxu0 %v4273
  %v4341 = vpop.f32.mrf.mxu0
  %v4342 = vadd.f32 0.0, %v4341
  %v4343 = vpop.f32.mrf.mxu0
  %4344 = vdwg.mxu0
  %4345 = vrot.lane.b32.xlu0 %v3838, 64
  %v4346 = vpop.permute.xlu0 %4345
  %v4349 = vsel %vm137, %v4190, 0
  %4351 = vmatprep.subr.mxu0 0.0
  %4352 = vmatpush1.msra.mxu0 0.0
  %4353 = vmatprep.subr.mxu0 0.0
  %4354 = vmatpush1.msra.mxu0 0.0
  %4355 = vmatprep.subr.mxu0 0.0
  %4356 = vmatpush1.msra.mxu0 0.0
  %4357 = vmatprep.subr.mxu0 0.0
  %4358 = vmatpush1.msra.mxu0 0.0
  %4359 = vmatprep.subr.mxu0 0.0
  %4360 = vmatpush1.msra.mxu0 0.0
  %4361 = vmatprep.subr.mxu0 0.0
  %4362 = vmatpush1.msra.mxu0 0.0
  %4363 = vmatprep.subr.mxu0 0.0
  %4364 = vmatpush1.msra.mxu0 0.0
  %4365 = vmatprep.subr.mxu0 0.0
  %4366 = vmatpush1.msra.mxu0 0.0
  %4367 = vmatprep.subr.mxu0 0.0
  %4368 = vmatpush1.msra.mxu0 0.0
  %4369 = vmatprep.subr.mxu0 0.0
  %4370 = vmatpush1.msra.mxu0 0.0
  %4371 = vmatprep.subr.mxu0 0.0
  %4372 = vmatpush1.msra.mxu0 0.0
  %4373 = vmatprep.subr.mxu0 0.0
  %4374 = vmatpush1.msra.mxu0 0.0
  %4375 = vmatprep.subr.mxu0 0.0
  %4376 = vmatpush1.msra.mxu0 0.0
  %4377 = vmatprep.subr.mxu0 0.0
  %4378 = vmatpush1.msra.mxu0 0.0
  %4379 = vmatprep.subr.mxu0 0.0
  %4380 = vmatpush1.msra.mxu0 0.0
  %4381 = vmatprep.subr.mxu0 0.0
  %4382 = vmatpush1.msra.mxu0 %v4346
  %4383 = vmatprep.subr.mxu0 0.0
  %4384 = vmatpush2.msra.mxu0 0.0
  %4385 = vmatprep.subr.mxu0 0.0
  %4386 = vmatpush2.msra.mxu0 0.0
  %4387 = vmatprep.subr.mxu0 0.0
  %4388 = vmatpush2.msra.mxu0 0.0
  %4389 = vmatprep.subr.mxu0 0.0
  %4390 = vmatpush2.msra.mxu0 0.0
  %4391 = vmatprep.subr.mxu0 0.0
  %4392 = vmatpush2.msra.mxu0 0.0
  %4393 = vmatprep.subr.mxu0 0.0
  %4394 = vmatpush2.msra.mxu0 0.0
  %4395 = vmatprep.subr.mxu0 0.0
  %4396 = vmatpush2.msra.mxu0 0.0
  %4397 = vmatprep.subr.mxu0 0.0
  %4398 = vmatpush2.msra.mxu0 0.0
  %4399 = vmatprep.subr.mxu0 0.0
  %4400 = vmatpush2.msra.mxu0 0.0
  %4401 = vmatprep.subr.mxu0 0.0
  %4402 = vmatpush2.msra.mxu0 0.0
  %4403 = vmatprep.subr.mxu0 0.0
  %4404 = vmatpush2.msra.mxu0 0.0
  %4405 = vmatprep.subr.mxu0 0.0
  %4406 = vmatpush2.msra.mxu0 0.0
  %4407 = vmatprep.subr.mxu0 0.0
  %4408 = vmatpush2.msra.mxu0 0.0
  %4409 = vmatprep.subr.mxu0 0.0
  %4410 = vmatpush2.msra.mxu0 0.0
  %4411 = vmatprep.subr.mxu0 0.0
  %4412 = vmatpush2.msra.mxu0 0.0
  %4413 = vmatprep.subr.mxu0 0.0
  %4414 = vmatpush2.msra.mxu0 0.0
  %4415 = vmatprep.mubr.f32.mxu0 0.0
  %4416 = vmatmul.mubr.f32.gmra.mxu0 %v4349
  %v4417 = vpop.f32.mrf.mxu0
  %v4418 = vadd.f32 0.0, %v4417
  %v4419 = vpop.f32.mrf.mxu0
  %4420 = vdwg.mxu0
  %4421 = vrot.lane.b32.xlu0 %v3840, 64
  %v4422 = vpop.permute.xlu0 %4421
  %v4425 = vsel %vm137, %v4192, 0
  %4427 = vmatprep.subr.mxu0 0.0
  %4428 = vmatpush1.msra.mxu0 0.0
  %4429 = vmatprep.subr.mxu0 0.0
  %4430 = vmatpush1.msra.mxu0 0.0
  %4431 = vmatprep.subr.mxu0 0.0
  %4432 = vmatpush1.msra.mxu0 0.0
  %4433 = vmatprep.subr.mxu0 0.0
  %4434 = vmatpush1.msra.mxu0 0.0
  %4435 = vmatprep.subr.mxu0 0.0
  %4436 = vmatpush1.msra.mxu0 0.0
  %4437 = vmatprep.subr.mxu0 0.0
  %4438 = vmatpush1.msra.mxu0 0.0
  %4439 = vmatprep.subr.mxu0 0.0
  %4440 = vmatpush1.msra.mxu0 0.0
  %4441 = vmatprep.subr.mxu0 0.0
  %4442 = vmatpush1.msra.mxu0 0.0
  %4443 = vmatprep.subr.mxu0 0.0
  %4444 = vmatpush1.msra.mxu0 0.0
  %4445 = vmatprep.subr.mxu0 0.0
  %4446 = vmatpush1.msra.mxu0 0.0
  %4447 = vmatprep.subr.mxu0 0.0
  %4448 = vmatpush1.msra.mxu0 0.0
  %4449 = vmatprep.subr.mxu0 0.0
  %4450 = vmatpush1.msra.mxu0 0.0
  %4451 = vmatprep.subr.mxu0 0.0
  %4452 = vmatpush1.msra.mxu0 0.0
  %4453 = vmatprep.subr.mxu0 0.0
  %4454 = vmatpush1.msra.mxu0 0.0
  %4455 = vmatprep.subr.mxu0 0.0
  %4456 = vmatpush1.msra.mxu0 0.0
  %4457 = vmatprep.subr.mxu0 0.0
  %4458 = vmatpush1.msra.mxu0 %v4422
  %4459 = vmatprep.subr.mxu0 0.0
  %4460 = vmatpush2.msra.mxu0 0.0
  %4461 = vmatprep.subr.mxu0 0.0
  %4462 = vmatpush2.msra.mxu0 0.0
  %4463 = vmatprep.subr.mxu0 0.0
  %4464 = vmatpush2.msra.mxu0 0.0
  %4465 = vmatprep.subr.mxu0 0.0
  %4466 = vmatpush2.msra.mxu0 0.0
  %4467 = vmatprep.subr.mxu0 0.0
  %4468 = vmatpush2.msra.mxu0 0.0
  %4469 = vmatprep.subr.mxu0 0.0
  %4470 = vmatpush2.msra.mxu0 0.0
  %4471 = vmatprep.subr.mxu0 0.0
  %4472 = vmatpush2.msra.mxu0 0.0
  %4473 = vmatprep.subr.mxu0 0.0
  %4474 = vmatpush2.msra.mxu0 0.0
  %4475 = vmatprep.subr.mxu0 0.0
  %4476 = vmatpush2.msra.mxu0 0.0
  %4477 = vmatprep.subr.mxu0 0.0
  %4478 = vmatpush2.msra.mxu0 0.0
  %4479 = vmatprep.subr.mxu0 0.0
  %4480 = vmatpush2.msra.mxu0 0.0
  %4481 = vmatprep.subr.mxu0 0.0
  %4482 = vmatpush2.msra.mxu0 0.0
  %4483 = vmatprep.subr.mxu0 0.0
  %4484 = vmatpush2.msra.mxu0 0.0
  %4485 = vmatprep.subr.mxu0 0.0
  %4486 = vmatpush2.msra.mxu0 0.0
  %4487 = vmatprep.subr.mxu0 0.0
  %4488 = vmatpush2.msra.mxu0 0.0
  %4489 = vmatprep.subr.mxu0 0.0
  %4490 = vmatpush2.msra.mxu0 0.0
  %4491 = vmatprep.mubr.f32.mxu0 0.0
  %4492 = vmatmul.mubr.f32.gmra.mxu0 %v4425
  %v4493 = vpop.f32.mrf.mxu0
  %v4494 = vadd.f32 0.0, %v4493
  %v4495 = vpop.f32.mrf.mxu0
  %4496 = vdwg.mxu0
  %4498 = vrot.lane.b32.xlu0 %v4342, 8
  %v4499 = vpop.permute.xlu0 %4498
  %4502 = vrot.lane.b32.xlu0 %v4418, 16
  %v4503 = vpop.permute.xlu0 %4502
  %4506 = vrot.lane.b32.xlu0 %v4494, 24
  %v4507 = vpop.permute.xlu0 %4506
  %v4509 = vsel %vm137, %v4266, %v4499
  %v4510 = vsel %vm1474, %v4509, %v4503
  %v4511 = vsel %vm1477, %v4510, %v4507
  %v4512 = vld [vmem:[%s3 + $0x110] sm:$0xff]
  %v4513 = vld [vmem:[%s3 + $0x230] sm:$0xff]
  %v4514 = vld [vmem:[%s3 + $0x350] sm:$0xff]
  %v4515 = vld [vmem:[%s3 + $0x470] sm:$0xff]
  %v4516 = vld [vmem:[%s5 + $0x23] sm:$0x1]
  %v4518 = vlaneseq
  %v4519 = vshrl.u32 %v4518, 7
  %v4520 = vsub.s32 0, %v4519
  %v4521 = vrot.slane %v4516, %v4520
  %4526 = vrot.lane.b32.xlu0 %v4512, 94
  %v4527 = vpop.permute.xlu0 %4526
  %4528 = vrot.lane.b32.xlu0 %v4513, 94
  %v4529 = vpop.permute.xlu0 %4528
  %4530 = vrot.lane.b32.xlu0 %v4514, 94
  %v4531 = vpop.permute.xlu0 %4530
  %4532 = vrot.lane.b32.xlu0 %v4515, 94
  %v4533 = vpop.permute.xlu0 %4532
  %4538 = vrot.lane.b32.xlu0 %v4521, 62
  %v4539 = vpop.permute.xlu0 %4538
  %v4542 = vsel %vm39, %v4511, 0
  %4544 = vmatprep.subr.mxu0 0.0
  %4545 = vmatpush1.msra.mxu0 0.0
  %4546 = vmatprep.subr.mxu0 0.0
  %4547 = vmatpush1.msra.mxu0 0.0
  %4548 = vmatprep.subr.mxu0 0.0
  %4549 = vmatpush1.msra.mxu0 0.0
  %4550 = vmatprep.subr.mxu0 0.0
  %4551 = vmatpush1.msra.mxu0 0.0
  %4552 = vmatprep.subr.mxu0 0.0
  %4553 = vmatpush1.msra.mxu0 0.0
  %4554 = vmatprep.subr.mxu0 0.0
  %4555 = vmatpush1.msra.mxu0 0.0
  %4556 = vmatprep.subr.mxu0 0.0
  %4557 = vmatpush1.msra.mxu0 0.0
  %4558 = vmatprep.subr.mxu0 0.0
  %4559 = vmatpush1.msra.mxu0 0.0
  %4560 = vmatprep.subr.mxu0 0.0
  %4561 = vmatpush1.msra.mxu0 0.0
  %4562 = vmatprep.subr.mxu0 0.0
  %4563 = vmatpush1.msra.mxu0 0.0
  %4564 = vmatprep.subr.mxu0 0.0
  %4565 = vmatpush1.msra.mxu0 0.0
  %4566 = vmatprep.subr.mxu0 0.0
  %4567 = vmatpush1.msra.mxu0 0.0
  %4568 = vmatprep.subr.mxu0 0.0
  %4569 = vmatpush1.msra.mxu0 %v4533
  %4570 = vmatprep.subr.mxu0 0.0
  %4571 = vmatpush1.msra.mxu0 %v4531
  %4572 = vmatprep.subr.mxu0 0.0
  %4573 = vmatpush1.msra.mxu0 %v4529
  %4574 = vmatprep.subr.mxu0 0.0
  %4575 = vmatpush1.msra.mxu0 %v4527
  %4576 = vmatprep.subr.mxu0 0.0
  %4577 = vmatpush2.msra.mxu0 0.0
  %4578 = vmatprep.subr.mxu0 0.0
  %4579 = vmatpush2.msra.mxu0 0.0
  %4580 = vmatprep.subr.mxu0 0.0
  %4581 = vmatpush2.msra.mxu0 0.0
  %4582 = vmatprep.subr.mxu0 0.0
  %4583 = vmatpush2.msra.mxu0 0.0
  %4584 = vmatprep.subr.mxu0 0.0
  %4585 = vmatpush2.msra.mxu0 0.0
  %4586 = vmatprep.subr.mxu0 0.0
  %4587 = vmatpush2.msra.mxu0 0.0
  %4588 = vmatprep.subr.mxu0 0.0
  %4589 = vmatpush2.msra.mxu0 0.0
  %4590 = vmatprep.subr.mxu0 0.0
  %4591 = vmatpush2.msra.mxu0 0.0
  %4592 = vmatprep.subr.mxu0 0.0
  %4593 = vmatpush2.msra.mxu0 0.0
  %4594 = vmatprep.subr.mxu0 0.0
  %4595 = vmatpush2.msra.mxu0 0.0
  %4596 = vmatprep.subr.mxu0 0.0
  %4597 = vmatpush2.msra.mxu0 0.0
  %4598 = vmatprep.subr.mxu0 0.0
  %4599 = vmatpush2.msra.mxu0 0.0
  %4600 = vmatprep.subr.mxu0 0.0
  %4601 = vmatpush2.msra.mxu0 0.0
  %4602 = vmatprep.subr.mxu0 0.0
  %4603 = vmatpush2.msra.mxu0 0.0
  %4604 = vmatprep.subr.mxu0 0.0
  %4605 = vmatpush2.msra.mxu0 0.0
  %4606 = vmatprep.subr.mxu0 0.0
  %4607 = vmatpush2.msra.mxu0 0.0
  %4608 = vmatprep.mubr.f32.mxu0 0.0
  %4609 = vmatmul.mubr.f32.gmra.mxu0 %v4542
  %v4610 = vpop.f32.mrf.mxu0
  %v4611 = vadd.f32 %v4539, %v4610
  %v4612 = vpop.f32.mrf.mxu0
  %4613 = vdwg.mxu0
  %v4614 = vld [vmem:[%s5 + $0x23] sm:$0x3]
  %v4615 = vld [vmem:[%s5 + $0x24] sm:$0x1]
  %v4616 = vadd.f32 %v3702, %v4611
  %v4617 = vsel %vm39, %v4616, 0.0
  %4618 = vadd.xlane.f32.xlu0 %v4617
  %v4619 = vpop.xlane.xlu0 %4618
  %v4620 = vmul.f32 %v4619, %v1599
  %v4621 = vsub.f32 %v4616, %v4620
  %v4622 = vmul.f32 %v4621, %v4621
  %v4623 = vsel %vm39, %v4622, 0.0
  %4624 = vadd.xlane.f32.xlu0 %v4623
  %v4625 = vpop.xlane.xlu0 %4624
  %v4626 = vmul.f32 %v4625, %v1599
  %v4627 = vadd.f32 %v4626, 1e-05
  %v4628 = vrsqrt.pop %v4627
  %v4629 = vmul.f32 %v4621, %v4628
  %v4631 = vlaneseq
  %v4632 = vshrl.u32 %v4631, 7
  %v4633 = vsub.s32 0, %v4632
  %v4634 = vrot.slane %v4614, %v4633
  %v4635 = vlaneseq
  %v4636 = vshrl.u32 %v4635, 7
  %v4637 = vsub.s32 1, %v4636
  %v4638 = vrot.slane %v4614, %v4637
  %4639 = vrot.lane.b32.xlu0 %v4634, 30
  %v4640 = vpop.permute.xlu0 %4639
  %4641 = vrot.lane.b32.xlu0 %v4638, 30
  %v4642 = vpop.permute.xlu0 %4641
  %v4643 = vsel %vm3758, %v4640, %v4642
  %v4645 = vmul.f32 %v4629, %v4643
  %v4647 = vlaneseq
  %v4648 = vshrl.u32 %v4647, 7
  %v4649 = vsub.s32 0, %v4648
  %v4650 = vrot.slane %v4615, %v4649
  %4651 = vrot.lane.b32.xlu0 %v4650, 126
  %v4652 = vpop.permute.xlu0 %4651
  %v4654 = vadd.f32 %v4645, %v4652
  %v4655 = vld [vmem:[%s3 + $0x110] sm:$0xff]
  %v4656 = vld [vmem:[%s3 + $0x118] sm:$0xff]
  %v4657 = vld [vmem:[%s3 + $0x230] sm:$0xff]
  %v4658 = vld [vmem:[%s3 + $0x238] sm:$0xff]
  %v4659 = vld [vmem:[%s3 + $0x350] sm:$0xff]
  %v4660 = vld [vmem:[%s3 + $0x358] sm:$0xff]
  %v4661 = vld [vmem:[%s3 + $0x470] sm:$0xff]
  %v4662 = vld [vmem:[%s3 + $0x478] sm:$0xff]
  %v4663 = vld [vmem:[%s5 + $0x24] sm:$0x3]
  %v4665 = vlaneseq
  %v4666 = vshrl.u32 %v4665, 7
  %v4667 = vsub.s32 0, %v4666
  %v4668 = vrot.slane %v4663, %v4667
  %v4669 = vlaneseq
  %v4670 = vshrl.u32 %v4669, 7
  %v4671 = vsub.s32 1, %v4670
  %v4672 = vrot.slane %v4663, %v4671
  %4681 = vrot.lane.b32.xlu0 %v4655, 30
  %v4682 = vpop.permute.xlu0 %4681
  %4683 = vrot.lane.b32.xlu0 %v4656, 30
  %v4684 = vpop.permute.xlu0 %4683
  %4685 = vrot.lane.b32.xlu0 %v4657, 30
  %v4686 = vpop.permute.xlu0 %4685
  %4687 = vrot.lane.b32.xlu0 %v4658, 30
  %v4688 = vpop.permute.xlu0 %4687
  %4689 = vrot.lane.b32.xlu0 %v4659, 30
  %v4690 = vpop.permute.xlu0 %4689
  %4691 = vrot.lane.b32.xlu0 %v4660, 30
  %v4692 = vpop.permute.xlu0 %4691
  %4693 = vrot.lane.b32.xlu0 %v4661, 30
  %v4694 = vpop.permute.xlu0 %4693
  %4695 = vrot.lane.b32.xlu0 %v4662, 30
  %v4696 = vpop.permute.xlu0 %4695
  %v4697 = vsel %vm3758, %v4682, %v4684
  %v4698 = vsel %vm3758, %v4686, %v4688
  %v4699 = vsel %vm3758, %v4690, %v4692
  %v4700 = vsel %vm3758, %v4694, %v4696
  %4705 = vrot.lane.b32.xlu0 %v4668, 62
  %v4706 = vpop.permute.xlu0 %4705
  %4707 = vrot.lane.b32.xlu0 %v4672, 62
  %v4708 = vpop.permute.xlu0 %4707
  %v4709 = vsel %vm3745, %v4706, %v4708
  %v4712 = vsel %vm39, %v3694, 0
  %v4715 = vsel %vm39, %v3695, 0
  %v4718 = vsel %vm39, %v3700, 0
  %v4721 = vsel %vm39, %v3701, 0
  %4723 = vmatprep.subr.mxu0 0.0
  %4724 = vmatpush1.msra.mxu0 0.0
  %4725 = vmatprep.subr.mxu0 0.0
  %4726 = vmatpush1.msra.mxu0 0.0
  %4727 = vmatprep.subr.mxu0 0.0
  %4728 = vmatpush1.msra.mxu0 0.0
  %4729 = vmatprep.subr.mxu0 0.0
  %4730 = vmatpush1.msra.mxu0 0.0
  %4731 = vmatprep.subr.mxu0 0.0
  %4732 = vmatpush1.msra.mxu0 0.0
  %4733 = vmatprep.subr.mxu0 0.0
  %4734 = vmatpush1.msra.mxu0 0.0
  %4735 = vmatprep.subr.mxu0 0.0
  %4736 = vmatpush1.msra.mxu0 0.0
  %4737 = vmatprep.subr.mxu0 0.0
  %4738 = vmatpush1.msra.mxu0 0.0
  %4739 = vmatprep.subr.mxu0 0.0
  %4740 = vmatpush1.msra.mxu0 0.0
  %4741 = vmatprep.subr.mxu0 0.0
  %4742 = vmatpush1.msra.mxu0 0.0
  %4743 = vmatprep.subr.mxu0 0.0
  %4744 = vmatpush1.msra.mxu0 0.0
  %4745 = vmatprep.subr.mxu0 0.0
  %4746 = vmatpush1.msra.mxu0 0.0
  %4747 = vmatprep.subr.mxu0 0.0
  %4748 = vmatpush1.msra.mxu0 %v4700
  %4749 = vmatprep.subr.mxu0 0.0
  %4750 = vmatpush1.msra.mxu0 %v4699
  %4751 = vmatprep.subr.mxu0 0.0
  %4752 = vmatpush1.msra.mxu0 %v4698
  %4753 = vmatprep.subr.mxu0 0.0
  %4754 = vmatpush1.msra.mxu0 %v4697
  %4755 = vmatprep.subr.mxu0 0.0
  %4756 = vmatpush2.msra.mxu0 0.0
  %4757 = vmatprep.subr.mxu0 0.0
  %4758 = vmatpush2.msra.mxu0 0.0
  %4759 = vmatprep.subr.mxu0 0.0
  %4760 = vmatpush2.msra.mxu0 0.0
  %4761 = vmatprep.subr.mxu0 0.0
  %4762 = vmatpush2.msra.mxu0 0.0
  %4763 = vmatprep.subr.mxu0 0.0
  %4764 = vmatpush2.msra.mxu0 0.0
  %4765 = vmatprep.subr.mxu0 0.0
  %4766 = vmatpush2.msra.mxu0 0.0
  %4767 = vmatprep.subr.mxu0 0.0
  %4768 = vmatpush2.msra.mxu0 0.0
  %4769 = vmatprep.subr.mxu0 0.0
  %4770 = vmatpush2.msra.mxu0 0.0
  %4771 = vmatprep.subr.mxu0 0.0
  %4772 = vmatpush2.msra.mxu0 0.0
  %4773 = vmatprep.subr.mxu0 0.0
  %4774 = vmatpush2.msra.mxu0 0.0
  %4775 = vmatprep.subr.mxu0 0.0
  %4776 = vmatpush2.msra.mxu0 0.0
  %4777 = vmatprep.subr.mxu0 0.0
  %4778 = vmatpush2.msra.mxu0 0.0
  %4779 = vmatprep.subr.mxu0 0.0
  %4780 = vmatpush2.msra.mxu0 0.0
  %4781 = vmatprep.subr.mxu0 0.0
  %4782 = vmatpush2.msra.mxu0 0.0
  %4783 = vmatprep.subr.mxu0 0.0
  %4784 = vmatpush2.msra.mxu0 0.0
  %4785 = vmatprep.subr.mxu0 0.0
  %4786 = vmatpush2.msra.mxu0 0.0
  %4787 = vmatprep.mubr.f32.mxu0 0.0
  %4788 = vmatmul.mubr.f32.gmra.mxu0 %v4712
  %v4789 = vpop.f32.mrf.mxu0
  %v4790 = vadd.f32 %v4709, %v4789
  %v4791 = vpop.f32.mrf.mxu0
  %4792 = vmatprep.mubr.f32.mxu0 0.0
  %4793 = vmatmul.mubr.f32.gmra.mxu0 %v4715
  %v4794 = vpop.f32.mrf.mxu0
  %v4795 = vadd.f32 %v4709, %v4794
  %v4796 = vpop.f32.mrf.mxu0
  %4797 = vmatprep.mubr.f32.mxu0 0.0
  %4798 = vmatmul.mubr.f32.gmra.mxu0 %v4718
  %v4799 = vpop.f32.mrf.mxu0
  %v4800 = vadd.f32 %v4709, %v4799
  %v4801 = vpop.f32.mrf.mxu0
  %4802 = vmatprep.mubr.f32.mxu0 0.0
  %4803 = vmatmul.mubr.f32.gmra.mxu0 %v4721
  %v4804 = vpop.f32.mrf.mxu0
  %v4805 = vadd.f32 %v4709, %v4804
  %v4806 = vpop.f32.mrf.mxu0
  %4807 = vdwg.mxu0
  %4808 = vrot.lane.b32.xlu0 %v4512, 62
  %v4809 = vpop.permute.xlu0 %4808
  %4810 = vrot.lane.b32.xlu0 %v4513, 62
  %v4811 = vpop.permute.xlu0 %4810
  %4812 = vrot.lane.b32.xlu0 %v4514, 62
  %v4813 = vpop.permute.xlu0 %4812
  %4814 = vrot.lane.b32.xlu0 %v4515, 62
  %v4815 = vpop.permute.xlu0 %4814
  %4820 = vrot.lane.b32.xlu0 %v4650, 94
  %v4821 = vpop.permute.xlu0 %4820
  %v4824 = vsel %vm39, %v4654, 0
  %4826 = vmatprep.subr.mxu0 0.0
  %4827 = vmatpush1.msra.mxu0 0.0
  %4828 = vmatprep.subr.mxu0 0.0
  %4829 = vmatpush1.msra.mxu0 0.0
  %4830 = vmatprep.subr.mxu0 0.0
  %4831 = vmatpush1.msra.mxu0 0.0
  %4832 = vmatprep.subr.mxu0 0.0
  %4833 = vmatpush1.msra.mxu0 0.0
  %4834 = vmatprep.subr.mxu0 0.0
  %4835 = vmatpush1.msra.mxu0 0.0
  %4836 = vmatprep.subr.mxu0 0.0
  %4837 = vmatpush1.msra.mxu0 0.0
  %4838 = vmatprep.subr.mxu0 0.0
  %4839 = vmatpush1.msra.mxu0 0.0
  %4840 = vmatprep.subr.mxu0 0.0
  %4841 = vmatpush1.msra.mxu0 0.0
  %4842 = vmatprep.subr.mxu0 0.0
  %4843 = vmatpush1.msra.mxu0 0.0
  %4844 = vmatprep.subr.mxu0 0.0
  %4845 = vmatpush1.msra.mxu0 0.0
  %4846 = vmatprep.subr.mxu0 0.0
  %4847 = vmatpush1.msra.mxu0 0.0
  %4848 = vmatprep.subr.mxu0 0.0
  %4849 = vmatpush1.msra.mxu0 0.0
  %4850 = vmatprep.subr.mxu0 0.0
  %4851 = vmatpush1.msra.mxu0 %v4815
  %4852 = vmatprep.subr.mxu0 0.0
  %4853 = vmatpush1.msra.mxu0 %v4813
  %4854 = vmatprep.subr.mxu0 0.0
  %4855 = vmatpush1.msra.mxu0 %v4811
  %4856 = vmatprep.subr.mxu0 0.0
  %4857 = vmatpush1.msra.mxu0 %v4809
  %4858 = vmatprep.subr.mxu0 0.0
  %4859 = vmatpush2.msra.mxu0 0.0
  %4860 = vmatprep.subr.mxu0 0.0
  %4861 = vmatpush2.msra.mxu0 0.0
  %4862 = vmatprep.subr.mxu0 0.0
  %4863 = vmatpush2.msra.mxu0 0.0
  %4864 = vmatprep.subr.mxu0 0.0
  %4865 = vmatpush2.msra.mxu0 0.0
  %4866 = vmatprep.subr.mxu0 0.0
  %4867 = vmatpush2.msra.mxu0 0.0
  %4868 = vmatprep.subr.mxu0 0.0
  %4869 = vmatpush2.msra.mxu0 0.0
  %4870 = vmatprep.subr.mxu0 0.0
  %4871 = vmatpush2.msra.mxu0 0.0
  %4872 = vmatprep.subr.mxu0 0.0
  %4873 = vmatpush2.msra.mxu0 0.0
  %4874 = vmatprep.subr.mxu0 0.0
  %4875 = vmatpush2.msra.mxu0 0.0
  %4876 = vmatprep.subr.mxu0 0.0
  %4877 = vmatpush2.msra.mxu0 0.0
  %4878 = vmatprep.subr.mxu0 0.0
  %4879 = vmatpush2.msra.mxu0 0.0
  %4880 = vmatprep.subr.mxu0 0.0
  %4881 = vmatpush2.msra.mxu0 0.0
  %4882 = vmatprep.subr.mxu0 0.0
  %4883 = vmatpush2.msra.mxu0 0.0
  %4884 = vmatprep.subr.mxu0 0.0
  %4885 = vmatpush2.msra.mxu0 0.0
  %4886 = vmatprep.subr.mxu0 0.0
  %4887 = vmatpush2.msra.mxu0 0.0
  %4888 = vmatprep.subr.mxu0 0.0
  %4889 = vmatpush2.msra.mxu0 0.0
  %4890 = vmatprep.mubr.f32.mxu0 0.0
  %4891 = vmatmul.mubr.f32.gmra.mxu0 %v4824
  %v4892 = vpop.f32.mrf.mxu0
  %v4893 = vadd.f32 %v4821, %v4892
  %v4894 = vpop.f32.mrf.mxu0
  %4895 = vdwg.mxu0
  %4897 = vrot.lane.b32.xlu0 %v4893, 120
  %v4898 = vpop.permute.xlu0 %4897
  %4899 = vrot.lane.b32.xlu0 %v4893, 112
  %v4900 = vpop.permute.xlu0 %4899
  %4901 = vrot.lane.b32.xlu0 %v4893, 104
  %v4902 = vpop.permute.xlu0 %4901
  %4907 = vrot.lane.b32.xlu0 %v4790, 120
  %v4908 = vpop.permute.xlu0 %4907
  %4909 = vrot.lane.b32.xlu0 %v4795, 120
  %v4910 = vpop.permute.xlu0 %4909
  %4911 = vrot.lane.b32.xlu0 %v4800, 120
  %v4912 = vpop.permute.xlu0 %4911
  %4913 = vrot.lane.b32.xlu0 %v4805, 120
  %v4914 = vpop.permute.xlu0 %4913
  %4915 = vrot.lane.b32.xlu0 %v4790, 112
  %v4916 = vpop.permute.xlu0 %4915
  %4917 = vrot.lane.b32.xlu0 %v4795, 112
  %v4918 = vpop.permute.xlu0 %4917
  %4919 = vrot.lane.b32.xlu0 %v4800, 112
  %v4920 = vpop.permute.xlu0 %4919
  %4921 = vrot.lane.b32.xlu0 %v4805, 112
  %v4922 = vpop.permute.xlu0 %4921
  %4923 = vrot.lane.b32.xlu0 %v4790, 104
  %v4924 = vpop.permute.xlu0 %4923
  %4925 = vrot.lane.b32.xlu0 %v4795, 104
  %v4926 = vpop.permute.xlu0 %4925
  %4927 = vrot.lane.b32.xlu0 %v4800, 104
  %v4928 = vpop.permute.xlu0 %4927
  %4929 = vrot.lane.b32.xlu0 %v4805, 104
  %v4930 = vpop.permute.xlu0 %4929
  %v4931 = vsel %vm137, %v4893, 0
  %v4933 = vsel %vm137, %v4790, 0
  %4935 = vmatprep.subr.mxu0 0.0
  %4936 = vmatpush1.xpose.msra.mxu0 0.0
  %4937 = vmatprep.subr.mxu0 0.0
  %4938 = vmatpush1.xpose.msra.mxu0 0.0
  %4939 = vmatprep.subr.mxu0 0.0
  %4940 = vmatpush1.xpose.msra.mxu0 0.0
  %4941 = vmatprep.subr.mxu0 0.0
  %4942 = vmatpush1.xpose.msra.mxu0 0.0
  %4943 = vmatprep.subr.mxu0 0.0
  %4944 = vmatpush1.xpose.msra.mxu0 0.0
  %4945 = vmatprep.subr.mxu0 0.0
  %4946 = vmatpush1.xpose.msra.mxu0 0.0
  %4947 = vmatprep.subr.mxu0 0.0
  %4948 = vmatpush1.xpose.msra.mxu0 0.0
  %4949 = vmatprep.subr.mxu0 0.0
  %4950 = vmatpush1.xpose.msra.mxu0 0.0
  %4951 = vmatprep.subr.mxu0 0.0
  %4952 = vmatpush1.xpose.msra.mxu0 0.0
  %4953 = vmatprep.subr.mxu0 0.0
  %4954 = vmatpush1.xpose.msra.mxu0 0.0
  %4955 = vmatprep.subr.mxu0 0.0
  %4956 = vmatpush1.xpose.msra.mxu0 0.0
  %4957 = vmatprep.subr.mxu0 0.0
  %4958 = vmatpush1.xpose.msra.mxu0 0.0
  %4959 = vmatprep.subr.mxu0 0.0
  %4960 = vmatpush1.xpose.msra.mxu0 0.0
  %4961 = vmatprep.subr.mxu0 0.0
  %4962 = vmatpush1.xpose.msra.mxu0 0.0
  %4963 = vmatprep.subr.mxu0 0.0
  %4964 = vmatpush1.xpose.msra.mxu0 0.0
  %4965 = vmatprep.subr.mxu0 0.0
  %4966 = vmatpush1.xpose.msra.mxu0 %v4933
  %4967 = vmatprep.subr.mxu0 0.0
  %4968 = vmatpush2.xpose.msra.mxu0 0.0
  %4969 = vmatprep.subr.mxu0 0.0
  %4970 = vmatpush2.xpose.msra.mxu0 0.0
  %4971 = vmatprep.subr.mxu0 0.0
  %4972 = vmatpush2.xpose.msra.mxu0 0.0
  %4973 = vmatprep.subr.mxu0 0.0
  %4974 = vmatpush2.xpose.msra.mxu0 0.0
  %4975 = vmatprep.subr.mxu0 0.0
  %4976 = vmatpush2.xpose.msra.mxu0 0.0
  %4977 = vmatprep.subr.mxu0 0.0
  %4978 = vmatpush2.xpose.msra.mxu0 0.0
  %4979 = vmatprep.subr.mxu0 0.0
  %4980 = vmatpush2.xpose.msra.mxu0 0.0
  %4981 = vmatprep.subr.mxu0 0.0
  %4982 = vmatpush2.xpose.msra.mxu0 0.0
  %4983 = vmatprep.subr.mxu0 0.0
  %4984 = vmatpush2.xpose.msra.mxu0 0.0
  %4985 = vmatprep.subr.mxu0 0.0
  %4986 = vmatpush2.xpose.msra.mxu0 0.0
  %4987 = vmatprep.subr.mxu0 0.0
  %4988 = vmatpush2.xpose.msra.mxu0 0.0
  %4989 = vmatprep.subr.mxu0 0.0
  %4990 = vmatpush2.xpose.msra.mxu0 0.0
  %4991 = vmatprep.subr.mxu0 0.0
  %4992 = vmatpush2.xpose.msra.mxu0 0.0
  %4993 = vmatprep.subr.mxu0 0.0
  %4994 = vmatpush2.xpose.msra.mxu0 0.0
  %4995 = vmatprep.subr.mxu0 0.0
  %4996 = vmatpush2.xpose.msra.mxu0 0.0
  %4997 = vmatprep.subr.mxu0 0.0
  %4998 = vmatpush2.xpose.msra.mxu0 0.0
  %4999 = vmatprep.mubr.f32.mxu0 0.0
  %5000 = vmatmul.mubr.f32.gmra.mxu0 %v4931
  %v5001 = vpop.f32.mrf.mxu0
  %v5002 = vadd.f32 0.0, %v5001
  %v5003 = vpop.f32.mrf.mxu0
  %5004 = vdwg.mxu0
  %v5005 = vsel %vm137, %v4795, 0
  %5007 = vmatprep.subr.mxu0 0.0
  %5008 = vmatpush1.xpose.msra.mxu0 0.0
  %5009 = vmatprep.subr.mxu0 0.0
  %5010 = vmatpush1.xpose.msra.mxu0 0.0
  %5011 = vmatprep.subr.mxu0 0.0
  %5012 = vmatpush1.xpose.msra.mxu0 0.0
  %5013 = vmatprep.subr.mxu0 0.0
  %5014 = vmatpush1.xpose.msra.mxu0 0.0
  %5015 = vmatprep.subr.mxu0 0.0
  %5016 = vmatpush1.xpose.msra.mxu0 0.0
  %5017 = vmatprep.subr.mxu0 0.0
  %5018 = vmatpush1.xpose.msra.mxu0 0.0
  %5019 = vmatprep.subr.mxu0 0.0
  %5020 = vmatpush1.xpose.msra.mxu0 0.0
  %5021 = vmatprep.subr.mxu0 0.0
  %5022 = vmatpush1.xpose.msra.mxu0 0.0
  %5023 = vmatprep.subr.mxu0 0.0
  %5024 = vmatpush1.xpose.msra.mxu0 0.0
  %5025 = vmatprep.subr.mxu0 0.0
  %5026 = vmatpush1.xpose.msra.mxu0 0.0
  %5027 = vmatprep.subr.mxu0 0.0
  %5028 = vmatpush1.xpose.msra.mxu0 0.0
  %5029 = vmatprep.subr.mxu0 0.0
  %5030 = vmatpush1.xpose.msra.mxu0 0.0
  %5031 = vmatprep.subr.mxu0 0.0
  %5032 = vmatpush1.xpose.msra.mxu0 0.0
  %5033 = vmatprep.subr.mxu0 0.0
  %5034 = vmatpush1.xpose.msra.mxu0 0.0
  %5035 = vmatprep.subr.mxu0 0.0
  %5036 = vmatpush1.xpose.msra.mxu0 0.0
  %5037 = vmatprep.subr.mxu0 0.0
  %5038 = vmatpush1.xpose.msra.mxu0 %v5005
  %5039 = vmatprep.subr.mxu0 0.0
  %5040 = vmatpush2.xpose.msra.mxu0 0.0
  %5041 = vmatprep.subr.mxu0 0.0
  %5042 = vmatpush2.xpose.msra.mxu0 0.0
  %5043 = vmatprep.subr.mxu0 0.0
  %5044 = vmatpush2.xpose.msra.mxu0 0.0
  %5045 = vmatprep.subr.mxu0 0.0
  %5046 = vmatpush2.xpose.msra.mxu0 0.0
  %5047 = vmatprep.subr.mxu0 0.0
  %5048 = vmatpush2.xpose.msra.mxu0 0.0
  %5049 = vmatprep.subr.mxu0 0.0
  %5050 = vmatpush2.xpose.msra.mxu0 0.0
  %5051 = vmatprep.subr.mxu0 0.0
  %5052 = vmatpush2.xpose.msra.mxu0 0.0
  %5053 = vmatprep.subr.mxu0 0.0
  %5054 = vmatpush2.xpose.msra.mxu0 0.0
  %5055 = vmatprep.subr.mxu0 0.0
  %5056 = vmatpush2.xpose.msra.mxu0 0.0
  %5057 = vmatprep.subr.mxu0 0.0
  %5058 = vmatpush2.xpose.msra.mxu0 0.0
  %5059 = vmatprep.subr.mxu0 0.0
  %5060 = vmatpush2.xpose.msra.mxu0 0.0
  %5061 = vmatprep.subr.mxu0 0.0
  %5062 = vmatpush2.xpose.msra.mxu0 0.0
  %5063 = vmatprep.subr.mxu0 0.0
  %5064 = vmatpush2.xpose.msra.mxu0 0.0
  %5065 = vmatprep.subr.mxu0 0.0
  %5066 = vmatpush2.xpose.msra.mxu0 0.0
  %5067 = vmatprep.subr.mxu0 0.0
  %5068 = vmatpush2.xpose.msra.mxu0 0.0
  %5069 = vmatprep.subr.mxu0 0.0
  %5070 = vmatpush2.xpose.msra.mxu0 0.0
  %5071 = vmatprep.mubr.f32.mxu0 0.0
  %5072 = vmatmul.mubr.f32.gmra.mxu0 %v4931
  %v5073 = vpop.f32.mrf.mxu0
  %v5074 = vadd.f32 0.0, %v5073
  %v5075 = vpop.f32.mrf.mxu0
  %5076 = vdwg.mxu0
  %v5077 = vsel %vm137, %v4800, 0
  %5079 = vmatprep.subr.mxu0 0.0
  %5080 = vmatpush1.xpose.msra.mxu0 0.0
  %5081 = vmatprep.subr.mxu0 0.0
  %5082 = vmatpush1.xpose.msra.mxu0 0.0
  %5083 = vmatprep.subr.mxu0 0.0
  %5084 = vmatpush1.xpose.msra.mxu0 0.0
  %5085 = vmatprep.subr.mxu0 0.0
  %5086 = vmatpush1.xpose.msra.mxu0 0.0
  %5087 = vmatprep.subr.mxu0 0.0
  %5088 = vmatpush1.xpose.msra.mxu0 0.0
  %5089 = vmatprep.subr.mxu0 0.0
  %5090 = vmatpush1.xpose.msra.mxu0 0.0
  %5091 = vmatprep.subr.mxu0 0.0
  %5092 = vmatpush1.xpose.msra.mxu0 0.0
  %5093 = vmatprep.subr.mxu0 0.0
  %5094 = vmatpush1.xpose.msra.mxu0 0.0
  %5095 = vmatprep.subr.mxu0 0.0
  %5096 = vmatpush1.xpose.msra.mxu0 0.0
  %5097 = vmatprep.subr.mxu0 0.0
  %5098 = vmatpush1.xpose.msra.mxu0 0.0
  %5099 = vmatprep.subr.mxu0 0.0
  %5100 = vmatpush1.xpose.msra.mxu0 0.0
  %5101 = vmatprep.subr.mxu0 0.0
  %5102 = vmatpush1.xpose.msra.mxu0 0.0
  %5103 = vmatprep.subr.mxu0 0.0
  %5104 = vmatpush1.xpose.msra.mxu0 0.0
  %5105 = vmatprep.subr.mxu0 0.0
  %5106 = vmatpush1.xpose.msra.mxu0 0.0
  %5107 = vmatprep.subr.mxu0 0.0
  %5108 = vmatpush1.xpose.msra.mxu0 0.0
  %5109 = vmatprep.subr.mxu0 0.0
  %5110 = vmatpush1.xpose.msra.mxu0 %v5077
  %5111 = vmatprep.subr.mxu0 0.0
  %5112 = vmatpush2.xpose.msra.mxu0 0.0
  %5113 = vmatprep.subr.mxu0 0.0
  %5114 = vmatpush2.xpose.msra.mxu0 0.0
  %5115 = vmatprep.subr.mxu0 0.0
  %5116 = vmatpush2.xpose.msra.mxu0 0.0
  %5117 = vmatprep.subr.mxu0 0.0
  %5118 = vmatpush2.xpose.msra.mxu0 0.0
  %5119 = vmatprep.subr.mxu0 0.0
  %5120 = vmatpush2.xpose.msra.mxu0 0.0
  %5121 = vmatprep.subr.mxu0 0.0
  %5122 = vmatpush2.xpose.msra.mxu0 0.0
  %5123 = vmatprep.subr.mxu0 0.0
  %5124 = vmatpush2.xpose.msra.mxu0 0.0
  %5125 = vmatprep.subr.mxu0 0.0
  %5126 = vmatpush2.xpose.msra.mxu0 0.0
  %5127 = vmatprep.subr.mxu0 0.0
  %5128 = vmatpush2.xpose.msra.mxu0 0.0
  %5129 = vmatprep.subr.mxu0 0.0
  %5130 = vmatpush2.xpose.msra.mxu0 0.0
  %5131 = vmatprep.subr.mxu0 0.0
  %5132 = vmatpush2.xpose.msra.mxu0 0.0
  %5133 = vmatprep.subr.mxu0 0.0
  %5134 = vmatpush2.xpose.msra.mxu0 0.0
  %5135 = vmatprep.subr.mxu0 0.0
  %5136 = vmatpush2.xpose.msra.mxu0 0.0
  %5137 = vmatprep.subr.mxu0 0.0
  %5138 = vmatpush2.xpose.msra.mxu0 0.0
  %5139 = vmatprep.subr.mxu0 0.0
  %5140 = vmatpush2.xpose.msra.mxu0 0.0
  %5141 = vmatprep.subr.mxu0 0.0
  %5142 = vmatpush2.xpose.msra.mxu0 0.0
  %5143 = vmatprep.mubr.f32.mxu0 0.0
  %5144 = vmatmul.mubr.f32.gmra.mxu0 %v4931
  %v5145 = vpop.f32.mrf.mxu0
  %v5146 = vadd.f32 0.0, %v5145
  %v5147 = vpop.f32.mrf.mxu0
  %5148 = vdwg.mxu0
  %v5149 = vsel %vm137, %v4805, 0
  %5151 = vmatprep.subr.mxu0 0.0
  %5152 = vmatpush1.xpose.msra.mxu0 0.0
  %5153 = vmatprep.subr.mxu0 0.0
  %5154 = vmatpush1.xpose.msra.mxu0 0.0
  %5155 = vmatprep.subr.mxu0 0.0
  %5156 = vmatpush1.xpose.msra.mxu0 0.0
  %5157 = vmatprep.subr.mxu0 0.0
  %5158 = vmatpush1.xpose.msra.mxu0 0.0
  %5159 = vmatprep.subr.mxu0 0.0
  %5160 = vmatpush1.xpose.msra.mxu0 0.0
  %5161 = vmatprep.subr.mxu0 0.0
  %5162 = vmatpush1.xpose.msra.mxu0 0.0
  %5163 = vmatprep.subr.mxu0 0.0
  %5164 = vmatpush1.xpose.msra.mxu0 0.0
  %5165 = vmatprep.subr.mxu0 0.0
  %5166 = vmatpush1.xpose.msra.mxu0 0.0
  %5167 = vmatprep.subr.mxu0 0.0
  %5168 = vmatpush1.xpose.msra.mxu0 0.0
  %5169 = vmatprep.subr.mxu0 0.0
  %5170 = vmatpush1.xpose.msra.mxu0 0.0
  %5171 = vmatprep.subr.mxu0 0.0
  %5172 = vmatpush1.xpose.msra.mxu0 0.0
  %5173 = vmatprep.subr.mxu0 0.0
  %5174 = vmatpush1.xpose.msra.mxu0 0.0
  %5175 = vmatprep.subr.mxu0 0.0
  %5176 = vmatpush1.xpose.msra.mxu0 0.0
  %5177 = vmatprep.subr.mxu0 0.0
  %5178 = vmatpush1.xpose.msra.mxu0 0.0
  %5179 = vmatprep.subr.mxu0 0.0
  %5180 = vmatpush1.xpose.msra.mxu0 0.0
  %5181 = vmatprep.subr.mxu0 0.0
  %5182 = vmatpush1.xpose.msra.mxu0 %v5149
  %5183 = vmatprep.subr.mxu0 0.0
  %5184 = vmatpush2.xpose.msra.mxu0 0.0
  %5185 = vmatprep.subr.mxu0 0.0
  %5186 = vmatpush2.xpose.msra.mxu0 0.0
  %5187 = vmatprep.subr.mxu0 0.0
  %5188 = vmatpush2.xpose.msra.mxu0 0.0
  %5189 = vmatprep.subr.mxu0 0.0
  %5190 = vmatpush2.xpose.msra.mxu0 0.0
  %5191 = vmatprep.subr.mxu0 0.0
  %5192 = vmatpush2.xpose.msra.mxu0 0.0
  %5193 = vmatprep.subr.mxu0 0.0
  %5194 = vmatpush2.xpose.msra.mxu0 0.0
  %5195 = vmatprep.subr.mxu0 0.0
  %5196 = vmatpush2.xpose.msra.mxu0 0.0
  %5197 = vmatprep.subr.mxu0 0.0
  %5198 = vmatpush2.xpose.msra.mxu0 0.0
  %5199 = vmatprep.subr.mxu0 0.0
  %5200 = vmatpush2.xpose.msra.mxu0 0.0
  %5201 = vmatprep.subr.mxu0 0.0
  %5202 = vmatpush2.xpose.msra.mxu0 0.0
  %5203 = vmatprep.subr.mxu0 0.0
  %5204 = vmatpush2.xpose.msra.mxu0 0.0
  %5205 = vmatprep.subr.mxu0 0.0
  %5206 = vmatpush2.xpose.msra.mxu0 0.0
  %5207 = vmatprep.subr.mxu0 0.0
  %5208 = vmatpush2.xpose.msra.mxu0 0.0
  %5209 = vmatprep.subr.mxu0 0.0
  %5210 = vmatpush2.xpose.msra.mxu0 0.0
  %5211 = vmatprep.subr.mxu0 0.0
  %5212 = vmatpush2.xpose.msra.mxu0 0.0
  %5213 = vmatprep.subr.mxu0 0.0
  %5214 = vmatpush2.xpose.msra.mxu0 0.0
  %5215 = vmatprep.mubr.f32.mxu0 0.0
  %5216 = vmatmul.mubr.f32.gmra.mxu0 %v4931
  %v5217 = vpop.f32.mrf.mxu0
  %v5218 = vadd.f32 0.0, %v5217
  %v5219 = vpop.f32.mrf.mxu0
  %5220 = vdwg.mxu0
  %v5221 = vsel %vm137, %v4898, 0
  %v5223 = vsel %vm137, %v4908, 0
  %5225 = vmatprep.subr.mxu0 0.0
  %5226 = vmatpush1.xpose.msra.mxu0 0.0
  %5227 = vmatprep.subr.mxu0 0.0
  %5228 = vmatpush1.xpose.msra.mxu0 0.0
  %5229 = vmatprep.subr.mxu0 0.0
  %5230 = vmatpush1.xpose.msra.mxu0 0.0
  %5231 = vmatprep.subr.mxu0 0.0
  %5232 = vmatpush1.xpose.msra.mxu0 0.0
  %5233 = vmatprep.subr.mxu0 0.0
  %5234 = vmatpush1.xpose.msra.mxu0 0.0
  %5235 = vmatprep.subr.mxu0 0.0
  %5236 = vmatpush1.xpose.msra.mxu0 0.0
  %5237 = vmatprep.subr.mxu0 0.0
  %5238 = vmatpush1.xpose.msra.mxu0 0.0
  %5239 = vmatprep.subr.mxu0 0.0
  %5240 = vmatpush1.xpose.msra.mxu0 0.0
  %5241 = vmatprep.subr.mxu0 0.0
  %5242 = vmatpush1.xpose.msra.mxu0 0.0
  %5243 = vmatprep.subr.mxu0 0.0
  %5244 = vmatpush1.xpose.msra.mxu0 0.0
  %5245 = vmatprep.subr.mxu0 0.0
  %5246 = vmatpush1.xpose.msra.mxu0 0.0
  %5247 = vmatprep.subr.mxu0 0.0
  %5248 = vmatpush1.xpose.msra.mxu0 0.0
  %5249 = vmatprep.subr.mxu0 0.0
  %5250 = vmatpush1.xpose.msra.mxu0 0.0
  %5251 = vmatprep.subr.mxu0 0.0
  %5252 = vmatpush1.xpose.msra.mxu0 0.0
  %5253 = vmatprep.subr.mxu0 0.0
  %5254 = vmatpush1.xpose.msra.mxu0 0.0
  %5255 = vmatprep.subr.mxu0 0.0
  %5256 = vmatpush1.xpose.msra.mxu0 %v5223
  %5257 = vmatprep.subr.mxu0 0.0
  %5258 = vmatpush2.xpose.msra.mxu0 0.0
  %5259 = vmatprep.subr.mxu0 0.0
  %5260 = vmatpush2.xpose.msra.mxu0 0.0
  %5261 = vmatprep.subr.mxu0 0.0
  %5262 = vmatpush2.xpose.msra.mxu0 0.0
  %5263 = vmatprep.subr.mxu0 0.0
  %5264 = vmatpush2.xpose.msra.mxu0 0.0
  %5265 = vmatprep.subr.mxu0 0.0
  %5266 = vmatpush2.xpose.msra.mxu0 0.0
  %5267 = vmatprep.subr.mxu0 0.0
  %5268 = vmatpush2.xpose.msra.mxu0 0.0
  %5269 = vmatprep.subr.mxu0 0.0
  %5270 = vmatpush2.xpose.msra.mxu0 0.0
  %5271 = vmatprep.subr.mxu0 0.0
  %5272 = vmatpush2.xpose.msra.mxu0 0.0
  %5273 = vmatprep.subr.mxu0 0.0
  %5274 = vmatpush2.xpose.msra.mxu0 0.0
  %5275 = vmatprep.subr.mxu0 0.0
  %5276 = vmatpush2.xpose.msra.mxu0 0.0
  %5277 = vmatprep.subr.mxu0 0.0
  %5278 = vmatpush2.xpose.msra.mxu0 0.0
  %5279 = vmatprep.subr.mxu0 0.0
  %5280 = vmatpush2.xpose.msra.mxu0 0.0
  %5281 = vmatprep.subr.mxu0 0.0
  %5282 = vmatpush2.xpose.msra.mxu0 0.0
  %5283 = vmatprep.subr.mxu0 0.0
  %5284 = vmatpush2.xpose.msra.mxu0 0.0
  %5285 = vmatprep.subr.mxu0 0.0
  %5286 = vmatpush2.xpose.msra.mxu0 0.0
  %5287 = vmatprep.subr.mxu0 0.0
  %5288 = vmatpush2.xpose.msra.mxu0 0.0
  %5289 = vmatprep.mubr.f32.mxu0 0.0
  %5290 = vmatmul.mubr.f32.gmra.mxu0 %v5221
  %v5291 = vpop.f32.mrf.mxu0
  %v5292 = vadd.f32 0.0, %v5291
  %v5293 = vpop.f32.mrf.mxu0
  %5294 = vdwg.mxu0
  %v5295 = vsel %vm137, %v4910, 0
  %5297 = vmatprep.subr.mxu0 0.0
  %5298 = vmatpush1.xpose.msra.mxu0 0.0
  %5299 = vmatprep.subr.mxu0 0.0
  %5300 = vmatpush1.xpose.msra.mxu0 0.0
  %5301 = vmatprep.subr.mxu0 0.0
  %5302 = vmatpush1.xpose.msra.mxu0 0.0
  %5303 = vmatprep.subr.mxu0 0.0
  %5304 = vmatpush1.xpose.msra.mxu0 0.0
  %5305 = vmatprep.subr.mxu0 0.0
  %5306 = vmatpush1.xpose.msra.mxu0 0.0
  %5307 = vmatprep.subr.mxu0 0.0
  %5308 = vmatpush1.xpose.msra.mxu0 0.0
  %5309 = vmatprep.subr.mxu0 0.0
  %5310 = vmatpush1.xpose.msra.mxu0 0.0
  %5311 = vmatprep.subr.mxu0 0.0
  %5312 = vmatpush1.xpose.msra.mxu0 0.0
  %5313 = vmatprep.subr.mxu0 0.0
  %5314 = vmatpush1.xpose.msra.mxu0 0.0
  %5315 = vmatprep.subr.mxu0 0.0
  %5316 = vmatpush1.xpose.msra.mxu0 0.0
  %5317 = vmatprep.subr.mxu0 0.0
  %5318 = vmatpush1.xpose.msra.mxu0 0.0
  %5319 = vmatprep.subr.mxu0 0.0
  %5320 = vmatpush1.xpose.msra.mxu0 0.0
  %5321 = vmatprep.subr.mxu0 0.0
  %5322 = vmatpush1.xpose.msra.mxu0 0.0
  %5323 = vmatprep.subr.mxu0 0.0
  %5324 = vmatpush1.xpose.msra.mxu0 0.0
  %5325 = vmatprep.subr.mxu0 0.0
  %5326 = vmatpush1.xpose.msra.mxu0 0.0
  %5327 = vmatprep.subr.mxu0 0.0
  %5328 = vmatpush1.xpose.msra.mxu0 %v5295
  %5329 = vmatprep.subr.mxu0 0.0
  %5330 = vmatpush2.xpose.msra.mxu0 0.0
  %5331 = vmatprep.subr.mxu0 0.0
  %5332 = vmatpush2.xpose.msra.mxu0 0.0
  %5333 = vmatprep.subr.mxu0 0.0
  %5334 = vmatpush2.xpose.msra.mxu0 0.0
  %5335 = vmatprep.subr.mxu0 0.0
  %5336 = vmatpush2.xpose.msra.mxu0 0.0
  %5337 = vmatprep.subr.mxu0 0.0
  %5338 = vmatpush2.xpose.msra.mxu0 0.0
  %5339 = vmatprep.subr.mxu0 0.0
  %5340 = vmatpush2.xpose.msra.mxu0 0.0
  %5341 = vmatprep.subr.mxu0 0.0
  %5342 = vmatpush2.xpose.msra.mxu0 0.0
  %5343 = vmatprep.subr.mxu0 0.0
  %5344 = vmatpush2.xpose.msra.mxu0 0.0
  %5345 = vmatprep.subr.mxu0 0.0
  %5346 = vmatpush2.xpose.msra.mxu0 0.0
  %5347 = vmatprep.subr.mxu0 0.0
  %5348 = vmatpush2.xpose.msra.mxu0 0.0
  %5349 = vmatprep.subr.mxu0 0.0
  %5350 = vmatpush2.xpose.msra.mxu0 0.0
  %5351 = vmatprep.subr.mxu0 0.0
  %5352 = vmatpush2.xpose.msra.mxu0 0.0
  %5353 = vmatprep.subr.mxu0 0.0
  %5354 = vmatpush2.xpose.msra.mxu0 0.0
  %5355 = vmatprep.subr.mxu0 0.0
  %5356 = vmatpush2.xpose.msra.mxu0 0.0
  %5357 = vmatprep.subr.mxu0 0.0
  %5358 = vmatpush2.xpose.msra.mxu0 0.0
  %5359 = vmatprep.subr.mxu0 0.0
  %5360 = vmatpush2.xpose.msra.mxu0 0.0
  %5361 = vmatprep.mubr.f32.mxu0 0.0
  %5362 = vmatmul.mubr.f32.gmra.mxu0 %v5221
  %v5363 = vpop.f32.mrf.mxu0
  %v5364 = vadd.f32 0.0, %v5363
  %v5365 = vpop.f32.mrf.mxu0
  %5366 = vdwg.mxu0
  %v5367 = vsel %vm137, %v4912, 0
  %5369 = vmatprep.subr.mxu0 0.0
  %5370 = vmatpush1.xpose.msra.mxu0 0.0
  %5371 = vmatprep.subr.mxu0 0.0
  %5372 = vmatpush1.xpose.msra.mxu0 0.0
  %5373 = vmatprep.subr.mxu0 0.0
  %5374 = vmatpush1.xpose.msra.mxu0 0.0
  %5375 = vmatprep.subr.mxu0 0.0
  %5376 = vmatpush1.xpose.msra.mxu0 0.0
  %5377 = vmatprep.subr.mxu0 0.0
  %5378 = vmatpush1.xpose.msra.mxu0 0.0
  %5379 = vmatprep.subr.mxu0 0.0
  %5380 = vmatpush1.xpose.msra.mxu0 0.0
  %5381 = vmatprep.subr.mxu0 0.0
  %5382 = vmatpush1.xpose.msra.mxu0 0.0
  %5383 = vmatprep.subr.mxu0 0.0
  %5384 = vmatpush1.xpose.msra.mxu0 0.0
  %5385 = vmatprep.subr.mxu0 0.0
  %5386 = vmatpush1.xpose.msra.mxu0 0.0
  %5387 = vmatprep.subr.mxu0 0.0
  %5388 = vmatpush1.xpose.msra.mxu0 0.0
  %5389 = vmatprep.subr.mxu0 0.0
  %5390 = vmatpush1.xpose.msra.mxu0 0.0
  %5391 = vmatprep.subr.mxu0 0.0
  %5392 = vmatpush1.xpose.msra.mxu0 0.0
  %5393 = vmatprep.subr.mxu0 0.0
  %5394 = vmatpush1.xpose.msra.mxu0 0.0
  %5395 = vmatprep.subr.mxu0 0.0
  %5396 = vmatpush1.xpose.msra.mxu0 0.0
  %5397 = vmatprep.subr.mxu0 0.0
  %5398 = vmatpush1.xpose.msra.mxu0 0.0
  %5399 = vmatprep.subr.mxu0 0.0
  %5400 = vmatpush1.xpose.msra.mxu0 %v5367
  %5401 = vmatprep.subr.mxu0 0.0
  %5402 = vmatpush2.xpose.msra.mxu0 0.0
  %5403 = vmatprep.subr.mxu0 0.0
  %5404 = vmatpush2.xpose.msra.mxu0 0.0
  %5405 = vmatprep.subr.mxu0 0.0
  %5406 = vmatpush2.xpose.msra.mxu0 0.0
  %5407 = vmatprep.subr.mxu0 0.0
  %5408 = vmatpush2.xpose.msra.mxu0 0.0
  %5409 = vmatprep.subr.mxu0 0.0
  %5410 = vmatpush2.xpose.msra.mxu0 0.0
  %5411 = vmatprep.subr.mxu0 0.0
  %5412 = vmatpush2.xpose.msra.mxu0 0.0
  %5413 = vmatprep.subr.mxu0 0.0
  %5414 = vmatpush2.xpose.msra.mxu0 0.0
  %5415 = vmatprep.subr.mxu0 0.0
  %5416 = vmatpush2.xpose.msra.mxu0 0.0
  %5417 = vmatprep.subr.mxu0 0.0
  %5418 = vmatpush2.xpose.msra.mxu0 0.0
  %5419 = vmatprep.subr.mxu0 0.0
  %5420 = vmatpush2.xpose.msra.mxu0 0.0
  %5421 = vmatprep.subr.mxu0 0.0
  %5422 = vmatpush2.xpose.msra.mxu0 0.0
  %5423 = vmatprep.subr.mxu0 0.0
  %5424 = vmatpush2.xpose.msra.mxu0 0.0
  %5425 = vmatprep.subr.mxu0 0.0
  %5426 = vmatpush2.xpose.msra.mxu0 0.0
  %5427 = vmatprep.subr.mxu0 0.0
  %5428 = vmatpush2.xpose.msra.mxu0 0.0
  %5429 = vmatprep.subr.mxu0 0.0
  %5430 = vmatpush2.xpose.msra.mxu0 0.0
  %5431 = vmatprep.subr.mxu0 0.0
  %5432 = vmatpush2.xpose.msra.mxu0 0.0
  %5433 = vmatprep.mubr.f32.mxu0 0.0
  %5434 = vmatmul.mubr.f32.gmra.mxu0 %v5221
  %v5435 = vpop.f32.mrf.mxu0
  %v5436 = vadd.f32 0.0, %v5435
  %v5437 = vpop.f32.mrf.mxu0
  %5438 = vdwg.mxu0
  %v5439 = vsel %vm137, %v4914, 0
  %5441 = vmatprep.subr.mxu0 0.0
  %5442 = vmatpush1.xpose.msra.mxu0 0.0
  %5443 = vmatprep.subr.mxu0 0.0
  %5444 = vmatpush1.xpose.msra.mxu0 0.0
  %5445 = vmatprep.subr.mxu0 0.0
  %5446 = vmatpush1.xpose.msra.mxu0 0.0
  %5447 = vmatprep.subr.mxu0 0.0
  %5448 = vmatpush1.xpose.msra.mxu0 0.0
  %5449 = vmatprep.subr.mxu0 0.0
  %5450 = vmatpush1.xpose.msra.mxu0 0.0
  %5451 = vmatprep.subr.mxu0 0.0
  %5452 = vmatpush1.xpose.msra.mxu0 0.0
  %5453 = vmatprep.subr.mxu0 0.0
  %5454 = vmatpush1.xpose.msra.mxu0 0.0
  %5455 = vmatprep.subr.mxu0 0.0
  %5456 = vmatpush1.xpose.msra.mxu0 0.0
  %5457 = vmatprep.subr.mxu0 0.0
  %5458 = vmatpush1.xpose.msra.mxu0 0.0
  %5459 = vmatprep.subr.mxu0 0.0
  %5460 = vmatpush1.xpose.msra.mxu0 0.0
  %5461 = vmatprep.subr.mxu0 0.0
  %5462 = vmatpush1.xpose.msra.mxu0 0.0
  %5463 = vmatprep.subr.mxu0 0.0
  %5464 = vmatpush1.xpose.msra.mxu0 0.0
  %5465 = vmatprep.subr.mxu0 0.0
  %5466 = vmatpush1.xpose.msra.mxu0 0.0
  %5467 = vmatprep.subr.mxu0 0.0
  %5468 = vmatpush1.xpose.msra.mxu0 0.0
  %5469 = vmatprep.subr.mxu0 0.0
  %5470 = vmatpush1.xpose.msra.mxu0 0.0
  %5471 = vmatprep.subr.mxu0 0.0
  %5472 = vmatpush1.xpose.msra.mxu0 %v5439
  %5473 = vmatprep.subr.mxu0 0.0
  %5474 = vmatpush2.xpose.msra.mxu0 0.0
  %5475 = vmatprep.subr.mxu0 0.0
  %5476 = vmatpush2.xpose.msra.mxu0 0.0
  %5477 = vmatprep.subr.mxu0 0.0
  %5478 = vmatpush2.xpose.msra.mxu0 0.0
  %5479 = vmatprep.subr.mxu0 0.0
  %5480 = vmatpush2.xpose.msra.mxu0 0.0
  %5481 = vmatprep.subr.mxu0 0.0
  %5482 = vmatpush2.xpose.msra.mxu0 0.0
  %5483 = vmatprep.subr.mxu0 0.0
  %5484 = vmatpush2.xpose.msra.mxu0 0.0
  %5485 = vmatprep.subr.mxu0 0.0
  %5486 = vmatpush2.xpose.msra.mxu0 0.0
  %5487 = vmatprep.subr.mxu0 0.0
  %5488 = vmatpush2.xpose.msra.mxu0 0.0
  %5489 = vmatprep.subr.mxu0 0.0
  %5490 = vmatpush2.xpose.msra.mxu0 0.0
  %5491 = vmatprep.subr.mxu0 0.0
  %5492 = vmatpush2.xpose.msra.mxu0 0.0
  %5493 = vmatprep.subr.mxu0 0.0
  %5494 = vmatpush2.xpose.msra.mxu0 0.0
  %5495 = vmatprep.subr.mxu0 0.0
  %5496 = vmatpush2.xpose.msra.mxu0 0.0
  %5497 = vmatprep.subr.mxu0 0.0
  %5498 = vmatpush2.xpose.msra.mxu0 0.0
  %5499 = vmatprep.subr.mxu0 0.0
  %5500 = vmatpush2.xpose.msra.mxu0 0.0
  %5501 = vmatprep.subr.mxu0 0.0
  %5502 = vmatpush2.xpose.msra.mxu0 0.0
  %5503 = vmatprep.subr.mxu0 0.0
  %5504 = vmatpush2.xpose.msra.mxu0 0.0
  %5505 = vmatprep.mubr.f32.mxu0 0.0
  %5506 = vmatmul.mubr.f32.gmra.mxu0 %v5221
  %v5507 = vpop.f32.mrf.mxu0
  %v5508 = vadd.f32 0.0, %v5507
  %v5509 = vpop.f32.mrf.mxu0
  %5510 = vdwg.mxu0
  %v5511 = vsel %vm137, %v4900, 0
  %v5513 = vsel %vm137, %v4916, 0
  %5515 = vmatprep.subr.mxu0 0.0
  %5516 = vmatpush1.xpose.msra.mxu0 0.0
  %5517 = vmatprep.subr.mxu0 0.0
  %5518 = vmatpush1.xpose.msra.mxu0 0.0
  %5519 = vmatprep.subr.mxu0 0.0
  %5520 = vmatpush1.xpose.msra.mxu0 0.0
  %5521 = vmatprep.subr.mxu0 0.0
  %5522 = vmatpush1.xpose.msra.mxu0 0.0
  %5523 = vmatprep.subr.mxu0 0.0
  %5524 = vmatpush1.xpose.msra.mxu0 0.0
  %5525 = vmatprep.subr.mxu0 0.0
  %5526 = vmatpush1.xpose.msra.mxu0 0.0
  %5527 = vmatprep.subr.mxu0 0.0
  %5528 = vmatpush1.xpose.msra.mxu0 0.0
  %5529 = vmatprep.subr.mxu0 0.0
  %5530 = vmatpush1.xpose.msra.mxu0 0.0
  %5531 = vmatprep.subr.mxu0 0.0
  %5532 = vmatpush1.xpose.msra.mxu0 0.0
  %5533 = vmatprep.subr.mxu0 0.0
  %5534 = vmatpush1.xpose.msra.mxu0 0.0
  %5535 = vmatprep.subr.mxu0 0.0
  %5536 = vmatpush1.xpose.msra.mxu0 0.0
  %5537 = vmatprep.subr.mxu0 0.0
  %5538 = vmatpush1.xpose.msra.mxu0 0.0
  %5539 = vmatprep.subr.mxu0 0.0
  %5540 = vmatpush1.xpose.msra.mxu0 0.0
  %5541 = vmatprep.subr.mxu0 0.0
  %5542 = vmatpush1.xpose.msra.mxu0 0.0
  %5543 = vmatprep.subr.mxu0 0.0
  %5544 = vmatpush1.xpose.msra.mxu0 0.0
  %5545 = vmatprep.subr.mxu0 0.0
  %5546 = vmatpush1.xpose.msra.mxu0 %v5513
  %5547 = vmatprep.subr.mxu0 0.0
  %5548 = vmatpush2.xpose.msra.mxu0 0.0
  %5549 = vmatprep.subr.mxu0 0.0
  %5550 = vmatpush2.xpose.msra.mxu0 0.0
  %5551 = vmatprep.subr.mxu0 0.0
  %5552 = vmatpush2.xpose.msra.mxu0 0.0
  %5553 = vmatprep.subr.mxu0 0.0
  %5554 = vmatpush2.xpose.msra.mxu0 0.0
  %5555 = vmatprep.subr.mxu0 0.0
  %5556 = vmatpush2.xpose.msra.mxu0 0.0
  %5557 = vmatprep.subr.mxu0 0.0
  %5558 = vmatpush2.xpose.msra.mxu0 0.0
  %5559 = vmatprep.subr.mxu0 0.0
  %5560 = vmatpush2.xpose.msra.mxu0 0.0
  %5561 = vmatprep.subr.mxu0 0.0
  %5562 = vmatpush2.xpose.msra.mxu0 0.0
  %5563 = vmatprep.subr.mxu0 0.0
  %5564 = vmatpush2.xpose.msra.mxu0 0.0
  %5565 = vmatprep.subr.mxu0 0.0
  %5566 = vmatpush2.xpose.msra.mxu0 0.0
  %5567 = vmatprep.subr.mxu0 0.0
  %5568 = vmatpush2.xpose.msra.mxu0 0.0
  %5569 = vmatprep.subr.mxu0 0.0
  %5570 = vmatpush2.xpose.msra.mxu0 0.0
  %5571 = vmatprep.subr.mxu0 0.0
  %5572 = vmatpush2.xpose.msra.mxu0 0.0
  %5573 = vmatprep.subr.mxu0 0.0
  %5574 = vmatpush2.xpose.msra.mxu0 0.0
  %5575 = vmatprep.subr.mxu0 0.0
  %5576 = vmatpush2.xpose.msra.mxu0 0.0
  %5577 = vmatprep.subr.mxu0 0.0
  %5578 = vmatpush2.xpose.msra.mxu0 0.0
  %5579 = vmatprep.mubr.f32.mxu0 0.0
  %5580 = vmatmul.mubr.f32.gmra.mxu0 %v5511
  %v5581 = vpop.f32.mrf.mxu0
  %v5582 = vadd.f32 0.0, %v5581
  %v5583 = vpop.f32.mrf.mxu0
  %5584 = vdwg.mxu0
  %v5585 = vsel %vm137, %v4918, 0
  %5587 = vmatprep.subr.mxu0 0.0
  %5588 = vmatpush1.xpose.msra.mxu0 0.0
  %5589 = vmatprep.subr.mxu0 0.0
  %5590 = vmatpush1.xpose.msra.mxu0 0.0
  %5591 = vmatprep.subr.mxu0 0.0
  %5592 = vmatpush1.xpose.msra.mxu0 0.0
  %5593 = vmatprep.subr.mxu0 0.0
  %5594 = vmatpush1.xpose.msra.mxu0 0.0
  %5595 = vmatprep.subr.mxu0 0.0
  %5596 = vmatpush1.xpose.msra.mxu0 0.0
  %5597 = vmatprep.subr.mxu0 0.0
  %5598 = vmatpush1.xpose.msra.mxu0 0.0
  %5599 = vmatprep.subr.mxu0 0.0
  %5600 = vmatpush1.xpose.msra.mxu0 0.0
  %5601 = vmatprep.subr.mxu0 0.0
  %5602 = vmatpush1.xpose.msra.mxu0 0.0
  %5603 = vmatprep.subr.mxu0 0.0
  %5604 = vmatpush1.xpose.msra.mxu0 0.0
  %5605 = vmatprep.subr.mxu0 0.0
  %5606 = vmatpush1.xpose.msra.mxu0 0.0
  %5607 = vmatprep.subr.mxu0 0.0
  %5608 = vmatpush1.xpose.msra.mxu0 0.0
  %5609 = vmatprep.subr.mxu0 0.0
  %5610 = vmatpush1.xpose.msra.mxu0 0.0
  %5611 = vmatprep.subr.mxu0 0.0
  %5612 = vmatpush1.xpose.msra.mxu0 0.0
  %5613 = vmatprep.subr.mxu0 0.0
  %5614 = vmatpush1.xpose.msra.mxu0 0.0
  %5615 = vmatprep.subr.mxu0 0.0
  %5616 = vmatpush1.xpose.msra.mxu0 0.0
  %5617 = vmatprep.subr.mxu0 0.0
  %5618 = vmatpush1.xpose.msra.mxu0 %v5585
  %5619 = vmatprep.subr.mxu0 0.0
  %5620 = vmatpush2.xpose.msra.mxu0 0.0
  %5621 = vmatprep.subr.mxu0 0.0
  %5622 = vmatpush2.xpose.msra.mxu0 0.0
  %5623 = vmatprep.subr.mxu0 0.0
  %5624 = vmatpush2.xpose.msra.mxu0 0.0
  %5625 = vmatprep.subr.mxu0 0.0
  %5626 = vmatpush2.xpose.msra.mxu0 0.0
  %5627 = vmatprep.subr.mxu0 0.0
  %5628 = vmatpush2.xpose.msra.mxu0 0.0
  %5629 = vmatprep.subr.mxu0 0.0
  %5630 = vmatpush2.xpose.msra.mxu0 0.0
  %5631 = vmatprep.subr.mxu0 0.0
  %5632 = vmatpush2.xpose.msra.mxu0 0.0
  %5633 = vmatprep.subr.mxu0 0.0
  %5634 = vmatpush2.xpose.msra.mxu0 0.0
  %5635 = vmatprep.subr.mxu0 0.0
  %5636 = vmatpush2.xpose.msra.mxu0 0.0
  %5637 = vmatprep.subr.mxu0 0.0
  %5638 = vmatpush2.xpose.msra.mxu0 0.0
  %5639 = vmatprep.subr.mxu0 0.0
  %5640 = vmatpush2.xpose.msra.mxu0 0.0
  %5641 = vmatprep.subr.mxu0 0.0
  %5642 = vmatpush2.xpose.msra.mxu0 0.0
  %5643 = vmatprep.subr.mxu0 0.0
  %5644 = vmatpush2.xpose.msra.mxu0 0.0
  %5645 = vmatprep.subr.mxu0 0.0
  %5646 = vmatpush2.xpose.msra.mxu0 0.0
  %5647 = vmatprep.subr.mxu0 0.0
  %5648 = vmatpush2.xpose.msra.mxu0 0.0
  %5649 = vmatprep.subr.mxu0 0.0
  %5650 = vmatpush2.xpose.msra.mxu0 0.0
  %5651 = vmatprep.mubr.f32.mxu0 0.0
  %5652 = vmatmul.mubr.f32.gmra.mxu0 %v5511
  %v5653 = vpop.f32.mrf.mxu0
  %v5654 = vadd.f32 0.0, %v5653
  %v5655 = vpop.f32.mrf.mxu0
  %5656 = vdwg.mxu0
  %v5657 = vsel %vm137, %v4920, 0
  %5659 = vmatprep.subr.mxu0 0.0
  %5660 = vmatpush1.xpose.msra.mxu0 0.0
  %5661 = vmatprep.subr.mxu0 0.0
  %5662 = vmatpush1.xpose.msra.mxu0 0.0
  %5663 = vmatprep.subr.mxu0 0.0
  %5664 = vmatpush1.xpose.msra.mxu0 0.0
  %5665 = vmatprep.subr.mxu0 0.0
  %5666 = vmatpush1.xpose.msra.mxu0 0.0
  %5667 = vmatprep.subr.mxu0 0.0
  %5668 = vmatpush1.xpose.msra.mxu0 0.0
  %5669 = vmatprep.subr.mxu0 0.0
  %5670 = vmatpush1.xpose.msra.mxu0 0.0
  %5671 = vmatprep.subr.mxu0 0.0
  %5672 = vmatpush1.xpose.msra.mxu0 0.0
  %5673 = vmatprep.subr.mxu0 0.0
  %5674 = vmatpush1.xpose.msra.mxu0 0.0
  %5675 = vmatprep.subr.mxu0 0.0
  %5676 = vmatpush1.xpose.msra.mxu0 0.0
  %5677 = vmatprep.subr.mxu0 0.0
  %5678 = vmatpush1.xpose.msra.mxu0 0.0
  %5679 = vmatprep.subr.mxu0 0.0
  %5680 = vmatpush1.xpose.msra.mxu0 0.0
  %5681 = vmatprep.subr.mxu0 0.0
  %5682 = vmatpush1.xpose.msra.mxu0 0.0
  %5683 = vmatprep.subr.mxu0 0.0
  %5684 = vmatpush1.xpose.msra.mxu0 0.0
  %5685 = vmatprep.subr.mxu0 0.0
  %5686 = vmatpush1.xpose.msra.mxu0 0.0
  %5687 = vmatprep.subr.mxu0 0.0
  %5688 = vmatpush1.xpose.msra.mxu0 0.0
  %5689 = vmatprep.subr.mxu0 0.0
  %5690 = vmatpush1.xpose.msra.mxu0 %v5657
  %5691 = vmatprep.subr.mxu0 0.0
  %5692 = vmatpush2.xpose.msra.mxu0 0.0
  %5693 = vmatprep.subr.mxu0 0.0
  %5694 = vmatpush2.xpose.msra.mxu0 0.0
  %5695 = vmatprep.subr.mxu0 0.0
  %5696 = vmatpush2.xpose.msra.mxu0 0.0
  %5697 = vmatprep.subr.mxu0 0.0
  %5698 = vmatpush2.xpose.msra.mxu0 0.0
  %5699 = vmatprep.subr.mxu0 0.0
  %5700 = vmatpush2.xpose.msra.mxu0 0.0
  %5701 = vmatprep.subr.mxu0 0.0
  %5702 = vmatpush2.xpose.msra.mxu0 0.0
  %5703 = vmatprep.subr.mxu0 0.0
  %5704 = vmatpush2.xpose.msra.mxu0 0.0
  %5705 = vmatprep.subr.mxu0 0.0
  %5706 = vmatpush2.xpose.msra.mxu0 0.0
  %5707 = vmatprep.subr.mxu0 0.0
  %5708 = vmatpush2.xpose.msra.mxu0 0.0
  %5709 = vmatprep.subr.mxu0 0.0
  %5710 = vmatpush2.xpose.msra.mxu0 0.0
  %5711 = vmatprep.subr.mxu0 0.0
  %5712 = vmatpush2.xpose.msra.mxu0 0.0
  %5713 = vmatprep.subr.mxu0 0.0
  %5714 = vmatpush2.xpose.msra.mxu0 0.0
  %5715 = vmatprep.subr.mxu0 0.0
  %5716 = vmatpush2.xpose.msra.mxu0 0.0
  %5717 = vmatprep.subr.mxu0 0.0
  %5718 = vmatpush2.xpose.msra.mxu0 0.0
  %5719 = vmatprep.subr.mxu0 0.0
  %5720 = vmatpush2.xpose.msra.mxu0 0.0
  %5721 = vmatprep.subr.mxu0 0.0
  %5722 = vmatpush2.xpose.msra.mxu0 0.0
  %5723 = vmatprep.mubr.f32.mxu0 0.0
  %5724 = vmatmul.mubr.f32.gmra.mxu0 %v5511
  %v5725 = vpop.f32.mrf.mxu0
  %v5726 = vadd.f32 0.0, %v5725
  %v5727 = vpop.f32.mrf.mxu0
  %5728 = vdwg.mxu0
  %v5729 = vsel %vm137, %v4922, 0
  %5731 = vmatprep.subr.mxu0 0.0
  %5732 = vmatpush1.xpose.msra.mxu0 0.0
  %5733 = vmatprep.subr.mxu0 0.0
  %5734 = vmatpush1.xpose.msra.mxu0 0.0
  %5735 = vmatprep.subr.mxu0 0.0
  %5736 = vmatpush1.xpose.msra.mxu0 0.0
  %5737 = vmatprep.subr.mxu0 0.0
  %5738 = vmatpush1.xpose.msra.mxu0 0.0
  %5739 = vmatprep.subr.mxu0 0.0
  %5740 = vmatpush1.xpose.msra.mxu0 0.0
  %5741 = vmatprep.subr.mxu0 0.0
  %5742 = vmatpush1.xpose.msra.mxu0 0.0
  %5743 = vmatprep.subr.mxu0 0.0
  %5744 = vmatpush1.xpose.msra.mxu0 0.0
  %5745 = vmatprep.subr.mxu0 0.0
  %5746 = vmatpush1.xpose.msra.mxu0 0.0
  %5747 = vmatprep.subr.mxu0 0.0
  %5748 = vmatpush1.xpose.msra.mxu0 0.0
  %5749 = vmatprep.subr.mxu0 0.0
  %5750 = vmatpush1.xpose.msra.mxu0 0.0
  %5751 = vmatprep.subr.mxu0 0.0
  %5752 = vmatpush1.xpose.msra.mxu0 0.0
  %5753 = vmatprep.subr.mxu0 0.0
  %5754 = vmatpush1.xpose.msra.mxu0 0.0
  %5755 = vmatprep.subr.mxu0 0.0
  %5756 = vmatpush1.xpose.msra.mxu0 0.0
  %5757 = vmatprep.subr.mxu0 0.0
  %5758 = vmatpush1.xpose.msra.mxu0 0.0
  %5759 = vmatprep.subr.mxu0 0.0
  %5760 = vmatpush1.xpose.msra.mxu0 0.0
  %5761 = vmatprep.subr.mxu0 0.0
  %5762 = vmatpush1.xpose.msra.mxu0 %v5729
  %5763 = vmatprep.subr.mxu0 0.0
  %5764 = vmatpush2.xpose.msra.mxu0 0.0
  %5765 = vmatprep.subr.mxu0 0.0
  %5766 = vmatpush2.xpose.msra.mxu0 0.0
  %5767 = vmatprep.subr.mxu0 0.0
  %5768 = vmatpush2.xpose.msra.mxu0 0.0
  %5769 = vmatprep.subr.mxu0 0.0
  %5770 = vmatpush2.xpose.msra.mxu0 0.0
  %5771 = vmatprep.subr.mxu0 0.0
  %5772 = vmatpush2.xpose.msra.mxu0 0.0
  %5773 = vmatprep.subr.mxu0 0.0
  %5774 = vmatpush2.xpose.msra.mxu0 0.0
  %5775 = vmatprep.subr.mxu0 0.0
  %5776 = vmatpush2.xpose.msra.mxu0 0.0
  %5777 = vmatprep.subr.mxu0 0.0
  %5778 = vmatpush2.xpose.msra.mxu0 0.0
  %5779 = vmatprep.subr.mxu0 0.0
  %5780 = vmatpush2.xpose.msra.mxu0 0.0
  %5781 = vmatprep.subr.mxu0 0.0
  %5782 = vmatpush2.xpose.msra.mxu0 0.0
  %5783 = vmatprep.subr.mxu0 0.0
  %5784 = vmatpush2.xpose.msra.mxu0 0.0
  %5785 = vmatprep.subr.mxu0 0.0
  %5786 = vmatpush2.xpose.msra.mxu0 0.0
  %5787 = vmatprep.subr.mxu0 0.0
  %5788 = vmatpush2.xpose.msra.mxu0 0.0
  %5789 = vmatprep.subr.mxu0 0.0
  %5790 = vmatpush2.xpose.msra.mxu0 0.0
  %5791 = vmatprep.subr.mxu0 0.0
  %5792 = vmatpush2.xpose.msra.mxu0 0.0
  %5793 = vmatprep.subr.mxu0 0.0
  %5794 = vmatpush2.xpose.msra.mxu0 0.0
  %5795 = vmatprep.mubr.f32.mxu0 0.0
  %5796 = vmatmul.mubr.f32.gmra.mxu0 %v5511
  %v5797 = vpop.f32.mrf.mxu0
  %v5798 = vadd.f32 0.0, %v5797
  %v5799 = vpop.f32.mrf.mxu0
  %5800 = vdwg.mxu0
  %v5801 = vsel %vm137, %v4902, 0
  %v5803 = vsel %vm137, %v4924, 0
  %5805 = vmatprep.subr.mxu0 0.0
  %5806 = vmatpush1.xpose.msra.mxu0 0.0
  %5807 = vmatprep.subr.mxu0 0.0
  %5808 = vmatpush1.xpose.msra.mxu0 0.0
  %5809 = vmatprep.subr.mxu0 0.0
  %5810 = vmatpush1.xpose.msra.mxu0 0.0
  %5811 = vmatprep.subr.mxu0 0.0
  %5812 = vmatpush1.xpose.msra.mxu0 0.0
  %5813 = vmatprep.subr.mxu0 0.0
  %5814 = vmatpush1.xpose.msra.mxu0 0.0
  %5815 = vmatprep.subr.mxu0 0.0
  %5816 = vmatpush1.xpose.msra.mxu0 0.0
  %5817 = vmatprep.subr.mxu0 0.0
  %5818 = vmatpush1.xpose.msra.mxu0 0.0
  %5819 = vmatprep.subr.mxu0 0.0
  %5820 = vmatpush1.xpose.msra.mxu0 0.0
  %5821 = vmatprep.subr.mxu0 0.0
  %5822 = vmatpush1.xpose.msra.mxu0 0.0
  %5823 = vmatprep.subr.mxu0 0.0
  %5824 = vmatpush1.xpose.msra.mxu0 0.0
  %5825 = vmatprep.subr.mxu0 0.0
  %5826 = vmatpush1.xpose.msra.mxu0 0.0
  %5827 = vmatprep.subr.mxu0 0.0
  %5828 = vmatpush1.xpose.msra.mxu0 0.0
  %5829 = vmatprep.subr.mxu0 0.0
  %5830 = vmatpush1.xpose.msra.mxu0 0.0
  %5831 = vmatprep.subr.mxu0 0.0
  %5832 = vmatpush1.xpose.msra.mxu0 0.0
  %5833 = vmatprep.subr.mxu0 0.0
  %5834 = vmatpush1.xpose.msra.mxu0 0.0
  %5835 = vmatprep.subr.mxu0 0.0
  %5836 = vmatpush1.xpose.msra.mxu0 %v5803
  %5837 = vmatprep.subr.mxu0 0.0
  %5838 = vmatpush2.xpose.msra.mxu0 0.0
  %5839 = vmatprep.subr.mxu0 0.0
  %5840 = vmatpush2.xpose.msra.mxu0 0.0
  %5841 = vmatprep.subr.mxu0 0.0
  %5842 = vmatpush2.xpose.msra.mxu0 0.0
  %5843 = vmatprep.subr.mxu0 0.0
  %5844 = vmatpush2.xpose.msra.mxu0 0.0
  %5845 = vmatprep.subr.mxu0 0.0
  %5846 = vmatpush2.xpose.msra.mxu0 0.0
  %5847 = vmatprep.subr.mxu0 0.0
  %5848 = vmatpush2.xpose.msra.mxu0 0.0
  %5849 = vmatprep.subr.mxu0 0.0
  %5850 = vmatpush2.xpose.msra.mxu0 0.0
  %5851 = vmatprep.subr.mxu0 0.0
  %5852 = vmatpush2.xpose.msra.mxu0 0.0
  %5853 = vmatprep.subr.mxu0 0.0
  %5854 = vmatpush2.xpose.msra.mxu0 0.0
  %5855 = vmatprep.subr.mxu0 0.0
  %5856 = vmatpush2.xpose.msra.mxu0 0.0
  %5857 = vmatprep.subr.mxu0 0.0
  %5858 = vmatpush2.xpose.msra.mxu0 0.0
  %5859 = vmatprep.subr.mxu0 0.0
  %5860 = vmatpush2.xpose.msra.mxu0 0.0
  %5861 = vmatprep.subr.mxu0 0.0
  %5862 = vmatpush2.xpose.msra.mxu0 0.0
  %5863 = vmatprep.subr.mxu0 0.0
  %5864 = vmatpush2.xpose.msra.mxu0 0.0
  %5865 = vmatprep.subr.mxu0 0.0
  %5866 = vmatpush2.xpose.msra.mxu0 0.0
  %5867 = vmatprep.subr.mxu0 0.0
  %5868 = vmatpush2.xpose.msra.mxu0 0.0
  %5869 = vmatprep.mubr.f32.mxu0 0.0
  %5870 = vmatmul.mubr.f32.gmra.mxu0 %v5801
  %v5871 = vpop.f32.mrf.mxu0
  %v5872 = vadd.f32 0.0, %v5871
  %v5873 = vpop.f32.mrf.mxu0
  %5874 = vdwg.mxu0
  %v5875 = vsel %vm137, %v4926, 0
  %5877 = vmatprep.subr.mxu0 0.0
  %5878 = vmatpush1.xpose.msra.mxu0 0.0
  %5879 = vmatprep.subr.mxu0 0.0
  %5880 = vmatpush1.xpose.msra.mxu0 0.0
  %5881 = vmatprep.subr.mxu0 0.0
  %5882 = vmatpush1.xpose.msra.mxu0 0.0
  %5883 = vmatprep.subr.mxu0 0.0
  %5884 = vmatpush1.xpose.msra.mxu0 0.0
  %5885 = vmatprep.subr.mxu0 0.0
  %5886 = vmatpush1.xpose.msra.mxu0 0.0
  %5887 = vmatprep.subr.mxu0 0.0
  %5888 = vmatpush1.xpose.msra.mxu0 0.0
  %5889 = vmatprep.subr.mxu0 0.0
  %5890 = vmatpush1.xpose.msra.mxu0 0.0
  %5891 = vmatprep.subr.mxu0 0.0
  %5892 = vmatpush1.xpose.msra.mxu0 0.0
  %5893 = vmatprep.subr.mxu0 0.0
  %5894 = vmatpush1.xpose.msra.mxu0 0.0
  %5895 = vmatprep.subr.mxu0 0.0
  %5896 = vmatpush1.xpose.msra.mxu0 0.0
  %5897 = vmatprep.subr.mxu0 0.0
  %5898 = vmatpush1.xpose.msra.mxu0 0.0
  %5899 = vmatprep.subr.mxu0 0.0
  %5900 = vmatpush1.xpose.msra.mxu0 0.0
  %5901 = vmatprep.subr.mxu0 0.0
  %5902 = vmatpush1.xpose.msra.mxu0 0.0
  %5903 = vmatprep.subr.mxu0 0.0
  %5904 = vmatpush1.xpose.msra.mxu0 0.0
  %5905 = vmatprep.subr.mxu0 0.0
  %5906 = vmatpush1.xpose.msra.mxu0 0.0
  %5907 = vmatprep.subr.mxu0 0.0
  %5908 = vmatpush1.xpose.msra.mxu0 %v5875
  %5909 = vmatprep.subr.mxu0 0.0
  %5910 = vmatpush2.xpose.msra.mxu0 0.0
  %5911 = vmatprep.subr.mxu0 0.0
  %5912 = vmatpush2.xpose.msra.mxu0 0.0
  %5913 = vmatprep.subr.mxu0 0.0
  %5914 = vmatpush2.xpose.msra.mxu0 0.0
  %5915 = vmatprep.subr.mxu0 0.0
  %5916 = vmatpush2.xpose.msra.mxu0 0.0
  %5917 = vmatprep.subr.mxu0 0.0
  %5918 = vmatpush2.xpose.msra.mxu0 0.0
  %5919 = vmatprep.subr.mxu0 0.0
  %5920 = vmatpush2.xpose.msra.mxu0 0.0
  %5921 = vmatprep.subr.mxu0 0.0
  %5922 = vmatpush2.xpose.msra.mxu0 0.0
  %5923 = vmatprep.subr.mxu0 0.0
  %5924 = vmatpush2.xpose.msra.mxu0 0.0
  %5925 = vmatprep.subr.mxu0 0.0
  %5926 = vmatpush2.xpose.msra.mxu0 0.0
  %5927 = vmatprep.subr.mxu0 0.0
  %5928 = vmatpush2.xpose.msra.mxu0 0.0
  %5929 = vmatprep.subr.mxu0 0.0
  %5930 = vmatpush2.xpose.msra.mxu0 0.0
  %5931 = vmatprep.subr.mxu0 0.0
  %5932 = vmatpush2.xpose.msra.mxu0 0.0
  %5933 = vmatprep.subr.mxu0 0.0
  %5934 = vmatpush2.xpose.msra.mxu0 0.0
  %5935 = vmatprep.subr.mxu0 0.0
  %5936 = vmatpush2.xpose.msra.mxu0 0.0
  %5937 = vmatprep.subr.mxu0 0.0
  %5938 = vmatpush2.xpose.msra.mxu0 0.0
  %5939 = vmatprep.subr.mxu0 0.0
  %5940 = vmatpush2.xpose.msra.mxu0 0.0
  %5941 = vmatprep.mubr.f32.mxu0 0.0
  %5942 = vmatmul.mubr.f32.gmra.mxu0 %v5801
  %v5943 = vpop.f32.mrf.mxu0
  %v5944 = vadd.f32 0.0, %v5943
  %v5945 = vpop.f32.mrf.mxu0
  %5946 = vdwg.mxu0
  %v5947 = vsel %vm137, %v4928, 0
  %5949 = vmatprep.subr.mxu0 0.0
  %5950 = vmatpush1.xpose.msra.mxu0 0.0
  %5951 = vmatprep.subr.mxu0 0.0
  %5952 = vmatpush1.xpose.msra.mxu0 0.0
  %5953 = vmatprep.subr.mxu0 0.0
  %5954 = vmatpush1.xpose.msra.mxu0 0.0
  %5955 = vmatprep.subr.mxu0 0.0
  %5956 = vmatpush1.xpose.msra.mxu0 0.0
  %5957 = vmatprep.subr.mxu0 0.0
  %5958 = vmatpush1.xpose.msra.mxu0 0.0
  %5959 = vmatprep.subr.mxu0 0.0
  %5960 = vmatpush1.xpose.msra.mxu0 0.0
  %5961 = vmatprep.subr.mxu0 0.0
  %5962 = vmatpush1.xpose.msra.mxu0 0.0
  %5963 = vmatprep.subr.mxu0 0.0
  %5964 = vmatpush1.xpose.msra.mxu0 0.0
  %5965 = vmatprep.subr.mxu0 0.0
  %5966 = vmatpush1.xpose.msra.mxu0 0.0
  %5967 = vmatprep.subr.mxu0 0.0
  %5968 = vmatpush1.xpose.msra.mxu0 0.0
  %5969 = vmatprep.subr.mxu0 0.0
  %5970 = vmatpush1.xpose.msra.mxu0 0.0
  %5971 = vmatprep.subr.mxu0 0.0
  %5972 = vmatpush1.xpose.msra.mxu0 0.0
  %5973 = vmatprep.subr.mxu0 0.0
  %5974 = vmatpush1.xpose.msra.mxu0 0.0
  %5975 = vmatprep.subr.mxu0 0.0
  %5976 = vmatpush1.xpose.msra.mxu0 0.0
  %5977 = vmatprep.subr.mxu0 0.0
  %5978 = vmatpush1.xpose.msra.mxu0 0.0
  %5979 = vmatprep.subr.mxu0 0.0
  %5980 = vmatpush1.xpose.msra.mxu0 %v5947
  %5981 = vmatprep.subr.mxu0 0.0
  %5982 = vmatpush2.xpose.msra.mxu0 0.0
  %5983 = vmatprep.subr.mxu0 0.0
  %5984 = vmatpush2.xpose.msra.mxu0 0.0
  %5985 = vmatprep.subr.mxu0 0.0
  %5986 = vmatpush2.xpose.msra.mxu0 0.0
  %5987 = vmatprep.subr.mxu0 0.0
  %5988 = vmatpush2.xpose.msra.mxu0 0.0
  %5989 = vmatprep.subr.mxu0 0.0
  %5990 = vmatpush2.xpose.msra.mxu0 0.0
  %5991 = vmatprep.subr.mxu0 0.0
  %5992 = vmatpush2.xpose.msra.mxu0 0.0
  %5993 = vmatprep.subr.mxu0 0.0
  %5994 = vmatpush2.xpose.msra.mxu0 0.0
  %5995 = vmatprep.subr.mxu0 0.0
  %5996 = vmatpush2.xpose.msra.mxu0 0.0
  %5997 = vmatprep.subr.mxu0 0.0
  %5998 = vmatpush2.xpose.msra.mxu0 0.0
  %5999 = vmatprep.subr.mxu0 0.0
  %6000 = vmatpush2.xpose.msra.mxu0 0.0
  %6001 = vmatprep.subr.mxu0 0.0
  %6002 = vmatpush2.xpose.msra.mxu0 0.0
  %6003 = vmatprep.subr.mxu0 0.0
  %6004 = vmatpush2.xpose.msra.mxu0 0.0
  %6005 = vmatprep.subr.mxu0 0.0
  %6006 = vmatpush2.xpose.msra.mxu0 0.0
  %6007 = vmatprep.subr.mxu0 0.0
  %6008 = vmatpush2.xpose.msra.mxu0 0.0
  %6009 = vmatprep.subr.mxu0 0.0
  %6010 = vmatpush2.xpose.msra.mxu0 0.0
  %6011 = vmatprep.subr.mxu0 0.0
  %6012 = vmatpush2.xpose.msra.mxu0 0.0
  %6013 = vmatprep.mubr.f32.mxu0 0.0
  %6014 = vmatmul.mubr.f32.gmra.mxu0 %v5801
  %v6015 = vpop.f32.mrf.mxu0
  %v6016 = vadd.f32 0.0, %v6015
  %v6017 = vpop.f32.mrf.mxu0
  %6018 = vdwg.mxu0
  %v6019 = vsel %vm137, %v4930, 0
  %6021 = vmatprep.subr.mxu0 0.0
  %6022 = vmatpush1.xpose.msra.mxu0 0.0
  %6023 = vmatprep.subr.mxu0 0.0
  %6024 = vmatpush1.xpose.msra.mxu0 0.0
  %6025 = vmatprep.subr.mxu0 0.0
  %6026 = vmatpush1.xpose.msra.mxu0 0.0
  %6027 = vmatprep.subr.mxu0 0.0
  %6028 = vmatpush1.xpose.msra.mxu0 0.0
  %6029 = vmatprep.subr.mxu0 0.0
  %6030 = vmatpush1.xpose.msra.mxu0 0.0
  %6031 = vmatprep.subr.mxu0 0.0
  %6032 = vmatpush1.xpose.msra.mxu0 0.0
  %6033 = vmatprep.subr.mxu0 0.0
  %6034 = vmatpush1.xpose.msra.mxu0 0.0
  %6035 = vmatprep.subr.mxu0 0.0
  %6036 = vmatpush1.xpose.msra.mxu0 0.0
  %6037 = vmatprep.subr.mxu0 0.0
  %6038 = vmatpush1.xpose.msra.mxu0 0.0
  %6039 = vmatprep.subr.mxu0 0.0
  %6040 = vmatpush1.xpose.msra.mxu0 0.0
  %6041 = vmatprep.subr.mxu0 0.0
  %6042 = vmatpush1.xpose.msra.mxu0 0.0
  %6043 = vmatprep.subr.mxu0 0.0
  %6044 = vmatpush1.xpose.msra.mxu0 0.0
  %6045 = vmatprep.subr.mxu0 0.0
  %6046 = vmatpush1.xpose.msra.mxu0 0.0
  %6047 = vmatprep.subr.mxu0 0.0
  %6048 = vmatpush1.xpose.msra.mxu0 0.0
  %6049 = vmatprep.subr.mxu0 0.0
  %6050 = vmatpush1.xpose.msra.mxu0 0.0
  %6051 = vmatprep.subr.mxu0 0.0
  %6052 = vmatpush1.xpose.msra.mxu0 %v6019
  %6053 = vmatprep.subr.mxu0 0.0
  %6054 = vmatpush2.xpose.msra.mxu0 0.0
  %6055 = vmatprep.subr.mxu0 0.0
  %6056 = vmatpush2.xpose.msra.mxu0 0.0
  %6057 = vmatprep.subr.mxu0 0.0
  %6058 = vmatpush2.xpose.msra.mxu0 0.0
  %6059 = vmatprep.subr.mxu0 0.0
  %6060 = vmatpush2.xpose.msra.mxu0 0.0
  %6061 = vmatprep.subr.mxu0 0.0
  %6062 = vmatpush2.xpose.msra.mxu0 0.0
  %6063 = vmatprep.subr.mxu0 0.0
  %6064 = vmatpush2.xpose.msra.mxu0 0.0
  %6065 = vmatprep.subr.mxu0 0.0
  %6066 = vmatpush2.xpose.msra.mxu0 0.0
  %6067 = vmatprep.subr.mxu0 0.0
  %6068 = vmatpush2.xpose.msra.mxu0 0.0
  %6069 = vmatprep.subr.mxu0 0.0
  %6070 = vmatpush2.xpose.msra.mxu0 0.0
  %6071 = vmatprep.subr.mxu0 0.0
  %6072 = vmatpush2.xpose.msra.mxu0 0.0
  %6073 = vmatprep.subr.mxu0 0.0
  %6074 = vmatpush2.xpose.msra.mxu0 0.0
  %6075 = vmatprep.subr.mxu0 0.0
  %6076 = vmatpush2.xpose.msra.mxu0 0.0
  %6077 = vmatprep.subr.mxu0 0.0
  %6078 = vmatpush2.xpose.msra.mxu0 0.0
  %6079 = vmatprep.subr.mxu0 0.0
  %6080 = vmatpush2.xpose.msra.mxu0 0.0
  %6081 = vmatprep.subr.mxu0 0.0
  %6082 = vmatpush2.xpose.msra.mxu0 0.0
  %6083 = vmatprep.subr.mxu0 0.0
  %6084 = vmatpush2.xpose.msra.mxu0 0.0
  %6085 = vmatprep.mubr.f32.mxu0 0.0
  %6086 = vmatmul.mubr.f32.gmra.mxu0 %v5801
  %v6087 = vpop.f32.mrf.mxu0
  %v6088 = vadd.f32 0.0, %v6087
  %v6089 = vpop.f32.mrf.mxu0
  %6090 = vdwg.mxu0
  %v6091 = vmul.f32 %v5002, 0.35355338
  %v6092 = vmul.f32 %v5074, 0.35355338
  %v6093 = vmul.f32 %v5146, 0.35355338
  %v6094 = vmul.f32 %v5218, 0.35355338
  %v6095 = vmul.f32 %v5292, 0.35355338
  %v6096 = vmul.f32 %v5364, 0.35355338
  %v6097 = vmul.f32 %v5436, 0.35355338
  %v6098 = vmul.f32 %v5508, 0.35355338
  %v6099 = vmul.f32 %v5582, 0.35355338
  %v6100 = vmul.f32 %v5654, 0.35355338
  %v6101 = vmul.f32 %v5726, 0.35355338
  %v6102 = vmul.f32 %v5798, 0.35355338
  %v6103 = vmul.f32 %v5872, 0.35355338
  %v6104 = vmul.f32 %v5944, 0.35355338
  %v6105 = vmul.f32 %v6016, 0.35355338
  %v6106 = vmul.f32 %v6088, 0.35355338
  %v6107 = vlaneseq
  %v6108 = vshrl.u32 %v6107, 7
  %v6109 = vsub.s32 0, %v6108
  %v6110 = vrot.slane %v3687, %v6109
  %v6111 = vlaneseq
  %v6112 = vshrl.u32 %v6111, 7
  %v6113 = vsub.s32 0, %v6112
  %v6114 = vrot.slane %v3688, %v6113
  %v6115 = vadd.f32 %v6091, %v6110
  %v6116 = vadd.f32 %v6092, %v6110
  %v6117 = vadd.f32 %v6093, %v6114
  %v6118 = vadd.f32 %v6094, %v6114
  %v6119 = vadd.f32 %v6095, %v6110
  %v6120 = vadd.f32 %v6096, %v6110
  %v6121 = vadd.f32 %v6097, %v6114
  %v6122 = vadd.f32 %v6098, %v6114
  %v6123 = vadd.f32 %v6099, %v6110
  %v6124 = vadd.f32 %v6100, %v6110
  %v6125 = vadd.f32 %v6101, %v6114
  %v6126 = vadd.f32 %v6102, %v6114
  %v6127 = vadd.f32 %v6103, %v6110
  %v6128 = vadd.f32 %v6104, %v6110
  %v6129 = vadd.f32 %v6105, %v6114
  %v6130 = vadd.f32 %v6106, %v6114
  %v6131 = vsel %vm137, %v6115, -inf
  %6132 = vmax.xlane.f32.xlu0 %v6131
  %v6133 = vpop.xlane.xlu0 %6132
  %v6134 = vsel %vm137, %v6116, -inf
  %6135 = vmax.xlane.f32.xlu0 %v6134
  %v6136 = vpop.xlane.xlu0 %6135
  %v6137 = vsel %vm137, %v6117, -inf
  %6138 = vmax.xlane.f32.xlu0 %v6137
  %v6139 = vpop.xlane.xlu0 %6138
  %v6140 = vsel %vm137, %v6118, -inf
  %6141 = vmax.xlane.f32.xlu0 %v6140
  %v6142 = vpop.xlane.xlu0 %6141
  %v6143 = vsel %vm137, %v6119, -inf
  %6144 = vmax.xlane.f32.xlu0 %v6143
  %v6145 = vpop.xlane.xlu0 %6144
  %v6146 = vsel %vm137, %v6120, -inf
  %6147 = vmax.xlane.f32.xlu0 %v6146
  %v6148 = vpop.xlane.xlu0 %6147
  %v6149 = vsel %vm137, %v6121, -inf
  %6150 = vmax.xlane.f32.xlu0 %v6149
  %v6151 = vpop.xlane.xlu0 %6150
  %v6152 = vsel %vm137, %v6122, -inf
  %6153 = vmax.xlane.f32.xlu0 %v6152
  %v6154 = vpop.xlane.xlu0 %6153
  %v6155 = vsel %vm137, %v6123, -inf
  %6156 = vmax.xlane.f32.xlu0 %v6155
  %v6157 = vpop.xlane.xlu0 %6156
  %v6158 = vsel %vm137, %v6124, -inf
  %6159 = vmax.xlane.f32.xlu0 %v6158
  %v6160 = vpop.xlane.xlu0 %6159
  %v6161 = vsel %vm137, %v6125, -inf
  %6162 = vmax.xlane.f32.xlu0 %v6161
  %v6163 = vpop.xlane.xlu0 %6162
  %v6164 = vsel %vm137, %v6126, -inf
  %6165 = vmax.xlane.f32.xlu0 %v6164
  %v6166 = vpop.xlane.xlu0 %6165
  %v6167 = vsel %vm137, %v6127, -inf
  %6168 = vmax.xlane.f32.xlu0 %v6167
  %v6169 = vpop.xlane.xlu0 %6168
  %v6170 = vsel %vm137, %v6128, -inf
  %6171 = vmax.xlane.f32.xlu0 %v6170
  %v6172 = vpop.xlane.xlu0 %6171
  %v6173 = vsel %vm137, %v6129, -inf
  %6174 = vmax.xlane.f32.xlu0 %v6173
  %v6175 = vpop.xlane.xlu0 %6174
  %v6176 = vsel %vm137, %v6130, -inf
  %6177 = vmax.xlane.f32.xlu0 %v6176
  %v6178 = vpop.xlane.xlu0 %6177
  %v6179 = vsub.f32 %v6115, %v6133
  %v6180 = vsub.f32 %v6116, %v6136
  %v6181 = vsub.f32 %v6117, %v6139
  %v6182 = vsub.f32 %v6118, %v6142
  %v6183 = vsub.f32 %v6119, %v6145
  %v6184 = vsub.f32 %v6120, %v6148
  %v6185 = vsub.f32 %v6121, %v6151
  %v6186 = vsub.f32 %v6122, %v6154
  %v6187 = vsub.f32 %v6123, %v6157
  %v6188 = vsub.f32 %v6124, %v6160
  %v6189 = vsub.f32 %v6125, %v6163
  %v6190 = vsub.f32 %v6126, %v6166
  %v6191 = vsub.f32 %v6127, %v6169
  %v6192 = vsub.f32 %v6128, %v6172
  %v6193 = vsub.f32 %v6129, %v6175
  %v6194 = vsub.f32 %v6130, %v6178
  %v6195 = vmul.f32 %v6179, 1.442695
  %v6196 = vpow.pop %v6195
  %v6197 = vmul.f32 %v6180, 1.442695
  %v6198 = vpow.pop %v6197
  %v6199 = vmul.f32 %v6181, 1.442695
  %v6200 = vpow.pop %v6199
  %v6201 = vmul.f32 %v6182, 1.442695
  %v6202 = vpow.pop %v6201
  %v6203 = vmul.f32 %v6183, 1.442695
  %v6204 = vpow.pop %v6203
  %v6205 = vmul.f32 %v6184, 1.442695
  %v6206 = vpow.pop %v6205
  %v6207 = vmul.f32 %v6185, 1.442695
  %v6208 = vpow.pop %v6207
  %v6209 = vmul.f32 %v6186, 1.442695
  %v6210 = vpow.pop %v6209
  %v6211 = vmul.f32 %v6187, 1.442695
  %v6212 = vpow.pop %v6211
  %v6213 = vmul.f32 %v6188, 1.442695
  %v6214 = vpow.pop %v6213
  %v6215 = vmul.f32 %v6189, 1.442695
  %v6216 = vpow.pop %v6215
  %v6217 = vmul.f32 %v6190, 1.442695
  %v6218 = vpow.pop %v6217
  %v6219 = vmul.f32 %v6191, 1.442695
  %v6220 = vpow.pop %v6219
  %v6221 = vmul.f32 %v6192, 1.442695
  %v6222 = vpow.pop %v6221
  %v6223 = vmul.f32 %v6193, 1.442695
  %v6224 = vpow.pop %v6223
  %v6225 = vmul.f32 %v6194, 1.442695
  %v6226 = vpow.pop %v6225
  %v6227 = vsel %vm137, %v6196, 0.0
  %6228 = vadd.xlane.f32.xlu0 %v6227
  %v6229 = vpop.xlane.xlu0 %6228
  %v6230 = vsel %vm137, %v6198, 0.0
  %6231 = vadd.xlane.f32.xlu0 %v6230
  %v6232 = vpop.xlane.xlu0 %6231
  %v6233 = vsel %vm137, %v6200, 0.0
  %6234 = vadd.xlane.f32.xlu0 %v6233
  %v6235 = vpop.xlane.xlu0 %6234
  %v6236 = vsel %vm137, %v6202, 0.0
  %6237 = vadd.xlane.f32.xlu0 %v6236
  %v6238 = vpop.xlane.xlu0 %6237
  %v6239 = vsel %vm137, %v6204, 0.0
  %6240 = vadd.xlane.f32.xlu0 %v6239
  %v6241 = vpop.xlane.xlu0 %6240
  %v6242 = vsel %vm137, %v6206, 0.0
  %6243 = vadd.xlane.f32.xlu0 %v6242
  %v6244 = vpop.xlane.xlu0 %6243
  %v6245 = vsel %vm137, %v6208, 0.0
  %6246 = vadd.xlane.f32.xlu0 %v6245
  %v6247 = vpop.xlane.xlu0 %6246
  %v6248 = vsel %vm137, %v6210, 0.0
  %6249 = vadd.xlane.f32.xlu0 %v6248
  %v6250 = vpop.xlane.xlu0 %6249
  %v6251 = vsel %vm137, %v6212, 0.0
  %6252 = vadd.xlane.f32.xlu0 %v6251
  %v6253 = vpop.xlane.xlu0 %6252
  %v6254 = vsel %vm137, %v6214, 0.0
  %6255 = vadd.xlane.f32.xlu0 %v6254
  %v6256 = vpop.xlane.xlu0 %6255
  %v6257 = vsel %vm137, %v6216, 0.0
  %6258 = vadd.xlane.f32.xlu0 %v6257
  %v6259 = vpop.xlane.xlu0 %6258
  %v6260 = vsel %vm137, %v6218, 0.0
  %6261 = vadd.xlane.f32.xlu0 %v6260
  %v6262 = vpop.xlane.xlu0 %6261
  %v6263 = vsel %vm137, %v6220, 0.0
  %6264 = vadd.xlane.f32.xlu0 %v6263
  %v6265 = vpop.xlane.xlu0 %6264
  %v6266 = vsel %vm137, %v6222, 0.0
  %6267 = vadd.xlane.f32.xlu0 %v6266
  %v6268 = vpop.xlane.xlu0 %6267
  %v6269 = vsel %vm137, %v6224, 0.0
  %6270 = vadd.xlane.f32.xlu0 %v6269
  %v6271 = vpop.xlane.xlu0 %6270
  %v6272 = vsel %vm137, %v6226, 0.0
  %6273 = vadd.xlane.f32.xlu0 %v6272
  %v6274 = vpop.xlane.xlu0 %6273
  %v6275 = vrcp.pop %v6229
  %v6276 = vmul.f32 %v6196, %v6275
  %v6277 = vrcp.pop %v6232
  %v6278 = vmul.f32 %v6198, %v6277
  %v6279 = vrcp.pop %v6235
  %v6280 = vmul.f32 %v6200, %v6279
  %v6281 = vrcp.pop %v6238
  %v6282 = vmul.f32 %v6202, %v6281
  %v6283 = vrcp.pop %v6241
  %v6284 = vmul.f32 %v6204, %v6283
  %v6285 = vrcp.pop %v6244
  %v6286 = vmul.f32 %v6206, %v6285
  %v6287 = vrcp.pop %v6247
  %v6288 = vmul.f32 %v6208, %v6287
  %v6289 = vrcp.pop %v6250
  %v6290 = vmul.f32 %v6210, %v6289
  %v6291 = vrcp.pop %v6253
  %v6292 = vmul.f32 %v6212, %v6291
  %v6293 = vrcp.pop %v6256
  %v6294 = vmul.f32 %v6214, %v6293
  %v6295 = vrcp.pop %v6259
  %v6296 = vmul.f32 %v6216, %v6295
  %v6297 = vrcp.pop %v6262
  %v6298 = vmul.f32 %v6218, %v6297
  %v6299 = vrcp.pop %v6265
  %v6300 = vmul.f32 %v6220, %v6299
  %v6301 = vrcp.pop %v6268
  %v6302 = vmul.f32 %v6222, %v6301
  %v6303 = vrcp.pop %v6271
  %v6304 = vmul.f32 %v6224, %v6303
  %v6305 = vrcp.pop %v6274
  %v6306 = vmul.f32 %v6226, %v6305
  %6307 = vrot.lane.b32.xlu0 %v4790, 96
  %v6308 = vpop.permute.xlu0 %6307
  %v6311 = vsel %vm137, %v6276, 0
  %6313 = vmatprep.subr.mxu0 0.0
  %6314 = vmatpush1.msra.mxu0 0.0
  %6315 = vmatprep.subr.mxu0 0.0
  %6316 = vmatpush1.msra.mxu0 0.0
  %6317 = vmatprep.subr.mxu0 0.0
  %6318 = vmatpush1.msra.mxu0 0.0
  %6319 = vmatprep.subr.mxu0 0.0
  %6320 = vmatpush1.msra.mxu0 0.0
  %6321 = vmatprep.subr.mxu0 0.0
  %6322 = vmatpush1.msra.mxu0 0.0
  %6323 = vmatprep.subr.mxu0 0.0
  %6324 = vmatpush1.msra.mxu0 0.0
  %6325 = vmatprep.subr.mxu0 0.0
  %6326 = vmatpush1.msra.mxu0 0.0
  %6327 = vmatprep.subr.mxu0 0.0
  %6328 = vmatpush1.msra.mxu0 0.0
  %6329 = vmatprep.subr.mxu0 0.0
  %6330 = vmatpush1.msra.mxu0 0.0
  %6331 = vmatprep.subr.mxu0 0.0
  %6332 = vmatpush1.msra.mxu0 0.0
  %6333 = vmatprep.subr.mxu0 0.0
  %6334 = vmatpush1.msra.mxu0 0.0
  %6335 = vmatprep.subr.mxu0 0.0
  %6336 = vmatpush1.msra.mxu0 0.0
  %6337 = vmatprep.subr.mxu0 0.0
  %6338 = vmatpush1.msra.mxu0 0.0
  %6339 = vmatprep.subr.mxu0 0.0
  %6340 = vmatpush1.msra.mxu0 0.0
  %6341 = vmatprep.subr.mxu0 0.0
  %6342 = vmatpush1.msra.mxu0 0.0
  %6343 = vmatprep.subr.mxu0 0.0
  %6344 = vmatpush1.msra.mxu0 %v6308
  %6345 = vmatprep.subr.mxu0 0.0
  %6346 = vmatpush2.msra.mxu0 0.0
  %6347 = vmatprep.subr.mxu0 0.0
  %6348 = vmatpush2.msra.mxu0 0.0
  %6349 = vmatprep.subr.mxu0 0.0
  %6350 = vmatpush2.msra.mxu0 0.0
  %6351 = vmatprep.subr.mxu0 0.0
  %6352 = vmatpush2.msra.mxu0 0.0
  %6353 = vmatprep.subr.mxu0 0.0
  %6354 = vmatpush2.msra.mxu0 0.0
  %6355 = vmatprep.subr.mxu0 0.0
  %6356 = vmatpush2.msra.mxu0 0.0
  %6357 = vmatprep.subr.mxu0 0.0
  %6358 = vmatpush2.msra.mxu0 0.0
  %6359 = vmatprep.subr.mxu0 0.0
  %6360 = vmatpush2.msra.mxu0 0.0
  %6361 = vmatprep.subr.mxu0 0.0
  %6362 = vmatpush2.msra.mxu0 0.0
  %6363 = vmatprep.subr.mxu0 0.0
  %6364 = vmatpush2.msra.mxu0 0.0
  %6365 = vmatprep.subr.mxu0 0.0
  %6366 = vmatpush2.msra.mxu0 0.0
  %6367 = vmatprep.subr.mxu0 0.0
  %6368 = vmatpush2.msra.mxu0 0.0
  %6369 = vmatprep.subr.mxu0 0.0
  %6370 = vmatpush2.msra.mxu0 0.0
  %6371 = vmatprep.subr.mxu0 0.0
  %6372 = vmatpush2.msra.mxu0 0.0
  %6373 = vmatprep.subr.mxu0 0.0
  %6374 = vmatpush2.msra.mxu0 0.0
  %6375 = vmatprep.subr.mxu0 0.0
  %6376 = vmatpush2.msra.mxu0 0.0
  %6377 = vmatprep.mubr.f32.mxu0 0.0
  %6378 = vmatmul.mubr.f32.gmra.mxu0 %v6311
  %v6379 = vpop.f32.mrf.mxu0
  %v6380 = vadd.f32 0.0, %v6379
  %v6381 = vpop.f32.mrf.mxu0
  %6382 = vdwg.mxu0
  %6383 = vrot.lane.b32.xlu0 %v4795, 96
  %v6384 = vpop.permute.xlu0 %6383
  %v6387 = vsel %vm137, %v6278, 0
  %6389 = vmatprep.subr.mxu0 0.0
  %6390 = vmatpush1.msra.mxu0 0.0
  %6391 = vmatprep.subr.mxu0 0.0
  %6392 = vmatpush1.msra.mxu0 0.0
  %6393 = vmatprep.subr.mxu0 0.0
  %6394 = vmatpush1.msra.mxu0 0.0
  %6395 = vmatprep.subr.mxu0 0.0
  %6396 = vmatpush1.msra.mxu0 0.0
  %6397 = vmatprep.subr.mxu0 0.0
  %6398 = vmatpush1.msra.mxu0 0.0
  %6399 = vmatprep.subr.mxu0 0.0
  %6400 = vmatpush1.msra.mxu0 0.0
  %6401 = vmatprep.subr.mxu0 0.0
  %6402 = vmatpush1.msra.mxu0 0.0
  %6403 = vmatprep.subr.mxu0 0.0
  %6404 = vmatpush1.msra.mxu0 0.0
  %6405 = vmatprep.subr.mxu0 0.0
  %6406 = vmatpush1.msra.mxu0 0.0
  %6407 = vmatprep.subr.mxu0 0.0
  %6408 = vmatpush1.msra.mxu0 0.0
  %6409 = vmatprep.subr.mxu0 0.0
  %6410 = vmatpush1.msra.mxu0 0.0
  %6411 = vmatprep.subr.mxu0 0.0
  %6412 = vmatpush1.msra.mxu0 0.0
  %6413 = vmatprep.subr.mxu0 0.0
  %6414 = vmatpush1.msra.mxu0 0.0
  %6415 = vmatprep.subr.mxu0 0.0
  %6416 = vmatpush1.msra.mxu0 0.0
  %6417 = vmatprep.subr.mxu0 0.0
  %6418 = vmatpush1.msra.mxu0 0.0
  %6419 = vmatprep.subr.mxu0 0.0
  %6420 = vmatpush1.msra.mxu0 %v6384
  %6421 = vmatprep.subr.mxu0 0.0
  %6422 = vmatpush2.msra.mxu0 0.0
  %6423 = vmatprep.subr.mxu0 0.0
  %6424 = vmatpush2.msra.mxu0 0.0
  %6425 = vmatprep.subr.mxu0 0.0
  %6426 = vmatpush2.msra.mxu0 0.0
  %6427 = vmatprep.subr.mxu0 0.0
  %6428 = vmatpush2.msra.mxu0 0.0
  %6429 = vmatprep.subr.mxu0 0.0
  %6430 = vmatpush2.msra.mxu0 0.0
  %6431 = vmatprep.subr.mxu0 0.0
  %6432 = vmatpush2.msra.mxu0 0.0
  %6433 = vmatprep.subr.mxu0 0.0
  %6434 = vmatpush2.msra.mxu0 0.0
  %6435 = vmatprep.subr.mxu0 0.0
  %6436 = vmatpush2.msra.mxu0 0.0
  %6437 = vmatprep.subr.mxu0 0.0
  %6438 = vmatpush2.msra.mxu0 0.0
  %6439 = vmatprep.subr.mxu0 0.0
  %6440 = vmatpush2.msra.mxu0 0.0
  %6441 = vmatprep.subr.mxu0 0.0
  %6442 = vmatpush2.msra.mxu0 0.0
  %6443 = vmatprep.subr.mxu0 0.0
  %6444 = vmatpush2.msra.mxu0 0.0
  %6445 = vmatprep.subr.mxu0 0.0
  %6446 = vmatpush2.msra.mxu0 0.0
  %6447 = vmatprep.subr.mxu0 0.0
  %6448 = vmatpush2.msra.mxu0 0.0
  %6449 = vmatprep.subr.mxu0 0.0
  %6450 = vmatpush2.msra.mxu0 0.0
  %6451 = vmatprep.subr.mxu0 0.0
  %6452 = vmatpush2.msra.mxu0 0.0
  %6453 = vmatprep.mubr.f32.mxu0 0.0
  %6454 = vmatmul.mubr.f32.gmra.mxu0 %v6387
  %v6455 = vpop.f32.mrf.mxu0
  %v6456 = vadd.f32 0.0, %v6455
  %v6457 = vpop.f32.mrf.mxu0
  %6458 = vdwg.mxu0
  %6459 = vrot.lane.b32.xlu0 %v4800, 96
  %v6460 = vpop.permute.xlu0 %6459
  %v6463 = vsel %vm137, %v6280, 0
  %6465 = vmatprep.subr.mxu0 0.0
  %6466 = vmatpush1.msra.mxu0 0.0
  %6467 = vmatprep.subr.mxu0 0.0
  %6468 = vmatpush1.msra.mxu0 0.0
  %6469 = vmatprep.subr.mxu0 0.0
  %6470 = vmatpush1.msra.mxu0 0.0
  %6471 = vmatprep.subr.mxu0 0.0
  %6472 = vmatpush1.msra.mxu0 0.0
  %6473 = vmatprep.subr.mxu0 0.0
  %6474 = vmatpush1.msra.mxu0 0.0
  %6475 = vmatprep.subr.mxu0 0.0
  %6476 = vmatpush1.msra.mxu0 0.0
  %6477 = vmatprep.subr.mxu0 0.0
  %6478 = vmatpush1.msra.mxu0 0.0
  %6479 = vmatprep.subr.mxu0 0.0
  %6480 = vmatpush1.msra.mxu0 0.0
  %6481 = vmatprep.subr.mxu0 0.0
  %6482 = vmatpush1.msra.mxu0 0.0
  %6483 = vmatprep.subr.mxu0 0.0
  %6484 = vmatpush1.msra.mxu0 0.0
  %6485 = vmatprep.subr.mxu0 0.0
  %6486 = vmatpush1.msra.mxu0 0.0
  %6487 = vmatprep.subr.mxu0 0.0
  %6488 = vmatpush1.msra.mxu0 0.0
  %6489 = vmatprep.subr.mxu0 0.0
  %6490 = vmatpush1.msra.mxu0 0.0
  %6491 = vmatprep.subr.mxu0 0.0
  %6492 = vmatpush1.msra.mxu0 0.0
  %6493 = vmatprep.subr.mxu0 0.0
  %6494 = vmatpush1.msra.mxu0 0.0
  %6495 = vmatprep.subr.mxu0 0.0
  %6496 = vmatpush1.msra.mxu0 %v6460
  %6497 = vmatprep.subr.mxu0 0.0
  %6498 = vmatpush2.msra.mxu0 0.0
  %6499 = vmatprep.subr.mxu0 0.0
  %6500 = vmatpush2.msra.mxu0 0.0
  %6501 = vmatprep.subr.mxu0 0.0
  %6502 = vmatpush2.msra.mxu0 0.0
  %6503 = vmatprep.subr.mxu0 0.0
  %6504 = vmatpush2.msra.mxu0 0.0
  %6505 = vmatprep.subr.mxu0 0.0
  %6506 = vmatpush2.msra.mxu0 0.0
  %6507 = vmatprep.subr.mxu0 0.0
  %6508 = vmatpush2.msra.mxu0 0.0
  %6509 = vmatprep.subr.mxu0 0.0
  %6510 = vmatpush2.msra.mxu0 0.0
  %6511 = vmatprep.subr.mxu0 0.0
  %6512 = vmatpush2.msra.mxu0 0.0
  %6513 = vmatprep.subr.mxu0 0.0
  %6514 = vmatpush2.msra.mxu0 0.0
  %6515 = vmatprep.subr.mxu0 0.0
  %6516 = vmatpush2.msra.mxu0 0.0
  %6517 = vmatprep.subr.mxu0 0.0
  %6518 = vmatpush2.msra.mxu0 0.0
  %6519 = vmatprep.subr.mxu0 0.0
  %6520 = vmatpush2.msra.mxu0 0.0
  %6521 = vmatprep.subr.mxu0 0.0
  %6522 = vmatpush2.msra.mxu0 0.0
  %6523 = vmatprep.subr.mxu0 0.0
  %6524 = vmatpush2.msra.mxu0 0.0
  %6525 = vmatprep.subr.mxu0 0.0
  %6526 = vmatpush2.msra.mxu0 0.0
  %6527 = vmatprep.subr.mxu0 0.0
  %6528 = vmatpush2.msra.mxu0 0.0
  %6529 = vmatprep.mubr.f32.mxu0 0.0
  %6530 = vmatmul.mubr.f32.gmra.mxu0 %v6463
  %v6531 = vpop.f32.mrf.mxu0
  %v6532 = vadd.f32 0.0, %v6531
  %v6533 = vpop.f32.mrf.mxu0
  %6534 = vdwg.mxu0
  %6535 = vrot.lane.b32.xlu0 %v4805, 96
  %v6536 = vpop.permute.xlu0 %6535
  %v6539 = vsel %vm137, %v6282, 0
  %6541 = vmatprep.subr.mxu0 0.0
  %6542 = vmatpush1.msra.mxu0 0.0
  %6543 = vmatprep.subr.mxu0 0.0
  %6544 = vmatpush1.msra.mxu0 0.0
  %6545 = vmatprep.subr.mxu0 0.0
  %6546 = vmatpush1.msra.mxu0 0.0
  %6547 = vmatprep.subr.mxu0 0.0
  %6548 = vmatpush1.msra.mxu0 0.0
  %6549 = vmatprep.subr.mxu0 0.0
  %6550 = vmatpush1.msra.mxu0 0.0
  %6551 = vmatprep.subr.mxu0 0.0
  %6552 = vmatpush1.msra.mxu0 0.0
  %6553 = vmatprep.subr.mxu0 0.0
  %6554 = vmatpush1.msra.mxu0 0.0
  %6555 = vmatprep.subr.mxu0 0.0
  %6556 = vmatpush1.msra.mxu0 0.0
  %6557 = vmatprep.subr.mxu0 0.0
  %6558 = vmatpush1.msra.mxu0 0.0
  %6559 = vmatprep.subr.mxu0 0.0
  %6560 = vmatpush1.msra.mxu0 0.0
  %6561 = vmatprep.subr.mxu0 0.0
  %6562 = vmatpush1.msra.mxu0 0.0
  %6563 = vmatprep.subr.mxu0 0.0
  %6564 = vmatpush1.msra.mxu0 0.0
  %6565 = vmatprep.subr.mxu0 0.0
  %6566 = vmatpush1.msra.mxu0 0.0
  %6567 = vmatprep.subr.mxu0 0.0
  %6568 = vmatpush1.msra.mxu0 0.0
  %6569 = vmatprep.subr.mxu0 0.0
  %6570 = vmatpush1.msra.mxu0 0.0
  %6571 = vmatprep.subr.mxu0 0.0
  %6572 = vmatpush1.msra.mxu0 %v6536
  %6573 = vmatprep.subr.mxu0 0.0
  %6574 = vmatpush2.msra.mxu0 0.0
  %6575 = vmatprep.subr.mxu0 0.0
  %6576 = vmatpush2.msra.mxu0 0.0
  %6577 = vmatprep.subr.mxu0 0.0
  %6578 = vmatpush2.msra.mxu0 0.0
  %6579 = vmatprep.subr.mxu0 0.0
  %6580 = vmatpush2.msra.mxu0 0.0
  %6581 = vmatprep.subr.mxu0 0.0
  %6582 = vmatpush2.msra.mxu0 0.0
  %6583 = vmatprep.subr.mxu0 0.0
  %6584 = vmatpush2.msra.mxu0 0.0
  %6585 = vmatprep.subr.mxu0 0.0
  %6586 = vmatpush2.msra.mxu0 0.0
  %6587 = vmatprep.subr.mxu0 0.0
  %6588 = vmatpush2.msra.mxu0 0.0
  %6589 = vmatprep.subr.mxu0 0.0
  %6590 = vmatpush2.msra.mxu0 0.0
  %6591 = vmatprep.subr.mxu0 0.0
  %6592 = vmatpush2.msra.mxu0 0.0
  %6593 = vmatprep.subr.mxu0 0.0
  %6594 = vmatpush2.msra.mxu0 0.0
  %6595 = vmatprep.subr.mxu0 0.0
  %6596 = vmatpush2.msra.mxu0 0.0
  %6597 = vmatprep.subr.mxu0 0.0
  %6598 = vmatpush2.msra.mxu0 0.0
  %6599 = vmatprep.subr.mxu0 0.0
  %6600 = vmatpush2.msra.mxu0 0.0
  %6601 = vmatprep.subr.mxu0 0.0
  %6602 = vmatpush2.msra.mxu0 0.0
  %6603 = vmatprep.subr.mxu0 0.0
  %6604 = vmatpush2.msra.mxu0 0.0
  %6605 = vmatprep.mubr.f32.mxu0 0.0
  %6606 = vmatmul.mubr.f32.gmra.mxu0 %v6539
  %v6607 = vpop.f32.mrf.mxu0
  %v6608 = vadd.f32 0.0, %v6607
  %v6609 = vpop.f32.mrf.mxu0
  %6610 = vdwg.mxu0
  %6611 = vrot.lane.b32.xlu0 %v4908, 96
  %v6612 = vpop.permute.xlu0 %6611
  %v6615 = vsel %vm137, %v6284, 0
  %6617 = vmatprep.subr.mxu0 0.0
  %6618 = vmatpush1.msra.mxu0 0.0
  %6619 = vmatprep.subr.mxu0 0.0
  %6620 = vmatpush1.msra.mxu0 0.0
  %6621 = vmatprep.subr.mxu0 0.0
  %6622 = vmatpush1.msra.mxu0 0.0
  %6623 = vmatprep.subr.mxu0 0.0
  %6624 = vmatpush1.msra.mxu0 0.0
  %6625 = vmatprep.subr.mxu0 0.0
  %6626 = vmatpush1.msra.mxu0 0.0
  %6627 = vmatprep.subr.mxu0 0.0
  %6628 = vmatpush1.msra.mxu0 0.0
  %6629 = vmatprep.subr.mxu0 0.0
  %6630 = vmatpush1.msra.mxu0 0.0
  %6631 = vmatprep.subr.mxu0 0.0
  %6632 = vmatpush1.msra.mxu0 0.0
  %6633 = vmatprep.subr.mxu0 0.0
  %6634 = vmatpush1.msra.mxu0 0.0
  %6635 = vmatprep.subr.mxu0 0.0
  %6636 = vmatpush1.msra.mxu0 0.0
  %6637 = vmatprep.subr.mxu0 0.0
  %6638 = vmatpush1.msra.mxu0 0.0
  %6639 = vmatprep.subr.mxu0 0.0
  %6640 = vmatpush1.msra.mxu0 0.0
  %6641 = vmatprep.subr.mxu0 0.0
  %6642 = vmatpush1.msra.mxu0 0.0
  %6643 = vmatprep.subr.mxu0 0.0
  %6644 = vmatpush1.msra.mxu0 0.0
  %6645 = vmatprep.subr.mxu0 0.0
  %6646 = vmatpush1.msra.mxu0 0.0
  %6647 = vmatprep.subr.mxu0 0.0
  %6648 = vmatpush1.msra.mxu0 %v6612
  %6649 = vmatprep.subr.mxu0 0.0
  %6650 = vmatpush2.msra.mxu0 0.0
  %6651 = vmatprep.subr.mxu0 0.0
  %6652 = vmatpush2.msra.mxu0 0.0
  %6653 = vmatprep.subr.mxu0 0.0
  %6654 = vmatpush2.msra.mxu0 0.0
  %6655 = vmatprep.subr.mxu0 0.0
  %6656 = vmatpush2.msra.mxu0 0.0
  %6657 = vmatprep.subr.mxu0 0.0
  %6658 = vmatpush2.msra.mxu0 0.0
  %6659 = vmatprep.subr.mxu0 0.0
  %6660 = vmatpush2.msra.mxu0 0.0
  %6661 = vmatprep.subr.mxu0 0.0
  %6662 = vmatpush2.msra.mxu0 0.0
  %6663 = vmatprep.subr.mxu0 0.0
  %6664 = vmatpush2.msra.mxu0 0.0
  %6665 = vmatprep.subr.mxu0 0.0
  %6666 = vmatpush2.msra.mxu0 0.0
  %6667 = vmatprep.subr.mxu0 0.0
  %6668 = vmatpush2.msra.mxu0 0.0
  %6669 = vmatprep.subr.mxu0 0.0
  %6670 = vmatpush2.msra.mxu0 0.0
  %6671 = vmatprep.subr.mxu0 0.0
  %6672 = vmatpush2.msra.mxu0 0.0
  %6673 = vmatprep.subr.mxu0 0.0
  %6674 = vmatpush2.msra.mxu0 0.0
  %6675 = vmatprep.subr.mxu0 0.0
  %6676 = vmatpush2.msra.mxu0 0.0
  %6677 = vmatprep.subr.mxu0 0.0
  %6678 = vmatpush2.msra.mxu0 0.0
  %6679 = vmatprep.subr.mxu0 0.0
  %6680 = vmatpush2.msra.mxu0 0.0
  %6681 = vmatprep.mubr.f32.mxu0 0.0
  %6682 = vmatmul.mubr.f32.gmra.mxu0 %v6615
  %v6683 = vpop.f32.mrf.mxu0
  %v6684 = vadd.f32 0.0, %v6683
  %v6685 = vpop.f32.mrf.mxu0
  %6686 = vdwg.mxu0
  %6687 = vrot.lane.b32.xlu0 %v4910, 96
  %v6688 = vpop.permute.xlu0 %6687
  %v6691 = vsel %vm137, %v6286, 0
  %6693 = vmatprep.subr.mxu0 0.0
  %6694 = vmatpush1.msra.mxu0 0.0
  %6695 = vmatprep.subr.mxu0 0.0
  %6696 = vmatpush1.msra.mxu0 0.0
  %6697 = vmatprep.subr.mxu0 0.0
  %6698 = vmatpush1.msra.mxu0 0.0
  %6699 = vmatprep.subr.mxu0 0.0
  %6700 = vmatpush1.msra.mxu0 0.0
  %6701 = vmatprep.subr.mxu0 0.0
  %6702 = vmatpush1.msra.mxu0 0.0
  %6703 = vmatprep.subr.mxu0 0.0
  %6704 = vmatpush1.msra.mxu0 0.0
  %6705 = vmatprep.subr.mxu0 0.0
  %6706 = vmatpush1.msra.mxu0 0.0
  %6707 = vmatprep.subr.mxu0 0.0
  %6708 = vmatpush1.msra.mxu0 0.0
  %6709 = vmatprep.subr.mxu0 0.0
  %6710 = vmatpush1.msra.mxu0 0.0
  %6711 = vmatprep.subr.mxu0 0.0
  %6712 = vmatpush1.msra.mxu0 0.0
  %6713 = vmatprep.subr.mxu0 0.0
  %6714 = vmatpush1.msra.mxu0 0.0
  %6715 = vmatprep.subr.mxu0 0.0
  %6716 = vmatpush1.msra.mxu0 0.0
  %6717 = vmatprep.subr.mxu0 0.0
  %6718 = vmatpush1.msra.mxu0 0.0
  %6719 = vmatprep.subr.mxu0 0.0
  %6720 = vmatpush1.msra.mxu0 0.0
  %6721 = vmatprep.subr.mxu0 0.0
  %6722 = vmatpush1.msra.mxu0 0.0
  %6723 = vmatprep.subr.mxu0 0.0
  %6724 = vmatpush1.msra.mxu0 %v6688
  %6725 = vmatprep.subr.mxu0 0.0
  %6726 = vmatpush2.msra.mxu0 0.0
  %6727 = vmatprep.subr.mxu0 0.0
  %6728 = vmatpush2.msra.mxu0 0.0
  %6729 = vmatprep.subr.mxu0 0.0
  %6730 = vmatpush2.msra.mxu0 0.0
  %6731 = vmatprep.subr.mxu0 0.0
  %6732 = vmatpush2.msra.mxu0 0.0
  %6733 = vmatprep.subr.mxu0 0.0
  %6734 = vmatpush2.msra.mxu0 0.0
  %6735 = vmatprep.subr.mxu0 0.0
  %6736 = vmatpush2.msra.mxu0 0.0
  %6737 = vmatprep.subr.mxu0 0.0
  %6738 = vmatpush2.msra.mxu0 0.0
  %6739 = vmatprep.subr.mxu0 0.0
  %6740 = vmatpush2.msra.mxu0 0.0
  %6741 = vmatprep.subr.mxu0 0.0
  %6742 = vmatpush2.msra.mxu0 0.0
  %6743 = vmatprep.subr.mxu0 0.0
  %6744 = vmatpush2.msra.mxu0 0.0
  %6745 = vmatprep.subr.mxu0 0.0
  %6746 = vmatpush2.msra.mxu0 0.0
  %6747 = vmatprep.subr.mxu0 0.0
  %6748 = vmatpush2.msra.mxu0 0.0
  %6749 = vmatprep.subr.mxu0 0.0
  %6750 = vmatpush2.msra.mxu0 0.0
  %6751 = vmatprep.subr.mxu0 0.0
  %6752 = vmatpush2.msra.mxu0 0.0
  %6753 = vmatprep.subr.mxu0 0.0
  %6754 = vmatpush2.msra.mxu0 0.0
  %6755 = vmatprep.subr.mxu0 0.0
  %6756 = vmatpush2.msra.mxu0 0.0
  %6757 = vmatprep.mubr.f32.mxu0 0.0
  %6758 = vmatmul.mubr.f32.gmra.mxu0 %v6691
  %v6759 = vpop.f32.mrf.mxu0
  %v6760 = vadd.f32 0.0, %v6759
  %v6761 = vpop.f32.mrf.mxu0
  %6762 = vdwg.mxu0
  %6763 = vrot.lane.b32.xlu0 %v4912, 96
  %v6764 = vpop.permute.xlu0 %6763
  %v6767 = vsel %vm137, %v6288, 0
  %6769 = vmatprep.subr.mxu0 0.0
  %6770 = vmatpush1.msra.mxu0 0.0
  %6771 = vmatprep.subr.mxu0 0.0
  %6772 = vmatpush1.msra.mxu0 0.0
  %6773 = vmatprep.subr.mxu0 0.0
  %6774 = vmatpush1.msra.mxu0 0.0
  %6775 = vmatprep.subr.mxu0 0.0
  %6776 = vmatpush1.msra.mxu0 0.0
  %6777 = vmatprep.subr.mxu0 0.0
  %6778 = vmatpush1.msra.mxu0 0.0
  %6779 = vmatprep.subr.mxu0 0.0
  %6780 = vmatpush1.msra.mxu0 0.0
  %6781 = vmatprep.subr.mxu0 0.0
  %6782 = vmatpush1.msra.mxu0 0.0
  %6783 = vmatprep.subr.mxu0 0.0
  %6784 = vmatpush1.msra.mxu0 0.0
  %6785 = vmatprep.subr.mxu0 0.0
  %6786 = vmatpush1.msra.mxu0 0.0
  %6787 = vmatprep.subr.mxu0 0.0
  %6788 = vmatpush1.msra.mxu0 0.0
  %6789 = vmatprep.subr.mxu0 0.0
  %6790 = vmatpush1.msra.mxu0 0.0
  %6791 = vmatprep.subr.mxu0 0.0
  %6792 = vmatpush1.msra.mxu0 0.0
  %6793 = vmatprep.subr.mxu0 0.0
  %6794 = vmatpush1.msra.mxu0 0.0
  %6795 = vmatprep.subr.mxu0 0.0
  %6796 = vmatpush1.msra.mxu0 0.0
  %6797 = vmatprep.subr.mxu0 0.0
  %6798 = vmatpush1.msra.mxu0 0.0
  %6799 = vmatprep.subr.mxu0 0.0
  %6800 = vmatpush1.msra.mxu0 %v6764
  %6801 = vmatprep.subr.mxu0 0.0
  %6802 = vmatpush2.msra.mxu0 0.0
  %6803 = vmatprep.subr.mxu0 0.0
  %6804 = vmatpush2.msra.mxu0 0.0
  %6805 = vmatprep.subr.mxu0 0.0
  %6806 = vmatpush2.msra.mxu0 0.0
  %6807 = vmatprep.subr.mxu0 0.0
  %6808 = vmatpush2.msra.mxu0 0.0
  %6809 = vmatprep.subr.mxu0 0.0
  %6810 = vmatpush2.msra.mxu0 0.0
  %6811 = vmatprep.subr.mxu0 0.0
  %6812 = vmatpush2.msra.mxu0 0.0
  %6813 = vmatprep.subr.mxu0 0.0
  %6814 = vmatpush2.msra.mxu0 0.0
  %6815 = vmatprep.subr.mxu0 0.0
  %6816 = vmatpush2.msra.mxu0 0.0
  %6817 = vmatprep.subr.mxu0 0.0
  %6818 = vmatpush2.msra.mxu0 0.0
  %6819 = vmatprep.subr.mxu0 0.0
  %6820 = vmatpush2.msra.mxu0 0.0
  %6821 = vmatprep.subr.mxu0 0.0
  %6822 = vmatpush2.msra.mxu0 0.0
  %6823 = vmatprep.subr.mxu0 0.0
  %6824 = vmatpush2.msra.mxu0 0.0
  %6825 = vmatprep.subr.mxu0 0.0
  %6826 = vmatpush2.msra.mxu0 0.0
  %6827 = vmatprep.subr.mxu0 0.0
  %6828 = vmatpush2.msra.mxu0 0.0
  %6829 = vmatprep.subr.mxu0 0.0
  %6830 = vmatpush2.msra.mxu0 0.0
  %6831 = vmatprep.subr.mxu0 0.0
  %6832 = vmatpush2.msra.mxu0 0.0
  %6833 = vmatprep.mubr.f32.mxu0 0.0
  %6834 = vmatmul.mubr.f32.gmra.mxu0 %v6767
  %v6835 = vpop.f32.mrf.mxu0
  %v6836 = vadd.f32 0.0, %v6835
  %v6837 = vpop.f32.mrf.mxu0
  %6838 = vdwg.mxu0
  %6839 = vrot.lane.b32.xlu0 %v4914, 96
  %v6840 = vpop.permute.xlu0 %6839
  %v6843 = vsel %vm137, %v6290, 0
  %6845 = vmatprep.subr.mxu0 0.0
  %6846 = vmatpush1.msra.mxu0 0.0
  %6847 = vmatprep.subr.mxu0 0.0
  %6848 = vmatpush1.msra.mxu0 0.0
  %6849 = vmatprep.subr.mxu0 0.0
  %6850 = vmatpush1.msra.mxu0 0.0
  %6851 = vmatprep.subr.mxu0 0.0
  %6852 = vmatpush1.msra.mxu0 0.0
  %6853 = vmatprep.subr.mxu0 0.0
  %6854 = vmatpush1.msra.mxu0 0.0
  %6855 = vmatprep.subr.mxu0 0.0
  %6856 = vmatpush1.msra.mxu0 0.0
  %6857 = vmatprep.subr.mxu0 0.0
  %6858 = vmatpush1.msra.mxu0 0.0
  %6859 = vmatprep.subr.mxu0 0.0
  %6860 = vmatpush1.msra.mxu0 0.0
  %6861 = vmatprep.subr.mxu0 0.0
  %6862 = vmatpush1.msra.mxu0 0.0
  %6863 = vmatprep.subr.mxu0 0.0
  %6864 = vmatpush1.msra.mxu0 0.0
  %6865 = vmatprep.subr.mxu0 0.0
  %6866 = vmatpush1.msra.mxu0 0.0
  %6867 = vmatprep.subr.mxu0 0.0
  %6868 = vmatpush1.msra.mxu0 0.0
  %6869 = vmatprep.subr.mxu0 0.0
  %6870 = vmatpush1.msra.mxu0 0.0
  %6871 = vmatprep.subr.mxu0 0.0
  %6872 = vmatpush1.msra.mxu0 0.0
  %6873 = vmatprep.subr.mxu0 0.0
  %6874 = vmatpush1.msra.mxu0 0.0
  %6875 = vmatprep.subr.mxu0 0.0
  %6876 = vmatpush1.msra.mxu0 %v6840
  %6877 = vmatprep.subr.mxu0 0.0
  %6878 = vmatpush2.msra.mxu0 0.0
  %6879 = vmatprep.subr.mxu0 0.0
  %6880 = vmatpush2.msra.mxu0 0.0
  %6881 = vmatprep.subr.mxu0 0.0
  %6882 = vmatpush2.msra.mxu0 0.0
  %6883 = vmatprep.subr.mxu0 0.0
  %6884 = vmatpush2.msra.mxu0 0.0
  %6885 = vmatprep.subr.mxu0 0.0
  %6886 = vmatpush2.msra.mxu0 0.0
  %6887 = vmatprep.subr.mxu0 0.0
  %6888 = vmatpush2.msra.mxu0 0.0
  %6889 = vmatprep.subr.mxu0 0.0
  %6890 = vmatpush2.msra.mxu0 0.0
  %6891 = vmatprep.subr.mxu0 0.0
  %6892 = vmatpush2.msra.mxu0 0.0
  %6893 = vmatprep.subr.mxu0 0.0
  %6894 = vmatpush2.msra.mxu0 0.0
  %6895 = vmatprep.subr.mxu0 0.0
  %6896 = vmatpush2.msra.mxu0 0.0
  %6897 = vmatprep.subr.mxu0 0.0
  %6898 = vmatpush2.msra.mxu0 0.0
  %6899 = vmatprep.subr.mxu0 0.0
  %6900 = vmatpush2.msra.mxu0 0.0
  %6901 = vmatprep.subr.mxu0 0.0
  %6902 = vmatpush2.msra.mxu0 0.0
  %6903 = vmatprep.subr.mxu0 0.0
  %6904 = vmatpush2.msra.mxu0 0.0
  %6905 = vmatprep.subr.mxu0 0.0
  %6906 = vmatpush2.msra.mxu0 0.0
  %6907 = vmatprep.subr.mxu0 0.0
  %6908 = vmatpush2.msra.mxu0 0.0
  %6909 = vmatprep.mubr.f32.mxu0 0.0
  %6910 = vmatmul.mubr.f32.gmra.mxu0 %v6843
  %v6911 = vpop.f32.mrf.mxu0
  %v6912 = vadd.f32 0.0, %v6911
  %v6913 = vpop.f32.mrf.mxu0
  %6914 = vdwg.mxu0
  %6915 = vrot.lane.b32.xlu0 %v4916, 96
  %v6916 = vpop.permute.xlu0 %6915
  %v6919 = vsel %vm137, %v6292, 0
  %6921 = vmatprep.subr.mxu0 0.0
  %6922 = vmatpush1.msra.mxu0 0.0
  %6923 = vmatprep.subr.mxu0 0.0
  %6924 = vmatpush1.msra.mxu0 0.0
  %6925 = vmatprep.subr.mxu0 0.0
  %6926 = vmatpush1.msra.mxu0 0.0
  %6927 = vmatprep.subr.mxu0 0.0
  %6928 = vmatpush1.msra.mxu0 0.0
  %6929 = vmatprep.subr.mxu0 0.0
  %6930 = vmatpush1.msra.mxu0 0.0
  %6931 = vmatprep.subr.mxu0 0.0
  %6932 = vmatpush1.msra.mxu0 0.0
  %6933 = vmatprep.subr.mxu0 0.0
  %6934 = vmatpush1.msra.mxu0 0.0
  %6935 = vmatprep.subr.mxu0 0.0
  %6936 = vmatpush1.msra.mxu0 0.0
  %6937 = vmatprep.subr.mxu0 0.0
  %6938 = vmatpush1.msra.mxu0 0.0
  %6939 = vmatprep.subr.mxu0 0.0
  %6940 = vmatpush1.msra.mxu0 0.0
  %6941 = vmatprep.subr.mxu0 0.0
  %6942 = vmatpush1.msra.mxu0 0.0
  %6943 = vmatprep.subr.mxu0 0.0
  %6944 = vmatpush1.msra.mxu0 0.0
  %6945 = vmatprep.subr.mxu0 0.0
  %6946 = vmatpush1.msra.mxu0 0.0
  %6947 = vmatprep.subr.mxu0 0.0
  %6948 = vmatpush1.msra.mxu0 0.0
  %6949 = vmatprep.subr.mxu0 0.0
  %6950 = vmatpush1.msra.mxu0 0.0
  %6951 = vmatprep.subr.mxu0 0.0
  %6952 = vmatpush1.msra.mxu0 %v6916
  %6953 = vmatprep.subr.mxu0 0.0
  %6954 = vmatpush2.msra.mxu0 0.0
  %6955 = vmatprep.subr.mxu0 0.0
  %6956 = vmatpush2.msra.mxu0 0.0
  %6957 = vmatprep.subr.mxu0 0.0
  %6958 = vmatpush2.msra.mxu0 0.0
  %6959 = vmatprep.subr.mxu0 0.0
  %6960 = vmatpush2.msra.mxu0 0.0
  %6961 = vmatprep.subr.mxu0 0.0
  %6962 = vmatpush2.msra.mxu0 0.0
  %6963 = vmatprep.subr.mxu0 0.0
  %6964 = vmatpush2.msra.mxu0 0.0
  %6965 = vmatprep.subr.mxu0 0.0
  %6966 = vmatpush2.msra.mxu0 0.0
  %6967 = vmatprep.subr.mxu0 0.0
  %6968 = vmatpush2.msra.mxu0 0.0
  %6969 = vmatprep.subr.mxu0 0.0
  %6970 = vmatpush2.msra.mxu0 0.0
  %6971 = vmatprep.subr.mxu0 0.0
  %6972 = vmatpush2.msra.mxu0 0.0
  %6973 = vmatprep.subr.mxu0 0.0
  %6974 = vmatpush2.msra.mxu0 0.0
  %6975 = vmatprep.subr.mxu0 0.0
  %6976 = vmatpush2.msra.mxu0 0.0
  %6977 = vmatprep.subr.mxu0 0.0
  %6978 = vmatpush2.msra.mxu0 0.0
  %6979 = vmatprep.subr.mxu0 0.0
  %6980 = vmatpush2.msra.mxu0 0.0
  %6981 = vmatprep.subr.mxu0 0.0
  %6982 = vmatpush2.msra.mxu0 0.0
  %6983 = vmatprep.subr.mxu0 0.0
  %6984 = vmatpush2.msra.mxu0 0.0
  %6985 = vmatprep.mubr.f32.mxu0 0.0
  %6986 = vmatmul.mubr.f32.gmra.mxu0 %v6919
  %v6987 = vpop.f32.mrf.mxu0
  %v6988 = vadd.f32 0.0, %v6987
  %v6989 = vpop.f32.mrf.mxu0
  %6990 = vdwg.mxu0
  %6991 = vrot.lane.b32.xlu0 %v4918, 96
  %v6992 = vpop.permute.xlu0 %6991
  %v6995 = vsel %vm137, %v6294, 0
  %6997 = vmatprep.subr.mxu0 0.0
  %6998 = vmatpush1.msra.mxu0 0.0
  %6999 = vmatprep.subr.mxu0 0.0
  %7000 = vmatpush1.msra.mxu0 0.0
  %7001 = vmatprep.subr.mxu0 0.0
  %7002 = vmatpush1.msra.mxu0 0.0
  %7003 = vmatprep.subr.mxu0 0.0
  %7004 = vmatpush1.msra.mxu0 0.0
  %7005 = vmatprep.subr.mxu0 0.0
  %7006 = vmatpush1.msra.mxu0 0.0
  %7007 = vmatprep.subr.mxu0 0.0
  %7008 = vmatpush1.msra.mxu0 0.0
  %7009 = vmatprep.subr.mxu0 0.0
  %7010 = vmatpush1.msra.mxu0 0.0
  %7011 = vmatprep.subr.mxu0 0.0
  %7012 = vmatpush1.msra.mxu0 0.0
  %7013 = vmatprep.subr.mxu0 0.0
  %7014 = vmatpush1.msra.mxu0 0.0
  %7015 = vmatprep.subr.mxu0 0.0
  %7016 = vmatpush1.msra.mxu0 0.0
  %7017 = vmatprep.subr.mxu0 0.0
  %7018 = vmatpush1.msra.mxu0 0.0
  %7019 = vmatprep.subr.mxu0 0.0
  %7020 = vmatpush1.msra.mxu0 0.0
  %7021 = vmatprep.subr.mxu0 0.0
  %7022 = vmatpush1.msra.mxu0 0.0
  %7023 = vmatprep.subr.mxu0 0.0
  %7024 = vmatpush1.msra.mxu0 0.0
  %7025 = vmatprep.subr.mxu0 0.0
  %7026 = vmatpush1.msra.mxu0 0.0
  %7027 = vmatprep.subr.mxu0 0.0
  %7028 = vmatpush1.msra.mxu0 %v6992
  %7029 = vmatprep.subr.mxu0 0.0
  %7030 = vmatpush2.msra.mxu0 0.0
  %7031 = vmatprep.subr.mxu0 0.0
  %7032 = vmatpush2.msra.mxu0 0.0
  %7033 = vmatprep.subr.mxu0 0.0
  %7034 = vmatpush2.msra.mxu0 0.0
  %7035 = vmatprep.subr.mxu0 0.0
  %7036 = vmatpush2.msra.mxu0 0.0
  %7037 = vmatprep.subr.mxu0 0.0
  %7038 = vmatpush2.msra.mxu0 0.0
  %7039 = vmatprep.subr.mxu0 0.0
  %7040 = vmatpush2.msra.mxu0 0.0
  %7041 = vmatprep.subr.mxu0 0.0
  %7042 = vmatpush2.msra.mxu0 0.0
  %7043 = vmatprep.subr.mxu0 0.0
  %7044 = vmatpush2.msra.mxu0 0.0
  %7045 = vmatprep.subr.mxu0 0.0
  %7046 = vmatpush2.msra.mxu0 0.0
  %7047 = vmatprep.subr.mxu0 0.0
  %7048 = vmatpush2.msra.mxu0 0.0
  %7049 = vmatprep.subr.mxu0 0.0
  %7050 = vmatpush2.msra.mxu0 0.0
  %7051 = vmatprep.subr.mxu0 0.0
  %7052 = vmatpush2.msra.mxu0 0.0
  %7053 = vmatprep.subr.mxu0 0.0
  %7054 = vmatpush2.msra.mxu0 0.0
  %7055 = vmatprep.subr.mxu0 0.0
  %7056 = vmatpush2.msra.mxu0 0.0
  %7057 = vmatprep.subr.mxu0 0.0
  %7058 = vmatpush2.msra.mxu0 0.0
  %7059 = vmatprep.subr.mxu0 0.0
  %7060 = vmatpush2.msra.mxu0 0.0
  %7061 = vmatprep.mubr.f32.mxu0 0.0
  %7062 = vmatmul.mubr.f32.gmra.mxu0 %v6995
  %v7063 = vpop.f32.mrf.mxu0
  %v7064 = vadd.f32 0.0, %v7063
  %v7065 = vpop.f32.mrf.mxu0
  %7066 = vdwg.mxu0
  %7067 = vrot.lane.b32.xlu0 %v4920, 96
  %v7068 = vpop.permute.xlu0 %7067
  %v7071 = vsel %vm137, %v6296, 0
  %7073 = vmatprep.subr.mxu0 0.0
  %7074 = vmatpush1.msra.mxu0 0.0
  %7075 = vmatprep.subr.mxu0 0.0
  %7076 = vmatpush1.msra.mxu0 0.0
  %7077 = vmatprep.subr.mxu0 0.0
  %7078 = vmatpush1.msra.mxu0 0.0
  %7079 = vmatprep.subr.mxu0 0.0
  %7080 = vmatpush1.msra.mxu0 0.0
  %7081 = vmatprep.subr.mxu0 0.0
  %7082 = vmatpush1.msra.mxu0 0.0
  %7083 = vmatprep.subr.mxu0 0.0
  %7084 = vmatpush1.msra.mxu0 0.0
  %7085 = vmatprep.subr.mxu0 0.0
  %7086 = vmatpush1.msra.mxu0 0.0
  %7087 = vmatprep.subr.mxu0 0.0
  %7088 = vmatpush1.msra.mxu0 0.0
  %7089 = vmatprep.subr.mxu0 0.0
  %7090 = vmatpush1.msra.mxu0 0.0
  %7091 = vmatprep.subr.mxu0 0.0
  %7092 = vmatpush1.msra.mxu0 0.0
  %7093 = vmatprep.subr.mxu0 0.0
  %7094 = vmatpush1.msra.mxu0 0.0
  %7095 = vmatprep.subr.mxu0 0.0
  %7096 = vmatpush1.msra.mxu0 0.0
  %7097 = vmatprep.subr.mxu0 0.0
  %7098 = vmatpush1.msra.mxu0 0.0
  %7099 = vmatprep.subr.mxu0 0.0
  %7100 = vmatpush1.msra.mxu0 0.0
  %7101 = vmatprep.subr.mxu0 0.0
  %7102 = vmatpush1.msra.mxu0 0.0
  %7103 = vmatprep.subr.mxu0 0.0
  %7104 = vmatpush1.msra.mxu0 %v7068
  %7105 = vmatprep.subr.mxu0 0.0
  %7106 = vmatpush2.msra.mxu0 0.0
  %7107 = vmatprep.subr.mxu0 0.0
  %7108 = vmatpush2.msra.mxu0 0.0
  %7109 = vmatprep.subr.mxu0 0.0
  %7110 = vmatpush2.msra.mxu0 0.0
  %7111 = vmatprep.subr.mxu0 0.0
  %7112 = vmatpush2.msra.mxu0 0.0
  %7113 = vmatprep.subr.mxu0 0.0
  %7114 = vmatpush2.msra.mxu0 0.0
  %7115 = vmatprep.subr.mxu0 0.0
  %7116 = vmatpush2.msra.mxu0 0.0
  %7117 = vmatprep.subr.mxu0 0.0
  %7118 = vmatpush2.msra.mxu0 0.0
  %7119 = vmatprep.subr.mxu0 0.0
  %7120 = vmatpush2.msra.mxu0 0.0
  %7121 = vmatprep.subr.mxu0 0.0
  %7122 = vmatpush2.msra.mxu0 0.0
  %7123 = vmatprep.subr.mxu0 0.0
  %7124 = vmatpush2.msra.mxu0 0.0
  %7125 = vmatprep.subr.mxu0 0.0
  %7126 = vmatpush2.msra.mxu0 0.0
  %7127 = vmatprep.subr.mxu0 0.0
  %7128 = vmatpush2.msra.mxu0 0.0
  %7129 = vmatprep.subr.mxu0 0.0
  %7130 = vmatpush2.msra.mxu0 0.0
  %7131 = vmatprep.subr.mxu0 0.0
  %7132 = vmatpush2.msra.mxu0 0.0
  %7133 = vmatprep.subr.mxu0 0.0
  %7134 = vmatpush2.msra.mxu0 0.0
  %7135 = vmatprep.subr.mxu0 0.0
  %7136 = vmatpush2.msra.mxu0 0.0
  %7137 = vmatprep.mubr.f32.mxu0 0.0
  %7138 = vmatmul.mubr.f32.gmra.mxu0 %v7071
  %v7139 = vpop.f32.mrf.mxu0
  %v7140 = vadd.f32 0.0, %v7139
  %v7141 = vpop.f32.mrf.mxu0
  %7142 = vdwg.mxu0
  %7143 = vrot.lane.b32.xlu0 %v4922, 96
  %v7144 = vpop.permute.xlu0 %7143
  %v7147 = vsel %vm137, %v6298, 0
  %7149 = vmatprep.subr.mxu0 0.0
  %7150 = vmatpush1.msra.mxu0 0.0
  %7151 = vmatprep.subr.mxu0 0.0
  %7152 = vmatpush1.msra.mxu0 0.0
  %7153 = vmatprep.subr.mxu0 0.0
  %7154 = vmatpush1.msra.mxu0 0.0
  %7155 = vmatprep.subr.mxu0 0.0
  %7156 = vmatpush1.msra.mxu0 0.0
  %7157 = vmatprep.subr.mxu0 0.0
  %7158 = vmatpush1.msra.mxu0 0.0
  %7159 = vmatprep.subr.mxu0 0.0
  %7160 = vmatpush1.msra.mxu0 0.0
  %7161 = vmatprep.subr.mxu0 0.0
  %7162 = vmatpush1.msra.mxu0 0.0
  %7163 = vmatprep.subr.mxu0 0.0
  %7164 = vmatpush1.msra.mxu0 0.0
  %7165 = vmatprep.subr.mxu0 0.0
  %7166 = vmatpush1.msra.mxu0 0.0
  %7167 = vmatprep.subr.mxu0 0.0
  %7168 = vmatpush1.msra.mxu0 0.0
  %7169 = vmatprep.subr.mxu0 0.0
  %7170 = vmatpush1.msra.mxu0 0.0
  %7171 = vmatprep.subr.mxu0 0.0
  %7172 = vmatpush1.msra.mxu0 0.0
  %7173 = vmatprep.subr.mxu0 0.0
  %7174 = vmatpush1.msra.mxu0 0.0
  %7175 = vmatprep.subr.mxu0 0.0
  %7176 = vmatpush1.msra.mxu0 0.0
  %7177 = vmatprep.subr.mxu0 0.0
  %7178 = vmatpush1.msra.mxu0 0.0
  %7179 = vmatprep.subr.mxu0 0.0
  %7180 = vmatpush1.msra.mxu0 %v7144
  %7181 = vmatprep.subr.mxu0 0.0
  %7182 = vmatpush2.msra.mxu0 0.0
  %7183 = vmatprep.subr.mxu0 0.0
  %7184 = vmatpush2.msra.mxu0 0.0
  %7185 = vmatprep.subr.mxu0 0.0
  %7186 = vmatpush2.msra.mxu0 0.0
  %7187 = vmatprep.subr.mxu0 0.0
  %7188 = vmatpush2.msra.mxu0 0.0
  %7189 = vmatprep.subr.mxu0 0.0
  %7190 = vmatpush2.msra.mxu0 0.0
  %7191 = vmatprep.subr.mxu0 0.0
  %7192 = vmatpush2.msra.mxu0 0.0
  %7193 = vmatprep.subr.mxu0 0.0
  %7194 = vmatpush2.msra.mxu0 0.0
  %7195 = vmatprep.subr.mxu0 0.0
  %7196 = vmatpush2.msra.mxu0 0.0
  %7197 = vmatprep.subr.mxu0 0.0
  %7198 = vmatpush2.msra.mxu0 0.0
  %7199 = vmatprep.subr.mxu0 0.0
  %7200 = vmatpush2.msra.mxu0 0.0
  %7201 = vmatprep.subr.mxu0 0.0
  %7202 = vmatpush2.msra.mxu0 0.0
  %7203 = vmatprep.subr.mxu0 0.0
  %7204 = vmatpush2.msra.mxu0 0.0
  %7205 = vmatprep.subr.mxu0 0.0
  %7206 = vmatpush2.msra.mxu0 0.0
  %7207 = vmatprep.subr.mxu0 0.0
  %7208 = vmatpush2.msra.mxu0 0.0
  %7209 = vmatprep.subr.mxu0 0.0
  %7210 = vmatpush2.msra.mxu0 0.0
  %7211 = vmatprep.subr.mxu0 0.0
  %7212 = vmatpush2.msra.mxu0 0.0
  %7213 = vmatprep.mubr.f32.mxu0 0.0
  %7214 = vmatmul.mubr.f32.gmra.mxu0 %v7147
  %v7215 = vpop.f32.mrf.mxu0
  %v7216 = vadd.f32 0.0, %v7215
  %v7217 = vpop.f32.mrf.mxu0
  %7218 = vdwg.mxu0
  %7219 = vrot.lane.b32.xlu0 %v4924, 96
  %v7220 = vpop.permute.xlu0 %7219
  %v7223 = vsel %vm137, %v6300, 0
  %7225 = vmatprep.subr.mxu0 0.0
  %7226 = vmatpush1.msra.mxu0 0.0
  %7227 = vmatprep.subr.mxu0 0.0
  %7228 = vmatpush1.msra.mxu0 0.0
  %7229 = vmatprep.subr.mxu0 0.0
  %7230 = vmatpush1.msra.mxu0 0.0
  %7231 = vmatprep.subr.mxu0 0.0
  %7232 = vmatpush1.msra.mxu0 0.0
  %7233 = vmatprep.subr.mxu0 0.0
  %7234 = vmatpush1.msra.mxu0 0.0
  %7235 = vmatprep.subr.mxu0 0.0
  %7236 = vmatpush1.msra.mxu0 0.0
  %7237 = vmatprep.subr.mxu0 0.0
  %7238 = vmatpush1.msra.mxu0 0.0
  %7239 = vmatprep.subr.mxu0 0.0
  %7240 = vmatpush1.msra.mxu0 0.0
  %7241 = vmatprep.subr.mxu0 0.0
  %7242 = vmatpush1.msra.mxu0 0.0
  %7243 = vmatprep.subr.mxu0 0.0
  %7244 = vmatpush1.msra.mxu0 0.0
  %7245 = vmatprep.subr.mxu0 0.0
  %7246 = vmatpush1.msra.mxu0 0.0
  %7247 = vmatprep.subr.mxu0 0.0
  %7248 = vmatpush1.msra.mxu0 0.0
  %7249 = vmatprep.subr.mxu0 0.0
  %7250 = vmatpush1.msra.mxu0 0.0
  %7251 = vmatprep.subr.mxu0 0.0
  %7252 = vmatpush1.msra.mxu0 0.0
  %7253 = vmatprep.subr.mxu0 0.0
  %7254 = vmatpush1.msra.mxu0 0.0
  %7255 = vmatprep.subr.mxu0 0.0
  %7256 = vmatpush1.msra.mxu0 %v7220
  %7257 = vmatprep.subr.mxu0 0.0
  %7258 = vmatpush2.msra.mxu0 0.0
  %7259 = vmatprep.subr.mxu0 0.0
  %7260 = vmatpush2.msra.mxu0 0.0
  %7261 = vmatprep.subr.mxu0 0.0
  %7262 = vmatpush2.msra.mxu0 0.0
  %7263 = vmatprep.subr.mxu0 0.0
  %7264 = vmatpush2.msra.mxu0 0.0
  %7265 = vmatprep.subr.mxu0 0.0
  %7266 = vmatpush2.msra.mxu0 0.0
  %7267 = vmatprep.subr.mxu0 0.0
  %7268 = vmatpush2.msra.mxu0 0.0
  %7269 = vmatprep.subr.mxu0 0.0
  %7270 = vmatpush2.msra.mxu0 0.0
  %7271 = vmatprep.subr.mxu0 0.0
  %7272 = vmatpush2.msra.mxu0 0.0
  %7273 = vmatprep.subr.mxu0 0.0
  %7274 = vmatpush2.msra.mxu0 0.0
  %7275 = vmatprep.subr.mxu0 0.0
  %7276 = vmatpush2.msra.mxu0 0.0
  %7277 = vmatprep.subr.mxu0 0.0
  %7278 = vmatpush2.msra.mxu0 0.0
  %7279 = vmatprep.subr.mxu0 0.0
  %7280 = vmatpush2.msra.mxu0 0.0
  %7281 = vmatprep.subr.mxu0 0.0
  %7282 = vmatpush2.msra.mxu0 0.0
  %7283 = vmatprep.subr.mxu0 0.0
  %7284 = vmatpush2.msra.mxu0 0.0
  %7285 = vmatprep.subr.mxu0 0.0
  %7286 = vmatpush2.msra.mxu0 0.0
  %7287 = vmatprep.subr.mxu0 0.0
  %7288 = vmatpush2.msra.mxu0 0.0
  %7289 = vmatprep.mubr.f32.mxu0 0.0
  %7290 = vmatmul.mubr.f32.gmra.mxu0 %v7223
  %v7291 = vpop.f32.mrf.mxu0
  %v7292 = vadd.f32 0.0, %v7291
  %v7293 = vpop.f32.mrf.mxu0
  %7294 = vdwg.mxu0
  %7295 = vrot.lane.b32.xlu0 %v4926, 96
  %v7296 = vpop.permute.xlu0 %7295
  %v7299 = vsel %vm137, %v6302, 0
  %7301 = vmatprep.subr.mxu0 0.0
  %7302 = vmatpush1.msra.mxu0 0.0
  %7303 = vmatprep.subr.mxu0 0.0
  %7304 = vmatpush1.msra.mxu0 0.0
  %7305 = vmatprep.subr.mxu0 0.0
  %7306 = vmatpush1.msra.mxu0 0.0
  %7307 = vmatprep.subr.mxu0 0.0
  %7308 = vmatpush1.msra.mxu0 0.0
  %7309 = vmatprep.subr.mxu0 0.0
  %7310 = vmatpush1.msra.mxu0 0.0
  %7311 = vmatprep.subr.mxu0 0.0
  %7312 = vmatpush1.msra.mxu0 0.0
  %7313 = vmatprep.subr.mxu0 0.0
  %7314 = vmatpush1.msra.mxu0 0.0
  %7315 = vmatprep.subr.mxu0 0.0
  %7316 = vmatpush1.msra.mxu0 0.0
  %7317 = vmatprep.subr.mxu0 0.0
  %7318 = vmatpush1.msra.mxu0 0.0
  %7319 = vmatprep.subr.mxu0 0.0
  %7320 = vmatpush1.msra.mxu0 0.0
  %7321 = vmatprep.subr.mxu0 0.0
  %7322 = vmatpush1.msra.mxu0 0.0
  %7323 = vmatprep.subr.mxu0 0.0
  %7324 = vmatpush1.msra.mxu0 0.0
  %7325 = vmatprep.subr.mxu0 0.0
  %7326 = vmatpush1.msra.mxu0 0.0
  %7327 = vmatprep.subr.mxu0 0.0
  %7328 = vmatpush1.msra.mxu0 0.0
  %7329 = vmatprep.subr.mxu0 0.0
  %7330 = vmatpush1.msra.mxu0 0.0
  %7331 = vmatprep.subr.mxu0 0.0
  %7332 = vmatpush1.msra.mxu0 %v7296
  %7333 = vmatprep.subr.mxu0 0.0
  %7334 = vmatpush2.msra.mxu0 0.0
  %7335 = vmatprep.subr.mxu0 0.0
  %7336 = vmatpush2.msra.mxu0 0.0
  %7337 = vmatprep.subr.mxu0 0.0
  %7338 = vmatpush2.msra.mxu0 0.0
  %7339 = vmatprep.subr.mxu0 0.0
  %7340 = vmatpush2.msra.mxu0 0.0
  %7341 = vmatprep.subr.mxu0 0.0
  %7342 = vmatpush2.msra.mxu0 0.0
  %7343 = vmatprep.subr.mxu0 0.0
  %7344 = vmatpush2.msra.mxu0 0.0
  %7345 = vmatprep.subr.mxu0 0.0
  %7346 = vmatpush2.msra.mxu0 0.0
  %7347 = vmatprep.subr.mxu0 0.0
  %7348 = vmatpush2.msra.mxu0 0.0
  %7349 = vmatprep.subr.mxu0 0.0
  %7350 = vmatpush2.msra.mxu0 0.0
  %7351 = vmatprep.subr.mxu0 0.0
  %7352 = vmatpush2.msra.mxu0 0.0
  %7353 = vmatprep.subr.mxu0 0.0
  %7354 = vmatpush2.msra.mxu0 0.0
  %7355 = vmatprep.subr.mxu0 0.0
  %7356 = vmatpush2.msra.mxu0 0.0
  %7357 = vmatprep.subr.mxu0 0.0
  %7358 = vmatpush2.msra.mxu0 0.0
  %7359 = vmatprep.subr.mxu0 0.0
  %7360 = vmatpush2.msra.mxu0 0.0
  %7361 = vmatprep.subr.mxu0 0.0
  %7362 = vmatpush2.msra.mxu0 0.0
  %7363 = vmatprep.subr.mxu0 0.0
  %7364 = vmatpush2.msra.mxu0 0.0
  %7365 = vmatprep.mubr.f32.mxu0 0.0
  %7366 = vmatmul.mubr.f32.gmra.mxu0 %v7299
  %v7367 = vpop.f32.mrf.mxu0
  %v7368 = vadd.f32 0.0, %v7367
  %v7369 = vpop.f32.mrf.mxu0
  %7370 = vdwg.mxu0
  %7371 = vrot.lane.b32.xlu0 %v4928, 96
  %v7372 = vpop.permute.xlu0 %7371
  %v7375 = vsel %vm137, %v6304, 0
  %7377 = vmatprep.subr.mxu0 0.0
  %7378 = vmatpush1.msra.mxu0 0.0
  %7379 = vmatprep.subr.mxu0 0.0
  %7380 = vmatpush1.msra.mxu0 0.0
  %7381 = vmatprep.subr.mxu0 0.0
  %7382 = vmatpush1.msra.mxu0 0.0
  %7383 = vmatprep.subr.mxu0 0.0
  %7384 = vmatpush1.msra.mxu0 0.0
  %7385 = vmatprep.subr.mxu0 0.0
  %7386 = vmatpush1.msra.mxu0 0.0
  %7387 = vmatprep.subr.mxu0 0.0
  %7388 = vmatpush1.msra.mxu0 0.0
  %7389 = vmatprep.subr.mxu0 0.0
  %7390 = vmatpush1.msra.mxu0 0.0
  %7391 = vmatprep.subr.mxu0 0.0
  %7392 = vmatpush1.msra.mxu0 0.0
  %7393 = vmatprep.subr.mxu0 0.0
  %7394 = vmatpush1.msra.mxu0 0.0
  %7395 = vmatprep.subr.mxu0 0.0
  %7396 = vmatpush1.msra.mxu0 0.0
  %7397 = vmatprep.subr.mxu0 0.0
  %7398 = vmatpush1.msra.mxu0 0.0
  %7399 = vmatprep.subr.mxu0 0.0
  %7400 = vmatpush1.msra.mxu0 0.0
  %7401 = vmatprep.subr.mxu0 0.0
  %7402 = vmatpush1.msra.mxu0 0.0
  %7403 = vmatprep.subr.mxu0 0.0
  %7404 = vmatpush1.msra.mxu0 0.0
  %7405 = vmatprep.subr.mxu0 0.0
  %7406 = vmatpush1.msra.mxu0 0.0
  %7407 = vmatprep.subr.mxu0 0.0
  %7408 = vmatpush1.msra.mxu0 %v7372
  %7409 = vmatprep.subr.mxu0 0.0
  %7410 = vmatpush2.msra.mxu0 0.0
  %7411 = vmatprep.subr.mxu0 0.0
  %7412 = vmatpush2.msra.mxu0 0.0
  %7413 = vmatprep.subr.mxu0 0.0
  %7414 = vmatpush2.msra.mxu0 0.0
  %7415 = vmatprep.subr.mxu0 0.0
  %7416 = vmatpush2.msra.mxu0 0.0
  %7417 = vmatprep.subr.mxu0 0.0
  %7418 = vmatpush2.msra.mxu0 0.0
  %7419 = vmatprep.subr.mxu0 0.0
  %7420 = vmatpush2.msra.mxu0 0.0
  %7421 = vmatprep.subr.mxu0 0.0
  %7422 = vmatpush2.msra.mxu0 0.0
  %7423 = vmatprep.subr.mxu0 0.0
  %7424 = vmatpush2.msra.mxu0 0.0
  %7425 = vmatprep.subr.mxu0 0.0
  %7426 = vmatpush2.msra.mxu0 0.0
  %7427 = vmatprep.subr.mxu0 0.0
  %7428 = vmatpush2.msra.mxu0 0.0
  %7429 = vmatprep.subr.mxu0 0.0
  %7430 = vmatpush2.msra.mxu0 0.0
  %7431 = vmatprep.subr.mxu0 0.0
  %7432 = vmatpush2.msra.mxu0 0.0
  %7433 = vmatprep.subr.mxu0 0.0
  %7434 = vmatpush2.msra.mxu0 0.0
  %7435 = vmatprep.subr.mxu0 0.0
  %7436 = vmatpush2.msra.mxu0 0.0
  %7437 = vmatprep.subr.mxu0 0.0
  %7438 = vmatpush2.msra.mxu0 0.0
  %7439 = vmatprep.subr.mxu0 0.0
  %7440 = vmatpush2.msra.mxu0 0.0
  %7441 = vmatprep.mubr.f32.mxu0 0.0
  %7442 = vmatmul.mubr.f32.gmra.mxu0 %v7375
  %v7443 = vpop.f32.mrf.mxu0
  %v7444 = vadd.f32 0.0, %v7443
  %v7445 = vpop.f32.mrf.mxu0
  %7446 = vdwg.mxu0
  %7447 = vrot.lane.b32.xlu0 %v4930, 96
  %v7448 = vpop.permute.xlu0 %7447
  %v7451 = vsel %vm137, %v6306, 0
  %7453 = vmatprep.subr.mxu0 0.0
  %7454 = vmatpush1.msra.mxu0 0.0
  %7455 = vmatprep.subr.mxu0 0.0
  %7456 = vmatpush1.msra.mxu0 0.0
  %7457 = vmatprep.subr.mxu0 0.0
  %7458 = vmatpush1.msra.mxu0 0.0
  %7459 = vmatprep.subr.mxu0 0.0
  %7460 = vmatpush1.msra.mxu0 0.0
  %7461 = vmatprep.subr.mxu0 0.0
  %7462 = vmatpush1.msra.mxu0 0.0
  %7463 = vmatprep.subr.mxu0 0.0
  %7464 = vmatpush1.msra.mxu0 0.0
  %7465 = vmatprep.subr.mxu0 0.0
  %7466 = vmatpush1.msra.mxu0 0.0
  %7467 = vmatprep.subr.mxu0 0.0
  %7468 = vmatpush1.msra.mxu0 0.0
  %7469 = vmatprep.subr.mxu0 0.0
  %7470 = vmatpush1.msra.mxu0 0.0
  %7471 = vmatprep.subr.mxu0 0.0
  %7472 = vmatpush1.msra.mxu0 0.0
  %7473 = vmatprep.subr.mxu0 0.0
  %7474 = vmatpush1.msra.mxu0 0.0
  %7475 = vmatprep.subr.mxu0 0.0
  %7476 = vmatpush1.msra.mxu0 0.0
  %7477 = vmatprep.subr.mxu0 0.0
  %7478 = vmatpush1.msra.mxu0 0.0
  %7479 = vmatprep.subr.mxu0 0.0
  %7480 = vmatpush1.msra.mxu0 0.0
  %7481 = vmatprep.subr.mxu0 0.0
  %7482 = vmatpush1.msra.mxu0 0.0
  %7483 = vmatprep.subr.mxu0 0.0
  %7484 = vmatpush1.msra.mxu0 %v7448
  %7485 = vmatprep.subr.mxu0 0.0
  %7486 = vmatpush2.msra.mxu0 0.0
  %7487 = vmatprep.subr.mxu0 0.0
  %7488 = vmatpush2.msra.mxu0 0.0
  %7489 = vmatprep.subr.mxu0 0.0
  %7490 = vmatpush2.msra.mxu0 0.0
  %7491 = vmatprep.subr.mxu0 0.0
  %7492 = vmatpush2.msra.mxu0 0.0
  %7493 = vmatprep.subr.mxu0 0.0
  %7494 = vmatpush2.msra.mxu0 0.0
  %7495 = vmatprep.subr.mxu0 0.0
  %7496 = vmatpush2.msra.mxu0 0.0
  %7497 = vmatprep.subr.mxu0 0.0
  %7498 = vmatpush2.msra.mxu0 0.0
  %7499 = vmatprep.subr.mxu0 0.0
  %7500 = vmatpush2.msra.mxu0 0.0
  %7501 = vmatprep.subr.mxu0 0.0
  %7502 = vmatpush2.msra.mxu0 0.0
  %7503 = vmatprep.subr.mxu0 0.0
  %7504 = vmatpush2.msra.mxu0 0.0
  %7505 = vmatprep.subr.mxu0 0.0
  %7506 = vmatpush2.msra.mxu0 0.0
  %7507 = vmatprep.subr.mxu0 0.0
  %7508 = vmatpush2.msra.mxu0 0.0
  %7509 = vmatprep.subr.mxu0 0.0
  %7510 = vmatpush2.msra.mxu0 0.0
  %7511 = vmatprep.subr.mxu0 0.0
  %7512 = vmatpush2.msra.mxu0 0.0
  %7513 = vmatprep.subr.mxu0 0.0
  %7514 = vmatpush2.msra.mxu0 0.0
  %7515 = vmatprep.subr.mxu0 0.0
  %7516 = vmatpush2.msra.mxu0 0.0
  %7517 = vmatprep.mubr.f32.mxu0 0.0
  %7518 = vmatmul.mubr.f32.gmra.mxu0 %v7451
  %v7519 = vpop.f32.mrf.mxu0
  %v7520 = vadd.f32 0.0, %v7519
  %v7521 = vpop.f32.mrf.mxu0
  %7522 = vdwg.mxu0
  %7527 = vrot.lane.b32.xlu0 %v6684, 8
  %v7528 = vpop.permute.xlu0 %7527
  %7529 = vrot.lane.b32.xlu0 %v6760, 8
  %v7530 = vpop.permute.xlu0 %7529
  %7531 = vrot.lane.b32.xlu0 %v6836, 8
  %v7532 = vpop.permute.xlu0 %7531
  %7533 = vrot.lane.b32.xlu0 %v6912, 8
  %v7534 = vpop.permute.xlu0 %7533
  %7543 = vrot.lane.b32.xlu0 %v6988, 16
  %v7544 = vpop.permute.xlu0 %7543
  %7545 = vrot.lane.b32.xlu0 %v7064, 16
  %v7546 = vpop.permute.xlu0 %7545
  %7547 = vrot.lane.b32.xlu0 %v7140, 16
  %v7548 = vpop.permute.xlu0 %7547
  %7549 = vrot.lane.b32.xlu0 %v7216, 16
  %v7550 = vpop.permute.xlu0 %7549
  %7559 = vrot.lane.b32.xlu0 %v7292, 24
  %v7560 = vpop.permute.xlu0 %7559
  %7561 = vrot.lane.b32.xlu0 %v7368, 24
  %v7562 = vpop.permute.xlu0 %7561
  %7563 = vrot.lane.b32.xlu0 %v7444, 24
  %v7564 = vpop.permute.xlu0 %7563
  %7565 = vrot.lane.b32.xlu0 %v7520, 24
  %v7566 = vpop.permute.xlu0 %7565
  %v7571 = vsel %vm137, %v6380, %v7528
  %v7572 = vsel %vm137, %v6456, %v7530
  %v7573 = vsel %vm137, %v6532, %v7532
  %v7574 = vsel %vm137, %v6608, %v7534
  %v7575 = vsel %vm1474, %v7571, %v7544
  %v7576 = vsel %vm1474, %v7572, %v7546
  %v7577 = vsel %vm1474, %v7573, %v7548
  %v7578 = vsel %vm1474, %v7574, %v7550
  %v7579 = vsel %vm1477, %v7575, %v7560
  %v7580 = vsel %vm1477, %v7576, %v7562
  %v7581 = vsel %vm1477, %v7577, %v7564
  %v7582 = vsel %vm1477, %v7578, %v7566
  %v7583 = vld [vmem:[%s3 + $0x118] sm:$0xff]
  %v7584 = vld [vmem:[%s3 + $0x238] sm:$0xff]
  %v7585 = vld [vmem:[%s3 + $0x358] sm:$0xff]
  %v7586 = vld [vmem:[%s3 + $0x478] sm:$0xff]
  %v7587 = vld [vmem:[%s5 + $0x25] sm:$0x1]
  %v7589 = vlaneseq
  %v7590 = vshrl.u32 %v7589, 7
  %v7591 = vsub.s32 0, %v7590
  %v7592 = vrot.slane %v7587, %v7591
  %7597 = vrot.lane.b32.xlu0 %v7583, 94
  %v7598 = vpop.permute.xlu0 %7597
  %7599 = vrot.lane.b32.xlu0 %v7584, 94
  %v7600 = vpop.permute.xlu0 %7599
  %7601 = vrot.lane.b32.xlu0 %v7585, 94
  %v7602 = vpop.permute.xlu0 %7601
  %7603 = vrot.lane.b32.xlu0 %v7586, 94
  %v7604 = vpop.permute.xlu0 %7603
  %7609 = vrot.lane.b32.xlu0 %v7592, 126
  %v7610 = vpop.permute.xlu0 %7609
  %v7613 = vsel %vm39, %v7579, 0
  %v7616 = vsel %vm39, %v7580, 0
  %v7619 = vsel %vm39, %v7581, 0
  %v7622 = vsel %vm39, %v7582, 0
  %7624 = vmatprep.subr.mxu0 0.0
  %7625 = vmatpush1.msra.mxu0 0.0
  %7626 = vmatprep.subr.mxu0 0.0
  %7627 = vmatpush1.msra.mxu0 0.0
  %7628 = vmatprep.subr.mxu0 0.0
  %7629 = vmatpush1.msra.mxu0 0.0
  %7630 = vmatprep.subr.mxu0 0.0
  %7631 = vmatpush1.msra.mxu0 0.0
  %7632 = vmatprep.subr.mxu0 0.0
  %7633 = vmatpush1.msra.mxu0 0.0
  %7634 = vmatprep.subr.mxu0 0.0
  %7635 = vmatpush1.msra.mxu0 0.0
  %7636 = vmatprep.subr.mxu0 0.0
  %7637 = vmatpush1.msra.mxu0 0.0
  %7638 = vmatprep.subr.mxu0 0.0
  %7639 = vmatpush1.msra.mxu0 0.0
  %7640 = vmatprep.subr.mxu0 0.0
  %7641 = vmatpush1.msra.mxu0 0.0
  %7642 = vmatprep.subr.mxu0 0.0
  %7643 = vmatpush1.msra.mxu0 0.0
  %7644 = vmatprep.subr.mxu0 0.0
  %7645 = vmatpush1.msra.mxu0 0.0
  %7646 = vmatprep.subr.mxu0 0.0
  %7647 = vmatpush1.msra.mxu0 0.0
  %7648 = vmatprep.subr.mxu0 0.0
  %7649 = vmatpush1.msra.mxu0 %v7604
  %7650 = vmatprep.subr.mxu0 0.0
  %7651 = vmatpush1.msra.mxu0 %v7602
  %7652 = vmatprep.subr.mxu0 0.0
  %7653 = vmatpush1.msra.mxu0 %v7600
  %7654 = vmatprep.subr.mxu0 0.0
  %7655 = vmatpush1.msra.mxu0 %v7598
  %7656 = vmatprep.subr.mxu0 0.0
  %7657 = vmatpush2.msra.mxu0 0.0
  %7658 = vmatprep.subr.mxu0 0.0
  %7659 = vmatpush2.msra.mxu0 0.0
  %7660 = vmatprep.subr.mxu0 0.0
  %7661 = vmatpush2.msra.mxu0 0.0
  %7662 = vmatprep.subr.mxu0 0.0
  %7663 = vmatpush2.msra.mxu0 0.0
  %7664 = vmatprep.subr.mxu0 0.0
  %7665 = vmatpush2.msra.mxu0 0.0
  %7666 = vmatprep.subr.mxu0 0.0
  %7667 = vmatpush2.msra.mxu0 0.0
  %7668 = vmatprep.subr.mxu0 0.0
  %7669 = vmatpush2.msra.mxu0 0.0
  %7670 = vmatprep.subr.mxu0 0.0
  %7671 = vmatpush2.msra.mxu0 0.0
  %7672 = vmatprep.subr.mxu0 0.0
  %7673 = vmatpush2.msra.mxu0 0.0
  %7674 = vmatprep.subr.mxu0 0.0
  %7675 = vmatpush2.msra.mxu0 0.0
  %7676 = vmatprep.subr.mxu0 0.0
  %7677 = vmatpush2.msra.mxu0 0.0
  %7678 = vmatprep.subr.mxu0 0.0
  %7679 = vmatpush2.msra.mxu0 0.0
  %7680 = vmatprep.subr.mxu0 0.0
  %7681 = vmatpush2.msra.mxu0 0.0
  %7682 = vmatprep.subr.mxu0 0.0
  %7683 = vmatpush2.msra.mxu0 0.0
  %7684 = vmatprep.subr.mxu0 0.0
  %7685 = vmatpush2.msra.mxu0 0.0
  %7686 = vmatprep.subr.mxu0 0.0
  %7687 = vmatpush2.msra.mxu0 0.0
  %7688 = vmatprep.mubr.f32.mxu0 0.0
  %7689 = vmatmul.mubr.f32.gmra.mxu0 %v7613
  %v7690 = vpop.f32.mrf.mxu0
  %v7691 = vadd.f32 %v7610, %v7690
  %v7692 = vpop.f32.mrf.mxu0
  %7693 = vmatprep.mubr.f32.mxu0 0.0
  %7694 = vmatmul.mubr.f32.gmra.mxu0 %v7616
  %v7695 = vpop.f32.mrf.mxu0
  %v7696 = vadd.f32 %v7610, %v7695
  %v7697 = vpop.f32.mrf.mxu0
  %7698 = vmatprep.mubr.f32.mxu0 0.0
  %7699 = vmatmul.mubr.f32.gmra.mxu0 %v7619
  %v7700 = vpop.f32.mrf.mxu0
  %v7701 = vadd.f32 %v7610, %v7700
  %v7702 = vpop.f32.mrf.mxu0
  %7703 = vmatprep.mubr.f32.mxu0 0.0
  %7704 = vmatmul.mubr.f32.gmra.mxu0 %v7622
  %v7705 = vpop.f32.mrf.mxu0
  %v7706 = vadd.f32 %v7610, %v7705
  %v7707 = vpop.f32.mrf.mxu0
  %7708 = vdwg.mxu0
  %v7709 = vadd.f32 %v4654, %v7691
  %v7710 = vadd.f32 %v4654, %v7696
  %v7711 = vadd.f32 %v4654, %v7701
  %v7712 = vadd.f32 %v4654, %v7706
  %v7713 = vsel %vm39, %v7709, 0.0
  %7714 = vadd.xlane.f32.xlu0 %v7713
  %v7715 = vpop.xlane.xlu0 %7714
  %v7716 = vsel %vm39, %v7710, 0.0
  %7717 = vadd.xlane.f32.xlu0 %v7716
  %v7718 = vpop.xlane.xlu0 %7717
  %v7719 = vsel %vm39, %v7711, 0.0
  %7720 = vadd.xlane.f32.xlu0 %v7719
  %v7721 = vpop.xlane.xlu0 %7720
  %v7722 = vsel %vm39, %v7712, 0.0
  %7723 = vadd.xlane.f32.xlu0 %v7722
  %v7724 = vpop.xlane.xlu0 %7723
  %v7725 = vmul.f32 %v7715, %v1599
  %v7726 = vmul.f32 %v7718, %v1599
  %v7727 = vmul.f32 %v7721, %v1599
  %v7728 = vmul.f32 %v7724, %v1599
  %v7729 = vsub.f32 %v7709, %v7725
  %v7730 = vsub.f32 %v7710, %v7726
  %v7731 = vsub.f32 %v7711, %v7727
  %v7732 = vsub.f32 %v7712, %v7728
  %v7733 = vmul.f32 %v7729, %v7729
  %v7734 = vmul.f32 %v7730, %v7730
  %v7735 = vmul.f32 %v7731, %v7731
  %v7736 = vmul.f32 %v7732, %v7732
  %v7737 = vsel %vm39, %v7733, 0.0
  %7738 = vadd.xlane.f32.xlu0 %v7737
  %v7739 = vpop.xlane.xlu0 %7738
  %v7740 = vsel %vm39, %v7734, 0.0
  %7741 = vadd.xlane.f32.xlu0 %v7740
  %v7742 = vpop.xlane.xlu0 %7741
  %v7743 = vsel %vm39, %v7735, 0.0
  %7744 = vadd.xlane.f32.xlu0 %v7743
  %v7745 = vpop.xlane.xlu0 %7744
  %v7746 = vsel %vm39, %v7736, 0.0
  %7747 = vadd.xlane.f32.xlu0 %v7746
  %v7748 = vpop.xlane.xlu0 %7747
  %v7749 = vmul.f32 %v7739, %v1599
  %v7750 = vmul.f32 %v7742, %v1599
  %v7751 = vmul.f32 %v7745, %v1599
  %v7752 = vmul.f32 %v7748, %v1599
  %v7753 = vadd.f32 %v7749, 1e-05
  %v7754 = vadd.f32 %v7750, 1e-05
  %v7755 = vadd.f32 %v7751, 1e-05
  %v7756 = vadd.f32 %v7752, 1e-05
  %v7757 = vrsqrt.pop %v7753
  %v7758 = vrsqrt.pop %v7754
  %v7759 = vrsqrt.pop %v7755
  %v7760 = vrsqrt.pop %v7756
  %v7761 = vmul.f32 %v7729, %v7757
  %v7762 = vmul.f32 %v7730, %v7758
  %v7763 = vmul.f32 %v7731, %v7759
  %v7764 = vmul.f32 %v7732, %v7760
  %7765 = vrot.lane.b32.xlu0 %v7592, 94
  %v7766 = vpop.permute.xlu0 %7765
  %v7768 = vmul.f32 %v7761, %v7766
  %v7769 = vmul.f32 %v7762, %v7766
  %v7770 = vmul.f32 %v7763, %v7766
  %v7771 = vmul.f32 %v7764, %v7766
  %7772 = vrot.lane.b32.xlu0 %v7592, 62
  %v7773 = vpop.permute.xlu0 %7772
  %v7775 = vadd.f32 %v7768, %v7773
  %v7776 = vadd.f32 %v7769, %v7773
  %v7777 = vadd.f32 %v7770, %v7773
  %v7778 = vadd.f32 %v7771, %v7773
  %v7779 = vld [vmem:[%s3 + $0x80] sm:$0xff]
  %v7780 = vld [vmem:[%s3 + $0x88] sm:$0xff]
  %v7781 = vld [vmem:[%s3 + $0x90] sm:$0xff]
  %v7782 = vld [vmem:[%s3 + $0x98] sm:$0xff]
  %v7783 = vld [vmem:[%s3 + $0xa0] sm:$0xff]
  %v7784 = vld [vmem:[%s3 + $0xa8] sm:$0xff]
  %v7785 = vld [vmem:[%s3 + $0xb0] sm:$0xff]
  %v7786 = vld [vmem:[%s3 + $0xb8] sm:$0xff]
  %v7787 = vld [vmem:[%s3 + $0xc0] sm:$0xff]
  %v7788 = vld [vmem:[%s3 + $0xc8] sm:$0xff]
  %v7789 = vld [vmem:[%s3 + $0xd0] sm:$0xff]
  %v7790 = vld [vmem:[%s3 + $0xd8] sm:$0xff]
  %v7791 = vld [vmem:[%s3 + $0xe0] sm:$0xff]
  %v7792 = vld [vmem:[%s3 + $0xe8] sm:$0xff]
  %v7793 = vld [vmem:[%s3 + $0xf0] sm:$0xff]
  %v7794 = vld [vmem:[%s3 + $0xf8] sm:$0xff]
  %v7795 = vld [vmem:[%s3 + $0x1a0] sm:$0xff]
  %v7796 = vld [vmem:[%s3 + $0x1a8] sm:$0xff]
  %v7797 = vld [vmem:[%s3 + $0x1b0] sm:$0xff]
  %v7798 = vld [vmem:[%s3 + $0x1b8] sm:$0xff]
  %v7799 = vld [vmem:[%s3 + $0x1c0] sm:$0xff]
  %v7800 = vld [vmem:[%s3 + $0x1c8] sm:$0xff]
  %v7801 = vld [vmem:[%s3 + $0x1d0] sm:$0xff]
  %v7802 = vld [vmem:[%s3 + $0x1d8] sm:$0xff]
  %v7803 = vld [vmem:[%s3 + $0x1e0] sm:$0xff]
  %v7804 = vld [vmem:[%s3 + $0x1e8] sm:$0xff]
  %v7805 = vld [vmem:[%s3 + $0x1f0] sm:$0xff]
  %v7806 = vld [vmem:[%s3 + $0x1f8] sm:$0xff]
  %v7807 = vld [vmem:[%s3 + $0x200] sm:$0xff]
  %v7808 = vld [vmem:[%s3 + $0x208] sm:$0xff]
  %v7809 = vld [vmem:[%s3 + $0x210] sm:$0xff]
  %v7810 = vld [vmem:[%s3 + $0x218] sm:$0xff]
  %v7811 = vld [vmem:[%s3 + $0x2c0] sm:$0xff]
  %v7812 = vld [vmem:[%s3 + $0x2c8] sm:$0xff]
  %v7813 = vld [vmem:[%s3 + $0x2d0] sm:$0xff]
  %v7814 = vld [vmem:[%s3 + $0x2d8] sm:$0xff]
  %v7815 = vld [vmem:[%s3 + $0x2e0] sm:$0xff]
  %v7816 = vld [vmem:[%s3 + $0x2e8] sm:$0xff]
  %v7817 = vld [vmem:[%s3 + $0x2f0] sm:$0xff]
  %v7818 = vld [vmem:[%s3 + $0x2f8] sm:$0xff]
  %v7819 = vld [vmem:[%s3 + $0x300] sm:$0xff]
  %v7820 = vld [vmem:[%s3 + $0x308] sm:$0xff]
  %v7821 = vld [vmem:[%s3 + $0x310] sm:$0xff]
  %v7822 = vld [vmem:[%s3 + $0x318] sm:$0xff]
  %v7823 = vld [vmem:[%s3 + $0x320] sm:$0xff]
  %v7824 = vld [vmem:[%s3 + $0x328] sm:$0xff]
  %v7825 = vld [vmem:[%s3 + $0x330] sm:$0xff]
  %v7826 = vld [vmem:[%s3 + $0x338] sm:$0xff]
  %v7827 = vld [vmem:[%s3 + $0x3e0] sm:$0xff]
  %v7828 = vld [vmem:[%s3 + $0x3e8] sm:$0xff]
  %v7829 = vld [vmem:[%s3 + $0x3f0] sm:$0xff]
  %v7830 = vld [vmem:[%s3 + $0x3f8] sm:$0xff]
  %v7831 = vld [vmem:[%s3 + $0x400] sm:$0xff]
  %v7832 = vld [vmem:[%s3 + $0x408] sm:$0xff]
  %v7833 = vld [vmem:[%s3 + $0x410] sm:$0xff]
  %v7834 = vld [vmem:[%s3 + $0x418] sm:$0xff]
  %v7835 = vld [vmem:[%s3 + $0x420] sm:$0xff]
  %v7836 = vld [vmem:[%s3 + $0x428] sm:$0xff]
  %v7837 = vld [vmem:[%s3 + $0x430] sm:$0xff]
  %v7838 = vld [vmem:[%s3 + $0x438] sm:$0xff]
  %v7839 = vld [vmem:[%s3 + $0x440] sm:$0xff]
  %v7840 = vld [vmem:[%s3 + $0x448] sm:$0xff]
  %v7841 = vld [vmem:[%s3 + $0x450] sm:$0xff]
  %v7842 = vld [vmem:[%s3 + $0x458] sm:$0xff]
  %v7843 = vld [vmem:[%s5 + $0x10] sm:$0xff]
  %v7844 = vld [vmem:[%s5 + $0x18] sm:$0xff]
  %v7847 = vlaneseq
  %v7848 = vshrl.u32 %v7847, 7
  %v7849 = vsub.s32 0, %v7848
  %v7850 = vrot.slane %v7843, %v7849
  %v7851 = vlaneseq
  %v7852 = vshrl.u32 %v7851, 7
  %v7853 = vsub.s32 1, %v7852
  %v7854 = vrot.slane %v7843, %v7853
  %v7855 = vlaneseq
  %v7856 = vshrl.u32 %v7855, 7
  %v7857 = vsub.s32 2, %v7856
  %v7858 = vrot.slane %v7843, %v7857
  %v7859 = vlaneseq
  %v7860 = vshrl.u32 %v7859, 7
  %v7861 = vsub.s32 3, %v7860
  %v7862 = vrot.slane %v7843, %v7861
  %v7863 = vlaneseq
  %v7864 = vshrl.u32 %v7863, 7
  %v7865 = vsub.s32 4, %v7864
  %v7866 = vrot.slane %v7843, %v7865
  %v7867 = vlaneseq
  %v7868 = vshrl.u32 %v7867, 7
  %v7869 = vsub.s32 5, %v7868
  %v7870 = vrot.slane %v7843, %v7869
  %v7871 = vlaneseq
  %v7872 = vshrl.u32 %v7871, 7
  %v7873 = vsub.s32 6, %v7872
  %v7874 = vrot.slane %v7843, %v7873
  %v7875 = vlaneseq
  %v7876 = vshrl.u32 %v7875, 7
  %v7877 = vsub.s32 7, %v7876
  %v7878 = vrot.slane %v7843, %v7877
  %v7879 = vlaneseq
  %v7880 = vshrl.u32 %v7879, 7
  %v7881 = vsub.s32 0, %v7880
  %v7882 = vrot.slane %v7844, %v7881
  %v7883 = vlaneseq
  %v7884 = vshrl.u32 %v7883, 7
  %v7885 = vsub.s32 1, %v7884
  %v7886 = vrot.slane %v7844, %v7885
  %v7887 = vlaneseq
  %v7888 = vshrl.u32 %v7887, 7
  %v7889 = vsub.s32 2, %v7888
  %v7890 = vrot.slane %v7844, %v7889
  %v7891 = vlaneseq
  %v7892 = vshrl.u32 %v7891, 7
  %v7893 = vsub.s32 3, %v7892
  %v7894 = vrot.slane %v7844, %v7893
  %v7895 = vlaneseq
  %v7896 = vshrl.u32 %v7895, 7
  %v7897 = vsub.s32 4, %v7896
  %v7898 = vrot.slane %v7844, %v7897
  %v7899 = vlaneseq
  %v7900 = vshrl.u32 %v7899, 7
  %v7901 = vsub.s32 5, %v7900
  %v7902 = vrot.slane %v7844, %v7901
  %v7903 = vlaneseq
  %v7904 = vshrl.u32 %v7903, 7
  %v7905 = vsub.s32 6, %v7904
  %v7906 = vrot.slane %v7844, %v7905
  %v7907 = vlaneseq
  %v7908 = vshrl.u32 %v7907, 7
  %v7909 = vsub.s32 7, %v7908
  %v7910 = vrot.slane %v7844, %v7909
  %v7928 = vsel %vm39, %v7775, 0
  %v7931 = vsel %vm39, %v7776, 0
  %v7934 = vsel %vm39, %v7777, 0
  %v7937 = vsel %vm39, %v7778, 0
  %7939 = vmatprep.subr.mxu0 0.0
  %7940 = vmatpush1.msra.mxu0 0.0
  %7941 = vmatprep.subr.mxu0 0.0
  %7942 = vmatpush1.msra.mxu0 0.0
  %7943 = vmatprep.subr.mxu0 0.0
  %7944 = vmatpush1.msra.mxu0 0.0
  %7945 = vmatprep.subr.mxu0 0.0
  %7946 = vmatpush1.msra.mxu0 0.0
  %7947 = vmatprep.subr.mxu0 0.0
  %7948 = vmatpush1.msra.mxu0 0.0
  %7949 = vmatprep.subr.mxu0 0.0
  %7950 = vmatpush1.msra.mxu0 0.0
  %7951 = vmatprep.subr.mxu0 0.0
  %7952 = vmatpush1.msra.mxu0 0.0
  %7953 = vmatprep.subr.mxu0 0.0
  %7954 = vmatpush1.msra.mxu0 0.0
  %7955 = vmatprep.subr.mxu0 0.0
  %7956 = vmatpush1.msra.mxu0 0.0
  %7957 = vmatprep.subr.mxu0 0.0
  %7958 = vmatpush1.msra.mxu0 0.0
  %7959 = vmatprep.subr.mxu0 0.0
  %7960 = vmatpush1.msra.mxu0 0.0
  %7961 = vmatprep.subr.mxu0 0.0
  %7962 = vmatpush1.msra.mxu0 0.0
  %7963 = vmatprep.subr.mxu0 %v7828
  %7964 = vmatpush1.msra.mxu0 %v7827
  %7965 = vmatprep.subr.mxu0 %v7812
  %7966 = vmatpush1.msra.mxu0 %v7811
  %7967 = vmatprep.subr.mxu0 %v7796
  %7968 = vmatpush1.msra.mxu0 %v7795
  %7969 = vmatprep.subr.mxu0 %v7780
  %7970 = vmatpush1.msra.mxu0 %v7779
  %7971 = vmatprep.subr.mxu0 0.0
  %7972 = vmatpush2.msra.mxu0 0.0
  %7973 = vmatprep.subr.mxu0 0.0
  %7974 = vmatpush2.msra.mxu0 0.0
  %7975 = vmatprep.subr.mxu0 0.0
  %7976 = vmatpush2.msra.mxu0 0.0
  %7977 = vmatprep.subr.mxu0 0.0
  %7978 = vmatpush2.msra.mxu0 0.0
  %7979 = vmatprep.subr.mxu0 0.0
  %7980 = vmatpush2.msra.mxu0 0.0
  %7981 = vmatprep.subr.mxu0 0.0
  %7982 = vmatpush2.msra.mxu0 0.0
  %7983 = vmatprep.subr.mxu0 0.0
  %7984 = vmatpush2.msra.mxu0 0.0
  %7985 = vmatprep.subr.mxu0 0.0
  %7986 = vmatpush2.msra.mxu0 0.0
  %7987 = vmatprep.subr.mxu0 0.0
  %7988 = vmatpush2.msra.mxu0 0.0
  %7989 = vmatprep.subr.mxu0 0.0
  %7990 = vmatpush2.msra.mxu0 0.0
  %7991 = vmatprep.subr.mxu0 0.0
  %7992 = vmatpush2.msra.mxu0 0.0
  %7993 = vmatprep.subr.mxu0 0.0
  %7994 = vmatpush2.msra.mxu0 0.0
  %7995 = vmatprep.subr.mxu0 0.0
  %7996 = vmatpush2.msra.mxu0 0.0
  %7997 = vmatprep.subr.mxu0 0.0
  %7998 = vmatpush2.msra.mxu0 0.0
  %7999 = vmatprep.subr.mxu0 0.0
  %8000 = vmatpush2.msra.mxu0 0.0
  %8001 = vmatprep.subr.mxu0 0.0
  %8002 = vmatpush2.msra.mxu0 0.0
  %8003 = vmatprep.mubr.f32.mxu0 0.0
  %8004 = vmatmul.mubr.f32.gmra.mxu0 %v7928
  %v8005 = vpop.f32.mrf.mxu0
  %v8006 = vadd.f32 %v7850, %v8005
  %v8007 = vpop.f32.mrf.mxu0
  %v8008 = vadd.f32 %v7854, %v8007
  %8009 = vmatprep.mubr.f32.mxu0 0.0
  %8010 = vmatmul.mubr.f32.gmra.mxu0 %v7931
  %v8011 = vpop.f32.mrf.mxu0
  %v8012 = vadd.f32 %v7850, %v8011
  %v8013 = vpop.f32.mrf.mxu0
  %v8014 = vadd.f32 %v7854, %v8013
  %8015 = vmatprep.mubr.f32.mxu0 0.0
  %8016 = vmatmul.mubr.f32.gmra.mxu0 %v7934
  %v8017 = vpop.f32.mrf.mxu0
  %v8018 = vadd.f32 %v7850, %v8017
  %v8019 = vpop.f32.mrf.mxu0
  %v8020 = vadd.f32 %v7854, %v8019
  %8021 = vmatprep.mubr.f32.mxu0 0.0
  %8022 = vmatmul.mubr.f32.gmra.mxu0 %v7937
  %v8023 = vpop.f32.mrf.mxu0
  %v8024 = vadd.f32 %v7850, %v8023
  %v8025 = vpop.f32.mrf.mxu0
  %v8026 = vadd.f32 %v7854, %v8025
  %8027 = vdwg.mxu0
  %8028 = vmatprep.subr.mxu0 0.0
  %8029 = vmatpush1.msra.mxu0 0.0
  %8030 = vmatprep.subr.mxu0 0.0
  %8031 = vmatpush1.msra.mxu0 0.0
  %8032 = vmatprep.subr.mxu0 0.0
  %8033 = vmatpush1.msra.mxu0 0.0
  %8034 = vmatprep.subr.mxu0 0.0
  %8035 = vmatpush1.msra.mxu0 0.0
  %8036 = vmatprep.subr.mxu0 0.0
  %8037 = vmatpush1.msra.mxu0 0.0
  %8038 = vmatprep.subr.mxu0 0.0
  %8039 = vmatpush1.msra.mxu0 0.0
  %8040 = vmatprep.subr.mxu0 0.0
  %8041 = vmatpush1.msra.mxu0 0.0
  %8042 = vmatprep.subr.mxu0 0.0
  %8043 = vmatpush1.msra.mxu0 0.0
  %8044 = vmatprep.subr.mxu0 0.0
  %8045 = vmatpush1.msra.mxu0 0.0
  %8046 = vmatprep.subr.mxu0 0.0
  %8047 = vmatpush1.msra.mxu0 0.0
  %8048 = vmatprep.subr.mxu0 0.0
  %8049 = vmatpush1.msra.mxu0 0.0
  %8050 = vmatprep.subr.mxu0 0.0
  %8051 = vmatpush1.msra.mxu0 0.0
  %8052 = vmatprep.subr.mxu0 %v7830
  %8053 = vmatpush1.msra.mxu0 %v7829
  %8054 = vmatprep.subr.mxu0 %v7814
  %8055 = vmatpush1.msra.mxu0 %v7813
  %8056 = vmatprep.subr.mxu0 %v7798
  %8057 = vmatpush1.msra.mxu0 %v7797
  %8058 = vmatprep.subr.mxu0 %v7782
  %8059 = vmatpush1.msra.mxu0 %v7781
  %8060 = vmatprep.subr.mxu0 0.0
  %8061 = vmatpush2.msra.mxu0 0.0
  %8062 = vmatprep.subr.mxu0 0.0
  %8063 = vmatpush2.msra.mxu0 0.0
  %8064 = vmatprep.subr.mxu0 0.0
  %8065 = vmatpush2.msra.mxu0 0.0
  %8066 = vmatprep.subr.mxu0 0.0
  %8067 = vmatpush2.msra.mxu0 0.0
  %8068 = vmatprep.subr.mxu0 0.0
  %8069 = vmatpush2.msra.mxu0 0.0
  %8070 = vmatprep.subr.mxu0 0.0
  %8071 = vmatpush2.msra.mxu0 0.0
  %8072 = vmatprep.subr.mxu0 0.0
  %8073 = vmatpush2.msra.mxu0 0.0
  %8074 = vmatprep.subr.mxu0 0.0
  %8075 = vmatpush2.msra.mxu0 0.0
  %8076 = vmatprep.subr.mxu0 0.0
  %8077 = vmatpush2.msra.mxu0 0.0
  %8078 = vmatprep.subr.mxu0 0.0
  %8079 = vmatpush2.msra.mxu0 0.0
  %8080 = vmatprep.subr.mxu0 0.0
  %8081 = vmatpush2.msra.mxu0 0.0
  %8082 = vmatprep.subr.mxu0 0.0
  %8083 = vmatpush2.msra.mxu0 0.0
  %8084 = vmatprep.subr.mxu0 0.0
  %8085 = vmatpush2.msra.mxu0 0.0
  %8086 = vmatprep.subr.mxu0 0.0
  %8087 = vmatpush2.msra.mxu0 0.0
  %8088 = vmatprep.subr.mxu0 0.0
  %8089 = vmatpush2.msra.mxu0 0.0
  %8090 = vmatprep.subr.mxu0 0.0
  %8091 = vmatpush2.msra.mxu0 0.0
  %8092 = vmatprep.mubr.f32.mxu0 0.0
  %8093 = vmatmul.mubr.f32.gmra.mxu0 %v7928
  %v8094 = vpop.f32.mrf.mxu0
  %v8095 = vadd.f32 %v7858, %v8094
  %v8096 = vpop.f32.mrf.mxu0
  %v8097 = vadd.f32 %v7862, %v8096
  %8098 = vmatprep.mubr.f32.mxu0 0.0
  %8099 = vmatmul.mubr.f32.gmra.mxu0 %v7931
  %v8100 = vpop.f32.mrf.mxu0
  %v8101 = vadd.f32 %v7858, %v8100
  %v8102 = vpop.f32.mrf.mxu0
  %v8103 = vadd.f32 %v7862, %v8102
  %8104 = vmatprep.mubr.f32.mxu0 0.0
  %8105 = vmatmul.mubr.f32.gmra.mxu0 %v7934
  %v8106 = vpop.f32.mrf.mxu0
  %v8107 = vadd.f32 %v7858, %v8106
  %v8108 = vpop.f32.mrf.mxu0
  %v8109 = vadd.f32 %v7862, %v8108
  %8110 = vmatprep.mubr.f32.mxu0 0.0
  %8111 = vmatmul.mubr.f32.gmra.mxu0 %v7937
  %v8112 = vpop.f32.mrf.mxu0
  %v8113 = vadd.f32 %v7858, %v8112
  %v8114 = vpop.f32.mrf.mxu0
  %v8115 = vadd.f32 %v7862, %v8114
  %8116 = vdwg.mxu0
  %8117 = vmatprep.subr.mxu0 0.0
  %8118 = vmatpush1.msra.mxu0 0.0
  %8119 = vmatprep.subr.mxu0 0.0
  %8120 = vmatpush1.msra.mxu0 0.0
  %8121 = vmatprep.subr.mxu0 0.0
  %8122 = vmatpush1.msra.mxu0 0.0
  %8123 = vmatprep.subr.mxu0 0.0
  %8124 = vmatpush1.msra.mxu0 0.0
  %8125 = vmatprep.subr.mxu0 0.0
  %8126 = vmatpush1.msra.mxu0 0.0
  %8127 = vmatprep.subr.mxu0 0.0
  %8128 = vmatpush1.msra.mxu0 0.0
  %8129 = vmatprep.subr.mxu0 0.0
  %8130 = vmatpush1.msra.mxu0 0.0
  %8131 = vmatprep.subr.mxu0 0.0
  %8132 = vmatpush1.msra.mxu0 0.0
  %8133 = vmatprep.subr.mxu0 0.0
  %8134 = vmatpush1.msra.mxu0 0.0
  %8135 = vmatprep.subr.mxu0 0.0
  %8136 = vmatpush1.msra.mxu0 0.0
  %8137 = vmatprep.subr.mxu0 0.0
  %8138 = vmatpush1.msra.mxu0 0.0
  %8139 = vmatprep.subr.mxu0 0.0
  %8140 = vmatpush1.msra.mxu0 0.0
  %8141 = vmatprep.subr.mxu0 %v7832
  %8142 = vmatpush1.msra.mxu0 %v7831
  %8143 = vmatprep.subr.mxu0 %v7816
  %8144 = vmatpush1.msra.mxu0 %v7815
  %8145 = vmatprep.subr.mxu0 %v7800
  %8146 = vmatpush1.msra.mxu0 %v7799
  %8147 = vmatprep.subr.mxu0 %v7784
  %8148 = vmatpush1.msra.mxu0 %v7783
  %8149 = vmatprep.subr.mxu0 0.0
  %8150 = vmatpush2.msra.mxu0 0.0
  %8151 = vmatprep.subr.mxu0 0.0
  %8152 = vmatpush2.msra.mxu0 0.0
  %8153 = vmatprep.subr.mxu0 0.0
  %8154 = vmatpush2.msra.mxu0 0.0
  %8155 = vmatprep.subr.mxu0 0.0
  %8156 = vmatpush2.msra.mxu0 0.0
  %8157 = vmatprep.subr.mxu0 0.0
  %8158 = vmatpush2.msra.mxu0 0.0
  %8159 = vmatprep.subr.mxu0 0.0
  %8160 = vmatpush2.msra.mxu0 0.0
  %8161 = vmatprep.subr.mxu0 0.0
  %8162 = vmatpush2.msra.mxu0 0.0
  %8163 = vmatprep.subr.mxu0 0.0
  %8164 = vmatpush2.msra.mxu0 0.0
  %8165 = vmatprep.subr.mxu0 0.0
  %8166 = vmatpush2.msra.mxu0 0.0
  %8167 = vmatprep.subr.mxu0 0.0
  %8168 = vmatpush2.msra.mxu0 0.0
  %8169 = vmatprep.subr.mxu0 0.0
  %8170 = vmatpush2.msra.mxu0 0.0
  %8171 = vmatprep.subr.mxu0 0.0
  %8172 = vmatpush2.msra.mxu0 0.0
  %8173 = vmatprep.subr.mxu0 0.0
  %8174 = vmatpush2.msra.mxu0 0.0
  %8175 = vmatprep.subr.mxu0 0.0
  %8176 = vmatpush2.msra.mxu0 0.0
  %8177 = vmatprep.subr.mxu0 0.0
  %8178 = vmatpush2.msra.mxu0 0.0
  %8179 = vmatprep.subr.mxu0 0.0
  %8180 = vmatpush2.msra.mxu0 0.0
  %8181 = vmatprep.mubr.f32.mxu0 0.0
  %8182 = vmatmul.mubr.f32.gmra.mxu0 %v7928
  %v8183 = vpop.f32.mrf.mxu0
  %v8184 = vadd.f32 %v7866, %v8183
  %v8185 = vpop.f32.mrf.mxu0
  %v8186 = vadd.f32 %v7870, %v8185
  %8187 = vmatprep.mubr.f32.mxu0 0.0
  %8188 = vmatmul.mubr.f32.gmra.mxu0 %v7931
  %v8189 = vpop.f32.mrf.mxu0
  %v8190 = vadd.f32 %v7866, %v8189
  %v8191 = vpop.f32.mrf.mxu0
  %v8192 = vadd.f32 %v7870, %v8191
  %8193 = vmatprep.mubr.f32.mxu0 0.0
  %8194 = vmatmul.mubr.f32.gmra.mxu0 %v7934
  %v8195 = vpop.f32.mrf.mxu0
  %v8196 = vadd.f32 %v7866, %v8195
  %v8197 = vpop.f32.mrf.mxu0
  %v8198 = vadd.f32 %v7870, %v8197
  %8199 = vmatprep.mubr.f32.mxu0 0.0
  %8200 = vmatmul.mubr.f32.gmra.mxu0 %v7937
  %v8201 = vpop.f32.mrf.mxu0
  %v8202 = vadd.f32 %v7866, %v8201
  %v8203 = vpop.f32.mrf.mxu0
  %v8204 = vadd.f32 %v7870, %v8203
  %8205 = vdwg.mxu0
  %8206 = vmatprep.subr.mxu0 0.0
  %8207 = vmatpush1.msra.mxu0 0.0
  %8208 = vmatprep.subr.mxu0 0.0
  %8209 = vmatpush1.msra.mxu0 0.0
  %8210 = vmatprep.subr.mxu0 0.0
  %8211 = vmatpush1.msra.mxu0 0.0
  %8212 = vmatprep.subr.mxu0 0.0
  %8213 = vmatpush1.msra.mxu0 0.0
  %8214 = vmatprep.subr.mxu0 0.0
  %8215 = vmatpush1.msra.mxu0 0.0
  %8216 = vmatprep.subr.mxu0 0.0
  %8217 = vmatpush1.msra.mxu0 0.0
  %8218 = vmatprep.subr.mxu0 0.0
  %8219 = vmatpush1.msra.mxu0 0.0
  %8220 = vmatprep.subr.mxu0 0.0
  %8221 = vmatpush1.msra.mxu0 0.0
  %8222 = vmatprep.subr.mxu0 0.0
  %8223 = vmatpush1.msra.mxu0 0.0
  %8224 = vmatprep.subr.mxu0 0.0
  %8225 = vmatpush1.msra.mxu0 0.0
  %8226 = vmatprep.subr.mxu0 0.0
  %8227 = vmatpush1.msra.mxu0 0.0
  %8228 = vmatprep.subr.mxu0 0.0
  %8229 = vmatpush1.msra.mxu0 0.0
  %8230 = vmatprep.subr.mxu0 %v7834
  %8231 = vmatpush1.msra.mxu0 %v7833
  %8232 = vmatprep.subr.mxu0 %v7818
  %8233 = vmatpush1.msra.mxu0 %v7817
  %8234 = vmatprep.subr.mxu0 %v7802
  %8235 = vmatpush1.msra.mxu0 %v7801
  %8236 = vmatprep.subr.mxu0 %v7786
  %8237 = vmatpush1.msra.mxu0 %v7785
  %8238 = vmatprep.subr.mxu0 0.0
  %8239 = vmatpush2.msra.mxu0 0.0
  %8240 = vmatprep.subr.mxu0 0.0
  %8241 = vmatpush2.msra.mxu0 0.0
  %8242 = vmatprep.subr.mxu0 0.0
  %8243 = vmatpush2.msra.mxu0 0.0
  %8244 = vmatprep.subr.mxu0 0.0
  %8245 = vmatpush2.msra.mxu0 0.0
  %8246 = vmatprep.subr.mxu0 0.0
  %8247 = vmatpush2.msra.mxu0 0.0
  %8248 = vmatprep.subr.mxu0 0.0
  %8249 = vmatpush2.msra.mxu0 0.0
  %8250 = vmatprep.subr.mxu0 0.0
  %8251 = vmatpush2.msra.mxu0 0.0
  %8252 = vmatprep.subr.mxu0 0.0
  %8253 = vmatpush2.msra.mxu0 0.0
  %8254 = vmatprep.subr.mxu0 0.0
  %8255 = vmatpush2.msra.mxu0 0.0
  %8256 = vmatprep.subr.mxu0 0.0
  %8257 = vmatpush2.msra.mxu0 0.0
  %8258 = vmatprep.subr.mxu0 0.0
  %8259 = vmatpush2.msra.mxu0 0.0
  %8260 = vmatprep.subr.mxu0 0.0
  %8261 = vmatpush2.msra.mxu0 0.0
  %8262 = vmatprep.subr.mxu0 0.0
  %8263 = vmatpush2.msra.mxu0 0.0
  %8264 = vmatprep.subr.mxu0 0.0
  %8265 = vmatpush2.msra.mxu0 0.0
  %8266 = vmatprep.subr.mxu0 0.0
  %8267 = vmatpush2.msra.mxu0 0.0
  %8268 = vmatprep.subr.mxu0 0.0
  %8269 = vmatpush2.msra.mxu0 0.0
  %8270 = vmatprep.mubr.f32.mxu0 0.0
  %8271 = vmatmul.mubr.f32.gmra.mxu0 %v7928
  %v8272 = vpop.f32.mrf.mxu0
  %v8273 = vadd.f32 %v7874, %v8272
  %v8274 = vpop.f32.mrf.mxu0
  %v8275 = vadd.f32 %v7878, %v8274
  %8276 = vmatprep.mubr.f32.mxu0 0.0
  %8277 = vmatmul.mubr.f32.gmra.mxu0 %v7931
  %v8278 = vpop.f32.mrf.mxu0
  %v8279 = vadd.f32 %v7874, %v8278
  %v8280 = vpop.f32.mrf.mxu0
  %v8281 = vadd.f32 %v7878, %v8280
  %8282 = vmatprep.mubr.f32.mxu0 0.0
  %8283 = vmatmul.mubr.f32.gmra.mxu0 %v7934
  %v8284 = vpop.f32.mrf.mxu0
  %v8285 = vadd.f32 %v7874, %v8284
  %v8286 = vpop.f32.mrf.mxu0
  %v8287 = vadd.f32 %v7878, %v8286
  %8288 = vmatprep.mubr.f32.mxu0 0.0
  %8289 = vmatmul.mubr.f32.gmra.mxu0 %v7937
  %v8290 = vpop.f32.mrf.mxu0
  %v8291 = vadd.f32 %v7874, %v8290
  %v8292 = vpop.f32.mrf.mxu0
  %v8293 = vadd.f32 %v7878, %v8292
  %8294 = vdwg.mxu0
  %8295 = vmatprep.subr.mxu0 0.0
  %8296 = vmatpush1.msra.mxu0 0.0
  %8297 = vmatprep.subr.mxu0 0.0
  %8298 = vmatpush1.msra.mxu0 0.0
  %8299 = vmatprep.subr.mxu0 0.0
  %8300 = vmatpush1.msra.mxu0 0.0
  %8301 = vmatprep.subr.mxu0 0.0
  %8302 = vmatpush1.msra.mxu0 0.0
  %8303 = vmatprep.subr.mxu0 0.0
  %8304 = vmatpush1.msra.mxu0 0.0
  %8305 = vmatprep.subr.mxu0 0.0
  %8306 = vmatpush1.msra.mxu0 0.0
  %8307 = vmatprep.subr.mxu0 0.0
  %8308 = vmatpush1.msra.mxu0 0.0
  %8309 = vmatprep.subr.mxu0 0.0
  %8310 = vmatpush1.msra.mxu0 0.0
  %8311 = vmatprep.subr.mxu0 0.0
  %8312 = vmatpush1.msra.mxu0 0.0
  %8313 = vmatprep.subr.mxu0 0.0
  %8314 = vmatpush1.msra.mxu0 0.0
  %8315 = vmatprep.subr.mxu0 0.0
  %8316 = vmatpush1.msra.mxu0 0.0
  %8317 = vmatprep.subr.mxu0 0.0
  %8318 = vmatpush1.msra.mxu0 0.0
  %8319 = vmatprep.subr.mxu0 %v7836
  %8320 = vmatpush1.msra.mxu0 %v7835
  %8321 = vmatprep.subr.mxu0 %v7820
  %8322 = vmatpush1.msra.mxu0 %v7819
  %8323 = vmatprep.subr.mxu0 %v7804
  %8324 = vmatpush1.msra.mxu0 %v7803
  %8325 = vmatprep.subr.mxu0 %v7788
  %8326 = vmatpush1.msra.mxu0 %v7787
  %8327 = vmatprep.subr.mxu0 0.0
  %8328 = vmatpush2.msra.mxu0 0.0
  %8329 = vmatprep.subr.mxu0 0.0
  %8330 = vmatpush2.msra.mxu0 0.0
  %8331 = vmatprep.subr.mxu0 0.0
  %8332 = vmatpush2.msra.mxu0 0.0
  %8333 = vmatprep.subr.mxu0 0.0
  %8334 = vmatpush2.msra.mxu0 0.0
  %8335 = vmatprep.subr.mxu0 0.0
  %8336 = vmatpush2.msra.mxu0 0.0
  %8337 = vmatprep.subr.mxu0 0.0
  %8338 = vmatpush2.msra.mxu0 0.0
  %8339 = vmatprep.subr.mxu0 0.0
  %8340 = vmatpush2.msra.mxu0 0.0
  %8341 = vmatprep.subr.mxu0 0.0
  %8342 = vmatpush2.msra.mxu0 0.0
  %8343 = vmatprep.subr.mxu0 0.0
  %8344 = vmatpush2.msra.mxu0 0.0
  %8345 = vmatprep.subr.mxu0 0.0
  %8346 = vmatpush2.msra.mxu0 0.0
  %8347 = vmatprep.subr.mxu0 0.0
  %8348 = vmatpush2.msra.mxu0 0.0
  %8349 = vmatprep.subr.mxu0 0.0
  %8350 = vmatpush2.msra.mxu0 0.0
  %8351 = vmatprep.subr.mxu0 0.0
  %8352 = vmatpush2.msra.mxu0 0.0
  %8353 = vmatprep.subr.mxu0 0.0
  %8354 = vmatpush2.msra.mxu0 0.0
  %8355 = vmatprep.subr.mxu0 0.0
  %8356 = vmatpush2.msra.mxu0 0.0
  %8357 = vmatprep.subr.mxu0 0.0
  %8358 = vmatpush2.msra.mxu0 0.0
  %8359 = vmatprep.mubr.f32.mxu0 0.0
  %8360 = vmatmul.mubr.f32.gmra.mxu0 %v7928
  %v8361 = vpop.f32.mrf.mxu0
  %v8362 = vadd.f32 %v7882, %v8361
  %v8363 = vpop.f32.mrf.mxu0
  %v8364 = vadd.f32 %v7886, %v8363
  %8365 = vmatprep.mubr.f32.mxu0 0.0
  %8366 = vmatmul.mubr.f32.gmra.mxu0 %v7931
  %v8367 = vpop.f32.mrf.mxu0
  %v8368 = vadd.f32 %v7882, %v8367
  %v8369 = vpop.f32.mrf.mxu0
  %v8370 = vadd.f32 %v7886, %v8369
  %8371 = vmatprep.mubr.f32.mxu0 0.0
  %8372 = vmatmul.mubr.f32.gmra.mxu0 %v7934
  %v8373 = vpop.f32.mrf.mxu0
  %v8374 = vadd.f32 %v7882, %v8373
  %v8375 = vpop.f32.mrf.mxu0
  %v8376 = vadd.f32 %v7886, %v8375
  %8377 = vmatprep.mubr.f32.mxu0 0.0
  %8378 = vmatmul.mubr.f32.gmra.mxu0 %v7937
  %v8379 = vpop.f32.mrf.mxu0
  %v8380 = vadd.f32 %v7882, %v8379
  %v8381 = vpop.f32.mrf.mxu0
  %v8382 = vadd.f32 %v7886, %v8381
  %8383 = vdwg.mxu0
  %8384 = vmatprep.subr.mxu0 0.0
  %8385 = vmatpush1.msra.mxu0 0.0
  %8386 = vmatprep.subr.mxu0 0.0
  %8387 = vmatpush1.msra.mxu0 0.0
  %8388 = vmatprep.subr.mxu0 0.0
  %8389 = vmatpush1.msra.mxu0 0.0
  %8390 = vmatprep.subr.mxu0 0.0
  %8391 = vmatpush1.msra.mxu0 0.0
  %8392 = vmatprep.subr.mxu0 0.0
  %8393 = vmatpush1.msra.mxu0 0.0
  %8394 = vmatprep.subr.mxu0 0.0
  %8395 = vmatpush1.msra.mxu0 0.0
  %8396 = vmatprep.subr.mxu0 0.0
  %8397 = vmatpush1.msra.mxu0 0.0
  %8398 = vmatprep.subr.mxu0 0.0
  %8399 = vmatpush1.msra.mxu0 0.0
  %8400 = vmatprep.subr.mxu0 0.0
  %8401 = vmatpush1.msra.mxu0 0.0
  %8402 = vmatprep.subr.mxu0 0.0
  %8403 = vmatpush1.msra.mxu0 0.0
  %8404 = vmatprep.subr.mxu0 0.0
  %8405 = vmatpush1.msra.mxu0 0.0
  %8406 = vmatprep.subr.mxu0 0.0
  %8407 = vmatpush1.msra.mxu0 0.0
  %8408 = vmatprep.subr.mxu0 %v7838
  %8409 = vmatpush1.msra.mxu0 %v7837
  %8410 = vmatprep.subr.mxu0 %v7822
  %8411 = vmatpush1.msra.mxu0 %v7821
  %8412 = vmatprep.subr.mxu0 %v7806
  %8413 = vmatpush1.msra.mxu0 %v7805
  %8414 = vmatprep.subr.mxu0 %v7790
  %8415 = vmatpush1.msra.mxu0 %v7789
  %8416 = vmatprep.subr.mxu0 0.0
  %8417 = vmatpush2.msra.mxu0 0.0
  %8418 = vmatprep.subr.mxu0 0.0
  %8419 = vmatpush2.msra.mxu0 0.0
  %8420 = vmatprep.subr.mxu0 0.0
  %8421 = vmatpush2.msra.mxu0 0.0
  %8422 = vmatprep.subr.mxu0 0.0
  %8423 = vmatpush2.msra.mxu0 0.0
  %8424 = vmatprep.subr.mxu0 0.0
  %8425 = vmatpush2.msra.mxu0 0.0
  %8426 = vmatprep.subr.mxu0 0.0
  %8427 = vmatpush2.msra.mxu0 0.0
  %8428 = vmatprep.subr.mxu0 0.0
  %8429 = vmatpush2.msra.mxu0 0.0
  %8430 = vmatprep.subr.mxu0 0.0
  %8431 = vmatpush2.msra.mxu0 0.0
  %8432 = vmatprep.subr.mxu0 0.0
  %8433 = vmatpush2.msra.mxu0 0.0
  %8434 = vmatprep.subr.mxu0 0.0
  %8435 = vmatpush2.msra.mxu0 0.0
  %8436 = vmatprep.subr.mxu0 0.0
  %8437 = vmatpush2.msra.mxu0 0.0
  %8438 = vmatprep.subr.mxu0 0.0
  %8439 = vmatpush2.msra.mxu0 0.0
  %8440 = vmatprep.subr.mxu0 0.0
  %8441 = vmatpush2.msra.mxu0 0.0
  %8442 = vmatprep.subr.mxu0 0.0
  %8443 = vmatpush2.msra.mxu0 0.0
  %8444 = vmatprep.subr.mxu0 0.0
  %8445 = vmatpush2.msra.mxu0 0.0
  %8446 = vmatprep.subr.mxu0 0.0
  %8447 = vmatpush2.msra.mxu0 0.0
  %8448 = vmatprep.mubr.f32.mxu0 0.0
  %8449 = vmatmul.mubr.f32.gmra.mxu0 %v7928
  %v8450 = vpop.f32.mrf.mxu0
  %v8451 = vadd.f32 %v7890, %v8450
  %v8452 = vpop.f32.mrf.mxu0
  %v8453 = vadd.f32 %v7894, %v8452
  %8454 = vmatprep.mubr.f32.mxu0 0.0
  %8455 = vmatmul.mubr.f32.gmra.mxu0 %v7931
  %v8456 = vpop.f32.mrf.mxu0
  %v8457 = vadd.f32 %v7890, %v8456
  %v8458 = vpop.f32.mrf.mxu0
  %v8459 = vadd.f32 %v7894, %v8458
  %8460 = vmatprep.mubr.f32.mxu0 0.0
  %8461 = vmatmul.mubr.f32.gmra.mxu0 %v7934
  %v8462 = vpop.f32.mrf.mxu0
  %v8463 = vadd.f32 %v7890, %v8462
  %v8464 = vpop.f32.mrf.mxu0
  %v8465 = vadd.f32 %v7894, %v8464
  %8466 = vmatprep.mubr.f32.mxu0 0.0
  %8467 = vmatmul.mubr.f32.gmra.mxu0 %v7937
  %v8468 = vpop.f32.mrf.mxu0
  %v8469 = vadd.f32 %v7890, %v8468
  %v8470 = vpop.f32.mrf.mxu0
  %v8471 = vadd.f32 %v7894, %v8470
  %8472 = vdwg.mxu0
  %8473 = vmatprep.subr.mxu0 0.0
  %8474 = vmatpush1.msra.mxu0 0.0
  %8475 = vmatprep.subr.mxu0 0.0
  %8476 = vmatpush1.msra.mxu0 0.0
  %8477 = vmatprep.subr.mxu0 0.0
  %8478 = vmatpush1.msra.mxu0 0.0
  %8479 = vmatprep.subr.mxu0 0.0
  %8480 = vmatpush1.msra.mxu0 0.0
  %8481 = vmatprep.subr.mxu0 0.0
  %8482 = vmatpush1.msra.mxu0 0.0
  %8483 = vmatprep.subr.mxu0 0.0
  %8484 = vmatpush1.msra.mxu0 0.0
  %8485 = vmatprep.subr.mxu0 0.0
  %8486 = vmatpush1.msra.mxu0 0.0
  %8487 = vmatprep.subr.mxu0 0.0
  %8488 = vmatpush1.msra.mxu0 0.0
  %8489 = vmatprep.subr.mxu0 0.0
  %8490 = vmatpush1.msra.mxu0 0.0
  %8491 = vmatprep.subr.mxu0 0.0
  %8492 = vmatpush1.msra.mxu0 0.0
  %8493 = vmatprep.subr.mxu0 0.0
  %8494 = vmatpush1.msra.mxu0 0.0
  %8495 = vmatprep.subr.mxu0 0.0
  %8496 = vmatpush1.msra.mxu0 0.0
  %8497 = vmatprep.subr.mxu0 %v7840
  %8498 = vmatpush1.msra.mxu0 %v7839
  %8499 = vmatprep.subr.mxu0 %v7824
  %8500 = vmatpush1.msra.mxu0 %v7823
  %8501 = vmatprep.subr.mxu0 %v7808
  %8502 = vmatpush1.msra.mxu0 %v7807
  %8503 = vmatprep.subr.mxu0 %v7792
  %8504 = vmatpush1.msra.mxu0 %v7791
  %8505 = vmatprep.subr.mxu0 0.0
  %8506 = vmatpush2.msra.mxu0 0.0
  %8507 = vmatprep.subr.mxu0 0.0
  %8508 = vmatpush2.msra.mxu0 0.0
  %8509 = vmatprep.subr.mxu0 0.0
  %8510 = vmatpush2.msra.mxu0 0.0
  %8511 = vmatprep.subr.mxu0 0.0
  %8512 = vmatpush2.msra.mxu0 0.0
  %8513 = vmatprep.subr.mxu0 0.0
  %8514 = vmatpush2.msra.mxu0 0.0
  %8515 = vmatprep.subr.mxu0 0.0
  %8516 = vmatpush2.msra.mxu0 0.0
  %8517 = vmatprep.subr.mxu0 0.0
  %8518 = vmatpush2.msra.mxu0 0.0
  %8519 = vmatprep.subr.mxu0 0.0
  %8520 = vmatpush2.msra.mxu0 0.0
  %8521 = vmatprep.subr.mxu0 0.0
  %8522 = vmatpush2.msra.mxu0 0.0
  %8523 = vmatprep.subr.mxu0 0.0
  %8524 = vmatpush2.msra.mxu0 0.0
  %8525 = vmatprep.subr.mxu0 0.0
  %8526 = vmatpush2.msra.mxu0 0.0
  %8527 = vmatprep.subr.mxu0 0.0
  %8528 = vmatpush2.msra.mxu0 0.0
  %8529 = vmatprep.subr.mxu0 0.0
  %8530 = vmatpush2.msra.mxu0 0.0
  %8531 = vmatprep.subr.mxu0 0.0
  %8532 = vmatpush2.msra.mxu0 0.0
  %8533 = vmatprep.subr.mxu0 0.0
  %8534 = vmatpush2.msra.mxu0 0.0
  %8535 = vmatprep.subr.mxu0 0.0
  %8536 = vmatpush2.msra.mxu0 0.0
  %8537 = vmatprep.mubr.f32.mxu0 0.0
  %8538 = vmatmul.mubr.f32.gmra.mxu0 %v7928
  %v8539 = vpop.f32.mrf.mxu0
  %v8540 = vadd.f32 %v7898, %v8539
  %v8541 = vpop.f32.mrf.mxu0
  %v8542 = vadd.f32 %v7902, %v8541
  %8543 = vmatprep.mubr.f32.mxu0 0.0
  %8544 = vmatmul.mubr.f32.gmra.mxu0 %v7931
  %v8545 = vpop.f32.mrf.mxu0
  %v8546 = vadd.f32 %v7898, %v8545
  %v8547 = vpop.f32.mrf.mxu0
  %v8548 = vadd.f32 %v7902, %v8547
  %8549 = vmatprep.mubr.f32.mxu0 0.0
  %8550 = vmatmul.mubr.f32.gmra.mxu0 %v7934
  %v8551 = vpop.f32.mrf.mxu0
  %v8552 = vadd.f32 %v7898, %v8551
  %v8553 = vpop.f32.mrf.mxu0
  %v8554 = vadd.f32 %v7902, %v8553
  %8555 = vmatprep.mubr.f32.mxu0 0.0
  %8556 = vmatmul.mubr.f32.gmra.mxu0 %v7937
  %v8557 = vpop.f32.mrf.mxu0
  %v8558 = vadd.f32 %v7898, %v8557
  %v8559 = vpop.f32.mrf.mxu0
  %v8560 = vadd.f32 %v7902, %v8559
  %8561 = vdwg.mxu0
  %8562 = vmatprep.subr.mxu0 0.0
  %8563 = vmatpush1.msra.mxu0 0.0
  %8564 = vmatprep.subr.mxu0 0.0
  %8565 = vmatpush1.msra.mxu0 0.0
  %8566 = vmatprep.subr.mxu0 0.0
  %8567 = vmatpush1.msra.mxu0 0.0
  %8568 = vmatprep.subr.mxu0 0.0
  %8569 = vmatpush1.msra.mxu0 0.0
  %8570 = vmatprep.subr.mxu0 0.0
  %8571 = vmatpush1.msra.mxu0 0.0
  %8572 = vmatprep.subr.mxu0 0.0
  %8573 = vmatpush1.msra.mxu0 0.0
  %8574 = vmatprep.subr.mxu0 0.0
  %8575 = vmatpush1.msra.mxu0 0.0
  %8576 = vmatprep.subr.mxu0 0.0
  %8577 = vmatpush1.msra.mxu0 0.0
  %8578 = vmatprep.subr.mxu0 0.0
  %8579 = vmatpush1.msra.mxu0 0.0
  %8580 = vmatprep.subr.mxu0 0.0
  %8581 = vmatpush1.msra.mxu0 0.0
  %8582 = vmatprep.subr.mxu0 0.0
  %8583 = vmatpush1.msra.mxu0 0.0
  %8584 = vmatprep.subr.mxu0 0.0
  %8585 = vmatpush1.msra.mxu0 0.0
  %8586 = vmatprep.subr.mxu0 %v7842
  %8587 = vmatpush1.msra.mxu0 %v7841
  %8588 = vmatprep.subr.mxu0 %v7826
  %8589 = vmatpush1.msra.mxu0 %v7825
  %8590 = vmatprep.subr.mxu0 %v7810
  %8591 = vmatpush1.msra.mxu0 %v7809
  %8592 = vmatprep.subr.mxu0 %v7794
  %8593 = vmatpush1.msra.mxu0 %v7793
  %8594 = vmatprep.subr.mxu0 0.0
  %8595 = vmatpush2.msra.mxu0 0.0
  %8596 = vmatprep.subr.mxu0 0.0
  %8597 = vmatpush2.msra.mxu0 0.0
  %8598 = vmatprep.subr.mxu0 0.0
  %8599 = vmatpush2.msra.mxu0 0.0
  %8600 = vmatprep.subr.mxu0 0.0
  %8601 = vmatpush2.msra.mxu0 0.0
  %8602 = vmatprep.subr.mxu0 0.0
  %8603 = vmatpush2.msra.mxu0 0.0
  %8604 = vmatprep.subr.mxu0 0.0
  %8605 = vmatpush2.msra.mxu0 0.0
  %8606 = vmatprep.subr.mxu0 0.0
  %8607 = vmatpush2.msra.mxu0 0.0
  %8608 = vmatprep.subr.mxu0 0.0
  %8609 = vmatpush2.msra.mxu0 0.0
  %8610 = vmatprep.subr.mxu0 0.0
  %8611 = vmatpush2.msra.mxu0 0.0
  %8612 = vmatprep.subr.mxu0 0.0
  %8613 = vmatpush2.msra.mxu0 0.0
  %8614 = vmatprep.subr.mxu0 0.0
  %8615 = vmatpush2.msra.mxu0 0.0
  %8616 = vmatprep.subr.mxu0 0.0
  %8617 = vmatpush2.msra.mxu0 0.0
  %8618 = vmatprep.subr.mxu0 0.0
  %8619 = vmatpush2.msra.mxu0 0.0
  %8620 = vmatprep.subr.mxu0 0.0
  %8621 = vmatpush2.msra.mxu0 0.0
  %8622 = vmatprep.subr.mxu0 0.0
  %8623 = vmatpush2.msra.mxu0 0.0
  %8624 = vmatprep.subr.mxu0 0.0
  %8625 = vmatpush2.msra.mxu0 0.0
  %8626 = vmatprep.mubr.f32.mxu0 0.0
  %8627 = vmatmul.mubr.f32.gmra.mxu0 %v7928
  %v8628 = vpop.f32.mrf.mxu0
  %v8629 = vadd.f32 %v7906, %v8628
  %v8630 = vpop.f32.mrf.mxu0
  %v8631 = vadd.f32 %v7910, %v8630
  %8632 = vmatprep.mubr.f32.mxu0 0.0
  %8633 = vmatmul.mubr.f32.gmra.mxu0 %v7931
  %v8634 = vpop.f32.mrf.mxu0
  %v8635 = vadd.f32 %v7906, %v8634
  %v8636 = vpop.f32.mrf.mxu0
  %v8637 = vadd.f32 %v7910, %v8636
  %8638 = vmatprep.mubr.f32.mxu0 0.0
  %8639 = vmatmul.mubr.f32.gmra.mxu0 %v7934
  %v8640 = vpop.f32.mrf.mxu0
  %v8641 = vadd.f32 %v7906, %v8640
  %v8642 = vpop.f32.mrf.mxu0
  %v8643 = vadd.f32 %v7910, %v8642
  %8644 = vmatprep.mubr.f32.mxu0 0.0
  %8645 = vmatmul.mubr.f32.gmra.mxu0 %v7937
  %v8646 = vpop.f32.mrf.mxu0
  %v8647 = vadd.f32 %v7906, %v8646
  %v8648 = vpop.f32.mrf.mxu0
  %v8649 = vadd.f32 %v7910, %v8648
  %8650 = vdwg.mxu0
  %v8651 = vmax.f32 %v8006, 0.0
  %v8652 = vmax.f32 %v8008, 0.0
  %v8653 = vmax.f32 %v8095, 0.0
  %v8654 = vmax.f32 %v8097, 0.0
  %v8655 = vmax.f32 %v8184, 0.0
  %v8656 = vmax.f32 %v8186, 0.0
  %v8657 = vmax.f32 %v8273, 0.0
  %v8658 = vmax.f32 %v8275, 0.0
  %v8659 = vmax.f32 %v8362, 0.0
  %v8660 = vmax.f32 %v8364, 0.0
  %v8661 = vmax.f32 %v8451, 0.0
  %v8662 = vmax.f32 %v8453, 0.0
  %v8663 = vmax.f32 %v8540, 0.0
  %v8664 = vmax.f32 %v8542, 0.0
  %v8665 = vmax.f32 %v8629, 0.0
  %v8666 = vmax.f32 %v8631, 0.0
  %v8667 = vmax.f32 %v8012, 0.0
  %v8668 = vmax.f32 %v8014, 0.0
  %v8669 = vmax.f32 %v8101, 0.0
  %v8670 = vmax.f32 %v8103, 0.0
  %v8671 = vmax.f32 %v8190, 0.0
  %v8672 = vmax.f32 %v8192, 0.0
  %v8673 = vmax.f32 %v8279, 0.0
  %v8674 = vmax.f32 %v8281, 0.0
  %v8675 = vmax.f32 %v8368, 0.0
  %v8676 = vmax.f32 %v8370, 0.0
  %v8677 = vmax.f32 %v8457, 0.0
  %v8678 = vmax.f32 %v8459, 0.0
  %v8679 = vmax.f32 %v8546, 0.0
  %v8680 = vmax.f32 %v8548, 0.0
  %v8681 = vmax.f32 %v8635, 0.0
  %v8682 = vmax.f32 %v8637, 0.0
  %v8683 = vmax.f32 %v8018, 0.0
  %v8684 = vmax.f32 %v8020, 0.0
  %v8685 = vmax.f32 %v8107, 0.0
  %v8686 = vmax.f32 %v8109, 0.0
  %v8687 = vmax.f32 %v8196, 0.0
  %v8688 = vmax.f32 %v8198, 0.0
  %v8689 = vmax.f32 %v8285, 0.0
  %v8690 = vmax.f32 %v8287, 0.0
  %v8691 = vmax.f32 %v8374, 0.0
  %v8692 = vmax.f32 %v8376, 0.0
  %v8693 = vmax.f32 %v8463, 0.0
  %v8694 = vmax.f32 %v8465, 0.0
  %v8695 = vmax.f32 %v8552, 0.0
  %v8696 = vmax.f32 %v8554, 0.0
  %v8697 = vmax.f32 %v8641, 0.0
  %v8698 = vmax.f32 %v8643, 0.0
  %v8699 = vmax.f32 %v8024, 0.0
  %v8700 = vmax.f32 %v8026, 0.0
  %v8701 = vmax.f32 %v8113, 0.0
  %v8702 = vmax.f32 %v8115, 0.0
  %v8703 = vmax.f32 %v8202, 0.0
  %v8704 = vmax.f32 %v8204, 0.0
  %v8705 = vmax.f32 %v8291, 0.0
  %v8706 = vmax.f32 %v8293, 0.0
  %v8707 = vmax.f32 %v8380, 0.0
  %v8708 = vmax.f32 %v8382, 0.0
  %v8709 = vmax.f32 %v8469, 0.0
  %v8710 = vmax.f32 %v8471, 0.0
  %v8711 = vmax.f32 %v8558, 0.0
  %v8712 = vmax.f32 %v8560, 0.0
  %v8713 = vmax.f32 %v8647, 0.0
  %v8714 = vmax.f32 %v8649, 0.0
  %v8715 = vld [vmem:[%s4] sm:$0xff]
  %v8716 = vld [vmem:[%s4 + $0x8] sm:$0xff]
  %v8717 = vld [vmem:[%s4 + $0x10] sm:$0xff]
  %v8718 = vld [vmem:[%s4 + $0x18] sm:$0xff]
  %v8719 = vld [vmem:[%s4 + $0x20] sm:$0xff]
  %v8720 = vld [vmem:[%s4 + $0x28] sm:$0xff]
  %v8721 = vld [vmem:[%s4 + $0x30] sm:$0xff]
  %v8722 = vld [vmem:[%s4 + $0x38] sm:$0xff]
  %v8723 = vld [vmem:[%s4 + $0x40] sm:$0xff]
  %v8724 = vld [vmem:[%s4 + $0x48] sm:$0xff]
  %v8725 = vld [vmem:[%s4 + $0x50] sm:$0xff]
  %v8726 = vld [vmem:[%s4 + $0x58] sm:$0xff]
  %v8727 = vld [vmem:[%s4 + $0x60] sm:$0xff]
  %v8728 = vld [vmem:[%s4 + $0x68] sm:$0xff]
  %v8729 = vld [vmem:[%s4 + $0x70] sm:$0xff]
  %v8730 = vld [vmem:[%s4 + $0x78] sm:$0xff]
  %v8731 = vld [vmem:[%s4 + $0x80] sm:$0xff]
  %v8732 = vld [vmem:[%s4 + $0x88] sm:$0xff]
  %v8733 = vld [vmem:[%s4 + $0x90] sm:$0xff]
  %v8734 = vld [vmem:[%s4 + $0x98] sm:$0xff]
  %v8735 = vld [vmem:[%s4 + $0xa0] sm:$0xff]
  %v8736 = vld [vmem:[%s4 + $0xa8] sm:$0xff]
  %v8737 = vld [vmem:[%s4 + $0xb0] sm:$0xff]
  %v8738 = vld [vmem:[%s4 + $0xb8] sm:$0xff]
  %v8739 = vld [vmem:[%s4 + $0xc0] sm:$0xff]
  %v8740 = vld [vmem:[%s4 + $0xc8] sm:$0xff]
  %v8741 = vld [vmem:[%s4 + $0xd0] sm:$0xff]
  %v8742 = vld [vmem:[%s4 + $0xd8] sm:$0xff]
  %v8743 = vld [vmem:[%s4 + $0xe0] sm:$0xff]
  %v8744 = vld [vmem:[%s4 + $0xe8] sm:$0xff]
  %v8745 = vld [vmem:[%s4 + $0xf0] sm:$0xff]
  %v8746 = vld [vmem:[%s4 + $0xf8] sm:$0xff]
  %v8747 = vld [vmem:[%s4 + $0x100] sm:$0xff]
  %v8748 = vld [vmem:[%s4 + $0x108] sm:$0xff]
  %v8749 = vld [vmem:[%s4 + $0x110] sm:$0xff]
  %v8750 = vld [vmem:[%s4 + $0x118] sm:$0xff]
  %v8751 = vld [vmem:[%s4 + $0x120] sm:$0xff]
  %v8752 = vld [vmem:[%s4 + $0x128] sm:$0xff]
  %v8753 = vld [vmem:[%s4 + $0x130] sm:$0xff]
  %v8754 = vld [vmem:[%s4 + $0x138] sm:$0xff]
  %v8755 = vld [vmem:[%s4 + $0x140] sm:$0xff]
  %v8756 = vld [vmem:[%s4 + $0x148] sm:$0xff]
  %v8757 = vld [vmem:[%s4 + $0x150] sm:$0xff]
  %v8758 = vld [vmem:[%s4 + $0x158] sm:$0xff]
  %v8759 = vld [vmem:[%s4 + $0x160] sm:$0xff]
  %v8760 = vld [vmem:[%s4 + $0x168] sm:$0xff]
  %v8761 = vld [vmem:[%s4 + $0x170] sm:$0xff]
  %v8762 = vld [vmem:[%s4 + $0x178] sm:$0xff]
  %v8763 = vld [vmem:[%s4 + $0x180] sm:$0xff]
  %v8764 = vld [vmem:[%s4 + $0x188] sm:$0xff]
  %v8765 = vld [vmem:[%s4 + $0x190] sm:$0xff]
  %v8766 = vld [vmem:[%s4 + $0x198] sm:$0xff]
  %v8767 = vld [vmem:[%s4 + $0x1a0] sm:$0xff]
  %v8768 = vld [vmem:[%s4 + $0x1a8] sm:$0xff]
  %v8769 = vld [vmem:[%s4 + $0x1b0] sm:$0xff]
  %v8770 = vld [vmem:[%s4 + $0x1b8] sm:$0xff]
  %v8771 = vld [vmem:[%s4 + $0x1c0] sm:$0xff]
  %v8772 = vld [vmem:[%s4 + $0x1c8] sm:$0xff]
  %v8773 = vld [vmem:[%s4 + $0x1d0] sm:$0xff]
  %v8774 = vld [vmem:[%s4 + $0x1d8] sm:$0xff]
  %v8775 = vld [vmem:[%s4 + $0x1e0] sm:$0xff]
  %v8776 = vld [vmem:[%s4 + $0x1e8] sm:$0xff]
  %v8777 = vld [vmem:[%s4 + $0x1f0] sm:$0xff]
  %v8778 = vld [vmem:[%s4 + $0x1f8] sm:$0xff]
  %v8779 = vld [vmem:[%s4 + $0x200] sm:$0xff]
  %v8780 = vld [vmem:[%s4 + $0x208] sm:$0xff]
  %v8781 = vld [vmem:[%s4 + $0x210] sm:$0xff]
  %v8782 = vld [vmem:[%s4 + $0x218] sm:$0xff]
  %v8783 = vld [vmem:[%s4 + $0x220] sm:$0xff]
  %v8784 = vld [vmem:[%s4 + $0x228] sm:$0xff]
  %v8785 = vld [vmem:[%s4 + $0x230] sm:$0xff]
  %v8786 = vld [vmem:[%s4 + $0x238] sm:$0xff]
  %v8787 = vld [vmem:[%s4 + $0x240] sm:$0xff]
  %v8788 = vld [vmem:[%s4 + $0x248] sm:$0xff]
  %v8789 = vld [vmem:[%s4 + $0x250] sm:$0xff]
  %v8790 = vld [vmem:[%s4 + $0x258] sm:$0xff]
  %v8791 = vld [vmem:[%s4 + $0x260] sm:$0xff]
  %v8792 = vld [vmem:[%s4 + $0x268] sm:$0xff]
  %v8793 = vld [vmem:[%s4 + $0x270] sm:$0xff]
  %v8794 = vld [vmem:[%s4 + $0x278] sm:$0xff]
  %v8795 = vld [vmem:[%s4 + $0x280] sm:$0xff]
  %v8796 = vld [vmem:[%s4 + $0x288] sm:$0xff]
  %v8797 = vld [vmem:[%s4 + $0x290] sm:$0xff]
  %v8798 = vld [vmem:[%s4 + $0x298] sm:$0xff]
  %v8799 = vld [vmem:[%s4 + $0x2a0] sm:$0xff]
  %v8800 = vld [vmem:[%s4 + $0x2a8] sm:$0xff]
  %v8801 = vld [vmem:[%s4 + $0x2b0] sm:$0xff]
  %v8802 = vld [vmem:[%s4 + $0x2b8] sm:$0xff]
  %v8803 = vld [vmem:[%s4 + $0x2c0] sm:$0xff]
  %v8804 = vld [vmem:[%s4 + $0x2c8] sm:$0xff]
  %v8805 = vld [vmem:[%s4 + $0x2d0] sm:$0xff]
  %v8806 = vld [vmem:[%s4 + $0x2d8] sm:$0xff]
  %v8807 = vld [vmem:[%s4 + $0x2e0] sm:$0xff]
  %v8808 = vld [vmem:[%s4 + $0x2e8] sm:$0xff]
  %v8809 = vld [vmem:[%s4 + $0x2f0] sm:$0xff]
  %v8810 = vld [vmem:[%s4 + $0x2f8] sm:$0xff]
  %v8811 = vld [vmem:[%s4 + $0x300] sm:$0xff]
  %v8812 = vld [vmem:[%s4 + $0x308] sm:$0xff]
  %v8813 = vld [vmem:[%s4 + $0x310] sm:$0xff]
  %v8814 = vld [vmem:[%s4 + $0x318] sm:$0xff]
  %v8815 = vld [vmem:[%s4 + $0x320] sm:$0xff]
  %v8816 = vld [vmem:[%s4 + $0x328] sm:$0xff]
  %v8817 = vld [vmem:[%s4 + $0x330] sm:$0xff]
  %v8818 = vld [vmem:[%s4 + $0x338] sm:$0xff]
  %v8819 = vld [vmem:[%s4 + $0x340] sm:$0xff]
  %v8820 = vld [vmem:[%s4 + $0x348] sm:$0xff]
  %v8821 = vld [vmem:[%s4 + $0x350] sm:$0xff]
  %v8822 = vld [vmem:[%s4 + $0x358] sm:$0xff]
  %v8823 = vld [vmem:[%s4 + $0x360] sm:$0xff]
  %v8824 = vld [vmem:[%s4 + $0x368] sm:$0xff]
  %v8825 = vld [vmem:[%s4 + $0x370] sm:$0xff]
  %v8826 = vld [vmem:[%s4 + $0x378] sm:$0xff]
  %v8827 = vld [vmem:[%s4 + $0x380] sm:$0xff]
  %v8828 = vld [vmem:[%s4 + $0x388] sm:$0xff]
  %v8829 = vld [vmem:[%s4 + $0x390] sm:$0xff]
  %v8830 = vld [vmem:[%s4 + $0x398] sm:$0xff]
  %v8831 = vld [vmem:[%s4 + $0x3a0] sm:$0xff]
  %v8832 = vld [vmem:[%s4 + $0x3a8] sm:$0xff]
  %v8833 = vld [vmem:[%s4 + $0x3b0] sm:$0xff]
  %v8834 = vld [vmem:[%s4 + $0x3b8] sm:$0xff]
  %v8835 = vld [vmem:[%s4 + $0x3c0] sm:$0xff]
  %v8836 = vld [vmem:[%s4 + $0x3c8] sm:$0xff]
  %v8837 = vld [vmem:[%s4 + $0x3d0] sm:$0xff]
  %v8838 = vld [vmem:[%s4 + $0x3d8] sm:$0xff]
  %v8839 = vld [vmem:[%s4 + $0x3e0] sm:$0xff]
  %v8840 = vld [vmem:[%s4 + $0x3e8] sm:$0xff]
  %v8841 = vld [vmem:[%s4 + $0x3f0] sm:$0xff]
  %v8842 = vld [vmem:[%s4 + $0x3f8] sm:$0xff]
  %v8843 = vld [vmem:[%s4 + $0x400] sm:$0xff]
  %v8844 = vld [vmem:[%s4 + $0x408] sm:$0xff]
  %v8845 = vld [vmem:[%s4 + $0x410] sm:$0xff]
  %v8846 = vld [vmem:[%s4 + $0x418] sm:$0xff]
  %v8847 = vld [vmem:[%s4 + $0x420] sm:$0xff]
  %v8848 = vld [vmem:[%s4 + $0x428] sm:$0xff]
  %v8849 = vld [vmem:[%s4 + $0x430] sm:$0xff]
  %v8850 = vld [vmem:[%s4 + $0x438] sm:$0xff]
  %v8851 = vld [vmem:[%s4 + $0x440] sm:$0xff]
  %v8852 = vld [vmem:[%s4 + $0x448] sm:$0xff]
  %v8853 = vld [vmem:[%s4 + $0x450] sm:$0xff]
  %v8854 = vld [vmem:[%s4 + $0x458] sm:$0xff]
  %v8855 = vld [vmem:[%s4 + $0x460] sm:$0xff]
  %v8856 = vld [vmem:[%s4 + $0x468] sm:$0xff]
  %v8857 = vld [vmem:[%s4 + $0x470] sm:$0xff]
  %v8858 = vld [vmem:[%s4 + $0x478] sm:$0xff]
  %v8859 = vld [vmem:[%s4 + $0x480] sm:$0xff]
  %v8860 = vld [vmem:[%s4 + $0x488] sm:$0xff]
  %v8861 = vld [vmem:[%s4 + $0x490] sm:$0xff]
  %v8862 = vld [vmem:[%s4 + $0x498] sm:$0xff]
  %v8863 = vld [vmem:[%s4 + $0x4a0] sm:$0xff]
  %v8864 = vld [vmem:[%s4 + $0x4a8] sm:$0xff]
  %v8865 = vld [vmem:[%s4 + $0x4b0] sm:$0xff]
  %v8866 = vld [vmem:[%s4 + $0x4b8] sm:$0xff]
  %v8867 = vld [vmem:[%s4 + $0x4c0] sm:$0xff]
  %v8868 = vld [vmem:[%s4 + $0x4c8] sm:$0xff]
  %v8869 = vld [vmem:[%s4 + $0x4d0] sm:$0xff]
  %v8870 = vld [vmem:[%s4 + $0x4d8] sm:$0xff]
  %v8871 = vld [vmem:[%s4 + $0x4e0] sm:$0xff]
  %v8872 = vld [vmem:[%s4 + $0x4e8] sm:$0xff]
  %v8873 = vld [vmem:[%s4 + $0x4f0] sm:$0xff]
  %v8874 = vld [vmem:[%s4 + $0x4f8] sm:$0xff]
  %v8875 = vld [vmem:[%s4 + $0x500] sm:$0xff]
  %v8876 = vld [vmem:[%s4 + $0x508] sm:$0xff]
  %v8877 = vld [vmem:[%s4 + $0x510] sm:$0xff]
  %v8878 = vld [vmem:[%s4 + $0x518] sm:$0xff]
  %v8879 = vld [vmem:[%s4 + $0x520] sm:$0xff]
  %v8880 = vld [vmem:[%s4 + $0x528] sm:$0xff]
  %v8881 = vld [vmem:[%s4 + $0x530] sm:$0xff]
  %v8882 = vld [vmem:[%s4 + $0x538] sm:$0xff]
  %v8883 = vld [vmem:[%s4 + $0x540] sm:$0xff]
  %v8884 = vld [vmem:[%s4 + $0x548] sm:$0xff]
  %v8885 = vld [vmem:[%s4 + $0x550] sm:$0xff]
  %v8886 = vld [vmem:[%s4 + $0x558] sm:$0xff]
  %v8887 = vld [vmem:[%s4 + $0x560] sm:$0xff]
  %v8888 = vld [vmem:[%s4 + $0x568] sm:$0xff]
  %v8889 = vld [vmem:[%s4 + $0x570] sm:$0xff]
  %v8890 = vld [vmem:[%s4 + $0x578] sm:$0xff]
  %v8891 = vld [vmem:[%s4 + $0x580] sm:$0xff]
  %v8892 = vld [vmem:[%s4 + $0x588] sm:$0xff]
  %v8893 = vld [vmem:[%s4 + $0x590] sm:$0xff]
  %v8894 = vld [vmem:[%s4 + $0x598] sm:$0xff]
  %v8895 = vld [vmem:[%s4 + $0x5a0] sm:$0xff]
  %v8896 = vld [vmem:[%s4 + $0x5a8] sm:$0xff]
  %v8897 = vld [vmem:[%s4 + $0x5b0] sm:$0xff]
  %v8898 = vld [vmem:[%s4 + $0x5b8] sm:$0xff]
  %v8899 = vld [vmem:[%s4 + $0x5c0] sm:$0xff]
  %v8900 = vld [vmem:[%s4 + $0x5c8] sm:$0xff]
  %v8901 = vld [vmem:[%s4 + $0x5d0] sm:$0xff]
  %v8902 = vld [vmem:[%s4 + $0x5d8] sm:$0xff]
  %v8903 = vld [vmem:[%s4 + $0x5e0] sm:$0xff]
  %v8904 = vld [vmem:[%s4 + $0x5e8] sm:$0xff]
  %v8905 = vld [vmem:[%s4 + $0x5f0] sm:$0xff]
  %v8906 = vld [vmem:[%s4 + $0x5f8] sm:$0xff]
  %v8907 = vld [vmem:[%s4 + $0x600] sm:$0xff]
  %v8908 = vld [vmem:[%s4 + $0x608] sm:$0xff]
  %v8909 = vld [vmem:[%s4 + $0x610] sm:$0xff]
  %v8910 = vld [vmem:[%s4 + $0x618] sm:$0xff]
  %v8911 = vld [vmem:[%s4 + $0x620] sm:$0xff]
  %v8912 = vld [vmem:[%s4 + $0x628] sm:$0xff]
  %v8913 = vld [vmem:[%s4 + $0x630] sm:$0xff]
  %v8914 = vld [vmem:[%s4 + $0x638] sm:$0xff]
  %v8915 = vld [vmem:[%s4 + $0x640] sm:$0xff]
  %v8916 = vld [vmem:[%s4 + $0x648] sm:$0xff]
  %v8917 = vld [vmem:[%s4 + $0x650] sm:$0xff]
  %v8918 = vld [vmem:[%s4 + $0x658] sm:$0xff]
  %v8919 = vld [vmem:[%s4 + $0x660] sm:$0xff]
  %v8920 = vld [vmem:[%s4 + $0x668] sm:$0xff]
  %v8921 = vld [vmem:[%s4 + $0x670] sm:$0xff]
  %v8922 = vld [vmem:[%s4 + $0x678] sm:$0xff]
  %v8923 = vld [vmem:[%s4 + $0x680] sm:$0xff]
  %v8924 = vld [vmem:[%s4 + $0x688] sm:$0xff]
  %v8925 = vld [vmem:[%s4 + $0x690] sm:$0xff]
  %v8926 = vld [vmem:[%s4 + $0x698] sm:$0xff]
  %v8927 = vld [vmem:[%s4 + $0x6a0] sm:$0xff]
  %v8928 = vld [vmem:[%s4 + $0x6a8] sm:$0xff]
  %v8929 = vld [vmem:[%s4 + $0x6b0] sm:$0xff]
  %v8930 = vld [vmem:[%s4 + $0x6b8] sm:$0xff]
  %v8931 = vld [vmem:[%s4 + $0x6c0] sm:$0xff]
  %v8932 = vld [vmem:[%s4 + $0x6c8] sm:$0xff]
  %v8933 = vld [vmem:[%s4 + $0x6d0] sm:$0xff]
  %v8934 = vld [vmem:[%s4 + $0x6d8] sm:$0xff]
  %v8935 = vld [vmem:[%s4 + $0x6e0] sm:$0xff]
  %v8936 = vld [vmem:[%s4 + $0x6e8] sm:$0xff]
  %v8937 = vld [vmem:[%s4 + $0x6f0] sm:$0xff]
  %v8938 = vld [vmem:[%s4 + $0x6f8] sm:$0xff]
  %v8939 = vld [vmem:[%s4 + $0x700] sm:$0xff]
  %v8940 = vld [vmem:[%s4 + $0x708] sm:$0xff]
  %v8941 = vld [vmem:[%s4 + $0x710] sm:$0xff]
  %v8942 = vld [vmem:[%s4 + $0x718] sm:$0xff]
  %v8943 = vld [vmem:[%s4 + $0x720] sm:$0xff]
  %v8944 = vld [vmem:[%s4 + $0x728] sm:$0xff]
  %v8945 = vld [vmem:[%s4 + $0x730] sm:$0xff]
  %v8946 = vld [vmem:[%s4 + $0x738] sm:$0xff]
  %v8947 = vld [vmem:[%s4 + $0x740] sm:$0xff]
  %v8948 = vld [vmem:[%s4 + $0x748] sm:$0xff]
  %v8949 = vld [vmem:[%s4 + $0x750] sm:$0xff]
  %v8950 = vld [vmem:[%s4 + $0x758] sm:$0xff]
  %v8951 = vld [vmem:[%s4 + $0x760] sm:$0xff]
  %v8952 = vld [vmem:[%s4 + $0x768] sm:$0xff]
  %v8953 = vld [vmem:[%s4 + $0x770] sm:$0xff]
  %v8954 = vld [vmem:[%s4 + $0x778] sm:$0xff]
  %v8955 = vld [vmem:[%s4 + $0x780] sm:$0xff]
  %v8956 = vld [vmem:[%s4 + $0x788] sm:$0xff]
  %v8957 = vld [vmem:[%s4 + $0x790] sm:$0xff]
  %v8958 = vld [vmem:[%s4 + $0x798] sm:$0xff]
  %v8959 = vld [vmem:[%s4 + $0x7a0] sm:$0xff]
  %v8960 = vld [vmem:[%s4 + $0x7a8] sm:$0xff]
  %v8961 = vld [vmem:[%s4 + $0x7b0] sm:$0xff]
  %v8962 = vld [vmem:[%s4 + $0x7b8] sm:$0xff]
  %v8963 = vld [vmem:[%s4 + $0x7c0] sm:$0xff]
  %v8964 = vld [vmem:[%s4 + $0x7c8] sm:$0xff]
  %v8965 = vld [vmem:[%s4 + $0x7d0] sm:$0xff]
  %v8966 = vld [vmem:[%s4 + $0x7d8] sm:$0xff]
  %v8967 = vld [vmem:[%s4 + $0x7e0] sm:$0xff]
  %v8968 = vld [vmem:[%s4 + $0x7e8] sm:$0xff]
  %v8969 = vld [vmem:[%s4 + $0x7f0] sm:$0xff]
  %v8970 = vld [vmem:[%s4 + $0x7f8] sm:$0xff]
  %v8971 = vld [vmem:[%s5 + $0x25] sm:$0x3]
  %v8973 = vlaneseq
  %v8974 = vshrl.u32 %v8973, 7
  %v8975 = vsub.s32 0, %v8974
  %v8976 = vrot.slane %v8971, %v8975
  %v8977 = vlaneseq
  %v8978 = vshrl.u32 %v8977, 7
  %v8979 = vsub.s32 1, %v8978
  %v8980 = vrot.slane %v8971, %v8979
  %9237 = vrot.lane.b32.xlu0 %v8715, 96
  %v9238 = vpop.permute.xlu0 %9237
  %9239 = vrot.lane.b32.xlu0 %v8716, 96
  %v9240 = vpop.permute.xlu0 %9239
  %9241 = vrot.lane.b32.xlu0 %v8717, 96
  %v9242 = vpop.permute.xlu0 %9241
  %9243 = vrot.lane.b32.xlu0 %v8718, 96
  %v9244 = vpop.permute.xlu0 %9243
  %9245 = vrot.lane.b32.xlu0 %v8719, 96
  %v9246 = vpop.permute.xlu0 %9245
  %9247 = vrot.lane.b32.xlu0 %v8720, 96
  %v9248 = vpop.permute.xlu0 %9247
  %9249 = vrot.lane.b32.xlu0 %v8721, 96
  %v9250 = vpop.permute.xlu0 %9249
  %9251 = vrot.lane.b32.xlu0 %v8722, 96
  %v9252 = vpop.permute.xlu0 %9251
  %9253 = vrot.lane.b32.xlu0 %v8723, 96
  %v9254 = vpop.permute.xlu0 %9253
  %9255 = vrot.lane.b32.xlu0 %v8724, 96
  %v9256 = vpop.permute.xlu0 %9255
  %9257 = vrot.lane.b32.xlu0 %v8725, 96
  %v9258 = vpop.permute.xlu0 %9257
  %9259 = vrot.lane.b32.xlu0 %v8726, 96
  %v9260 = vpop.permute.xlu0 %9259
  %9261 = vrot.lane.b32.xlu0 %v8727, 96
  %v9262 = vpop.permute.xlu0 %9261
  %9263 = vrot.lane.b32.xlu0 %v8728, 96
  %v9264 = vpop.permute.xlu0 %9263
  %9265 = vrot.lane.b32.xlu0 %v8729, 96
  %v9266 = vpop.permute.xlu0 %9265
  %9267 = vrot.lane.b32.xlu0 %v8730, 96
  %v9268 = vpop.permute.xlu0 %9267
  %9269 = vrot.lane.b32.xlu0 %v8731, 96
  %v9270 = vpop.permute.xlu0 %9269
  %9271 = vrot.lane.b32.xlu0 %v8732, 96
  %v9272 = vpop.permute.xlu0 %9271
  %9273 = vrot.lane.b32.xlu0 %v8733, 96
  %v9274 = vpop.permute.xlu0 %9273
  %9275 = vrot.lane.b32.xlu0 %v8734, 96
  %v9276 = vpop.permute.xlu0 %9275
  %9277 = vrot.lane.b32.xlu0 %v8735, 96
  %v9278 = vpop.permute.xlu0 %9277
  %9279 = vrot.lane.b32.xlu0 %v8736, 96
  %v9280 = vpop.permute.xlu0 %9279
  %9281 = vrot.lane.b32.xlu0 %v8737, 96
  %v9282 = vpop.permute.xlu0 %9281
  %9283 = vrot.lane.b32.xlu0 %v8738, 96
  %v9284 = vpop.permute.xlu0 %9283
  %9285 = vrot.lane.b32.xlu0 %v8739, 96
  %v9286 = vpop.permute.xlu0 %9285
  %9287 = vrot.lane.b32.xlu0 %v8740, 96
  %v9288 = vpop.permute.xlu0 %9287
  %9289 = vrot.lane.b32.xlu0 %v8741, 96
  %v9290 = vpop.permute.xlu0 %9289
  %9291 = vrot.lane.b32.xlu0 %v8742, 96
  %v9292 = vpop.permute.xlu0 %9291
  %9293 = vrot.lane.b32.xlu0 %v8743, 96
  %v9294 = vpop.permute.xlu0 %9293
  %9295 = vrot.lane.b32.xlu0 %v8744, 96
  %v9296 = vpop.permute.xlu0 %9295
  %9297 = vrot.lane.b32.xlu0 %v8745, 96
  %v9298 = vpop.permute.xlu0 %9297
  %9299 = vrot.lane.b32.xlu0 %v8746, 96
  %v9300 = vpop.permute.xlu0 %9299
  %9301 = vrot.lane.b32.xlu0 %v8747, 96
  %v9302 = vpop.permute.xlu0 %9301
  %9303 = vrot.lane.b32.xlu0 %v8748, 96
  %v9304 = vpop.permute.xlu0 %9303
  %9305 = vrot.lane.b32.xlu0 %v8749, 96
  %v9306 = vpop.permute.xlu0 %9305
  %9307 = vrot.lane.b32.xlu0 %v8750, 96
  %v9308 = vpop.permute.xlu0 %9307
  %9309 = vrot.lane.b32.xlu0 %v8751, 96
  %v9310 = vpop.permute.xlu0 %9309
  %9311 = vrot.lane.b32.xlu0 %v8752, 96
  %v9312 = vpop.permute.xlu0 %9311
  %9313 = vrot.lane.b32.xlu0 %v8753, 96
  %v9314 = vpop.permute.xlu0 %9313
  %9315 = vrot.lane.b32.xlu0 %v8754, 96
  %v9316 = vpop.permute.xlu0 %9315
  %9317 = vrot.lane.b32.xlu0 %v8755, 96
  %v9318 = vpop.permute.xlu0 %9317
  %9319 = vrot.lane.b32.xlu0 %v8756, 96
  %v9320 = vpop.permute.xlu0 %9319
  %9321 = vrot.lane.b32.xlu0 %v8757, 96
  %v9322 = vpop.permute.xlu0 %9321
  %9323 = vrot.lane.b32.xlu0 %v8758, 96
  %v9324 = vpop.permute.xlu0 %9323
  %9325 = vrot.lane.b32.xlu0 %v8759, 96
  %v9326 = vpop.permute.xlu0 %9325
  %9327 = vrot.lane.b32.xlu0 %v8760, 96
  %v9328 = vpop.permute.xlu0 %9327
  %9329 = vrot.lane.b32.xlu0 %v8761, 96
  %v9330 = vpop.permute.xlu0 %9329
  %9331 = vrot.lane.b32.xlu0 %v8762, 96
  %v9332 = vpop.permute.xlu0 %9331
  %9333 = vrot.lane.b32.xlu0 %v8763, 96
  %v9334 = vpop.permute.xlu0 %9333
  %9335 = vrot.lane.b32.xlu0 %v8764, 96
  %v9336 = vpop.permute.xlu0 %9335
  %9337 = vrot.lane.b32.xlu0 %v8765, 96
  %v9338 = vpop.permute.xlu0 %9337
  %9339 = vrot.lane.b32.xlu0 %v8766, 96
  %v9340 = vpop.permute.xlu0 %9339
  %9341 = vrot.lane.b32.xlu0 %v8767, 96
  %v9342 = vpop.permute.xlu0 %9341
  %9343 = vrot.lane.b32.xlu0 %v8768, 96
  %v9344 = vpop.permute.xlu0 %9343
  %9345 = vrot.lane.b32.xlu0 %v8769, 96
  %v9346 = vpop.permute.xlu0 %9345
  %9347 = vrot.lane.b32.xlu0 %v8770, 96
  %v9348 = vpop.permute.xlu0 %9347
  %9349 = vrot.lane.b32.xlu0 %v8771, 96
  %v9350 = vpop.permute.xlu0 %9349
  %9351 = vrot.lane.b32.xlu0 %v8772, 96
  %v9352 = vpop.permute.xlu0 %9351
  %9353 = vrot.lane.b32.xlu0 %v8773, 96
  %v9354 = vpop.permute.xlu0 %9353
  %9355 = vrot.lane.b32.xlu0 %v8774, 96
  %v9356 = vpop.permute.xlu0 %9355
  %9357 = vrot.lane.b32.xlu0 %v8775, 96
  %v9358 = vpop.permute.xlu0 %9357
  %9359 = vrot.lane.b32.xlu0 %v8776, 96
  %v9360 = vpop.permute.xlu0 %9359
  %9361 = vrot.lane.b32.xlu0 %v8777, 96
  %v9362 = vpop.permute.xlu0 %9361
  %9363 = vrot.lane.b32.xlu0 %v8778, 96
  %v9364 = vpop.permute.xlu0 %9363
  %9365 = vrot.lane.b32.xlu0 %v8779, 96
  %v9366 = vpop.permute.xlu0 %9365
  %9367 = vrot.lane.b32.xlu0 %v8780, 96
  %v9368 = vpop.permute.xlu0 %9367
  %9369 = vrot.lane.b32.xlu0 %v8781, 96
  %v9370 = vpop.permute.xlu0 %9369
  %9371 = vrot.lane.b32.xlu0 %v8782, 96
  %v9372 = vpop.permute.xlu0 %9371
  %9373 = vrot.lane.b32.xlu0 %v8783, 96
  %v9374 = vpop.permute.xlu0 %9373
  %9375 = vrot.lane.b32.xlu0 %v8784, 96
  %v9376 = vpop.permute.xlu0 %9375
  %9377 = vrot.lane.b32.xlu0 %v8785, 96
  %v9378 = vpop.permute.xlu0 %9377
  %9379 = vrot.lane.b32.xlu0 %v8786, 96
  %v9380 = vpop.permute.xlu0 %9379
  %9381 = vrot.lane.b32.xlu0 %v8787, 96
  %v9382 = vpop.permute.xlu0 %9381
  %9383 = vrot.lane.b32.xlu0 %v8788, 96
  %v9384 = vpop.permute.xlu0 %9383
  %9385 = vrot.lane.b32.xlu0 %v8789, 96
  %v9386 = vpop.permute.xlu0 %9385
  %9387 = vrot.lane.b32.xlu0 %v8790, 96
  %v9388 = vpop.permute.xlu0 %9387
  %9389 = vrot.lane.b32.xlu0 %v8791, 96
  %v9390 = vpop.permute.xlu0 %9389
  %9391 = vrot.lane.b32.xlu0 %v8792, 96
  %v9392 = vpop.permute.xlu0 %9391
  %9393 = vrot.lane.b32.xlu0 %v8793, 96
  %v9394 = vpop.permute.xlu0 %9393
  %9395 = vrot.lane.b32.xlu0 %v8794, 96
  %v9396 = vpop.permute.xlu0 %9395
  %9397 = vrot.lane.b32.xlu0 %v8795, 96
  %v9398 = vpop.permute.xlu0 %9397
  %9399 = vrot.lane.b32.xlu0 %v8796, 96
  %v9400 = vpop.permute.xlu0 %9399
  %9401 = vrot.lane.b32.xlu0 %v8797, 96
  %v9402 = vpop.permute.xlu0 %9401
  %9403 = vrot.lane.b32.xlu0 %v8798, 96
  %v9404 = vpop.permute.xlu0 %9403
  %9405 = vrot.lane.b32.xlu0 %v8799, 96
  %v9406 = vpop.permute.xlu0 %9405
  %9407 = vrot.lane.b32.xlu0 %v8800, 96
  %v9408 = vpop.permute.xlu0 %9407
  %9409 = vrot.lane.b32.xlu0 %v8801, 96
  %v9410 = vpop.permute.xlu0 %9409
  %9411 = vrot.lane.b32.xlu0 %v8802, 96
  %v9412 = vpop.permute.xlu0 %9411
  %9413 = vrot.lane.b32.xlu0 %v8803, 96
  %v9414 = vpop.permute.xlu0 %9413
  %9415 = vrot.lane.b32.xlu0 %v8804, 96
  %v9416 = vpop.permute.xlu0 %9415
  %9417 = vrot.lane.b32.xlu0 %v8805, 96
  %v9418 = vpop.permute.xlu0 %9417
  %9419 = vrot.lane.b32.xlu0 %v8806, 96
  %v9420 = vpop.permute.xlu0 %9419
  %9421 = vrot.lane.b32.xlu0 %v8807, 96
  %v9422 = vpop.permute.xlu0 %9421
  %9423 = vrot.lane.b32.xlu0 %v8808, 96
  %v9424 = vpop.permute.xlu0 %9423
  %9425 = vrot.lane.b32.xlu0 %v8809, 96
  %v9426 = vpop.permute.xlu0 %9425
  %9427 = vrot.lane.b32.xlu0 %v8810, 96
  %v9428 = vpop.permute.xlu0 %9427
  %9429 = vrot.lane.b32.xlu0 %v8811, 96
  %v9430 = vpop.permute.xlu0 %9429
  %9431 = vrot.lane.b32.xlu0 %v8812, 96
  %v9432 = vpop.permute.xlu0 %9431
  %9433 = vrot.lane.b32.xlu0 %v8813, 96
  %v9434 = vpop.permute.xlu0 %9433
  %9435 = vrot.lane.b32.xlu0 %v8814, 96
  %v9436 = vpop.permute.xlu0 %9435
  %9437 = vrot.lane.b32.xlu0 %v8815, 96
  %v9438 = vpop.permute.xlu0 %9437
  %9439 = vrot.lane.b32.xlu0 %v8816, 96
  %v9440 = vpop.permute.xlu0 %9439
  %9441 = vrot.lane.b32.xlu0 %v8817, 96
  %v9442 = vpop.permute.xlu0 %9441
  %9443 = vrot.lane.b32.xlu0 %v8818, 96
  %v9444 = vpop.permute.xlu0 %9443
  %9445 = vrot.lane.b32.xlu0 %v8819, 96
  %v9446 = vpop.permute.xlu0 %9445
  %9447 = vrot.lane.b32.xlu0 %v8820, 96
  %v9448 = vpop.permute.xlu0 %9447
  %9449 = vrot.lane.b32.xlu0 %v8821, 96
  %v9450 = vpop.permute.xlu0 %9449
  %9451 = vrot.lane.b32.xlu0 %v8822, 96
  %v9452 = vpop.permute.xlu0 %9451
  %9453 = vrot.lane.b32.xlu0 %v8823, 96
  %v9454 = vpop.permute.xlu0 %9453
  %9455 = vrot.lane.b32.xlu0 %v8824, 96
  %v9456 = vpop.permute.xlu0 %9455
  %9457 = vrot.lane.b32.xlu0 %v8825, 96
  %v9458 = vpop.permute.xlu0 %9457
  %9459 = vrot.lane.b32.xlu0 %v8826, 96
  %v9460 = vpop.permute.xlu0 %9459
  %9461 = vrot.lane.b32.xlu0 %v8827, 96
  %v9462 = vpop.permute.xlu0 %9461
  %9463 = vrot.lane.b32.xlu0 %v8828, 96
  %v9464 = vpop.permute.xlu0 %9463
  %9465 = vrot.lane.b32.xlu0 %v8829, 96
  %v9466 = vpop.permute.xlu0 %9465
  %9467 = vrot.lane.b32.xlu0 %v8830, 96
  %v9468 = vpop.permute.xlu0 %9467
  %9469 = vrot.lane.b32.xlu0 %v8831, 96
  %v9470 = vpop.permute.xlu0 %9469
  %9471 = vrot.lane.b32.xlu0 %v8832, 96
  %v9472 = vpop.permute.xlu0 %9471
  %9473 = vrot.lane.b32.xlu0 %v8833, 96
  %v9474 = vpop.permute.xlu0 %9473
  %9475 = vrot.lane.b32.xlu0 %v8834, 96
  %v9476 = vpop.permute.xlu0 %9475
  %9477 = vrot.lane.b32.xlu0 %v8835, 96
  %v9478 = vpop.permute.xlu0 %9477
  %9479 = vrot.lane.b32.xlu0 %v8836, 96
  %v9480 = vpop.permute.xlu0 %9479
  %9481 = vrot.lane.b32.xlu0 %v8837, 96
  %v9482 = vpop.permute.xlu0 %9481
  %9483 = vrot.lane.b32.xlu0 %v8838, 96
  %v9484 = vpop.permute.xlu0 %9483
  %9485 = vrot.lane.b32.xlu0 %v8839, 96
  %v9486 = vpop.permute.xlu0 %9485
  %9487 = vrot.lane.b32.xlu0 %v8840, 96
  %v9488 = vpop.permute.xlu0 %9487
  %9489 = vrot.lane.b32.xlu0 %v8841, 96
  %v9490 = vpop.permute.xlu0 %9489
  %9491 = vrot.lane.b32.xlu0 %v8842, 96
  %v9492 = vpop.permute.xlu0 %9491
  %9493 = vrot.lane.b32.xlu0 %v8843, 96
  %v9494 = vpop.permute.xlu0 %9493
  %9495 = vrot.lane.b32.xlu0 %v8844, 96
  %v9496 = vpop.permute.xlu0 %9495
  %9497 = vrot.lane.b32.xlu0 %v8845, 96
  %v9498 = vpop.permute.xlu0 %9497
  %9499 = vrot.lane.b32.xlu0 %v8846, 96
  %v9500 = vpop.permute.xlu0 %9499
  %9501 = vrot.lane.b32.xlu0 %v8847, 96
  %v9502 = vpop.permute.xlu0 %9501
  %9503 = vrot.lane.b32.xlu0 %v8848, 96
  %v9504 = vpop.permute.xlu0 %9503
  %9505 = vrot.lane.b32.xlu0 %v8849, 96
  %v9506 = vpop.permute.xlu0 %9505
  %9507 = vrot.lane.b32.xlu0 %v8850, 96
  %v9508 = vpop.permute.xlu0 %9507
  %9509 = vrot.lane.b32.xlu0 %v8851, 96
  %v9510 = vpop.permute.xlu0 %9509
  %9511 = vrot.lane.b32.xlu0 %v8852, 96
  %v9512 = vpop.permute.xlu0 %9511
  %9513 = vrot.lane.b32.xlu0 %v8853, 96
  %v9514 = vpop.permute.xlu0 %9513
  %9515 = vrot.lane.b32.xlu0 %v8854, 96
  %v9516 = vpop.permute.xlu0 %9515
  %9517 = vrot.lane.b32.xlu0 %v8855, 96
  %v9518 = vpop.permute.xlu0 %9517
  %9519 = vrot.lane.b32.xlu0 %v8856, 96
  %v9520 = vpop.permute.xlu0 %9519
  %9521 = vrot.lane.b32.xlu0 %v8857, 96
  %v9522 = vpop.permute.xlu0 %9521
  %9523 = vrot.lane.b32.xlu0 %v8858, 96
  %v9524 = vpop.permute.xlu0 %9523
  %9525 = vrot.lane.b32.xlu0 %v8859, 96
  %v9526 = vpop.permute.xlu0 %9525
  %9527 = vrot.lane.b32.xlu0 %v8860, 96
  %v9528 = vpop.permute.xlu0 %9527
  %9529 = vrot.lane.b32.xlu0 %v8861, 96
  %v9530 = vpop.permute.xlu0 %9529
  %9531 = vrot.lane.b32.xlu0 %v8862, 96
  %v9532 = vpop.permute.xlu0 %9531
  %9533 = vrot.lane.b32.xlu0 %v8863, 96
  %v9534 = vpop.permute.xlu0 %9533
  %9535 = vrot.lane.b32.xlu0 %v8864, 96
  %v9536 = vpop.permute.xlu0 %9535
  %9537 = vrot.lane.b32.xlu0 %v8865, 96
  %v9538 = vpop.permute.xlu0 %9537
  %9539 = vrot.lane.b32.xlu0 %v8866, 96
  %v9540 = vpop.permute.xlu0 %9539
  %9541 = vrot.lane.b32.xlu0 %v8867, 96
  %v9542 = vpop.permute.xlu0 %9541
  %9543 = vrot.lane.b32.xlu0 %v8868, 96
  %v9544 = vpop.permute.xlu0 %9543
  %9545 = vrot.lane.b32.xlu0 %v8869, 96
  %v9546 = vpop.permute.xlu0 %9545
  %9547 = vrot.lane.b32.xlu0 %v8870, 96
  %v9548 = vpop.permute.xlu0 %9547
  %9549 = vrot.lane.b32.xlu0 %v8871, 96
  %v9550 = vpop.permute.xlu0 %9549
  %9551 = vrot.lane.b32.xlu0 %v8872, 96
  %v9552 = vpop.permute.xlu0 %9551
  %9553 = vrot.lane.b32.xlu0 %v8873, 96
  %v9554 = vpop.permute.xlu0 %9553
  %9555 = vrot.lane.b32.xlu0 %v8874, 96
  %v9556 = vpop.permute.xlu0 %9555
  %9557 = vrot.lane.b32.xlu0 %v8875, 96
  %v9558 = vpop.permute.xlu0 %9557
  %9559 = vrot.lane.b32.xlu0 %v8876, 96
  %v9560 = vpop.permute.xlu0 %9559
  %9561 = vrot.lane.b32.xlu0 %v8877, 96
  %v9562 = vpop.permute.xlu0 %9561
  %9563 = vrot.lane.b32.xlu0 %v8878, 96
  %v9564 = vpop.permute.xlu0 %9563
  %9565 = vrot.lane.b32.xlu0 %v8879, 96
  %v9566 = vpop.permute.xlu0 %9565
  %9567 = vrot.lane.b32.xlu0 %v8880, 96
  %v9568 = vpop.permute.xlu0 %9567
  %9569 = vrot.lane.b32.xlu0 %v8881, 96
  %v9570 = vpop.permute.xlu0 %9569
  %9571 = vrot.lane.b32.xlu0 %v8882, 96
  %v9572 = vpop.permute.xlu0 %9571
  %9573 = vrot.lane.b32.xlu0 %v8883, 96
  %v9574 = vpop.permute.xlu0 %9573
  %9575 = vrot.lane.b32.xlu0 %v8884, 96
  %v9576 = vpop.permute.xlu0 %9575
  %9577 = vrot.lane.b32.xlu0 %v8885, 96
  %v9578 = vpop.permute.xlu0 %9577
  %9579 = vrot.lane.b32.xlu0 %v8886, 96
  %v9580 = vpop.permute.xlu0 %9579
  %9581 = vrot.lane.b32.xlu0 %v8887, 96
  %v9582 = vpop.permute.xlu0 %9581
  %9583 = vrot.lane.b32.xlu0 %v8888, 96
  %v9584 = vpop.permute.xlu0 %9583
  %9585 = vrot.lane.b32.xlu0 %v8889, 96
  %v9586 = vpop.permute.xlu0 %9585
  %9587 = vrot.lane.b32.xlu0 %v8890, 96
  %v9588 = vpop.permute.xlu0 %9587
  %9589 = vrot.lane.b32.xlu0 %v8891, 96
  %v9590 = vpop.permute.xlu0 %9589
  %9591 = vrot.lane.b32.xlu0 %v8892, 96
  %v9592 = vpop.permute.xlu0 %9591
  %9593 = vrot.lane.b32.xlu0 %v8893, 96
  %v9594 = vpop.permute.xlu0 %9593
  %9595 = vrot.lane.b32.xlu0 %v8894, 96
  %v9596 = vpop.permute.xlu0 %9595
  %9597 = vrot.lane.b32.xlu0 %v8895, 96
  %v9598 = vpop.permute.xlu0 %9597
  %9599 = vrot.lane.b32.xlu0 %v8896, 96
  %v9600 = vpop.permute.xlu0 %9599
  %9601 = vrot.lane.b32.xlu0 %v8897, 96
  %v9602 = vpop.permute.xlu0 %9601
  %9603 = vrot.lane.b32.xlu0 %v8898, 96
  %v9604 = vpop.permute.xlu0 %9603
  %9605 = vrot.lane.b32.xlu0 %v8899, 96
  %v9606 = vpop.permute.xlu0 %9605
  %9607 = vrot.lane.b32.xlu0 %v8900, 96
  %v9608 = vpop.permute.xlu0 %9607
  %9609 = vrot.lane.b32.xlu0 %v8901, 96
  %v9610 = vpop.permute.xlu0 %9609
  %9611 = vrot.lane.b32.xlu0 %v8902, 96
  %v9612 = vpop.permute.xlu0 %9611
  %9613 = vrot.lane.b32.xlu0 %v8903, 96
  %v9614 = vpop.permute.xlu0 %9613
  %9615 = vrot.lane.b32.xlu0 %v8904, 96
  %v9616 = vpop.permute.xlu0 %9615
  %9617 = vrot.lane.b32.xlu0 %v8905, 96
  %v9618 = vpop.permute.xlu0 %9617
  %9619 = vrot.lane.b32.xlu0 %v8906, 96
  %v9620 = vpop.permute.xlu0 %9619
  %9621 = vrot.lane.b32.xlu0 %v8907, 96
  %v9622 = vpop.permute.xlu0 %9621
  %9623 = vrot.lane.b32.xlu0 %v8908, 96
  %v9624 = vpop.permute.xlu0 %9623
  %9625 = vrot.lane.b32.xlu0 %v8909, 96
  %v9626 = vpop.permute.xlu0 %9625
  %9627 = vrot.lane.b32.xlu0 %v8910, 96
  %v9628 = vpop.permute.xlu0 %9627
  %9629 = vrot.lane.b32.xlu0 %v8911, 96
  %v9630 = vpop.permute.xlu0 %9629
  %9631 = vrot.lane.b32.xlu0 %v8912, 96
  %v9632 = vpop.permute.xlu0 %9631
  %9633 = vrot.lane.b32.xlu0 %v8913, 96
  %v9634 = vpop.permute.xlu0 %9633
  %9635 = vrot.lane.b32.xlu0 %v8914, 96
  %v9636 = vpop.permute.xlu0 %9635
  %9637 = vrot.lane.b32.xlu0 %v8915, 96
  %v9638 = vpop.permute.xlu0 %9637
  %9639 = vrot.lane.b32.xlu0 %v8916, 96
  %v9640 = vpop.permute.xlu0 %9639
  %9641 = vrot.lane.b32.xlu0 %v8917, 96
  %v9642 = vpop.permute.xlu0 %9641
  %9643 = vrot.lane.b32.xlu0 %v8918, 96
  %v9644 = vpop.permute.xlu0 %9643
  %9645 = vrot.lane.b32.xlu0 %v8919, 96
  %v9646 = vpop.permute.xlu0 %9645
  %9647 = vrot.lane.b32.xlu0 %v8920, 96
  %v9648 = vpop.permute.xlu0 %9647
  %9649 = vrot.lane.b32.xlu0 %v8921, 96
  %v9650 = vpop.permute.xlu0 %9649
  %9651 = vrot.lane.b32.xlu0 %v8922, 96
  %v9652 = vpop.permute.xlu0 %9651
  %9653 = vrot.lane.b32.xlu0 %v8923, 96
  %v9654 = vpop.permute.xlu0 %9653
  %9655 = vrot.lane.b32.xlu0 %v8924, 96
  %v9656 = vpop.permute.xlu0 %9655
  %9657 = vrot.lane.b32.xlu0 %v8925, 96
  %v9658 = vpop.permute.xlu0 %9657
  %9659 = vrot.lane.b32.xlu0 %v8926, 96
  %v9660 = vpop.permute.xlu0 %9659
  %9661 = vrot.lane.b32.xlu0 %v8927, 96
  %v9662 = vpop.permute.xlu0 %9661
  %9663 = vrot.lane.b32.xlu0 %v8928, 96
  %v9664 = vpop.permute.xlu0 %9663
  %9665 = vrot.lane.b32.xlu0 %v8929, 96
  %v9666 = vpop.permute.xlu0 %9665
  %9667 = vrot.lane.b32.xlu0 %v8930, 96
  %v9668 = vpop.permute.xlu0 %9667
  %9669 = vrot.lane.b32.xlu0 %v8931, 96
  %v9670 = vpop.permute.xlu0 %9669
  %9671 = vrot.lane.b32.xlu0 %v8932, 96
  %v9672 = vpop.permute.xlu0 %9671
  %9673 = vrot.lane.b32.xlu0 %v8933, 96
  %v9674 = vpop.permute.xlu0 %9673
  %9675 = vrot.lane.b32.xlu0 %v8934, 96
  %v9676 = vpop.permute.xlu0 %9675
  %9677 = vrot.lane.b32.xlu0 %v8935, 96
  %v9678 = vpop.permute.xlu0 %9677
  %9679 = vrot.lane.b32.xlu0 %v8936, 96
  %v9680 = vpop.permute.xlu0 %9679
  %9681 = vrot.lane.b32.xlu0 %v8937, 96
  %v9682 = vpop.permute.xlu0 %9681
  %9683 = vrot.lane.b32.xlu0 %v8938, 96
  %v9684 = vpop.permute.xlu0 %9683
  %9685 = vrot.lane.b32.xlu0 %v8939, 96
  %v9686 = vpop.permute.xlu0 %9685
  %9687 = vrot.lane.b32.xlu0 %v8940, 96
  %v9688 = vpop.permute.xlu0 %9687
  %9689 = vrot.lane.b32.xlu0 %v8941, 96
  %v9690 = vpop.permute.xlu0 %9689
  %9691 = vrot.lane.b32.xlu0 %v8942, 96
  %v9692 = vpop.permute.xlu0 %9691
  %9693 = vrot.lane.b32.xlu0 %v8943, 96
  %v9694 = vpop.permute.xlu0 %9693
  %9695 = vrot.lane.b32.xlu0 %v8944, 96
  %v9696 = vpop.permute.xlu0 %9695
  %9697 = vrot.lane.b32.xlu0 %v8945, 96
  %v9698 = vpop.permute.xlu0 %9697
  %9699 = vrot.lane.b32.xlu0 %v8946, 96
  %v9700 = vpop.permute.xlu0 %9699
  %9701 = vrot.lane.b32.xlu0 %v8947, 96
  %v9702 = vpop.permute.xlu0 %9701
  %9703 = vrot.lane.b32.xlu0 %v8948, 96
  %v9704 = vpop.permute.xlu0 %9703
  %9705 = vrot.lane.b32.xlu0 %v8949, 96
  %v9706 = vpop.permute.xlu0 %9705
  %9707 = vrot.lane.b32.xlu0 %v8950, 96
  %v9708 = vpop.permute.xlu0 %9707
  %9709 = vrot.lane.b32.xlu0 %v8951, 96
  %v9710 = vpop.permute.xlu0 %9709
  %9711 = vrot.lane.b32.xlu0 %v8952, 96
  %v9712 = vpop.permute.xlu0 %9711
  %9713 = vrot.lane.b32.xlu0 %v8953, 96
  %v9714 = vpop.permute.xlu0 %9713
  %9715 = vrot.lane.b32.xlu0 %v8954, 96
  %v9716 = vpop.permute.xlu0 %9715
  %9717 = vrot.lane.b32.xlu0 %v8955, 96
  %v9718 = vpop.permute.xlu0 %9717
  %9719 = vrot.lane.b32.xlu0 %v8956, 96
  %v9720 = vpop.permute.xlu0 %9719
  %9721 = vrot.lane.b32.xlu0 %v8957, 96
  %v9722 = vpop.permute.xlu0 %9721
  %9723 = vrot.lane.b32.xlu0 %v8958, 96
  %v9724 = vpop.permute.xlu0 %9723
  %9725 = vrot.lane.b32.xlu0 %v8959, 96
  %v9726 = vpop.permute.xlu0 %9725
  %9727 = vrot.lane.b32.xlu0 %v8960, 96
  %v9728 = vpop.permute.xlu0 %9727
  %9729 = vrot.lane.b32.xlu0 %v8961, 96
  %v9730 = vpop.permute.xlu0 %9729
  %9731 = vrot.lane.b32.xlu0 %v8962, 96
  %v9732 = vpop.permute.xlu0 %9731
  %9733 = vrot.lane.b32.xlu0 %v8963, 96
  %v9734 = vpop.permute.xlu0 %9733
  %9735 = vrot.lane.b32.xlu0 %v8964, 96
  %v9736 = vpop.permute.xlu0 %9735
  %9737 = vrot.lane.b32.xlu0 %v8965, 96
  %v9738 = vpop.permute.xlu0 %9737
  %9739 = vrot.lane.b32.xlu0 %v8966, 96
  %v9740 = vpop.permute.xlu0 %9739
  %9741 = vrot.lane.b32.xlu0 %v8967, 96
  %v9742 = vpop.permute.xlu0 %9741
  %9743 = vrot.lane.b32.xlu0 %v8968, 96
  %v9744 = vpop.permute.xlu0 %9743
  %9745 = vrot.lane.b32.xlu0 %v8969, 96
  %v9746 = vpop.permute.xlu0 %9745
  %9747 = vrot.lane.b32.xlu0 %v8970, 96
  %v9748 = vpop.permute.xlu0 %9747
  %10005 = vrot.lane.b32.xlu0 %v8976, 30
  %v10006 = vpop.permute.xlu0 %10005
  %10007 = vrot.lane.b32.xlu0 %v8980, 30
  %v10008 = vpop.permute.xlu0 %10007
  %v10009 = vsel %vm3758, %v10006, %v10008
  %10011 = vmatprep.subr.mxu0 0.0
  %10012 = vmatpush1.msra.mxu0 %v9268
  %10013 = vmatprep.subr.mxu0 0.0
  %10014 = vmatpush1.msra.mxu0 %v9266
  %10015 = vmatprep.subr.mxu0 0.0
  %10016 = vmatpush1.msra.mxu0 %v9264
  %10017 = vmatprep.subr.mxu0 0.0
  %10018 = vmatpush1.msra.mxu0 %v9262
  %10019 = vmatprep.subr.mxu0 0.0
  %10020 = vmatpush1.msra.mxu0 %v9260
  %10021 = vmatprep.subr.mxu0 0.0
  %10022 = vmatpush1.msra.mxu0 %v9258
  %10023 = vmatprep.subr.mxu0 0.0
  %10024 = vmatpush1.msra.mxu0 %v9256
  %10025 = vmatprep.subr.mxu0 0.0
  %10026 = vmatpush1.msra.mxu0 %v9254
  %10027 = vmatprep.subr.mxu0 0.0
  %10028 = vmatpush1.msra.mxu0 %v9252
  %10029 = vmatprep.subr.mxu0 0.0
  %10030 = vmatpush1.msra.mxu0 %v9250
  %10031 = vmatprep.subr.mxu0 0.0
  %10032 = vmatpush1.msra.mxu0 %v9248
  %10033 = vmatprep.subr.mxu0 0.0
  %10034 = vmatpush1.msra.mxu0 %v9246
  %10035 = vmatprep.subr.mxu0 0.0
  %10036 = vmatpush1.msra.mxu0 %v9244
  %10037 = vmatprep.subr.mxu0 0.0
  %10038 = vmatpush1.msra.mxu0 %v9242
  %10039 = vmatprep.subr.mxu0 0.0
  %10040 = vmatpush1.msra.mxu0 %v9240
  %10041 = vmatprep.subr.mxu0 0.0
  %10042 = vmatpush1.msra.mxu0 %v9238
  %10043 = vmatprep.subr.mxu0 0.0
  %10044 = vmatpush2.msra.mxu0 %v9300
  %10045 = vmatprep.subr.mxu0 0.0
  %10046 = vmatpush2.msra.mxu0 %v9298
  %10047 = vmatprep.subr.mxu0 0.0
  %10048 = vmatpush2.msra.mxu0 %v9296
  %10049 = vmatprep.subr.mxu0 0.0
  %10050 = vmatpush2.msra.mxu0 %v9294
  %10051 = vmatprep.subr.mxu0 0.0
  %10052 = vmatpush2.msra.mxu0 %v9292
  %10053 = vmatprep.subr.mxu0 0.0
  %10054 = vmatpush2.msra.mxu0 %v9290
  %10055 = vmatprep.subr.mxu0 0.0
  %10056 = vmatpush2.msra.mxu0 %v9288
  %10057 = vmatprep.subr.mxu0 0.0
  %10058 = vmatpush2.msra.mxu0 %v9286
  %10059 = vmatprep.subr.mxu0 0.0
  %10060 = vmatpush2.msra.mxu0 %v9284
  %10061 = vmatprep.subr.mxu0 0.0
  %10062 = vmatpush2.msra.mxu0 %v9282
  %10063 = vmatprep.subr.mxu0 0.0
  %10064 = vmatpush2.msra.mxu0 %v9280
  %10065 = vmatprep.subr.mxu0 0.0
  %10066 = vmatpush2.msra.mxu0 %v9278
  %10067 = vmatprep.subr.mxu0 0.0
  %10068 = vmatpush2.msra.mxu0 %v9276
  %10069 = vmatprep.subr.mxu0 0.0
  %10070 = vmatpush2.msra.mxu0 %v9274
  %10071 = vmatprep.subr.mxu0 0.0
  %10072 = vmatpush2.msra.mxu0 %v9272
  %10073 = vmatprep.subr.mxu0 0.0
  %10074 = vmatpush2.msra.mxu0 %v9270
  %10075 = vmatprep.mubr.f32.mxu0 %v8652
  %10076 = vmatmul.mubr.f32.gmra.mxu0 %v8651
  %v10077 = vpop.f32.mrf.mxu0
  %v10078 = vadd.f32 %v10009, %v10077
  %v10079 = vpop.f32.mrf.mxu0
  %10080 = vmatprep.mubr.f32.mxu0 %v8668
  %10081 = vmatmul.mubr.f32.gmra.mxu0 %v8667
  %v10082 = vpop.f32.mrf.mxu0
  %v10083 = vadd.f32 %v10009, %v10082
  %v10084 = vpop.f32.mrf.mxu0
  %10085 = vmatprep.mubr.f32.mxu0 %v8684
  %10086 = vmatmul.mubr.f32.gmra.mxu0 %v8683
  %v10087 = vpop.f32.mrf.mxu0
  %v10088 = vadd.f32 %v10009, %v10087
  %v10089 = vpop.f32.mrf.mxu0
  %10090 = vmatprep.mubr.f32.mxu0 %v8700
  %10091 = vmatmul.mubr.f32.gmra.mxu0 %v8699
  %v10092 = vpop.f32.mrf.mxu0
  %v10093 = vadd.f32 %v10009, %v10092
  %v10094 = vpop.f32.mrf.mxu0
  %10095 = vdwg.mxu0
  %10096 = vmatprep.subr.mxu0 0.0
  %10097 = vmatpush1.msra.mxu0 %v9332
  %10098 = vmatprep.subr.mxu0 0.0
  %10099 = vmatpush1.msra.mxu0 %v9330
  %10100 = vmatprep.subr.mxu0 0.0
  %10101 = vmatpush1.msra.mxu0 %v9328
  %10102 = vmatprep.subr.mxu0 0.0
  %10103 = vmatpush1.msra.mxu0 %v9326
  %10104 = vmatprep.subr.mxu0 0.0
  %10105 = vmatpush1.msra.mxu0 %v9324
  %10106 = vmatprep.subr.mxu0 0.0
  %10107 = vmatpush1.msra.mxu0 %v9322
  %10108 = vmatprep.subr.mxu0 0.0
  %10109 = vmatpush1.msra.mxu0 %v9320
  %10110 = vmatprep.subr.mxu0 0.0
  %10111 = vmatpush1.msra.mxu0 %v9318
  %10112 = vmatprep.subr.mxu0 0.0
  %10113 = vmatpush1.msra.mxu0 %v9316
  %10114 = vmatprep.subr.mxu0 0.0
  %10115 = vmatpush1.msra.mxu0 %v9314
  %10116 = vmatprep.subr.mxu0 0.0
  %10117 = vmatpush1.msra.mxu0 %v9312
  %10118 = vmatprep.subr.mxu0 0.0
  %10119 = vmatpush1.msra.mxu0 %v9310
  %10120 = vmatprep.subr.mxu0 0.0
  %10121 = vmatpush1.msra.mxu0 %v9308
  %10122 = vmatprep.subr.mxu0 0.0
  %10123 = vmatpush1.msra.mxu0 %v9306
  %10124 = vmatprep.subr.mxu0 0.0
  %10125 = vmatpush1.msra.mxu0 %v9304
  %10126 = vmatprep.subr.mxu0 0.0
  %10127 = vmatpush1.msra.mxu0 %v9302
  %10128 = vmatprep.subr.mxu0 0.0
  %10129 = vmatpush2.msra.mxu0 %v9364
  %10130 = vmatprep.subr.mxu0 0.0
  %10131 = vmatpush2.msra.mxu0 %v9362
  %10132 = vmatprep.subr.mxu0 0.0
  %10133 = vmatpush2.msra.mxu0 %v9360
  %10134 = vmatprep.subr.mxu0 0.0
  %10135 = vmatpush2.msra.mxu0 %v9358
  %10136 = vmatprep.subr.mxu0 0.0
  %10137 = vmatpush2.msra.mxu0 %v9356
  %10138 = vmatprep.subr.mxu0 0.0
  %10139 = vmatpush2.msra.mxu0 %v9354
  %10140 = vmatprep.subr.mxu0 0.0
  %10141 = vmatpush2.msra.mxu0 %v9352
  %10142 = vmatprep.subr.mxu0 0.0
  %10143 = vmatpush2.msra.mxu0 %v9350
  %10144 = vmatprep.subr.mxu0 0.0
  %10145 = vmatpush2.msra.mxu0 %v9348
  %10146 = vmatprep.subr.mxu0 0.0
  %10147 = vmatpush2.msra.mxu0 %v9346
  %10148 = vmatprep.subr.mxu0 0.0
  %10149 = vmatpush2.msra.mxu0 %v9344
  %10150 = vmatprep.subr.mxu0 0.0
  %10151 = vmatpush2.msra.mxu0 %v9342
  %10152 = vmatprep.subr.mxu0 0.0
  %10153 = vmatpush2.msra.mxu0 %v9340
  %10154 = vmatprep.subr.mxu0 0.0
  %10155 = vmatpush2.msra.mxu0 %v9338
  %10156 = vmatprep.subr.mxu0 0.0
  %10157 = vmatpush2.msra.mxu0 %v9336
  %10158 = vmatprep.subr.mxu0 0.0
  %10159 = vmatpush2.msra.mxu0 %v9334
  %10160 = vmatprep.mubr.f32.mxu0 %v8654
  %10161 = vmatmul.mubr.f32.gmra.mxu0 %v8653
  %v10162 = vpop.f32.mrf.mxu0
  %v10163 = vadd.f32 %v10078, %v10162
  %v10164 = vpop.f32.mrf.mxu0
  %10165 = vmatprep.mubr.f32.mxu0 %v8670
  %10166 = vmatmul.mubr.f32.gmra.mxu0 %v8669
  %v10167 = vpop.f32.mrf.mxu0
  %v10168 = vadd.f32 %v10083, %v10167
  %v10169 = vpop.f32.mrf.mxu0
  %10170 = vmatprep.mubr.f32.mxu0 %v8686
  %10171 = vmatmul.mubr.f32.gmra.mxu0 %v8685
  %v10172 = vpop.f32.mrf.mxu0
  %v10173 = vadd.f32 %v10088, %v10172
  %v10174 = vpop.f32.mrf.mxu0
  %10175 = vmatprep.mubr.f32.mxu0 %v8702
  %10176 = vmatmul.mubr.f32.gmra.mxu0 %v8701
  %v10177 = vpop.f32.mrf.mxu0
  %v10178 = vadd.f32 %v10093, %v10177
  %v10179 = vpop.f32.mrf.mxu0
  %10180 = vdwg.mxu0
  %10181 = vmatprep.subr.mxu0 0.0
  %10182 = vmatpush1.msra.mxu0 %v9396
  %10183 = vmatprep.subr.mxu0 0.0
  %10184 = vmatpush1.msra.mxu0 %v9394
  %10185 = vmatprep.subr.mxu0 0.0
  %10186 = vmatpush1.msra.mxu0 %v9392
  %10187 = vmatprep.subr.mxu0 0.0
  %10188 = vmatpush1.msra.mxu0 %v9390
  %10189 = vmatprep.subr.mxu0 0.0
  %10190 = vmatpush1.msra.mxu0 %v9388
  %10191 = vmatprep.subr.mxu0 0.0
  %10192 = vmatpush1.msra.mxu0 %v9386
  %10193 = vmatprep.subr.mxu0 0.0
  %10194 = vmatpush1.msra.mxu0 %v9384
  %10195 = vmatprep.subr.mxu0 0.0
  %10196 = vmatpush1.msra.mxu0 %v9382
  %10197 = vmatprep.subr.mxu0 0.0
  %10198 = vmatpush1.msra.mxu0 %v9380
  %10199 = vmatprep.subr.mxu0 0.0
  %10200 = vmatpush1.msra.mxu0 %v9378
  %10201 = vmatprep.subr.mxu0 0.0
  %10202 = vmatpush1.msra.mxu0 %v9376
  %10203 = vmatprep.subr.mxu0 0.0
  %10204 = vmatpush1.msra.mxu0 %v9374
  %10205 = vmatprep.subr.mxu0 0.0
  %10206 = vmatpush1.msra.mxu0 %v9372
  %10207 = vmatprep.subr.mxu0 0.0
  %10208 = vmatpush1.msra.mxu0 %v9370
  %10209 = vmatprep.subr.mxu0 0.0
  %10210 = vmatpush1.msra.mxu0 %v9368
  %10211 = vmatprep.subr.mxu0 0.0
  %10212 = vmatpush1.msra.mxu0 %v9366
  %10213 = vmatprep.subr.mxu0 0.0
  %10214 = vmatpush2.msra.mxu0 %v9428
  %10215 = vmatprep.subr.mxu0 0.0
  %10216 = vmatpush2.msra.mxu0 %v9426
  %10217 = vmatprep.subr.mxu0 0.0
  %10218 = vmatpush2.msra.mxu0 %v9424
  %10219 = vmatprep.subr.mxu0 0.0
  %10220 = vmatpush2.msra.mxu0 %v9422
  %10221 = vmatprep.subr.mxu0 0.0
  %10222 = vmatpush2.msra.mxu0 %v9420
  %10223 = vmatprep.subr.mxu0 0.0
  %10224 = vmatpush2.msra.mxu0 %v9418
  %10225 = vmatprep.subr.mxu0 0.0
  %10226 = vmatpush2.msra.mxu0 %v9416
  %10227 = vmatprep.subr.mxu0 0.0
  %10228 = vmatpush2.msra.mxu0 %v9414
  %10229 = vmatprep.subr.mxu0 0.0
  %10230 = vmatpush2.msra.mxu0 %v9412
  %10231 = vmatprep.subr.mxu0 0.0
  %10232 = vmatpush2.msra.mxu0 %v9410
  %10233 = vmatprep.subr.mxu0 0.0
  %10234 = vmatpush2.msra.mxu0 %v9408
  %10235 = vmatprep.subr.mxu0 0.0
  %10236 = vmatpush2.msra.mxu0 %v9406
  %10237 = vmatprep.subr.mxu0 0.0
  %10238 = vmatpush2.msra.mxu0 %v9404
  %10239 = vmatprep.subr.mxu0 0.0
  %10240 = vmatpush2.msra.mxu0 %v9402
  %10241 = vmatprep.subr.mxu0 0.0
  %10242 = vmatpush2.msra.mxu0 %v9400
  %10243 = vmatprep.subr.mxu0 0.0
  %10244 = vmatpush2.msra.mxu0 %v9398
  %10245 = vmatprep.mubr.f32.mxu0 %v8656
  %10246 = vmatmul.mubr.f32.gmra.mxu0 %v8655
  %v10247 = vpop.f32.mrf.mxu0
  %v10248 = vadd.f32 %v10163, %v10247
  %v10249 = vpop.f32.mrf.mxu0
  %10250 = vmatprep.mubr.f32.mxu0 %v8672
  %10251 = vmatmul.mubr.f32.gmra.mxu0 %v8671
  %v10252 = vpop.f32.mrf.mxu0
  %v10253 = vadd.f32 %v10168, %v10252
  %v10254 = vpop.f32.mrf.mxu0
  %10255 = vmatprep.mubr.f32.mxu0 %v8688
  %10256 = vmatmul.mubr.f32.gmra.mxu0 %v8687
  %v10257 = vpop.f32.mrf.mxu0
  %v10258 = vadd.f32 %v10173, %v10257
  %v10259 = vpop.f32.mrf.mxu0
  %10260 = vmatprep.mubr.f32.mxu0 %v8704
  %10261 = vmatmul.mubr.f32.gmra.mxu0 %v8703
  %v10262 = vpop.f32.mrf.mxu0
  %v10263 = vadd.f32 %v10178, %v10262
  %v10264 = vpop.f32.mrf.mxu0
  %10265 = vdwg.mxu0
  %10266 = vmatprep.subr.mxu0 0.0
  %10267 = vmatpush1.msra.mxu0 %v9460
  %10268 = vmatprep.subr.mxu0 0.0
  %10269 = vmatpush1.msra.mxu0 %v9458
  %10270 = vmatprep.subr.mxu0 0.0
  %10271 = vmatpush1.msra.mxu0 %v9456
  %10272 = vmatprep.subr.mxu0 0.0
  %10273 = vmatpush1.msra.mxu0 %v9454
  %10274 = vmatprep.subr.mxu0 0.0
  %10275 = vmatpush1.msra.mxu0 %v9452
  %10276 = vmatprep.subr.mxu0 0.0
  %10277 = vmatpush1.msra.mxu0 %v9450
  %10278 = vmatprep.subr.mxu0 0.0
  %10279 = vmatpush1.msra.mxu0 %v9448
  %10280 = vmatprep.subr.mxu0 0.0
  %10281 = vmatpush1.msra.mxu0 %v9446
  %10282 = vmatprep.subr.mxu0 0.0
  %10283 = vmatpush1.msra.mxu0 %v9444
  %10284 = vmatprep.subr.mxu0 0.0
  %10285 = vmatpush1.msra.mxu0 %v9442
  %10286 = vmatprep.subr.mxu0 0.0
  %10287 = vmatpush1.msra.mxu0 %v9440
  %10288 = vmatprep.subr.mxu0 0.0
  %10289 = vmatpush1.msra.mxu0 %v9438
  %10290 = vmatprep.subr.mxu0 0.0
  %10291 = vmatpush1.msra.mxu0 %v9436
  %10292 = vmatprep.subr.mxu0 0.0
  %10293 = vmatpush1.msra.mxu0 %v9434
  %10294 = vmatprep.subr.mxu0 0.0
  %10295 = vmatpush1.msra.mxu0 %v9432
  %10296 = vmatprep.subr.mxu0 0.0
  %10297 = vmatpush1.msra.mxu0 %v9430
  %10298 = vmatprep.subr.mxu0 0.0
  %10299 = vmatpush2.msra.mxu0 %v9492
  %10300 = vmatprep.subr.mxu0 0.0
  %10301 = vmatpush2.msra.mxu0 %v9490
  %10302 = vmatprep.subr.mxu0 0.0
  %10303 = vmatpush2.msra.mxu0 %v9488
  %10304 = vmatprep.subr.mxu0 0.0
  %10305 = vmatpush2.msra.mxu0 %v9486
  %10306 = vmatprep.subr.mxu0 0.0
  %10307 = vmatpush2.msra.mxu0 %v9484
  %10308 = vmatprep.subr.mxu0 0.0
  %10309 = vmatpush2.msra.mxu0 %v9482
  %10310 = vmatprep.subr.mxu0 0.0
  %10311 = vmatpush2.msra.mxu0 %v9480
  %10312 = vmatprep.subr.mxu0 0.0
  %10313 = vmatpush2.msra.mxu0 %v9478
  %10314 = vmatprep.subr.mxu0 0.0
  %10315 = vmatpush2.msra.mxu0 %v9476
  %10316 = vmatprep.subr.mxu0 0.0
  %10317 = vmatpush2.msra.mxu0 %v9474
  %10318 = vmatprep.subr.mxu0 0.0
  %10319 = vmatpush2.msra.mxu0 %v9472
  %10320 = vmatprep.subr.mxu0 0.0
  %10321 = vmatpush2.msra.mxu0 %v9470
  %10322 = vmatprep.subr.mxu0 0.0
  %10323 = vmatpush2.msra.mxu0 %v9468
  %10324 = vmatprep.subr.mxu0 0.0
  %10325 = vmatpush2.msra.mxu0 %v9466
  %10326 = vmatprep.subr.mxu0 0.0
  %10327 = vmatpush2.msra.mxu0 %v9464
  %10328 = vmatprep.subr.mxu0 0.0
  %10329 = vmatpush2.msra.mxu0 %v9462
  %10330 = vmatprep.mubr.f32.mxu0 %v8658
  %10331 = vmatmul.mubr.f32.gmra.mxu0 %v8657
  %v10332 = vpop.f32.mrf.mxu0
  %v10333 = vadd.f32 %v10248, %v10332
  %v10334 = vpop.f32.mrf.mxu0
  %10335 = vmatprep.mubr.f32.mxu0 %v8674
  %10336 = vmatmul.mubr.f32.gmra.mxu0 %v8673
  %v10337 = vpop.f32.mrf.mxu0
  %v10338 = vadd.f32 %v10253, %v10337
  %v10339 = vpop.f32.mrf.mxu0
  %10340 = vmatprep.mubr.f32.mxu0 %v8690
  %10341 = vmatmul.mubr.f32.gmra.mxu0 %v8689
  %v10342 = vpop.f32.mrf.mxu0
  %v10343 = vadd.f32 %v10258, %v10342
  %v10344 = vpop.f32.mrf.mxu0
  %10345 = vmatprep.mubr.f32.mxu0 %v8706
  %10346 = vmatmul.mubr.f32.gmra.mxu0 %v8705
  %v10347 = vpop.f32.mrf.mxu0
  %v10348 = vadd.f32 %v10263, %v10347
  %v10349 = vpop.f32.mrf.mxu0
  %10350 = vdwg.mxu0
  %10351 = vmatprep.subr.mxu0 0.0
  %10352 = vmatpush1.msra.mxu0 %v9524
  %10353 = vmatprep.subr.mxu0 0.0
  %10354 = vmatpush1.msra.mxu0 %v9522
  %10355 = vmatprep.subr.mxu0 0.0
  %10356 = vmatpush1.msra.mxu0 %v9520
  %10357 = vmatprep.subr.mxu0 0.0
  %10358 = vmatpush1.msra.mxu0 %v9518
  %10359 = vmatprep.subr.mxu0 0.0
  %10360 = vmatpush1.msra.mxu0 %v9516
  %10361 = vmatprep.subr.mxu0 0.0
  %10362 = vmatpush1.msra.mxu0 %v9514
  %10363 = vmatprep.subr.mxu0 0.0
  %10364 = vmatpush1.msra.mxu0 %v9512
  %10365 = vmatprep.subr.mxu0 0.0
  %10366 = vmatpush1.msra.mxu0 %v9510
  %10367 = vmatprep.subr.mxu0 0.0
  %10368 = vmatpush1.msra.mxu0 %v9508
  %10369 = vmatprep.subr.mxu0 0.0
  %10370 = vmatpush1.msra.mxu0 %v9506
  %10371 = vmatprep.subr.mxu0 0.0
  %10372 = vmatpush1.msra.mxu0 %v9504
  %10373 = vmatprep.subr.mxu0 0.0
  %10374 = vmatpush1.msra.mxu0 %v9502
  %10375 = vmatprep.subr.mxu0 0.0
  %10376 = vmatpush1.msra.mxu0 %v9500
  %10377 = vmatprep.subr.mxu0 0.0
  %10378 = vmatpush1.msra.mxu0 %v9498
  %10379 = vmatprep.subr.mxu0 0.0
  %10380 = vmatpush1.msra.mxu0 %v9496
  %10381 = vmatprep.subr.mxu0 0.0
  %10382 = vmatpush1.msra.mxu0 %v9494
  %10383 = vmatprep.subr.mxu0 0.0
  %10384 = vmatpush2.msra.mxu0 %v9556
  %10385 = vmatprep.subr.mxu0 0.0
  %10386 = vmatpush2.msra.mxu0 %v9554
  %10387 = vmatprep.subr.mxu0 0.0
  %10388 = vmatpush2.msra.mxu0 %v9552
  %10389 = vmatprep.subr.mxu0 0.0
  %10390 = vmatpush2.msra.mxu0 %v9550
  %10391 = vmatprep.subr.mxu0 0.0
  %10392 = vmatpush2.msra.mxu0 %v9548
  %10393 = vmatprep.subr.mxu0 0.0
  %10394 = vmatpush2.msra.mxu0 %v9546
  %10395 = vmatprep.subr.mxu0 0.0
  %10396 = vmatpush2.msra.mxu0 %v9544
  %10397 = vmatprep.subr.mxu0 0.0
  %10398 = vmatpush2.msra.mxu0 %v9542
  %10399 = vmatprep.subr.mxu0 0.0
  %10400 = vmatpush2.msra.mxu0 %v9540
  %10401 = vmatprep.subr.mxu0 0.0
  %10402 = vmatpush2.msra.mxu0 %v9538
  %10403 = vmatprep.subr.mxu0 0.0
  %10404 = vmatpush2.msra.mxu0 %v9536
  %10405 = vmatprep.subr.mxu0 0.0
  %10406 = vmatpush2.msra.mxu0 %v9534
  %10407 = vmatprep.subr.mxu0 0.0
  %10408 = vmatpush2.msra.mxu0 %v9532
  %10409 = vmatprep.subr.mxu0 0.0
  %10410 = vmatpush2.msra.mxu0 %v9530
  %10411 = vmatprep.subr.mxu0 0.0
  %10412 = vmatpush2.msra.mxu0 %v9528
  %10413 = vmatprep.subr.mxu0 0.0
  %10414 = vmatpush2.msra.mxu0 %v9526
  %10415 = vmatprep.mubr.f32.mxu0 %v8660
  %10416 = vmatmul.mubr.f32.gmra.mxu0 %v8659
  %v10417 = vpop.f32.mrf.mxu0
  %v10418 = vadd.f32 %v10333, %v10417
  %v10419 = vpop.f32.mrf.mxu0
  %10420 = vmatprep.mubr.f32.mxu0 %v8676
  %10421 = vmatmul.mubr.f32.gmra.mxu0 %v8675
  %v10422 = vpop.f32.mrf.mxu0
  %v10423 = vadd.f32 %v10338, %v10422
  %v10424 = vpop.f32.mrf.mxu0
  %10425 = vmatprep.mubr.f32.mxu0 %v8692
  %10426 = vmatmul.mubr.f32.gmra.mxu0 %v8691
  %v10427 = vpop.f32.mrf.mxu0
  %v10428 = vadd.f32 %v10343, %v10427
  %v10429 = vpop.f32.mrf.mxu0
  %10430 = vmatprep.mubr.f32.mxu0 %v8708
  %10431 = vmatmul.mubr.f32.gmra.mxu0 %v8707
  %v10432 = vpop.f32.mrf.mxu0
  %v10433 = vadd.f32 %v10348, %v10432
  %v10434 = vpop.f32.mrf.mxu0
  %10435 = vdwg.mxu0
  %10436 = vmatprep.subr.mxu0 0.0
  %10437 = vmatpush1.msra.mxu0 %v9588
  %10438 = vmatprep.subr.mxu0 0.0
  %10439 = vmatpush1.msra.mxu0 %v9586
  %10440 = vmatprep.subr.mxu0 0.0
  %10441 = vmatpush1.msra.mxu0 %v9584
  %10442 = vmatprep.subr.mxu0 0.0
  %10443 = vmatpush1.msra.mxu0 %v9582
  %10444 = vmatprep.subr.mxu0 0.0
  %10445 = vmatpush1.msra.mxu0 %v9580
  %10446 = vmatprep.subr.mxu0 0.0
  %10447 = vmatpush1.msra.mxu0 %v9578
  %10448 = vmatprep.subr.mxu0 0.0
  %10449 = vmatpush1.msra.mxu0 %v9576
  %10450 = vmatprep.subr.mxu0 0.0
  %10451 = vmatpush1.msra.mxu0 %v9574
  %10452 = vmatprep.subr.mxu0 0.0
  %10453 = vmatpush1.msra.mxu0 %v9572
  %10454 = vmatprep.subr.mxu0 0.0
  %10455 = vmatpush1.msra.mxu0 %v9570
  %10456 = vmatprep.subr.mxu0 0.0
  %10457 = vmatpush1.msra.mxu0 %v9568
  %10458 = vmatprep.subr.mxu0 0.0
  %10459 = vmatpush1.msra.mxu0 %v9566
  %10460 = vmatprep.subr.mxu0 0.0
  %10461 = vmatpush1.msra.mxu0 %v9564
  %10462 = vmatprep.subr.mxu0 0.0
  %10463 = vmatpush1.msra.mxu0 %v9562
  %10464 = vmatprep.subr.mxu0 0.0
  %10465 = vmatpush1.msra.mxu0 %v9560
  %10466 = vmatprep.subr.mxu0 0.0
  %10467 = vmatpush1.msra.mxu0 %v9558
  %10468 = vmatprep.subr.mxu0 0.0
  %10469 = vmatpush2.msra.mxu0 %v9620
  %10470 = vmatprep.subr.mxu0 0.0
  %10471 = vmatpush2.msra.mxu0 %v9618
  %10472 = vmatprep.subr.mxu0 0.0
  %10473 = vmatpush2.msra.mxu0 %v9616
  %10474 = vmatprep.subr.mxu0 0.0
  %10475 = vmatpush2.msra.mxu0 %v9614
  %10476 = vmatprep.subr.mxu0 0.0
  %10477 = vmatpush2.msra.mxu0 %v9612
  %10478 = vmatprep.subr.mxu0 0.0
  %10479 = vmatpush2.msra.mxu0 %v9610
  %10480 = vmatprep.subr.mxu0 0.0
  %10481 = vmatpush2.msra.mxu0 %v9608
  %10482 = vmatprep.subr.mxu0 0.0
  %10483 = vmatpush2.msra.mxu0 %v9606
  %10484 = vmatprep.subr.mxu0 0.0
  %10485 = vmatpush2.msra.mxu0 %v9604
  %10486 = vmatprep.subr.mxu0 0.0
  %10487 = vmatpush2.msra.mxu0 %v9602
  %10488 = vmatprep.subr.mxu0 0.0
  %10489 = vmatpush2.msra.mxu0 %v9600
  %10490 = vmatprep.subr.mxu0 0.0
  %10491 = vmatpush2.msra.mxu0 %v9598
  %10492 = vmatprep.subr.mxu0 0.0
  %10493 = vmatpush2.msra.mxu0 %v9596
  %10494 = vmatprep.subr.mxu0 0.0
  %10495 = vmatpush2.msra.mxu0 %v9594
  %10496 = vmatprep.subr.mxu0 0.0
  %10497 = vmatpush2.msra.mxu0 %v9592
  %10498 = vmatprep.subr.mxu0 0.0
  %10499 = vmatpush2.msra.mxu0 %v9590
  %10500 = vmatprep.mubr.f32.mxu0 %v8662
  %10501 = vmatmul.mubr.f32.gmra.mxu0 %v8661
  %v10502 = vpop.f32.mrf.mxu0
  %v10503 = vadd.f32 %v10418, %v10502
  %v10504 = vpop.f32.mrf.mxu0
  %10505 = vmatprep.mubr.f32.mxu0 %v8678
  %10506 = vmatmul.mubr.f32.gmra.mxu0 %v8677
  %v10507 = vpop.f32.mrf.mxu0
  %v10508 = vadd.f32 %v10423, %v10507
  %v10509 = vpop.f32.mrf.mxu0
  %10510 = vmatprep.mubr.f32.mxu0 %v8694
  %10511 = vmatmul.mubr.f32.gmra.mxu0 %v8693
  %v10512 = vpop.f32.mrf.mxu0
  %v10513 = vadd.f32 %v10428, %v10512
  %v10514 = vpop.f32.mrf.mxu0
  %10515 = vmatprep.mubr.f32.mxu0 %v8710
  %10516 = vmatmul.mubr.f32.gmra.mxu0 %v8709
  %v10517 = vpop.f32.mrf.mxu0
  %v10518 = vadd.f32 %v10433, %v10517
  %v10519 = vpop.f32.mrf.mxu0
  %10520 = vdwg.mxu0
  %10521 = vmatprep.subr.mxu0 0.0
  %10522 = vmatpush1.msra.mxu0 %v9652
  %10523 = vmatprep.subr.mxu0 0.0
  %10524 = vmatpush1.msra.mxu0 %v9650
  %10525 = vmatprep.subr.mxu0 0.0
  %10526 = vmatpush1.msra.mxu0 %v9648
  %10527 = vmatprep.subr.mxu0 0.0
  %10528 = vmatpush1.msra.mxu0 %v9646
  %10529 = vmatprep.subr.mxu0 0.0
  %10530 = vmatpush1.msra.mxu0 %v9644
  %10531 = vmatprep.subr.mxu0 0.0
  %10532 = vmatpush1.msra.mxu0 %v9642
  %10533 = vmatprep.subr.mxu0 0.0
  %10534 = vmatpush1.msra.mxu0 %v9640
  %10535 = vmatprep.subr.mxu0 0.0
  %10536 = vmatpush1.msra.mxu0 %v9638
  %10537 = vmatprep.subr.mxu0 0.0
  %10538 = vmatpush1.msra.mxu0 %v9636
  %10539 = vmatprep.subr.mxu0 0.0
  %10540 = vmatpush1.msra.mxu0 %v9634
  %10541 = vmatprep.subr.mxu0 0.0
  %10542 = vmatpush1.msra.mxu0 %v9632
  %10543 = vmatprep.subr.mxu0 0.0
  %10544 = vmatpush1.msra.mxu0 %v9630
  %10545 = vmatprep.subr.mxu0 0.0
  %10546 = vmatpush1.msra.mxu0 %v9628
  %10547 = vmatprep.subr.mxu0 0.0
  %10548 = vmatpush1.msra.mxu0 %v9626
  %10549 = vmatprep.subr.mxu0 0.0
  %10550 = vmatpush1.msra.mxu0 %v9624
  %10551 = vmatprep.subr.mxu0 0.0
  %10552 = vmatpush1.msra.mxu0 %v9622
  %10553 = vmatprep.subr.mxu0 0.0
  %10554 = vmatpush2.msra.mxu0 %v9684
  %10555 = vmatprep.subr.mxu0 0.0
  %10556 = vmatpush2.msra.mxu0 %v9682
  %10557 = vmatprep.subr.mxu0 0.0
  %10558 = vmatpush2.msra.mxu0 %v9680
  %10559 = vmatprep.subr.mxu0 0.0
  %10560 = vmatpush2.msra.mxu0 %v9678
  %10561 = vmatprep.subr.mxu0 0.0
  %10562 = vmatpush2.msra.mxu0 %v9676
  %10563 = vmatprep.subr.mxu0 0.0
  %10564 = vmatpush2.msra.mxu0 %v9674
  %10565 = vmatprep.subr.mxu0 0.0
  %10566 = vmatpush2.msra.mxu0 %v9672
  %10567 = vmatprep.subr.mxu0 0.0
  %10568 = vmatpush2.msra.mxu0 %v9670
  %10569 = vmatprep.subr.mxu0 0.0
  %10570 = vmatpush2.msra.mxu0 %v9668
  %10571 = vmatprep.subr.mxu0 0.0
  %10572 = vmatpush2.msra.mxu0 %v9666
  %10573 = vmatprep.subr.mxu0 0.0
  %10574 = vmatpush2.msra.mxu0 %v9664
  %10575 = vmatprep.subr.mxu0 0.0
  %10576 = vmatpush2.msra.mxu0 %v9662
  %10577 = vmatprep.subr.mxu0 0.0
  %10578 = vmatpush2.msra.mxu0 %v9660
  %10579 = vmatprep.subr.mxu0 0.0
  %10580 = vmatpush2.msra.mxu0 %v9658
  %10581 = vmatprep.subr.mxu0 0.0
  %10582 = vmatpush2.msra.mxu0 %v9656
  %10583 = vmatprep.subr.mxu0 0.0
  %10584 = vmatpush2.msra.mxu0 %v9654
  %10585 = vmatprep.mubr.f32.mxu0 %v8664
  %10586 = vmatmul.mubr.f32.gmra.mxu0 %v8663
  %v10587 = vpop.f32.mrf.mxu0
  %v10588 = vadd.f32 %v10503, %v10587
  %v10589 = vpop.f32.mrf.mxu0
  %10590 = vmatprep.mubr.f32.mxu0 %v8680
  %10591 = vmatmul.mubr.f32.gmra.mxu0 %v8679
  %v10592 = vpop.f32.mrf.mxu0
  %v10593 = vadd.f32 %v10508, %v10592
  %v10594 = vpop.f32.mrf.mxu0
  %10595 = vmatprep.mubr.f32.mxu0 %v8696
  %10596 = vmatmul.mubr.f32.gmra.mxu0 %v8695
  %v10597 = vpop.f32.mrf.mxu0
  %v10598 = vadd.f32 %v10513, %v10597
  %v10599 = vpop.f32.mrf.mxu0
  %10600 = vmatprep.mubr.f32.mxu0 %v8712
  %10601 = vmatmul.mubr.f32.gmra.mxu0 %v8711
  %v10602 = vpop.f32.mrf.mxu0
  %v10603 = vadd.f32 %v10518, %v10602
  %v10604 = vpop.f32.mrf.mxu0
  %10605 = vdwg.mxu0
  %10606 = vmatprep.subr.mxu0 0.0
  %10607 = vmatpush1.msra.mxu0 %v9716
  %10608 = vmatprep.subr.mxu0 0.0
  %10609 = vmatpush1.msra.mxu0 %v9714
  %10610 = vmatprep.subr.mxu0 0.0
  %10611 = vmatpush1.msra.mxu0 %v9712
  %10612 = vmatprep.subr.mxu0 0.0
  %10613 = vmatpush1.msra.mxu0 %v9710
  %10614 = vmatprep.subr.mxu0 0.0
  %10615 = vmatpush1.msra.mxu0 %v9708
  %10616 = vmatprep.subr.mxu0 0.0
  %10617 = vmatpush1.msra.mxu0 %v9706
  %10618 = vmatprep.subr.mxu0 0.0
  %10619 = vmatpush1.msra.mxu0 %v9704
  %10620 = vmatprep.subr.mxu0 0.0
  %10621 = vmatpush1.msra.mxu0 %v9702
  %10622 = vmatprep.subr.mxu0 0.0
  %10623 = vmatpush1.msra.mxu0 %v9700
  %10624 = vmatprep.subr.mxu0 0.0
  %10625 = vmatpush1.msra.mxu0 %v9698
  %10626 = vmatprep.subr.mxu0 0.0
  %10627 = vmatpush1.msra.mxu0 %v9696
  %10628 = vmatprep.subr.mxu0 0.0
  %10629 = vmatpush1.msra.mxu0 %v9694
  %10630 = vmatprep.subr.mxu0 0.0
  %10631 = vmatpush1.msra.mxu0 %v9692
  %10632 = vmatprep.subr.mxu0 0.0
  %10633 = vmatpush1.msra.mxu0 %v9690
  %10634 = vmatprep.subr.mxu0 0.0
  %10635 = vmatpush1.msra.mxu0 %v9688
  %10636 = vmatprep.subr.mxu0 0.0
  %10637 = vmatpush1.msra.mxu0 %v9686
  %10638 = vmatprep.subr.mxu0 0.0
  %10639 = vmatpush2.msra.mxu0 %v9748
  %10640 = vmatprep.subr.mxu0 0.0
  %10641 = vmatpush2.msra.mxu0 %v9746
  %10642 = vmatprep.subr.mxu0 0.0
  %10643 = vmatpush2.msra.mxu0 %v9744
  %10644 = vmatprep.subr.mxu0 0.0
  %10645 = vmatpush2.msra.mxu0 %v9742
  %10646 = vmatprep.subr.mxu0 0.0
  %10647 = vmatpush2.msra.mxu0 %v9740
  %10648 = vmatprep.subr.mxu0 0.0
  %10649 = vmatpush2.msra.mxu0 %v9738
  %10650 = vmatprep.subr.mxu0 0.0
  %10651 = vmatpush2.msra.mxu0 %v9736
  %10652 = vmatprep.subr.mxu0 0.0
  %10653 = vmatpush2.msra.mxu0 %v9734
  %10654 = vmatprep.subr.mxu0 0.0
  %10655 = vmatpush2.msra.mxu0 %v9732
  %10656 = vmatprep.subr.mxu0 0.0
  %10657 = vmatpush2.msra.mxu0 %v9730
  %10658 = vmatprep.subr.mxu0 0.0
  %10659 = vmatpush2.msra.mxu0 %v9728
  %10660 = vmatprep.subr.mxu0 0.0
  %10661 = vmatpush2.msra.mxu0 %v9726
  %10662 = vmatprep.subr.mxu0 0.0
  %10663 = vmatpush2.msra.mxu0 %v9724
  %10664 = vmatprep.subr.mxu0 0.0
  %10665 = vmatpush2.msra.mxu0 %v9722
  %10666 = vmatprep.subr.mxu0 0.0
  %10667 = vmatpush2.msra.mxu0 %v9720
  %10668 = vmatprep.subr.mxu0 0.0
  %10669 = vmatpush2.msra.mxu0 %v9718
  %10670 = vmatprep.mubr.f32.mxu0 %v8666
  %10671 = vmatmul.mubr.f32.gmra.mxu0 %v8665
  %v10672 = vpop.f32.mrf.mxu0
  %v10673 = vadd.f32 %v10588, %v10672
  %v10674 = vpop.f32.mrf.mxu0
  %10675 = vmatprep.mubr.f32.mxu0 %v8682
  %10676 = vmatmul.mubr.f32.gmra.mxu0 %v8681
  %v10677 = vpop.f32.mrf.mxu0
  %v10678 = vadd.f32 %v10593, %v10677
  %v10679 = vpop.f32.mrf.mxu0
  %10680 = vmatprep.mubr.f32.mxu0 %v8698
  %10681 = vmatmul.mubr.f32.gmra.mxu0 %v8697
  %v10682 = vpop.f32.mrf.mxu0
  %v10683 = vadd.f32 %v10598, %v10682
  %v10684 = vpop.f32.mrf.mxu0
  %10685 = vmatprep.mubr.f32.mxu0 %v8714
  %10686 = vmatmul.mubr.f32.gmra.mxu0 %v8713
  %v10687 = vpop.f32.mrf.mxu0
  %v10688 = vadd.f32 %v10603, %v10687
  %v10689 = vpop.f32.mrf.mxu0
  %10690 = vdwg.mxu0
  %v10691 = vld [vmem:[%s5 + $0x26] sm:$0x1]
  %v10692 = vadd.f32 %v7775, %v10673
  %v10693 = vadd.f32 %v7776, %v10678
  %v10694 = vadd.f32 %v7777, %v10683
  %v10695 = vadd.f32 %v7778, %v10688
  %v10696 = vsel %vm39, %v10692, 0.0
  %10697 = vadd.xlane.f32.xlu0 %v10696
  %v10698 = vpop.xlane.xlu0 %10697
  %v10699 = vsel %vm39, %v10693, 0.0
  %10700 = vadd.xlane.f32.xlu0 %v10699
  %v10701 = vpop.xlane.xlu0 %10700
  %v10702 = vsel %vm39, %v10694, 0.0
  %10703 = vadd.xlane.f32.xlu0 %v10702
  %v10704 = vpop.xlane.xlu0 %10703
  %v10705 = vsel %vm39, %v10695, 0.0
  %10706 = vadd.xlane.f32.xlu0 %v10705
  %v10707 = vpop.xlane.xlu0 %10706
  %v10708 = vmul.f32 %v10698, %v1599
  %v10709 = vmul.f32 %v10701, %v1599
  %v10710 = vmul.f32 %v10704, %v1599
  %v10711 = vmul.f32 %v10707, %v1599
  %v10712 = vsub.f32 %v10692, %v10708
  %v10713 = vsub.f32 %v10693, %v10709
  %v10714 = vsub.f32 %v10694, %v10710
  %v10715 = vsub.f32 %v10695, %v10711
  %v10716 = vmul.f32 %v10712, %v10712
  %v10717 = vmul.f32 %v10713, %v10713
  %v10718 = vmul.f32 %v10714, %v10714
  %v10719 = vmul.f32 %v10715, %v10715
  %v10720 = vsel %vm39, %v10716, 0.0
  %10721 = vadd.xlane.f32.xlu0 %v10720
  %v10722 = vpop.xlane.xlu0 %10721
  %v10723 = vsel %vm39, %v10717, 0.0
  %10724 = vadd.xlane.f32.xlu0 %v10723
  %v10725 = vpop.xlane.xlu0 %10724
  %v10726 = vsel %vm39, %v10718, 0.0
  %10727 = vadd.xlane.f32.xlu0 %v10726
  %v10728 = vpop.xlane.xlu0 %10727
  %v10729 = vsel %vm39, %v10719, 0.0
  %10730 = vadd.xlane.f32.xlu0 %v10729
  %v10731 = vpop.xlane.xlu0 %10730
  %v10732 = vmul.f32 %v10722, %v1599
  %v10733 = vmul.f32 %v10725, %v1599
  %v10734 = vmul.f32 %v10728, %v1599
  %v10735 = vmul.f32 %v10731, %v1599
  %v10736 = vadd.f32 %v10732, 1e-05
  %v10737 = vadd.f32 %v10733, 1e-05
  %v10738 = vadd.f32 %v10734, 1e-05
  %v10739 = vadd.f32 %v10735, 1e-05
  %v10740 = vrsqrt.pop %v10736
  %v10741 = vrsqrt.pop %v10737
  %v10742 = vrsqrt.pop %v10738
  %v10743 = vrsqrt.pop %v10739
  %v10744 = vmul.f32 %v10712, %v10740
  %v10745 = vmul.f32 %v10713, %v10741
  %v10746 = vmul.f32 %v10714, %v10742
  %v10747 = vmul.f32 %v10715, %v10743
  %v10749 = vlaneseq
  %v10750 = vshrl.u32 %v10749, 7
  %v10751 = vsub.s32 0, %v10750
  %v10752 = vrot.slane %v10691, %v10751
  %10753 = vrot.lane.b32.xlu0 %v10752, 126
  %v10754 = vpop.permute.xlu0 %10753
  %v10756 = vmul.f32 %v10744, %v10754
  %v10757 = vmul.f32 %v10745, %v10754
  %v10758 = vmul.f32 %v10746, %v10754
  %v10759 = vmul.f32 %v10747, %v10754
  %10760 = vrot.lane.b32.xlu0 %v10752, 94
  %v10761 = vpop.permute.xlu0 %10760
  %v10763 = vadd.f32 %v10756, %v10761
  %v10764 = vadd.f32 %v10757, %v10761
  %v10765 = vadd.f32 %v10758, %v10761
  %v10766 = vadd.f32 %v10759, %v10761
  %10767 = vrot.lane.b32.xlu0 %v7583, 62
  %v10768 = vpop.permute.xlu0 %10767
  %10769 = vrot.lane.b32.xlu0 %v7584, 62
  %v10770 = vpop.permute.xlu0 %10769
  %10771 = vrot.lane.b32.xlu0 %v7585, 62
  %v10772 = vpop.permute.xlu0 %10771
  %10773 = vrot.lane.b32.xlu0 %v7586, 62
  %v10774 = vpop.permute.xlu0 %10773
  %10779 = vrot.lane.b32.xlu0 %v10752, 62
  %v10780 = vpop.permute.xlu0 %10779
  %v10783 = vsel %vm39, %v10763, 0
  %v10786 = vsel %vm39, %v10764, 0
  %v10789 = vsel %vm39, %v10765, 0
  %v10792 = vsel %vm39, %v10766, 0
  %10794 = vmatprep.subr.mxu0 0.0
  %10795 = vmatpush1.msra.mxu0 0.0
  %10796 = vmatprep.subr.mxu0 0.0
  %10797 = vmatpush1.msra.mxu0 0.0
  %10798 = vmatprep.subr.mxu0 0.0
  %10799 = vmatpush1.msra.mxu0 0.0
  %10800 = vmatprep.subr.mxu0 0.0
  %10801 = vmatpush1.msra.mxu0 0.0
  %10802 = vmatprep.subr.mxu0 0.0
  %10803 = vmatpush1.msra.mxu0 0.0
  %10804 = vmatprep.subr.mxu0 0.0
  %10805 = vmatpush1.msra.mxu0 0.0
  %10806 = vmatprep.subr.mxu0 0.0
  %10807 = vmatpush1.msra.mxu0 0.0
  %10808 = vmatprep.subr.mxu0 0.0
  %10809 = vmatpush1.msra.mxu0 0.0
  %10810 = vmatprep.subr.mxu0 0.0
  %10811 = vmatpush1.msra.mxu0 0.0
  %10812 = vmatprep.subr.mxu0 0.0
  %10813 = vmatpush1.msra.mxu0 0.0
  %10814 = vmatprep.subr.mxu0 0.0
  %10815 = vmatpush1.msra.mxu0 0.0
  %10816 = vmatprep.subr.mxu0 0.0
  %10817 = vmatpush1.msra.mxu0 0.0
  %10818 = vmatprep.subr.mxu0 0.0
  %10819 = vmatpush1.msra.mxu0 %v10774
  %10820 = vmatprep.subr.mxu0 0.0
  %10821 = vmatpush1.msra.mxu0 %v10772
  %10822 = vmatprep.subr.mxu0 0.0
  %10823 = vmatpush1.msra.mxu0 %v10770
  %10824 = vmatprep.subr.mxu0 0.0
  %10825 = vmatpush1.msra.mxu0 %v10768
  %10826 = vmatprep.subr.mxu0 0.0
  %10827 = vmatpush2.msra.mxu0 0.0
  %10828 = vmatprep.subr.mxu0 0.0
  %10829 = vmatpush2.msra.mxu0 0.0
  %10830 = vmatprep.subr.mxu0 0.0
  %10831 = vmatpush2.msra.mxu0 0.0
  %10832 = vmatprep.subr.mxu0 0.0
  %10833 = vmatpush2.msra.mxu0 0.0
  %10834 = vmatprep.subr.mxu0 0.0
  %10835 = vmatpush2.msra.mxu0 0.0
  %10836 = vmatprep.subr.mxu0 0.0
  %10837 = vmatpush2.msra.mxu0 0.0
  %10838 = vmatprep.subr.mxu0 0.0
  %10839 = vmatpush2.msra.mxu0 0.0
  %10840 = vmatprep.subr.mxu0 0.0
  %10841 = vmatpush2.msra.mxu0 0.0
  %10842 = vmatprep.subr.mxu0 0.0
  %10843 = vmatpush2.msra.mxu0 0.0
  %10844 = vmatprep.subr.mxu0 0.0
  %10845 = vmatpush2.msra.mxu0 0.0
  %10846 = vmatprep.subr.mxu0 0.0
  %10847 = vmatpush2.msra.mxu0 0.0
  %10848 = vmatprep.subr.mxu0 0.0
  %10849 = vmatpush2.msra.mxu0 0.0
  %10850 = vmatprep.subr.mxu0 0.0
  %10851 = vmatpush2.msra.mxu0 0.0
  %10852 = vmatprep.subr.mxu0 0.0
  %10853 = vmatpush2.msra.mxu0 0.0
  %10854 = vmatprep.subr.mxu0 0.0
  %10855 = vmatpush2.msra.mxu0 0.0
  %10856 = vmatprep.subr.mxu0 0.0
  %10857 = vmatpush2.msra.mxu0 0.0
  %10858 = vmatprep.mubr.f32.mxu0 0.0
  %10859 = vmatmul.mubr.f32.gmra.mxu0 %v10783
  %v10860 = vpop.f32.mrf.mxu0
  %v10861 = vadd.f32 %v10780, %v10860
  %v10862 = vpop.f32.mrf.mxu0
  %10863 = vmatprep.mubr.f32.mxu0 0.0
  %10864 = vmatmul.mubr.f32.gmra.mxu0 %v10786
  %v10865 = vpop.f32.mrf.mxu0
  %v10866 = vadd.f32 %v10780, %v10865
  %v10867 = vpop.f32.mrf.mxu0
  %10868 = vmatprep.mubr.f32.mxu0 0.0
  %10869 = vmatmul.mubr.f32.gmra.mxu0 %v10789
  %v10870 = vpop.f32.mrf.mxu0
  %v10871 = vadd.f32 %v10780, %v10870
  %v10872 = vpop.f32.mrf.mxu0
  %10873 = vmatprep.mubr.f32.mxu0 0.0
  %10874 = vmatmul.mubr.f32.gmra.mxu0 %v10792
  %v10875 = vpop.f32.mrf.mxu0
  %v10876 = vadd.f32 %v10780, %v10875
  %v10877 = vpop.f32.mrf.mxu0
  %10878 = vdwg.mxu0
  %10879 = vst.msk [vmem:[%s6] sm:$0xff] %vm1474, %v10861
  %10880 = vst.msk [vmem:[%s6 + $0x8] sm:$0xff] %vm1474, %v10866
  %10881 = vst.msk [vmem:[%s6 + $0x10] sm:$0xff] %vm1474, %v10871
  %10882 = vst.msk [vmem:[%s6 + $0x18] sm:$0xff] %vm1474, %v10876
  // Predicated region
  $region26: #{_lambda_.1} parent=0 // pred_check
    _
  $region27: #{_lambda_.1} parent=0 // pred_check_branch
    %10884 = sbr.rel (0) target = $region29
  $region28: #{_lambda_.1} parent=0 // pred_region
    _
  $region29: #{_lambda_.1} parent=0 // pred_fallthru
    _
  // Predicated region
  $region30: #{_lambda_.1} parent=0 // pred_check
    _
  $region31: #{_lambda_.1} parent=0 // pred_check_branch
    %10886 = sbr.rel (0) target = $region33
  $region32: #{_lambda_.1} parent=0 // pred_region
    _
  $region33: #{_lambda_.1} parent=0 // pred_fallthru
    _

</llo_original>
